<compile_context>
chip_gen: v7x
topology: tpu7x:2x2x1
jax: 0.10.0
libtpu: 0.0.40
codegen_flags: <defaults>
</compile_context>

<pallas_src>
import functools
import math

import numpy as np

import jax
import jax.numpy as jnp
from jax.experimental import pallas as pl
from jax.experimental.pallas import tpu as pltpu

# ------------------------- static model configuration (config dict equivalent) -------------------
BATCH = 2
IN_CHANNELS = 4
SEQ_LEN = 16            # config['data']['seq_len']
EMBED_DIM = 32          # config['model']['embed_dim']
NUM_HEADS = (2, 2)      # config['model']['num_heads']
DEPTHS = (1, 1)         # config['model']['depths']
DIM_MULTS = (1, 2)      # config['model']['dim_mults']
MLP_RATIO = 2.0         # config['model']['mlp_ratio']
WINDOW_SIZE = min(4, SEQ_LEN // 2 ** (len(DEPTHS) - 1))   # = 4
DIM_KEY = 64
LN_EPS = 1e-5
REL_WIDTH = 2 * WINDOW_SIZE - 1                            # 7 relative offsets per window
NEG_INF = -1e30

DIMS_DOWN = [EMBED_DIM * m for m in DIM_MULTS]             # [32, 64]

assert SEQ_LEN % (2 * WINDOW_SIZE) == 0


# ------------------------------------ host-side constant builders --------------------------------

def get_positional_embed(seq_len, feature_size):
    # TODO(synk): the original get_positional_embed (Enformer-style basis features) is not in the
    # provided source; a deterministic sinusoidal relative-distance embedding with the identical
    # shape (2*seq_len - 1, feature_size) is used instead.
    dist = np.arange(-(seq_len - 1), seq_len, dtype=np.float32)
    half = max(feature_size // 2, 1)
    freqs = np.exp(-math.log(10000.0) * np.arange(half, dtype=np.float32) / half)
    ang = dist[:, None] * freqs[None, :]
    emb = np.concatenate([np.sin(ang), np.cos(ang)], axis=-1)[:, :feature_size]
    return emb.astype(np.float32)


def sinusoidal_pe(max_len, d_model):
    pos = np.arange(max_len, dtype=np.float32)[:, None]
    div = np.exp(np.arange(0, d_model, 2, dtype=np.float32) * (-math.log(10000.0) / d_model))
    pe = np.zeros((max_len, d_model), np.float32)
    pe[:, 0::2] = np.sin(pos * div)
    pe[:, 1::2] = np.cos(pos * div)
    return pe


def _build_masks(rows):
    """(8*rows, rows) f32: row-block 0 = additive window mask (0 in-window, -1e30 outside);
    row-blocks 1..7 = one-hot masks for relative offset r-(ws-1) inside a window."""
    ws = WINDOW_SIZE
    idx = np.arange(rows)
    same = (idx[:, None] // ws) == (idx[None, :] // ws)
    rel = idx[None, :] - idx[:, None]
    parts = [np.where(same, 0.0, NEG_INF).astype(np.float32)]
    for r in range(REL_WIDTH):
        parts.append((same & (rel == (r - (ws - 1)))).astype(np.float32))
    return np.concatenate(parts, axis=0)


def _merge_sel(rows):
    """(rows, rows) f32: top half selects even rows, bottom half selects odd rows."""
    half = rows // 2
    se = np.zeros((half, rows), np.float32)
    so = np.zeros((half, rows), np.float32)
    se[np.arange(half), 2 * np.arange(half)] = 1.0
    so[np.arange(half), 2 * np.arange(half) + 1] = 1.0
    return np.concatenate([se, so], axis=0)


def _expand_sel(rows_in):
    """(4*rows_in, rows_in) f32: [Ue; Uo] where Ue scatters src rows to even dest rows and
    Uo scatters src rows to odd dest rows (PatchExpand row interleave)."""
    rows_out = 2 * rows_in
    ue = np.zeros((rows_out, rows_in), np.float32)
    uo = np.zeros((rows_out, rows_in), np.float32)
    ue[2 * np.arange(rows_in), np.arange(rows_in)] = 1.0
    uo[2 * np.arange(rows_in) + 1, np.arange(rows_in)] = 1.0
    return np.concatenate([ue, uo], axis=0)


class _SlabPacker:
    """Packs many small matrices (all with the same row count) into one lane-dense slab,
    each matrix in a 128-lane-aligned column slot."""

    def __init__(self, rows):
        self.rows = rows
        self.cols = 0
        self.parts = []

    def add(self, arr):
        arr = np.asarray(arr, np.float32)
        assert arr.ndim == 2 and arr.shape[0] == self.rows, arr.shape
        c = arr.shape[1]
        slot = ((c + 127) // 128) * 128
        buf = np.zeros((self.rows, slot), np.float32)
        buf[:, :c] = arr
        off = self.cols
        self.parts.append(buf)
        self.cols += slot
        return (off, c)

    def finalize(self, dtype):
        if not self.parts:
            return jnp.zeros((self.rows, 128), dtype)
        return jnp.asarray(np.concatenate(self.parts, axis=1), dtype)


# -------------------------------- deterministic parameter init -----------------------------------

def init_raw_params(seed=0):
    rng = np.random.default_rng(seed)

    def tn(shape, std=0.02):                       # trunc_normal_(std=0.02) equivalent
        return (np.clip(rng.standard_normal(shape), -2.0, 2.0) * std).astype(np.float32)

    def randn(shape):
        return rng.standard_normal(shape).astype(np.float32)

    # TokenEmbedding Conv1d(C_in, E, k=3, circular, bias=False), kaiming-ish init.
    conv_w = randn((EMBED_DIM, IN_CHANNELS, 3)) * math.sqrt(2.0 / (IN_CHANNELS * 3))
    # tap t multiplies x[(l + t - 1) mod L]; packed along columns: (C_in, 3*E).
    conv_packed = np.concatenate([conv_w[:, :, t].T for t in range(3)], axis=1)

    def attn_raw(dim, nh):
        # TODO(synk): w_qkv columns are stored [q|k|v] head-major (distribution-equivalent to the
        # torch '(h d k)' layout for a fresh init; loading trained torch weights would need an
        # explicit column permutation).
        F = DIM_KEY * nh
        return dict(
            w_qkv=tn((dim, 3 * F)),
            w_out=tn((F, dim)),
            b_out=np.zeros((1, dim), np.float32),
            w_rel=tn((F, F)),
            rcb=[randn((1, DIM_KEY)) for _ in range(nh)],
            rpb=[randn((1, DIM_KEY)) for _ in range(nh)],
            positions=get_positional_embed(WINDOW_SIZE, F),
        )

    def block_raw(dim, nh):
        hidden = int(dim * MLP_RATIO)
        return dict(
            dim=dim, nh=nh,
            attn=attn_raw(dim, nh),
            ln1_g=np.ones((1, dim), np.float32), ln1_b=np.zeros((1, dim), np.float32),
            fc1_w=tn((dim, hidden)), fc1_b=np.zeros((1, hidden), np.float32),
            fc2_w=tn((hidden, dim)), fc2_b=np.zeros((1, dim), np.float32),
            ln2_g=np.ones((1, dim), np.float32), ln2_b=np.zeros((1, dim), np.float32),
        )

    d0, d1 = DIMS_DOWN
    return dict(
        conv_packed=conv_packed,
        pe=sinusoidal_pe(SEQ_LEN, EMBED_DIM),
        # Execution order: down stage (dim 32), up stage 0 (dim 64), up stage 1 (dim 32).
        blocks=[block_raw(d0, NUM_HEADS[0]),
                block_raw(d1, NUM_HEADS[1]),
                block_raw(d0, NUM_HEADS[0])],
        merge=dict(norm_g=np.ones((1, 2 * d0), np.float32),
                   norm_b=np.zeros((1, 2 * d0), np.float32),
                   red_w=tn((2 * d0, 2 * d0))),
        expand=dict(exp_w=tn((d1, d1)),
                    norm_g=np.ones((1, d1 // 2), np.float32),
                    norm_b=np.zeros((1, d1 // 2), np.float32)),
        cb_w=tn((2 * d0, d0)),                       # concat_back_dim[0] (only one used in forward)
        cb_b=np.zeros((1, d0), np.float32),
        out_w=tn((EMBED_DIM, IN_CHANNELS)),          # output Conv1d k=1, no bias
    )


def _attn_fold(attn, dim, nh):
    """Fold scale, rel_content_bias and the relative-position path into one projection.

    W_big columns: [ q*scale | k | v | per-head (Wq_h @ rel_k_h^T) (128-lane slots) ]
    b_big columns: [ rcb*scale |0 |0 | per-head (rpb_h @ rel_k_h^T) ]
    """
    F = DIM_KEY * nh
    scale = DIM_KEY ** -0.5
    w_qkv = attn['w_qkv']
    rel_k = attn['positions'] @ attn['w_rel']                 # (2ws-1, F)
    width = 3 * F + nh * 128
    W = np.zeros((dim, width), np.float32)
    bvec = np.zeros((1, width), np.float32)
    W[:, 0:F] = w_qkv[:, 0:F] * scale
    W[:, F:2 * F] = w_qkv[:, F:2 * F]
    W[:, 2 * F:3 * F] = w_qkv[:, 2 * F:3 * F]
    for h in range(nh):
        wq_h = w_qkv[:, h * DIM_KEY:(h + 1) * DIM_KEY]
        rk_h = rel_k[:, h * DIM_KEY:(h + 1) * DIM_KEY]        # (2ws-1, dk)
        W[:, 3 * F + h * 128:3 * F + h * 128 + REL_WIDTH] = wq_h @ rk_h.T
        bvec[:, h * DIM_KEY:(h + 1) * DIM_KEY] = attn['rcb'][h] * scale
        bvec[:, 3 * F + h * 128:3 * F + h * 128 + REL_WIDTH] = attn['rpb'][h] @ rk_h.T
    return W, bvec


def build_operands(raw, batches_per_block):
    rows_a = batches_per_block * SEQ_LEN           # resolution of the dim-32 stages
    rows_b = rows_a // 2                           # resolution of the dim-64 stage

    vec = _SlabPacker(1)
    m32 = _SlabPacker(32)
    m64 = _SlabPacker(64)
    m128 = _SlabPacker(128)
    slabs = {32: ('m32', m32), 64: ('m64', m64), 128: ('m128', m128)}

    def add_mat(arr):
        tag, pk = slabs[arr.shape[0]]
        off, c = pk.add(arr)
        return (tag, off, c)

    def add_vec(arr):
        return vec.add(np.reshape(arr, (1, -1)))

    blocks_meta = []
    for braw in raw['blocks']:
        dim, nh = braw['dim'], braw['nh']
        wbig, bbig = _attn_fold(braw['attn'], dim, nh)
        blocks_meta.append(dict(
            dim=dim, nh=nh,
            wbig=add_mat(wbig),
            wout=add_mat(braw['attn']['w_out']),
            fc1=add_mat(braw['fc1_w']),
            fc2=add_mat(braw['fc2_w']),
            b_big=add_vec(bbig),
            b_out=add_vec(braw['attn']['b_out']),
            ln1_g=add_vec(braw['ln1_g']), ln1_b=add_vec(braw['ln1_b']),
            fc1_b=add_vec(braw['fc1_b']), fc2_b=add_vec(braw['fc2_b']),
            ln2_g=add_vec(braw['ln2_g']), ln2_b=add_vec(braw['ln2_b']),
        ))

    merge_meta = dict(red_w=add_mat(raw['merge']['red_w']),
                      norm_g=add_vec(raw['merge']['norm_g']),
                      norm_b=add_vec(raw['merge']['norm_b']))
    expand_meta = dict(exp_w=add_mat(raw['expand']['exp_w']),
                       norm_g=add_vec(raw['expand']['norm_g']),
                       norm_b=add_vec(raw['expand']['norm_b']))
    cb_meta = dict(w=add_mat(raw['cb_w']), b=add_vec(raw['cb_b']))
    out_w_meta = add_mat(raw['out_w'])

    operands = (
        vec.finalize(jnp.float32),                                    # (1, V) packed biases/gains
        m32.finalize(jnp.bfloat16),                                   # 32-row weight slab
        m64.finalize(jnp.bfloat16),                                   # 64-row weight slab
        m128.finalize(jnp.bfloat16),                                  # 128-row weight slab
        jnp.asarray(raw['conv_packed'], jnp.bfloat16),                # (C_in, 3*E) conv taps
        jnp.asarray(np.tile(raw['pe'], (batches_per_block, 1)), jnp.float32),  # (rows_a, E)
        jnp.asarray(_build_masks(rows_a), jnp.float32),               # (8*rows_a, rows_a)
        jnp.asarray(_build_masks(rows_b), jnp.float32),               # (8*rows_b, rows_b)
        jnp.asarray(_merge_sel(rows_a), jnp.float32),                 # (rows_a, rows_a)
        jnp.asarray(_expand_sel(rows_b), jnp.float32),                # (2*rows_a, rows_b)
    )
    meta = dict(blocks=blocks_meta, merge=merge_meta, expand=expand_meta,
                cb=cb_meta, out_w=out_w_meta, rows_a=rows_a, rows_b=rows_b)
    return operands, meta


# ---------------------------------- the single fused Pallas kernel -------------------------------

def _swinv2_unet_kernel(x_ref, vec_ref, m32_ref, m64_ref, m128_ref, conv_ref, pe_ref,
                        mask_a_ref, mask_b_ref, msel_ref, esel_ref, out_ref,
                        *, meta, batches):
    slabs = {'m32': m32_ref, 'm64': m64_ref, 'm128': m128_ref}

    def W(entry):                                  # bf16 weight slice from a packed slab
        tag, off, cols = entry
        return slabs[tag][:, off:off + cols]

    def V(entry):                                  # (1, cols) f32 vector slice
        off, cols = entry
        return vec_ref[:, off:off + cols]

    def bf(v):
        return v.astype(jnp.bfloat16)

    def ln(v, g, b):
        mu = jnp.mean(v, axis=-1, keepdims=True)
        c = v - mu
        var = jnp.mean(c * c, axis=-1, keepdims=True)
        return c * jax.lax.rsqrt(var + LN_EPS) * g + b

    def gelu(v):
        # TODO(synk): nn.GELU() default is exact erf-GELU; tanh approximation used for robust
        # Mosaic lowering (numerically ~1e-3 close).
        return 0.5 * v * (1.0 + jnp.tanh(0.7978845608028654 * (v + 0.044715 * v * v * v)))

    def roll_rows(v, shift):
        """torch.roll(view(B, n, C), shift, dims=1) on the flattened (B*n, C) layout via static
        slice + concatenate along the sublane axis (no MXU, no iota)."""
        n = v.shape[0] // batches
        s = shift % n
        if s == 0:
            return v
        pieces = []
        for i in range(batches):
            chunk = v[i * n:(i + 1) * n]
            pieces.append(chunk[n - s:, :])
            pieces.append(chunk[:n - s, :])
        return jnp.concatenate(pieces, axis=0)

    def matmul_nt(a, b):                           # a @ b.T, contracting last dims
        return jax.lax.dot_general(a, b, (((1,), (1,)), ((), ())),
                                   preferred_element_type=jnp.float32)

    def attention(v, bm, mask_ref):
        nh = bm['nh']
        F = nh * DIM_KEY
        M = v.shape[0]
        # One projection produces q (pre-scaled, rcb folded), k, v and the relative-position
        # logits (q @ rel_k^T folded into the weight; rpb @ rel_k^T folded into the bias).
        qkvr = jnp.dot(bf(v), W(bm['wbig']), preferred_element_type=jnp.float32) + V(bm['b_big'])
        neg = mask_ref[0:M, :]                                           # additive window mask
        sels = [mask_ref[(1 + r) * M:(2 + r) * M, :] for r in range(REL_WIDTH)]
        heads = []
        for h in range(nh):                                              # statically unrolled
            q = qkvr[:, h * DIM_KEY:(h + 1) * DIM_KEY]
            k = qkvr[:, F + h * DIM_KEY:F + (h + 1) * DIM_KEY]
            vv = qkvr[:, 2 * F + h * DIM_KEY:2 * F + (h + 1) * DIM_KEY]
            rl = qkvr[:, 3 * F + h * 128:3 * F + h * 128 + REL_WIDTH]    # (M, 2ws-1)
            logits = matmul_nt(bf(q), bf(k)) + neg
            # relative_shift_swin == pick column ws-1+(j-i); 7 FMAs against constant one-hots.
            for r in range(REL_WIDTH):
                logits = logits + rl[:, r:r + 1] * sels[r]
            logits = logits - jnp.max(logits, axis=-1, keepdims=True)
            e = jnp.exp(logits)
            p = e * pl.reciprocal(jnp.sum(e, axis=-1, keepdims=True), approx=True)
            heads.append(jnp.dot(bf(p), bf(vv), preferred_element_type=jnp.float32))
        o = jnp.concatenate(heads, axis=-1)                              # (M, F)
        return jnp.dot(bf(o), W(bm['wout']), preferred_element_type=jnp.float32) + V(bm['b_out'])

    def swin_block(v, bm, mask_ref):
        a = attention(v, bm, mask_ref)
        v = ln(a, V(bm['ln1_g']), V(bm['ln1_b'])) + v
        hdn = gelu(jnp.dot(bf(v), W(bm['fc1']), preferred_element_type=jnp.float32)
                   + V(bm['fc1_b']))
        m = jnp.dot(bf(hdn), W(bm['fc2']), preferred_element_type=jnp.float32) + V(bm['fc2_b'])
        v = ln(m, V(bm['ln2_g']), V(bm['ln2_b'])) + v
        return roll_rows(v, -(WINDOW_SIZE // 2))     # depth==1 -> i==0 -> shift = -ws//2

    def patch_merging(v):
        pm = meta['merge']
        M, C = v.shape
        half = M // 2
        xe = jnp.dot(msel_ref[0:half, :], v, preferred_element_type=jnp.float32)   # rows 0,2,4,...
        xo = jnp.dot(msel_ref[half:M, :], v, preferred_element_type=jnp.float32)   # rows 1,3,5,...
        mu = (jnp.sum(xe, -1, keepdims=True) + jnp.sum(xo, -1, keepdims=True)) / (2 * C)
        xec, xoc = xe - mu, xo - mu
        var = (jnp.sum(xec * xec, -1, keepdims=True)
               + jnp.sum(xoc * xoc, -1, keepdims=True)) / (2 * C)
        inv = jax.lax.rsqrt(var + LN_EPS)
        g, b = V(pm['norm_g']), V(pm['norm_b'])                                     # (1, 2C)
        ye = xec * inv * g[:, :C] + b[:, :C]
        yo = xoc * inv * g[:, C:] + b[:, C:]
        w = W(pm['red_w'])                                                          # (2C, 2C)
        return (jnp.dot(bf(ye), w[:C, :], preferred_element_type=jnp.float32)
                + jnp.dot(bf(yo), w[C:, :], preferred_element_type=jnp.float32))

    def patch_expand(v):
        pm = meta['expand']
        y = jnp.dot(bf(v), W(pm['exp_w']), preferred_element_type=jnp.float32)      # (M, C)
        M, C = y.shape
        Ch = C // 2
        Mout = 2 * M
        z = (jnp.dot(esel_ref[0:Mout, :], y[:, :Ch], preferred_element_type=jnp.float32)
             + jnp.dot(esel_ref[Mout:2 * Mout, :], y[:, Ch:], preferred_element_type=jnp.float32))
        return ln(z, V(pm['norm_g']), V(pm['norm_b']))

    # ---------------- DataEmbedding: circular Conv1d(k=3) as three shifted matmuls + PE ----------
    x = x_ref[...].astype(jnp.float32)                                   # (rows_a, C_in)
    xm1 = roll_rows(x, 1)                                                # x[(l-1) mod L]
    xp1 = roll_rows(x, -1)                                               # x[(l+1) mod L]
    conv = conv_ref[...]                                                 # (C_in, 3*E) bf16
    E = EMBED_DIM
    x = (jnp.dot(bf(xm1), conv[:, 0:E], preferred_element_type=jnp.float32)
         + jnp.dot(bf(x), conv[:, E:2 * E], preferred_element_type=jnp.float32)
         + jnp.dot(bf(xp1), conv[:, 2 * E:3 * E], preferred_element_type=jnp.float32)
         + pe_ref[...])

    blocks = meta['blocks']
    # ---------------- down stage (dim 32) ---------------------------------------------------------
    x = swin_block(x, blocks[0], mask_a_ref)
    skip = x
    x = patch_merging(x)                                                 # (rows_b, 64)
    # ---------------- up stage 0 (dim 64) + PatchExpand -------------------------------------------
    x = swin_block(x, blocks[1], mask_b_ref)
    x = patch_expand(x)                                                  # (rows_a, 32)
    # ---------------- up stage 1: concat-back with skip, then dim-32 block ------------------------
    cb = meta['cb']
    wcb = W(cb['w'])                                                     # (64, 32)
    c1 = x.shape[-1]
    x = (jnp.dot(bf(x), wcb[:c1, :], preferred_element_type=jnp.float32)
         + jnp.dot(bf(skip), wcb[c1:, :], preferred_element_type=jnp.float32)
         + V(cb['b']))
    x = swin_block(x, blocks[2], mask_a_ref)
    # ---------------- output projection (Conv1d k=1, no bias) -------------------------------------
    y = jnp.dot(bf(x), W(meta['out_w']), preferred_element_type=jnp.float32)
    out_ref[...] = y.astype(out_ref.dtype)


# ------------------------------------------ wrapper ----------------------------------------------

def _const_index_map(rank):
    zeros = (0,) * rank
    return lambda b: zeros


def _pick_batches_per_block(batch):
    """On multi-TensorCore parts (v7x) use one batch element per grid step so the grid can be
    sharded across cores; on single-TC parts process the whole batch in one grid step."""
    try:
        kind = jax.devices()[0].device_kind.lower()
    except Exception:  # pragma: no cover
        kind = ""
    if batch > 1 and "v7" in kind:
        return 1
    return batch


def build_forward(raw_params, batch):
    bpb = _pick_batches_per_block(batch)
    operands, meta = build_operands(raw_params, bpb)
    nsteps = batch // bpb
    rows_blk = bpb * SEQ_LEN

    kernel = functools.partial(_swinv2_unet_kernel, meta=meta, batches=bpb)

    in_specs = [pl.BlockSpec((rows_blk, IN_CHANNELS), lambda b: (b, 0))]
    for op in operands:
        in_specs.append(pl.BlockSpec(op.shape, _const_index_map(len(op.shape))))
    out_specs = pl.BlockSpec((rows_blk, IN_CHANNELS), lambda b: (b, 0))

    bytes_accessed = int(sum(int(np.prod(o.shape)) * o.dtype.itemsize for o in operands)
                         + 2 * batch * SEQ_LEN * IN_CHANNELS * 4)
    cost = pl.CostEstimate(flops=20_000_000, transcendentals=50_000,
                           bytes_accessed=bytes_accessed)

    call = pl.pallas_call(
        kernel,
        out_shape=jax.ShapeDtypeStruct((batch * SEQ_LEN, IN_CHANNELS), jnp.float32),
        grid=(nsteps,),
        in_specs=in_specs,
        out_specs=out_specs,
        compiler_params=pltpu.CompilerParams(dimension_semantics=("parallel",)),
        cost_estimate=cost,
    )

    @jax.jit
    def forward(x):
        """x: (B, IN_CHANNELS, SEQ_LEN) -> (B, IN_CHANNELS, SEQ_LEN)."""
        B, c_in, L = x.shape
        x2 = jnp.transpose(x, (0, 2, 1)).reshape(B * L, c_in).astype(jnp.float32)
        y2 = call(x2, *operands)
        return jnp.transpose(y2.reshape(B, L, c_in), (0, 2, 1))

    return forward


if __name__ == "__main__":
    raw = init_raw_params(0)
    fwd = build_forward(raw, BATCH)
    x = jax.random.normal(jax.random.PRNGKey(0), (BATCH, IN_CHANNELS, SEQ_LEN), jnp.float32)
    y = fwd(x)
    y = jax.block_until_ready(y)
    assert y.shape == (BATCH, IN_CHANNELS, SEQ_LEN), y.shape
    assert bool(jnp.all(jnp.isfinite(y)))
    print("KERNEL_OK")
</pallas_src>

<mosaic_0001>
module attributes {stable_mosaic.version = 11 : i64} {
  func.func @_swinv2_unet_kernel(%arg0: i32, %arg1: memref<32x4xf32, #tpu.memory_space<vmem>>, %arg2: memref<1x5248xf32, #tpu.memory_space<vmem>>, %arg3: memref<32x1664xbf16, #tpu.memory_space<vmem>>, %arg4: memref<64x1408xbf16, #tpu.memory_space<vmem>>, %arg5: memref<128x512xbf16, #tpu.memory_space<vmem>>, %arg6: memref<4x96xbf16, #tpu.memory_space<vmem>>, %arg7: memref<32x32xf32, #tpu.memory_space<vmem>>, %arg8: memref<256x32xf32, #tpu.memory_space<vmem>>, %arg9: memref<128x16xf32, #tpu.memory_space<vmem>>, %arg10: memref<32x32xf32, #tpu.memory_space<vmem>>, %arg11: memref<64x16xf32, #tpu.memory_space<vmem>>, %arg12: memref<32x4xf32, #tpu.memory_space<vmem>>) attributes {dimension_semantics = [#tpu.dimension_semantics<parallel>], iteration_bounds = array<i64: 1>, scalar_prefetch = 0 : i64, scratch_operands = 0 : i64, tpu.core_type = #tpu.core_type<tc>, window_params = [{transform_indices = @transform_0, window_bounds = array<i64: 32, 4>}, {pipeline_mode = #tpu.pipeline_mode<synchronous>, transform_indices = @transform_1, window_bounds = array<i64: 1, 5248>}, {pipeline_mode = #tpu.pipeline_mode<synchronous>, transform_indices = @transform_2, window_bounds = array<i64: 32, 1664>}, {pipeline_mode = #tpu.pipeline_mode<synchronous>, transform_indices = @transform_3, window_bounds = array<i64: 64, 1408>}, {pipeline_mode = #tpu.pipeline_mode<synchronous>, transform_indices = @transform_4, window_bounds = array<i64: 128, 512>}, {pipeline_mode = #tpu.pipeline_mode<synchronous>, transform_indices = @transform_5, window_bounds = array<i64: 4, 96>}, {pipeline_mode = #tpu.pipeline_mode<synchronous>, transform_indices = @transform_6, window_bounds = array<i64: 32, 32>}, {pipeline_mode = #tpu.pipeline_mode<synchronous>, transform_indices = @transform_7, window_bounds = array<i64: 256, 32>}, {pipeline_mode = #tpu.pipeline_mode<synchronous>, transform_indices = @transform_8, window_bounds = array<i64: 128, 16>}, {pipeline_mode = #tpu.pipeline_mode<synchronous>, transform_indices = @transform_9, window_bounds = array<i64: 32, 32>}, {pipeline_mode = #tpu.pipeline_mode<synchronous>, transform_indices = @transform_10, window_bounds = array<i64: 64, 16>}, {transform_indices = @transform_11, window_bounds = array<i64: 32, 4>}]} {
    %c0 = arith.constant 0 : index
    %c0_0 = arith.constant 0 : index
    %0 = vector.load %arg1[%c0, %c0_0] : memref<32x4xf32, #tpu.memory_space<vmem>>, vector<32x4xf32>
    %1 = vector.extract_strided_slice %0 {offsets = [0, 0], sizes = [16, 4], strides = [1, 1]} : vector<32x4xf32> to vector<16x4xf32>
    %2 = vector.extract_strided_slice %1 {offsets = [15, 0], sizes = [1, 4], strides = [1, 1]} : vector<16x4xf32> to vector<1x4xf32>
    %3 = vector.extract_strided_slice %1 {offsets = [0, 0], sizes = [15, 4], strides = [1, 1]} : vector<16x4xf32> to vector<15x4xf32>
    %4 = vector.extract_strided_slice %0 {offsets = [16, 0], sizes = [16, 4], strides = [1, 1]} : vector<32x4xf32> to vector<16x4xf32>
    %5 = vector.extract_strided_slice %4 {offsets = [15, 0], sizes = [1, 4], strides = [1, 1]} : vector<16x4xf32> to vector<1x4xf32>
    %6 = vector.extract_strided_slice %4 {offsets = [0, 0], sizes = [15, 4], strides = [1, 1]} : vector<16x4xf32> to vector<15x4xf32>
    %7 = tpu.concatenate %2, %3, %5, %6 in 0 : vector<1x4xf32>, vector<15x4xf32>, vector<1x4xf32>, vector<15x4xf32> -> vector<32x4xf32>
    %8 = vector.extract_strided_slice %0 {offsets = [0, 0], sizes = [16, 4], strides = [1, 1]} : vector<32x4xf32> to vector<16x4xf32>
    %9 = vector.extract_strided_slice %8 {offsets = [1, 0], sizes = [15, 4], strides = [1, 1]} : vector<16x4xf32> to vector<15x4xf32>
    %10 = vector.extract_strided_slice %8 {offsets = [0, 0], sizes = [1, 4], strides = [1, 1]} : vector<16x4xf32> to vector<1x4xf32>
    %11 = vector.extract_strided_slice %0 {offsets = [16, 0], sizes = [16, 4], strides = [1, 1]} : vector<32x4xf32> to vector<16x4xf32>
    %12 = vector.extract_strided_slice %11 {offsets = [1, 0], sizes = [15, 4], strides = [1, 1]} : vector<16x4xf32> to vector<15x4xf32>
    %13 = vector.extract_strided_slice %11 {offsets = [0, 0], sizes = [1, 4], strides = [1, 1]} : vector<16x4xf32> to vector<1x4xf32>
    %14 = tpu.concatenate %9, %10, %12, %13 in 0 : vector<15x4xf32>, vector<1x4xf32>, vector<15x4xf32>, vector<1x4xf32> -> vector<32x4xf32>
    %c0_1 = arith.constant 0 : index
    %c0_2 = arith.constant 0 : index
    %15 = vector.load %arg6[%c0_1, %c0_2] : memref<4x96xbf16, #tpu.memory_space<vmem>>, vector<4x96xbf16>
    %16 = arith.truncf %7 : vector<32x4xf32> to vector<32x4xbf16>
    %17 = vector.extract_strided_slice %15 {offsets = [0, 0], sizes = [4, 32], strides = [1, 1]} : vector<4x96xbf16> to vector<4x32xbf16>
    %cst = arith.constant dense<0.000000e+00> : vector<32x32xf32>
    %18 = tpu.matmul %16, %17, %cst {dimension_numbers = #tpu.dot_dimension_numbers<[1], [0], [0], [1], [0, 0, 1, 1], [], []>} : vector<32x4xbf16>, vector<4x32xbf16>, vector<32x32xf32> -> vector<32x32xf32>
    %19 = arith.truncf %0 : vector<32x4xf32> to vector<32x4xbf16>
    %20 = vector.extract_strided_slice %15 {offsets = [0, 32], sizes = [4, 32], strides = [1, 1]} : vector<4x96xbf16> to vector<4x32xbf16>
    %cst_3 = arith.constant dense<0.000000e+00> : vector<32x32xf32>
    %21 = tpu.matmul %19, %20, %cst_3 {dimension_numbers = #tpu.dot_dimension_numbers<[1], [0], [0], [1], [0, 0, 1, 1], [], []>} : vector<32x4xbf16>, vector<4x32xbf16>, vector<32x32xf32> -> vector<32x32xf32>
    %22 = arith.addf %18, %21 : vector<32x32xf32>
    %23 = arith.truncf %14 : vector<32x4xf32> to vector<32x4xbf16>
    %24 = vector.extract_strided_slice %15 {offsets = [0, 64], sizes = [4, 32], strides = [1, 1]} : vector<4x96xbf16> to vector<4x32xbf16>
    %cst_4 = arith.constant dense<0.000000e+00> : vector<32x32xf32>
    %25 = tpu.matmul %23, %24, %cst_4 {dimension_numbers = #tpu.dot_dimension_numbers<[1], [0], [0], [1], [0, 0, 1, 1], [], []>} : vector<32x4xbf16>, vector<4x32xbf16>, vector<32x32xf32> -> vector<32x32xf32>
    %26 = arith.addf %22, %25 : vector<32x32xf32>
    %c0_5 = arith.constant 0 : index
    %c0_6 = arith.constant 0 : index
    %27 = vector.load %arg7[%c0_5, %c0_6] : memref<32x32xf32, #tpu.memory_space<vmem>>, vector<32x32xf32>
    %28 = arith.addf %26, %27 : vector<32x32xf32>
    %29 = arith.truncf %28 : vector<32x32xf32> to vector<32x32xbf16>
    %c0_7 = arith.constant 0 : index
    %c0_8 = arith.constant 0 : index
    %30 = vector.load %arg3[%c0_7, %c0_8] : memref<32x1664xbf16, #tpu.memory_space<vmem>>, vector<32x640xbf16>
    %cst_9 = arith.constant dense<0.000000e+00> : vector<32x640xf32>
    %31 = tpu.matmul %29, %30, %cst_9 {dimension_numbers = #tpu.dot_dimension_numbers<[1], [0], [0], [1], [0, 0, 1, 1], [], []>} : vector<32x32xbf16>, vector<32x640xbf16>, vector<32x640xf32> -> vector<32x640xf32>
    %c0_10 = arith.constant 0 : index
    %c0_11 = arith.constant 0 : index
    %32 = vector.load %arg2[%c0_10, %c0_11] : memref<1x5248xf32, #tpu.memory_space<vmem>>, vector<1x640xf32>
    %33 = vector.broadcast %32 : vector<1x640xf32> to vector<32x640xf32>
    %34 = arith.addf %31, %33 : vector<32x640xf32>
    %c0_12 = arith.constant 0 : index
    %c0_13 = arith.constant 0 : index
    %35 = vector.load %arg8[%c0_12, %c0_13] : memref<256x32xf32, #tpu.memory_space<vmem>>, vector<32x32xf32>
    %c32 = arith.constant 32 : index
    %c0_14 = arith.constant 0 : index
    %36 = vector.load %arg8[%c32, %c0_14] : memref<256x32xf32, #tpu.memory_space<vmem>>, vector<32x32xf32>
    %c64 = arith.constant 64 : index
    %c0_15 = arith.constant 0 : index
    %37 = vector.load %arg8[%c64, %c0_15] : memref<256x32xf32, #tpu.memory_space<vmem>>, vector<32x32xf32>
    %c96 = arith.constant 96 : index
    %c0_16 = arith.constant 0 : index
    %38 = vector.load %arg8[%c96, %c0_16] : memref<256x32xf32, #tpu.memory_space<vmem>>, vector<32x32xf32>
    %c128 = arith.constant 128 : index
    %c0_17 = arith.constant 0 : index
    %39 = vector.load %arg8[%c128, %c0_17] : memref<256x32xf32, #tpu.memory_space<vmem>>, vector<32x32xf32>
    %c160 = arith.constant 160 : index
    %c0_18 = arith.constant 0 : index
    %40 = vector.load %arg8[%c160, %c0_18] : memref<256x32xf32, #tpu.memory_space<vmem>>, vector<32x32xf32>
    %c192 = arith.constant 192 : index
    %c0_19 = arith.constant 0 : index
    %41 = vector.load %arg8[%c192, %c0_19] : memref<256x32xf32, #tpu.memory_space<vmem>>, vector<32x32xf32>
    %c224 = arith.constant 224 : index
    %c0_20 = arith.constant 0 : index
    %42 = vector.load %arg8[%c224, %c0_20] : memref<256x32xf32, #tpu.memory_space<vmem>>, vector<32x32xf32>
    %43 = vector.extract_strided_slice %34 {offsets = [0, 0], sizes = [32, 64], strides = [1, 1]} : vector<32x640xf32> to vector<32x64xf32>
    %44 = vector.extract_strided_slice %34 {offsets = [0, 128], sizes = [32, 64], strides = [1, 1]} : vector<32x640xf32> to vector<32x64xf32>
    %45 = vector.extract_strided_slice %34 {offsets = [0, 256], sizes = [32, 64], strides = [1, 1]} : vector<32x640xf32> to vector<32x64xf32>
    %46 = vector.extract_strided_slice %34 {offsets = [0, 384], sizes = [32, 7], strides = [1, 1]} : vector<32x640xf32> to vector<32x7xf32>
    %47 = arith.truncf %43 : vector<32x64xf32> to vector<32x64xbf16>
    %48 = arith.truncf %44 : vector<32x64xf32> to vector<32x64xbf16>
    %cst_21 = arith.constant dense<0.000000e+00> : vector<32x32xf32>
    %49 = tpu.matmul %47, %48, %cst_21 {dimension_numbers = #tpu.dot_dimension_numbers<[1], [1], [0], [0], [0, 0, 1, 0], [], []>} : vector<32x64xbf16>, vector<32x64xbf16>, vector<32x32xf32> -> vector<32x32xf32>
    %50 = arith.addf %49, %35 : vector<32x32xf32>
    %51 = vector.extract_strided_slice %46 {offsets = [0, 0], sizes = [32, 1], strides = [1, 1]} : vector<32x7xf32> to vector<32x1xf32>
    %52 = vector.broadcast %51 : vector<32x1xf32> to vector<32x32xf32>
    %53 = arith.mulf %52, %36 : vector<32x32xf32>
    %54 = arith.addf %50, %53 : vector<32x32xf32>
    %55 = vector.extract_strided_slice %46 {offsets = [0, 1], sizes = [32, 1], strides = [1, 1]} : vector<32x7xf32> to vector<32x1xf32>
    %56 = vector.broadcast %55 : vector<32x1xf32> to vector<32x32xf32>
    %57 = arith.mulf %56, %37 : vector<32x32xf32>
    %58 = arith.addf %54, %57 : vector<32x32xf32>
    %59 = vector.extract_strided_slice %46 {offsets = [0, 2], sizes = [32, 1], strides = [1, 1]} : vector<32x7xf32> to vector<32x1xf32>
    %60 = vector.broadcast %59 : vector<32x1xf32> to vector<32x32xf32>
    %61 = arith.mulf %60, %38 : vector<32x32xf32>
    %62 = arith.addf %58, %61 : vector<32x32xf32>
    %63 = vector.extract_strided_slice %46 {offsets = [0, 3], sizes = [32, 1], strides = [1, 1]} : vector<32x7xf32> to vector<32x1xf32>
    %64 = vector.broadcast %63 : vector<32x1xf32> to vector<32x32xf32>
    %65 = arith.mulf %64, %39 : vector<32x32xf32>
    %66 = arith.addf %62, %65 : vector<32x32xf32>
    %67 = vector.extract_strided_slice %46 {offsets = [0, 4], sizes = [32, 1], strides = [1, 1]} : vector<32x7xf32> to vector<32x1xf32>
    %68 = vector.broadcast %67 : vector<32x1xf32> to vector<32x32xf32>
    %69 = arith.mulf %68, %40 : vector<32x32xf32>
    %70 = arith.addf %66, %69 : vector<32x32xf32>
    %71 = vector.extract_strided_slice %46 {offsets = [0, 5], sizes = [32, 1], strides = [1, 1]} : vector<32x7xf32> to vector<32x1xf32>
    %72 = vector.broadcast %71 : vector<32x1xf32> to vector<32x32xf32>
    %73 = arith.mulf %72, %41 : vector<32x32xf32>
    %74 = arith.addf %70, %73 : vector<32x32xf32>
    %75 = vector.extract_strided_slice %46 {offsets = [0, 6], sizes = [32, 1], strides = [1, 1]} : vector<32x7xf32> to vector<32x1xf32>
    %76 = vector.broadcast %75 : vector<32x1xf32> to vector<32x32xf32>
    %77 = arith.mulf %76, %42 : vector<32x32xf32>
    %78 = arith.addf %74, %77 : vector<32x32xf32>
    %cst_22 = arith.constant dense<0xFF800000> : vector<32xf32>
    %79 = vector.multi_reduction <maximumf>, %78, %cst_22 [1] : vector<32x32xf32> to vector<32xf32>
    %80 = vector.shape_cast %79 : vector<32xf32> to vector<32x1xf32>
    %81 = vector.broadcast %80 : vector<32x1xf32> to vector<32x32xf32>
    %82 = arith.subf %78, %81 : vector<32x32xf32>
    %83 = math.exp %82 : vector<32x32xf32>
    %cst_23 = arith.constant dense<0.000000e+00> : vector<32xf32>
    %84 = vector.multi_reduction <add>, %83, %cst_23 [1] : vector<32x32xf32> to vector<32xf32>
    %85 = vector.shape_cast %84 : vector<32xf32> to vector<32x1xf32>
    %86 = tpu.reciprocal %85 {approx = true} : vector<32x1xf32> -> vector<32x1xf32>
    %87 = vector.broadcast %86 : vector<32x1xf32> to vector<32x32xf32>
    %88 = arith.mulf %83, %87 : vector<32x32xf32>
    %89 = arith.truncf %88 : vector<32x32xf32> to vector<32x32xbf16>
    %90 = arith.truncf %45 : vector<32x64xf32> to vector<32x64xbf16>
    %cst_24 = arith.constant dense<0.000000e+00> : vector<32x64xf32>
    %91 = tpu.matmul %89, %90, %cst_24 {dimension_numbers = #tpu.dot_dimension_numbers<[1], [0], [0], [1], [0, 0, 1, 1], [], []>} : vector<32x32xbf16>, vector<32x64xbf16>, vector<32x64xf32> -> vector<32x64xf32>
    %92 = vector.extract_strided_slice %34 {offsets = [0, 64], sizes = [32, 64], strides = [1, 1]} : vector<32x640xf32> to vector<32x64xf32>
    %93 = vector.extract_strided_slice %34 {offsets = [0, 192], sizes = [32, 64], strides = [1, 1]} : vector<32x640xf32> to vector<32x64xf32>
    %94 = vector.extract_strided_slice %34 {offsets = [0, 320], sizes = [32, 64], strides = [1, 1]} : vector<32x640xf32> to vector<32x64xf32>
    %95 = vector.extract_strided_slice %34 {offsets = [0, 512], sizes = [32, 7], strides = [1, 1]} : vector<32x640xf32> to vector<32x7xf32>
    %96 = arith.truncf %92 : vector<32x64xf32> to vector<32x64xbf16>
    %97 = arith.truncf %93 : vector<32x64xf32> to vector<32x64xbf16>
    %cst_25 = arith.constant dense<0.000000e+00> : vector<32x32xf32>
    %98 = tpu.matmul %96, %97, %cst_25 {dimension_numbers = #tpu.dot_dimension_numbers<[1], [1], [0], [0], [0, 0, 1, 0], [], []>} : vector<32x64xbf16>, vector<32x64xbf16>, vector<32x32xf32> -> vector<32x32xf32>
    %99 = arith.addf %98, %35 : vector<32x32xf32>
    %100 = vector.extract_strided_slice %95 {offsets = [0, 0], sizes = [32, 1], strides = [1, 1]} : vector<32x7xf32> to vector<32x1xf32>
    %101 = vector.broadcast %100 : vector<32x1xf32> to vector<32x32xf32>
    %102 = arith.mulf %101, %36 : vector<32x32xf32>
    %103 = arith.addf %99, %102 : vector<32x32xf32>
    %104 = vector.extract_strided_slice %95 {offsets = [0, 1], sizes = [32, 1], strides = [1, 1]} : vector<32x7xf32> to vector<32x1xf32>
    %105 = vector.broadcast %104 : vector<32x1xf32> to vector<32x32xf32>
    %106 = arith.mulf %105, %37 : vector<32x32xf32>
    %107 = arith.addf %103, %106 : vector<32x32xf32>
    %108 = vector.extract_strided_slice %95 {offsets = [0, 2], sizes = [32, 1], strides = [1, 1]} : vector<32x7xf32> to vector<32x1xf32>
    %109 = vector.broadcast %108 : vector<32x1xf32> to vector<32x32xf32>
    %110 = arith.mulf %109, %38 : vector<32x32xf32>
    %111 = arith.addf %107, %110 : vector<32x32xf32>
    %112 = vector.extract_strided_slice %95 {offsets = [0, 3], sizes = [32, 1], strides = [1, 1]} : vector<32x7xf32> to vector<32x1xf32>
    %113 = vector.broadcast %112 : vector<32x1xf32> to vector<32x32xf32>
    %114 = arith.mulf %113, %39 : vector<32x32xf32>
    %115 = arith.addf %111, %114 : vector<32x32xf32>
    %116 = vector.extract_strided_slice %95 {offsets = [0, 4], sizes = [32, 1], strides = [1, 1]} : vector<32x7xf32> to vector<32x1xf32>
    %117 = vector.broadcast %116 : vector<32x1xf32> to vector<32x32xf32>
    %118 = arith.mulf %117, %40 : vector<32x32xf32>
    %119 = arith.addf %115, %118 : vector<32x32xf32>
    %120 = vector.extract_strided_slice %95 {offsets = [0, 5], sizes = [32, 1], strides = [1, 1]} : vector<32x7xf32> to vector<32x1xf32>
    %121 = vector.broadcast %120 : vector<32x1xf32> to vector<32x32xf32>
    %122 = arith.mulf %121, %41 : vector<32x32xf32>
    %123 = arith.addf %119, %122 : vector<32x32xf32>
    %124 = vector.extract_strided_slice %95 {offsets = [0, 6], sizes = [32, 1], strides = [1, 1]} : vector<32x7xf32> to vector<32x1xf32>
    %125 = vector.broadcast %124 : vector<32x1xf32> to vector<32x32xf32>
    %126 = arith.mulf %125, %42 : vector<32x32xf32>
    %127 = arith.addf %123, %126 : vector<32x32xf32>
    %cst_26 = arith.constant dense<0xFF800000> : vector<32xf32>
    %128 = vector.multi_reduction <maximumf>, %127, %cst_26 [1] : vector<32x32xf32> to vector<32xf32>
    %129 = vector.shape_cast %128 : vector<32xf32> to vector<32x1xf32>
    %130 = vector.broadcast %129 : vector<32x1xf32> to vector<32x32xf32>
    %131 = arith.subf %127, %130 : vector<32x32xf32>
    %132 = math.exp %131 : vector<32x32xf32>
    %cst_27 = arith.constant dense<0.000000e+00> : vector<32xf32>
    %133 = vector.multi_reduction <add>, %132, %cst_27 [1] : vector<32x32xf32> to vector<32xf32>
    %134 = vector.shape_cast %133 : vector<32xf32> to vector<32x1xf32>
    %135 = tpu.reciprocal %134 {approx = true} : vector<32x1xf32> -> vector<32x1xf32>
    %136 = vector.broadcast %135 : vector<32x1xf32> to vector<32x32xf32>
    %137 = arith.mulf %132, %136 : vector<32x32xf32>
    %138 = arith.truncf %137 : vector<32x32xf32> to vector<32x32xbf16>
    %139 = arith.truncf %94 : vector<32x64xf32> to vector<32x64xbf16>
    %cst_28 = arith.constant dense<0.000000e+00> : vector<32x64xf32>
    %140 = tpu.matmul %138, %139, %cst_28 {dimension_numbers = #tpu.dot_dimension_numbers<[1], [0], [0], [1], [0, 0, 1, 1], [], []>} : vector<32x32xbf16>, vector<32x64xbf16>, vector<32x64xf32> -> vector<32x64xf32>
    %141 = tpu.concatenate %91, %140 in 1 : vector<32x64xf32>, vector<32x64xf32> -> vector<32x128xf32>
    %142 = arith.truncf %141 : vector<32x128xf32> to vector<32x128xbf16>
    %c0_29 = arith.constant 0 : index
    %c0_30 = arith.constant 0 : index
    %143 = vector.load %arg5[%c0_29, %c0_30] : memref<128x512xbf16, #tpu.memory_space<vmem>>, vector<128x32xbf16>
    %cst_31 = arith.constant dense<0.000000e+00> : vector<32x32xf32>
    %144 = tpu.matmul %142, %143, %cst_31 {dimension_numbers = #tpu.dot_dimension_numbers<[1], [0], [0], [1], [0, 0, 1, 1], [], []>} : vector<32x128xbf16>, vector<128x32xbf16>, vector<32x32xf32> -> vector<32x32xf32>
    %c0_32 = arith.constant 0 : index
    %c640 = arith.constant 640 : index
    %145 = vector.load %arg2[%c0_32, %c640] : memref<1x5248xf32, #tpu.memory_space<vmem>>, vector<1x32xf32>
    %146 = vector.broadcast %145 : vector<1x32xf32> to vector<32x32xf32>
    %147 = arith.addf %144, %146 : vector<32x32xf32>
    %c0_33 = arith.constant 0 : index
    %c768 = arith.constant 768 : index
    %148 = vector.load %arg2[%c0_33, %c768] : memref<1x5248xf32, #tpu.memory_space<vmem>>, vector<1x32xf32>
    %c0_34 = arith.constant 0 : index
    %c896 = arith.constant 896 : index
    %149 = vector.load %arg2[%c0_34, %c896] : memref<1x5248xf32, #tpu.memory_space<vmem>>, vector<1x32xf32>
    %cst_35 = arith.constant dense<0.000000e+00> : vector<32xf32>
    %150 = vector.multi_reduction <add>, %147, %cst_35 [1] : vector<32x32xf32> to vector<32xf32>
    %151 = vector.shape_cast %150 : vector<32xf32> to vector<32x1xf32>
    %cst_36 = arith.constant 3.200000e+01 : f32
    %152 = vector.broadcast %cst_36 : f32 to vector<32x1xf32>
    %153 = arith.divf %151, %152 : vector<32x1xf32>
    %154 = vector.broadcast %153 : vector<32x1xf32> to vector<32x32xf32>
    %155 = arith.subf %147, %154 : vector<32x32xf32>
    %156 = arith.mulf %155, %155 : vector<32x32xf32>
    %cst_37 = arith.constant dense<0.000000e+00> : vector<32xf32>
    %157 = vector.multi_reduction <add>, %156, %cst_37 [1] : vector<32x32xf32> to vector<32xf32>
    %158 = vector.shape_cast %157 : vector<32xf32> to vector<32x1xf32>
    %cst_38 = arith.constant 3.200000e+01 : f32
    %159 = vector.broadcast %cst_38 : f32 to vector<32x1xf32>
    %160 = arith.divf %158, %159 : vector<32x1xf32>
    %cst_39 = arith.constant 9.99999974E-6 : f32
    %161 = vector.broadcast %cst_39 : f32 to vector<32x1xf32>
    %162 = arith.addf %160, %161 : vector<32x1xf32>
    %163 = math.rsqrt %162 : vector<32x1xf32>
    %164 = vector.broadcast %163 : vector<32x1xf32> to vector<32x32xf32>
    %165 = arith.mulf %155, %164 : vector<32x32xf32>
    %166 = vector.broadcast %148 : vector<1x32xf32> to vector<32x32xf32>
    %167 = arith.mulf %165, %166 : vector<32x32xf32>
    %168 = vector.broadcast %149 : vector<1x32xf32> to vector<32x32xf32>
    %169 = arith.addf %167, %168 : vector<32x32xf32>
    %170 = arith.addf %169, %28 : vector<32x32xf32>
    %171 = arith.truncf %170 : vector<32x32xf32> to vector<32x32xbf16>
    %c0_40 = arith.constant 0 : index
    %c640_41 = arith.constant 640 : index
    %172 = vector.load %arg3[%c0_40, %c640_41] : memref<32x1664xbf16, #tpu.memory_space<vmem>>, vector<32x64xbf16>
    %cst_42 = arith.constant dense<0.000000e+00> : vector<32x64xf32>
    %173 = tpu.matmul %171, %172, %cst_42 {dimension_numbers = #tpu.dot_dimension_numbers<[1], [0], [0], [1], [0, 0, 1, 1], [], []>} : vector<32x32xbf16>, vector<32x64xbf16>, vector<32x64xf32> -> vector<32x64xf32>
    %c0_43 = arith.constant 0 : index
    %c1024 = arith.constant 1024 : index
    %174 = vector.load %arg2[%c0_43, %c1024] : memref<1x5248xf32, #tpu.memory_space<vmem>>, vector<1x64xf32>
    %175 = vector.broadcast %174 : vector<1x64xf32> to vector<32x64xf32>
    %176 = arith.addf %173, %175 : vector<32x64xf32>
    %cst_44 = arith.constant 5.000000e-01 : f32
    %177 = vector.broadcast %cst_44 : f32 to vector<32x64xf32>
    %178 = arith.mulf %177, %176 : vector<32x64xf32>
    %cst_45 = arith.constant 4.471500e-02 : f32
    %179 = vector.broadcast %cst_45 : f32 to vector<32x64xf32>
    %180 = arith.mulf %179, %176 : vector<32x64xf32>
    %181 = arith.mulf %180, %176 : vector<32x64xf32>
    %182 = arith.mulf %181, %176 : vector<32x64xf32>
    %183 = arith.addf %176, %182 : vector<32x64xf32>
    %cst_46 = arith.constant 0.797884583 : f32
    %184 = vector.broadcast %cst_46 : f32 to vector<32x64xf32>
    %185 = arith.mulf %184, %183 : vector<32x64xf32>
    %186 = math.tanh %185 : vector<32x64xf32>
    %cst_47 = arith.constant 1.000000e+00 : f32
    %187 = vector.broadcast %cst_47 : f32 to vector<32x64xf32>
    %188 = arith.addf %187, %186 : vector<32x64xf32>
    %189 = arith.mulf %178, %188 : vector<32x64xf32>
    %190 = arith.truncf %189 : vector<32x64xf32> to vector<32x64xbf16>
    %c0_48 = arith.constant 0 : index
    %c0_49 = arith.constant 0 : index
    %191 = vector.load %arg4[%c0_48, %c0_49] : memref<64x1408xbf16, #tpu.memory_space<vmem>>, vector<64x32xbf16>
    %cst_50 = arith.constant dense<0.000000e+00> : vector<32x32xf32>
    %192 = tpu.matmul %190, %191, %cst_50 {dimension_numbers = #tpu.dot_dimension_numbers<[1], [0], [0], [1], [0, 0, 1, 1], [], []>} : vector<32x64xbf16>, vector<64x32xbf16>, vector<32x32xf32> -> vector<32x32xf32>
    %c0_51 = arith.constant 0 : index
    %c1152 = arith.constant 1152 : index
    %193 = vector.load %arg2[%c0_51, %c1152] : memref<1x5248xf32, #tpu.memory_space<vmem>>, vector<1x32xf32>
    %194 = vector.broadcast %193 : vector<1x32xf32> to vector<32x32xf32>
    %195 = arith.addf %192, %194 : vector<32x32xf32>
    %c0_52 = arith.constant 0 : index
    %c1280 = arith.constant 1280 : index
    %196 = vector.load %arg2[%c0_52, %c1280] : memref<1x5248xf32, #tpu.memory_space<vmem>>, vector<1x32xf32>
    %c0_53 = arith.constant 0 : index
    %c1408 = arith.constant 1408 : index
    %197 = vector.load %arg2[%c0_53, %c1408] : memref<1x5248xf32, #tpu.memory_space<vmem>>, vector<1x32xf32>
    %cst_54 = arith.constant dense<0.000000e+00> : vector<32xf32>
    %198 = vector.multi_reduction <add>, %195, %cst_54 [1] : vector<32x32xf32> to vector<32xf32>
    %199 = vector.shape_cast %198 : vector<32xf32> to vector<32x1xf32>
    %cst_55 = arith.constant 3.200000e+01 : f32
    %200 = vector.broadcast %cst_55 : f32 to vector<32x1xf32>
    %201 = arith.divf %199, %200 : vector<32x1xf32>
    %202 = vector.broadcast %201 : vector<32x1xf32> to vector<32x32xf32>
    %203 = arith.subf %195, %202 : vector<32x32xf32>
    %204 = arith.mulf %203, %203 : vector<32x32xf32>
    %cst_56 = arith.constant dense<0.000000e+00> : vector<32xf32>
    %205 = vector.multi_reduction <add>, %204, %cst_56 [1] : vector<32x32xf32> to vector<32xf32>
    %206 = vector.shape_cast %205 : vector<32xf32> to vector<32x1xf32>
    %cst_57 = arith.constant 3.200000e+01 : f32
    %207 = vector.broadcast %cst_57 : f32 to vector<32x1xf32>
    %208 = arith.divf %206, %207 : vector<32x1xf32>
    %cst_58 = arith.constant 9.99999974E-6 : f32
    %209 = vector.broadcast %cst_58 : f32 to vector<32x1xf32>
    %210 = arith.addf %208, %209 : vector<32x1xf32>
    %211 = math.rsqrt %210 : vector<32x1xf32>
    %212 = vector.broadcast %211 : vector<32x1xf32> to vector<32x32xf32>
    %213 = arith.mulf %203, %212 : vector<32x32xf32>
    %214 = vector.broadcast %196 : vector<1x32xf32> to vector<32x32xf32>
    %215 = arith.mulf %213, %214 : vector<32x32xf32>
    %216 = vector.broadcast %197 : vector<1x32xf32> to vector<32x32xf32>
    %217 = arith.addf %215, %216 : vector<32x32xf32>
    %218 = arith.addf %217, %170 : vector<32x32xf32>
    %219 = vector.extract_strided_slice %218 {offsets = [0, 0], sizes = [16, 32], strides = [1, 1]} : vector<32x32xf32> to vector<16x32xf32>
    %220 = vector.extract_strided_slice %219 {offsets = [2, 0], sizes = [14, 32], strides = [1, 1]} : vector<16x32xf32> to vector<14x32xf32>
    %221 = vector.extract_strided_slice %219 {offsets = [0, 0], sizes = [2, 32], strides = [1, 1]} : vector<16x32xf32> to vector<2x32xf32>
    %222 = vector.extract_strided_slice %218 {offsets = [16, 0], sizes = [16, 32], strides = [1, 1]} : vector<32x32xf32> to vector<16x32xf32>
    %223 = vector.extract_strided_slice %222 {offsets = [2, 0], sizes = [14, 32], strides = [1, 1]} : vector<16x32xf32> to vector<14x32xf32>
    %224 = vector.extract_strided_slice %222 {offsets = [0, 0], sizes = [2, 32], strides = [1, 1]} : vector<16x32xf32> to vector<2x32xf32>
    %225 = tpu.concatenate %220, %221, %223, %224 in 0 : vector<14x32xf32>, vector<2x32xf32>, vector<14x32xf32>, vector<2x32xf32> -> vector<32x32xf32>
    %c0_59 = arith.constant 0 : index
    %c0_60 = arith.constant 0 : index
    %226 = vector.load %arg10[%c0_59, %c0_60] : memref<32x32xf32, #tpu.memory_space<vmem>>, vector<16x32xf32>
    %cst_61 = arith.constant dense<0.000000e+00> : vector<16x32xf32>
    %227 = tpu.matmul %226, %225, %cst_61 {dimension_numbers = #tpu.dot_dimension_numbers<[1], [0], [0], [1], [0, 0, 1, 1], [], []>} : vector<16x32xf32>, vector<32x32xf32>, vector<16x32xf32> -> vector<16x32xf32>
    %c16 = arith.constant 16 : index
    %c0_62 = arith.constant 0 : index
    %228 = vector.load %arg10[%c16, %c0_62] : memref<32x32xf32, #tpu.memory_space<vmem>>, vector<16x32xf32>
    %cst_63 = arith.constant dense<0.000000e+00> : vector<16x32xf32>
    %229 = tpu.matmul %228, %225, %cst_63 {dimension_numbers = #tpu.dot_dimension_numbers<[1], [0], [0], [1], [0, 0, 1, 1], [], []>} : vector<16x32xf32>, vector<32x32xf32>, vector<16x32xf32> -> vector<16x32xf32>
    %cst_64 = arith.constant dense<0.000000e+00> : vector<16xf32>
    %230 = vector.multi_reduction <add>, %227, %cst_64 [1] : vector<16x32xf32> to vector<16xf32>
    %231 = vector.shape_cast %230 : vector<16xf32> to vector<16x1xf32>
    %cst_65 = arith.constant dense<0.000000e+00> : vector<16xf32>
    %232 = vector.multi_reduction <add>, %229, %cst_65 [1] : vector<16x32xf32> to vector<16xf32>
    %233 = vector.shape_cast %232 : vector<16xf32> to vector<16x1xf32>
    %234 = arith.addf %231, %233 : vector<16x1xf32>
    %cst_66 = arith.constant 6.400000e+01 : f32
    %235 = vector.broadcast %cst_66 : f32 to vector<16x1xf32>
    %236 = arith.divf %234, %235 : vector<16x1xf32>
    %237 = vector.broadcast %236 : vector<16x1xf32> to vector<16x32xf32>
    %238 = arith.subf %227, %237 : vector<16x32xf32>
    %239 = vector.broadcast %236 : vector<16x1xf32> to vector<16x32xf32>
    %240 = arith.subf %229, %239 : vector<16x32xf32>
    %241 = arith.mulf %238, %238 : vector<16x32xf32>
    %cst_67 = arith.constant dense<0.000000e+00> : vector<16xf32>
    %242 = vector.multi_reduction <add>, %241, %cst_67 [1] : vector<16x32xf32> to vector<16xf32>
    %243 = vector.shape_cast %242 : vector<16xf32> to vector<16x1xf32>
    %244 = arith.mulf %240, %240 : vector<16x32xf32>
    %cst_68 = arith.constant dense<0.000000e+00> : vector<16xf32>
    %245 = vector.multi_reduction <add>, %244, %cst_68 [1] : vector<16x32xf32> to vector<16xf32>
    %246 = vector.shape_cast %245 : vector<16xf32> to vector<16x1xf32>
    %247 = arith.addf %243, %246 : vector<16x1xf32>
    %cst_69 = arith.constant 6.400000e+01 : f32
    %248 = vector.broadcast %cst_69 : f32 to vector<16x1xf32>
    %249 = arith.divf %247, %248 : vector<16x1xf32>
    %cst_70 = arith.constant 9.99999974E-6 : f32
    %250 = vector.broadcast %cst_70 : f32 to vector<16x1xf32>
    %251 = arith.addf %249, %250 : vector<16x1xf32>
    %252 = math.rsqrt %251 : vector<16x1xf32>
    %c0_71 = arith.constant 0 : index
    %c4608 = arith.constant 4608 : index
    %253 = vector.load %arg2[%c0_71, %c4608] : memref<1x5248xf32, #tpu.memory_space<vmem>>, vector<1x64xf32>
    %c0_72 = arith.constant 0 : index
    %c4736 = arith.constant 4736 : index
    %254 = vector.load %arg2[%c0_72, %c4736] : memref<1x5248xf32, #tpu.memory_space<vmem>>, vector<1x64xf32>
    %255 = vector.broadcast %252 : vector<16x1xf32> to vector<16x32xf32>
    %256 = arith.mulf %238, %255 : vector<16x32xf32>
    %257 = vector.extract_strided_slice %253 {offsets = [0, 0], sizes = [1, 32], strides = [1, 1]} : vector<1x64xf32> to vector<1x32xf32>
    %258 = vector.broadcast %257 : vector<1x32xf32> to vector<16x32xf32>
    %259 = arith.mulf %256, %258 : vector<16x32xf32>
    %260 = vector.extract_strided_slice %254 {offsets = [0, 0], sizes = [1, 32], strides = [1, 1]} : vector<1x64xf32> to vector<1x32xf32>
    %261 = vector.broadcast %260 : vector<1x32xf32> to vector<16x32xf32>
    %262 = arith.addf %259, %261 : vector<16x32xf32>
    %263 = vector.broadcast %252 : vector<16x1xf32> to vector<16x32xf32>
    %264 = arith.mulf %240, %263 : vector<16x32xf32>
    %265 = vector.extract_strided_slice %253 {offsets = [0, 32], sizes = [1, 32], strides = [1, 1]} : vector<1x64xf32> to vector<1x32xf32>
    %266 = vector.broadcast %265 : vector<1x32xf32> to vector<16x32xf32>
    %267 = arith.mulf %264, %266 : vector<16x32xf32>
    %268 = vector.extract_strided_slice %254 {offsets = [0, 32], sizes = [1, 32], strides = [1, 1]} : vector<1x64xf32> to vector<1x32xf32>
    %269 = vector.broadcast %268 : vector<1x32xf32> to vector<16x32xf32>
    %270 = arith.addf %267, %269 : vector<16x32xf32>
    %c0_73 = arith.constant 0 : index
    %c1024_74 = arith.constant 1024 : index
    %271 = vector.load %arg4[%c0_73, %c1024_74] : memref<64x1408xbf16, #tpu.memory_space<vmem>>, vector<64x64xbf16>
    %272 = arith.truncf %262 : vector<16x32xf32> to vector<16x32xbf16>
    %273 = vector.extract_strided_slice %271 {offsets = [0, 0], sizes = [32, 64], strides = [1, 1]} : vector<64x64xbf16> to vector<32x64xbf16>
    %cst_75 = arith.constant dense<0.000000e+00> : vector<16x64xf32>
    %274 = tpu.matmul %272, %273, %cst_75 {dimension_numbers = #tpu.dot_dimension_numbers<[1], [0], [0], [1], [0, 0, 1, 1], [], []>} : vector<16x32xbf16>, vector<32x64xbf16>, vector<16x64xf32> -> vector<16x64xf32>
    %275 = arith.truncf %270 : vector<16x32xf32> to vector<16x32xbf16>
    %276 = vector.extract_strided_slice %271 {offsets = [32, 0], sizes = [32, 64], strides = [1, 1]} : vector<64x64xbf16> to vector<32x64xbf16>
    %cst_76 = arith.constant dense<0.000000e+00> : vector<16x64xf32>
    %277 = tpu.matmul %275, %276, %cst_76 {dimension_numbers = #tpu.dot_dimension_numbers<[1], [0], [0], [1], [0, 0, 1, 1], [], []>} : vector<16x32xbf16>, vector<32x64xbf16>, vector<16x64xf32> -> vector<16x64xf32>
    %278 = arith.addf %274, %277 : vector<16x64xf32>
    %279 = arith.truncf %278 : vector<16x64xf32> to vector<16x64xbf16>
    %c0_77 = arith.constant 0 : index
    %c128_78 = arith.constant 128 : index
    %280 = vector.load %arg4[%c0_77, %c128_78] : memref<64x1408xbf16, #tpu.memory_space<vmem>>, vector<64x640xbf16>
    %cst_79 = arith.constant dense<0.000000e+00> : vector<16x640xf32>
    %281 = tpu.matmul %279, %280, %cst_79 {dimension_numbers = #tpu.dot_dimension_numbers<[1], [0], [0], [1], [0, 0, 1, 1], [], []>} : vector<16x64xbf16>, vector<64x640xbf16>, vector<16x640xf32> -> vector<16x640xf32>
    %c0_80 = arith.constant 0 : index
    %c1536 = arith.constant 1536 : index
    %282 = vector.load %arg2[%c0_80, %c1536] : memref<1x5248xf32, #tpu.memory_space<vmem>>, vector<1x640xf32>
    %283 = vector.broadcast %282 : vector<1x640xf32> to vector<16x640xf32>
    %284 = arith.addf %281, %283 : vector<16x640xf32>
    %c0_81 = arith.constant 0 : index
    %c0_82 = arith.constant 0 : index
    %285 = vector.load %arg9[%c0_81, %c0_82] : memref<128x16xf32, #tpu.memory_space<vmem>>, vector<16x16xf32>
    %c16_83 = arith.constant 16 : index
    %c0_84 = arith.constant 0 : index
    %286 = vector.load %arg9[%c16_83, %c0_84] : memref<128x16xf32, #tpu.memory_space<vmem>>, vector<16x16xf32>
    %c32_85 = arith.constant 32 : index
    %c0_86 = arith.constant 0 : index
    %287 = vector.load %arg9[%c32_85, %c0_86] : memref<128x16xf32, #tpu.memory_space<vmem>>, vector<16x16xf32>
    %c48 = arith.constant 48 : index
    %c0_87 = arith.constant 0 : index
    %288 = vector.load %arg9[%c48, %c0_87] : memref<128x16xf32, #tpu.memory_space<vmem>>, vector<16x16xf32>
    %c64_88 = arith.constant 64 : index
    %c0_89 = arith.constant 0 : index
    %289 = vector.load %arg9[%c64_88, %c0_89] : memref<128x16xf32, #tpu.memory_space<vmem>>, vector<16x16xf32>
    %c80 = arith.constant 80 : index
    %c0_90 = arith.constant 0 : index
    %290 = vector.load %arg9[%c80, %c0_90] : memref<128x16xf32, #tpu.memory_space<vmem>>, vector<16x16xf32>
    %c96_91 = arith.constant 96 : index
    %c0_92 = arith.constant 0 : index
    %291 = vector.load %arg9[%c96_91, %c0_92] : memref<128x16xf32, #tpu.memory_space<vmem>>, vector<16x16xf32>
    %c112 = arith.constant 112 : index
    %c0_93 = arith.constant 0 : index
    %292 = vector.load %arg9[%c112, %c0_93] : memref<128x16xf32, #tpu.memory_space<vmem>>, vector<16x16xf32>
    %293 = vector.extract_strided_slice %284 {offsets = [0, 0], sizes = [16, 64], strides = [1, 1]} : vector<16x640xf32> to vector<16x64xf32>
    %294 = vector.extract_strided_slice %284 {offsets = [0, 128], sizes = [16, 64], strides = [1, 1]} : vector<16x640xf32> to vector<16x64xf32>
    %295 = vector.extract_strided_slice %284 {offsets = [0, 256], sizes = [16, 64], strides = [1, 1]} : vector<16x640xf32> to vector<16x64xf32>
    %296 = vector.extract_strided_slice %284 {offsets = [0, 384], sizes = [16, 7], strides = [1, 1]} : vector<16x640xf32> to vector<16x7xf32>
    %297 = arith.truncf %293 : vector<16x64xf32> to vector<16x64xbf16>
    %298 = arith.truncf %294 : vector<16x64xf32> to vector<16x64xbf16>
    %cst_94 = arith.constant dense<0.000000e+00> : vector<16x16xf32>
    %299 = tpu.matmul %297, %298, %cst_94 {dimension_numbers = #tpu.dot_dimension_numbers<[1], [1], [0], [0], [0, 0, 1, 0], [], []>} : vector<16x64xbf16>, vector<16x64xbf16>, vector<16x16xf32> -> vector<16x16xf32>
    %300 = arith.addf %299, %285 : vector<16x16xf32>
    %301 = vector.extract_strided_slice %296 {offsets = [0, 0], sizes = [16, 1], strides = [1, 1]} : vector<16x7xf32> to vector<16x1xf32>
    %302 = vector.broadcast %301 : vector<16x1xf32> to vector<16x16xf32>
    %303 = arith.mulf %302, %286 : vector<16x16xf32>
    %304 = arith.addf %300, %303 : vector<16x16xf32>
    %305 = vector.extract_strided_slice %296 {offsets = [0, 1], sizes = [16, 1], strides = [1, 1]} : vector<16x7xf32> to vector<16x1xf32>
    %306 = vector.broadcast %305 : vector<16x1xf32> to vector<16x16xf32>
    %307 = arith.mulf %306, %287 : vector<16x16xf32>
    %308 = arith.addf %304, %307 : vector<16x16xf32>
    %309 = vector.extract_strided_slice %296 {offsets = [0, 2], sizes = [16, 1], strides = [1, 1]} : vector<16x7xf32> to vector<16x1xf32>
    %310 = vector.broadcast %309 : vector<16x1xf32> to vector<16x16xf32>
    %311 = arith.mulf %310, %288 : vector<16x16xf32>
    %312 = arith.addf %308, %311 : vector<16x16xf32>
    %313 = vector.extract_strided_slice %296 {offsets = [0, 3], sizes = [16, 1], strides = [1, 1]} : vector<16x7xf32> to vector<16x1xf32>
    %314 = vector.broadcast %313 : vector<16x1xf32> to vector<16x16xf32>
    %315 = arith.mulf %314, %289 : vector<16x16xf32>
    %316 = arith.addf %312, %315 : vector<16x16xf32>
    %317 = vector.extract_strided_slice %296 {offsets = [0, 4], sizes = [16, 1], strides = [1, 1]} : vector<16x7xf32> to vector<16x1xf32>
    %318 = vector.broadcast %317 : vector<16x1xf32> to vector<16x16xf32>
    %319 = arith.mulf %318, %290 : vector<16x16xf32>
    %320 = arith.addf %316, %319 : vector<16x16xf32>
    %321 = vector.extract_strided_slice %296 {offsets = [0, 5], sizes = [16, 1], strides = [1, 1]} : vector<16x7xf32> to vector<16x1xf32>
    %322 = vector.broadcast %321 : vector<16x1xf32> to vector<16x16xf32>
    %323 = arith.mulf %322, %291 : vector<16x16xf32>
    %324 = arith.addf %320, %323 : vector<16x16xf32>
    %325 = vector.extract_strided_slice %296 {offsets = [0, 6], sizes = [16, 1], strides = [1, 1]} : vector<16x7xf32> to vector<16x1xf32>
    %326 = vector.broadcast %325 : vector<16x1xf32> to vector<16x16xf32>
    %327 = arith.mulf %326, %292 : vector<16x16xf32>
    %328 = arith.addf %324, %327 : vector<16x16xf32>
    %cst_95 = arith.constant dense<0xFF800000> : vector<16xf32>
    %329 = vector.multi_reduction <maximumf>, %328, %cst_95 [1] : vector<16x16xf32> to vector<16xf32>
    %330 = vector.shape_cast %329 : vector<16xf32> to vector<16x1xf32>
    %331 = vector.broadcast %330 : vector<16x1xf32> to vector<16x16xf32>
    %332 = arith.subf %328, %331 : vector<16x16xf32>
    %333 = math.exp %332 : vector<16x16xf32>
    %cst_96 = arith.constant dense<0.000000e+00> : vector<16xf32>
    %334 = vector.multi_reduction <add>, %333, %cst_96 [1] : vector<16x16xf32> to vector<16xf32>
    %335 = vector.shape_cast %334 : vector<16xf32> to vector<16x1xf32>
    %336 = tpu.reciprocal %335 {approx = true} : vector<16x1xf32> -> vector<16x1xf32>
    %337 = vector.broadcast %336 : vector<16x1xf32> to vector<16x16xf32>
    %338 = arith.mulf %333, %337 : vector<16x16xf32>
    %339 = arith.truncf %338 : vector<16x16xf32> to vector<16x16xbf16>
    %340 = arith.truncf %295 : vector<16x64xf32> to vector<16x64xbf16>
    %cst_97 = arith.constant dense<0.000000e+00> : vector<16x64xf32>
    %341 = tpu.matmul %339, %340, %cst_97 {dimension_numbers = #tpu.dot_dimension_numbers<[1], [0], [0], [1], [0, 0, 1, 1], [], []>} : vector<16x16xbf16>, vector<16x64xbf16>, vector<16x64xf32> -> vector<16x64xf32>
    %342 = vector.extract_strided_slice %284 {offsets = [0, 64], sizes = [16, 64], strides = [1, 1]} : vector<16x640xf32> to vector<16x64xf32>
    %343 = vector.extract_strided_slice %284 {offsets = [0, 192], sizes = [16, 64], strides = [1, 1]} : vector<16x640xf32> to vector<16x64xf32>
    %344 = vector.extract_strided_slice %284 {offsets = [0, 320], sizes = [16, 64], strides = [1, 1]} : vector<16x640xf32> to vector<16x64xf32>
    %345 = vector.extract_strided_slice %284 {offsets = [0, 512], sizes = [16, 7], strides = [1, 1]} : vector<16x640xf32> to vector<16x7xf32>
    %346 = arith.truncf %342 : vector<16x64xf32> to vector<16x64xbf16>
    %347 = arith.truncf %343 : vector<16x64xf32> to vector<16x64xbf16>
    %cst_98 = arith.constant dense<0.000000e+00> : vector<16x16xf32>
    %348 = tpu.matmul %346, %347, %cst_98 {dimension_numbers = #tpu.dot_dimension_numbers<[1], [1], [0], [0], [0, 0, 1, 0], [], []>} : vector<16x64xbf16>, vector<16x64xbf16>, vector<16x16xf32> -> vector<16x16xf32>
    %349 = arith.addf %348, %285 : vector<16x16xf32>
    %350 = vector.extract_strided_slice %345 {offsets = [0, 0], sizes = [16, 1], strides = [1, 1]} : vector<16x7xf32> to vector<16x1xf32>
    %351 = vector.broadcast %350 : vector<16x1xf32> to vector<16x16xf32>
    %352 = arith.mulf %351, %286 : vector<16x16xf32>
    %353 = arith.addf %349, %352 : vector<16x16xf32>
    %354 = vector.extract_strided_slice %345 {offsets = [0, 1], sizes = [16, 1], strides = [1, 1]} : vector<16x7xf32> to vector<16x1xf32>
    %355 = vector.broadcast %354 : vector<16x1xf32> to vector<16x16xf32>
    %356 = arith.mulf %355, %287 : vector<16x16xf32>
    %357 = arith.addf %353, %356 : vector<16x16xf32>
    %358 = vector.extract_strided_slice %345 {offsets = [0, 2], sizes = [16, 1], strides = [1, 1]} : vector<16x7xf32> to vector<16x1xf32>
    %359 = vector.broadcast %358 : vector<16x1xf32> to vector<16x16xf32>
    %360 = arith.mulf %359, %288 : vector<16x16xf32>
    %361 = arith.addf %357, %360 : vector<16x16xf32>
    %362 = vector.extract_strided_slice %345 {offsets = [0, 3], sizes = [16, 1], strides = [1, 1]} : vector<16x7xf32> to vector<16x1xf32>
    %363 = vector.broadcast %362 : vector<16x1xf32> to vector<16x16xf32>
    %364 = arith.mulf %363, %289 : vector<16x16xf32>
    %365 = arith.addf %361, %364 : vector<16x16xf32>
    %366 = vector.extract_strided_slice %345 {offsets = [0, 4], sizes = [16, 1], strides = [1, 1]} : vector<16x7xf32> to vector<16x1xf32>
    %367 = vector.broadcast %366 : vector<16x1xf32> to vector<16x16xf32>
    %368 = arith.mulf %367, %290 : vector<16x16xf32>
    %369 = arith.addf %365, %368 : vector<16x16xf32>
    %370 = vector.extract_strided_slice %345 {offsets = [0, 5], sizes = [16, 1], strides = [1, 1]} : vector<16x7xf32> to vector<16x1xf32>
    %371 = vector.broadcast %370 : vector<16x1xf32> to vector<16x16xf32>
    %372 = arith.mulf %371, %291 : vector<16x16xf32>
    %373 = arith.addf %369, %372 : vector<16x16xf32>
    %374 = vector.extract_strided_slice %345 {offsets = [0, 6], sizes = [16, 1], strides = [1, 1]} : vector<16x7xf32> to vector<16x1xf32>
    %375 = vector.broadcast %374 : vector<16x1xf32> to vector<16x16xf32>
    %376 = arith.mulf %375, %292 : vector<16x16xf32>
    %377 = arith.addf %373, %376 : vector<16x16xf32>
    %cst_99 = arith.constant dense<0xFF800000> : vector<16xf32>
    %378 = vector.multi_reduction <maximumf>, %377, %cst_99 [1] : vector<16x16xf32> to vector<16xf32>
    %379 = vector.shape_cast %378 : vector<16xf32> to vector<16x1xf32>
    %380 = vector.broadcast %379 : vector<16x1xf32> to vector<16x16xf32>
    %381 = arith.subf %377, %380 : vector<16x16xf32>
    %382 = math.exp %381 : vector<16x16xf32>
    %cst_100 = arith.constant dense<0.000000e+00> : vector<16xf32>
    %383 = vector.multi_reduction <add>, %382, %cst_100 [1] : vector<16x16xf32> to vector<16xf32>
    %384 = vector.shape_cast %383 : vector<16xf32> to vector<16x1xf32>
    %385 = tpu.reciprocal %384 {approx = true} : vector<16x1xf32> -> vector<16x1xf32>
    %386 = vector.broadcast %385 : vector<16x1xf32> to vector<16x16xf32>
    %387 = arith.mulf %382, %386 : vector<16x16xf32>
    %388 = arith.truncf %387 : vector<16x16xf32> to vector<16x16xbf16>
    %389 = arith.truncf %344 : vector<16x64xf32> to vector<16x64xbf16>
    %cst_101 = arith.constant dense<0.000000e+00> : vector<16x64xf32>
    %390 = tpu.matmul %388, %389, %cst_101 {dimension_numbers = #tpu.dot_dimension_numbers<[1], [0], [0], [1], [0, 0, 1, 1], [], []>} : vector<16x16xbf16>, vector<16x64xbf16>, vector<16x64xf32> -> vector<16x64xf32>
    %391 = tpu.concatenate %341, %390 in 1 : vector<16x64xf32>, vector<16x64xf32> -> vector<16x128xf32>
    %392 = arith.truncf %391 : vector<16x128xf32> to vector<16x128xbf16>
    %c0_102 = arith.constant 0 : index
    %c128_103 = arith.constant 128 : index
    %393 = vector.load %arg5[%c0_102, %c128_103] : memref<128x512xbf16, #tpu.memory_space<vmem>>, vector<128x64xbf16>
    %cst_104 = arith.constant dense<0.000000e+00> : vector<16x64xf32>
    %394 = tpu.matmul %392, %393, %cst_104 {dimension_numbers = #tpu.dot_dimension_numbers<[1], [0], [0], [1], [0, 0, 1, 1], [], []>} : vector<16x128xbf16>, vector<128x64xbf16>, vector<16x64xf32> -> vector<16x64xf32>
    %c0_105 = arith.constant 0 : index
    %c2176 = arith.constant 2176 : index
    %395 = vector.load %arg2[%c0_105, %c2176] : memref<1x5248xf32, #tpu.memory_space<vmem>>, vector<1x64xf32>
    %396 = vector.broadcast %395 : vector<1x64xf32> to vector<16x64xf32>
    %397 = arith.addf %394, %396 : vector<16x64xf32>
    %c0_106 = arith.constant 0 : index
    %c2304 = arith.constant 2304 : index
    %398 = vector.load %arg2[%c0_106, %c2304] : memref<1x5248xf32, #tpu.memory_space<vmem>>, vector<1x64xf32>
    %c0_107 = arith.constant 0 : index
    %c2432 = arith.constant 2432 : index
    %399 = vector.load %arg2[%c0_107, %c2432] : memref<1x5248xf32, #tpu.memory_space<vmem>>, vector<1x64xf32>
    %cst_108 = arith.constant dense<0.000000e+00> : vector<16xf32>
    %400 = vector.multi_reduction <add>, %397, %cst_108 [1] : vector<16x64xf32> to vector<16xf32>
    %401 = vector.shape_cast %400 : vector<16xf32> to vector<16x1xf32>
    %cst_109 = arith.constant 6.400000e+01 : f32
    %402 = vector.broadcast %cst_109 : f32 to vector<16x1xf32>
    %403 = arith.divf %401, %402 : vector<16x1xf32>
    %404 = vector.broadcast %403 : vector<16x1xf32> to vector<16x64xf32>
    %405 = arith.subf %397, %404 : vector<16x64xf32>
    %406 = arith.mulf %405, %405 : vector<16x64xf32>
    %cst_110 = arith.constant dense<0.000000e+00> : vector<16xf32>
    %407 = vector.multi_reduction <add>, %406, %cst_110 [1] : vector<16x64xf32> to vector<16xf32>
    %408 = vector.shape_cast %407 : vector<16xf32> to vector<16x1xf32>
    %cst_111 = arith.constant 6.400000e+01 : f32
    %409 = vector.broadcast %cst_111 : f32 to vector<16x1xf32>
    %410 = arith.divf %408, %409 : vector<16x1xf32>
    %cst_112 = arith.constant 9.99999974E-6 : f32
    %411 = vector.broadcast %cst_112 : f32 to vector<16x1xf32>
    %412 = arith.addf %410, %411 : vector<16x1xf32>
    %413 = math.rsqrt %412 : vector<16x1xf32>
    %414 = vector.broadcast %413 : vector<16x1xf32> to vector<16x64xf32>
    %415 = arith.mulf %405, %414 : vector<16x64xf32>
    %416 = vector.broadcast %398 : vector<1x64xf32> to vector<16x64xf32>
    %417 = arith.mulf %415, %416 : vector<16x64xf32>
    %418 = vector.broadcast %399 : vector<1x64xf32> to vector<16x64xf32>
    %419 = arith.addf %417, %418 : vector<16x64xf32>
    %420 = arith.addf %419, %278 : vector<16x64xf32>
    %421 = arith.truncf %420 : vector<16x64xf32> to vector<16x64xbf16>
    %c0_113 = arith.constant 0 : index
    %c768_114 = arith.constant 768 : index
    %422 = vector.load %arg4[%c0_113, %c768_114] : memref<64x1408xbf16, #tpu.memory_space<vmem>>, vector<64x128xbf16>
    %cst_115 = arith.constant dense<0.000000e+00> : vector<16x128xf32>
    %423 = tpu.matmul %421, %422, %cst_115 {dimension_numbers = #tpu.dot_dimension_numbers<[1], [0], [0], [1], [0, 0, 1, 1], [], []>} : vector<16x64xbf16>, vector<64x128xbf16>, vector<16x128xf32> -> vector<16x128xf32>
    %c0_116 = arith.constant 0 : index
    %c2560 = arith.constant 2560 : index
    %424 = vector.load %arg2[%c0_116, %c2560] : memref<1x5248xf32, #tpu.memory_space<vmem>>, vector<1x128xf32>
    %425 = vector.broadcast %424 : vector<1x128xf32> to vector<16x128xf32>
    %426 = arith.addf %423, %425 : vector<16x128xf32>
    %cst_117 = arith.constant 5.000000e-01 : f32
    %427 = vector.broadcast %cst_117 : f32 to vector<16x128xf32>
    %428 = arith.mulf %427, %426 : vector<16x128xf32>
    %cst_118 = arith.constant 4.471500e-02 : f32
    %429 = vector.broadcast %cst_118 : f32 to vector<16x128xf32>
    %430 = arith.mulf %429, %426 : vector<16x128xf32>
    %431 = arith.mulf %430, %426 : vector<16x128xf32>
    %432 = arith.mulf %431, %426 : vector<16x128xf32>
    %433 = arith.addf %426, %432 : vector<16x128xf32>
    %cst_119 = arith.constant 0.797884583 : f32
    %434 = vector.broadcast %cst_119 : f32 to vector<16x128xf32>
    %435 = arith.mulf %434, %433 : vector<16x128xf32>
    %436 = math.tanh %435 : vector<16x128xf32>
    %cst_120 = arith.constant 1.000000e+00 : f32
    %437 = vector.broadcast %cst_120 : f32 to vector<16x128xf32>
    %438 = arith.addf %437, %436 : vector<16x128xf32>
    %439 = arith.mulf %428, %438 : vector<16x128xf32>
    %440 = arith.truncf %439 : vector<16x128xf32> to vector<16x128xbf16>
    %c0_121 = arith.constant 0 : index
    %c256 = arith.constant 256 : index
    %441 = vector.load %arg5[%c0_121, %c256] : memref<128x512xbf16, #tpu.memory_space<vmem>>, vector<128x64xbf16>
    %cst_122 = arith.constant dense<0.000000e+00> : vector<16x64xf32>
    %442 = tpu.matmul %440, %441, %cst_122 {dimension_numbers = #tpu.dot_dimension_numbers<[1], [0], [0], [1], [0, 0, 1, 1], [], []>} : vector<16x128xbf16>, vector<128x64xbf16>, vector<16x64xf32> -> vector<16x64xf32>
    %c0_123 = arith.constant 0 : index
    %c2688 = arith.constant 2688 : index
    %443 = vector.load %arg2[%c0_123, %c2688] : memref<1x5248xf32, #tpu.memory_space<vmem>>, vector<1x64xf32>
    %444 = vector.broadcast %443 : vector<1x64xf32> to vector<16x64xf32>
    %445 = arith.addf %442, %444 : vector<16x64xf32>
    %c0_124 = arith.constant 0 : index
    %c2816 = arith.constant 2816 : index
    %446 = vector.load %arg2[%c0_124, %c2816] : memref<1x5248xf32, #tpu.memory_space<vmem>>, vector<1x64xf32>
    %c0_125 = arith.constant 0 : index
    %c2944 = arith.constant 2944 : index
    %447 = vector.load %arg2[%c0_125, %c2944] : memref<1x5248xf32, #tpu.memory_space<vmem>>, vector<1x64xf32>
    %cst_126 = arith.constant dense<0.000000e+00> : vector<16xf32>
    %448 = vector.multi_reduction <add>, %445, %cst_126 [1] : vector<16x64xf32> to vector<16xf32>
    %449 = vector.shape_cast %448 : vector<16xf32> to vector<16x1xf32>
    %cst_127 = arith.constant 6.400000e+01 : f32
    %450 = vector.broadcast %cst_127 : f32 to vector<16x1xf32>
    %451 = arith.divf %449, %450 : vector<16x1xf32>
    %452 = vector.broadcast %451 : vector<16x1xf32> to vector<16x64xf32>
    %453 = arith.subf %445, %452 : vector<16x64xf32>
    %454 = arith.mulf %453, %453 : vector<16x64xf32>
    %cst_128 = arith.constant dense<0.000000e+00> : vector<16xf32>
    %455 = vector.multi_reduction <add>, %454, %cst_128 [1] : vector<16x64xf32> to vector<16xf32>
    %456 = vector.shape_cast %455 : vector<16xf32> to vector<16x1xf32>
    %cst_129 = arith.constant 6.400000e+01 : f32
    %457 = vector.broadcast %cst_129 : f32 to vector<16x1xf32>
    %458 = arith.divf %456, %457 : vector<16x1xf32>
    %cst_130 = arith.constant 9.99999974E-6 : f32
    %459 = vector.broadcast %cst_130 : f32 to vector<16x1xf32>
    %460 = arith.addf %458, %459 : vector<16x1xf32>
    %461 = math.rsqrt %460 : vector<16x1xf32>
    %462 = vector.broadcast %461 : vector<16x1xf32> to vector<16x64xf32>
    %463 = arith.mulf %453, %462 : vector<16x64xf32>
    %464 = vector.broadcast %446 : vector<1x64xf32> to vector<16x64xf32>
    %465 = arith.mulf %463, %464 : vector<16x64xf32>
    %466 = vector.broadcast %447 : vector<1x64xf32> to vector<16x64xf32>
    %467 = arith.addf %465, %466 : vector<16x64xf32>
    %468 = arith.addf %467, %420 : vector<16x64xf32>
    %469 = vector.extract_strided_slice %468 {offsets = [0, 0], sizes = [8, 64], strides = [1, 1]} : vector<16x64xf32> to vector<8x64xf32>
    %470 = vector.extract_strided_slice %469 {offsets = [2, 0], sizes = [6, 64], strides = [1, 1]} : vector<8x64xf32> to vector<6x64xf32>
    %471 = vector.extract_strided_slice %469 {offsets = [0, 0], sizes = [2, 64], strides = [1, 1]} : vector<8x64xf32> to vector<2x64xf32>
    %472 = vector.extract_strided_slice %468 {offsets = [8, 0], sizes = [8, 64], strides = [1, 1]} : vector<16x64xf32> to vector<8x64xf32>
    %473 = vector.extract_strided_slice %472 {offsets = [2, 0], sizes = [6, 64], strides = [1, 1]} : vector<8x64xf32> to vector<6x64xf32>
    %474 = vector.extract_strided_slice %472 {offsets = [0, 0], sizes = [2, 64], strides = [1, 1]} : vector<8x64xf32> to vector<2x64xf32>
    %475 = tpu.concatenate %470, %471, %473, %474 in 0 : vector<6x64xf32>, vector<2x64xf32>, vector<6x64xf32>, vector<2x64xf32> -> vector<16x64xf32>
    %476 = arith.truncf %475 : vector<16x64xf32> to vector<16x64xbf16>
    %c0_131 = arith.constant 0 : index
    %c1152_132 = arith.constant 1152 : index
    %477 = vector.load %arg4[%c0_131, %c1152_132] : memref<64x1408xbf16, #tpu.memory_space<vmem>>, vector<64x64xbf16>
    %cst_133 = arith.constant dense<0.000000e+00> : vector<16x64xf32>
    %478 = tpu.matmul %476, %477, %cst_133 {dimension_numbers = #tpu.dot_dimension_numbers<[1], [0], [0], [1], [0, 0, 1, 1], [], []>} : vector<16x64xbf16>, vector<64x64xbf16>, vector<16x64xf32> -> vector<16x64xf32>
    %c0_134 = arith.constant 0 : index
    %c0_135 = arith.constant 0 : index
    %479 = vector.load %arg11[%c0_134, %c0_135] : memref<64x16xf32, #tpu.memory_space<vmem>>, vector<32x16xf32>
    %480 = vector.extract_strided_slice %478 {offsets = [0, 0], sizes = [16, 32], strides = [1, 1]} : vector<16x64xf32> to vector<16x32xf32>
    %cst_136 = arith.constant dense<0.000000e+00> : vector<32x32xf32>
    %481 = tpu.matmul %479, %480, %cst_136 {dimension_numbers = #tpu.dot_dimension_numbers<[1], [0], [0], [1], [0, 0, 1, 1], [], []>} : vector<32x16xf32>, vector<16x32xf32>, vector<32x32xf32> -> vector<32x32xf32>
    %c32_137 = arith.constant 32 : index
    %c0_138 = arith.constant 0 : index
    %482 = vector.load %arg11[%c32_137, %c0_138] : memref<64x16xf32, #tpu.memory_space<vmem>>, vector<32x16xf32>
    %483 = vector.extract_strided_slice %478 {offsets = [0, 32], sizes = [16, 32], strides = [1, 1]} : vector<16x64xf32> to vector<16x32xf32>
    %cst_139 = arith.constant dense<0.000000e+00> : vector<32x32xf32>
    %484 = tpu.matmul %482, %483, %cst_139 {dimension_numbers = #tpu.dot_dimension_numbers<[1], [0], [0], [1], [0, 0, 1, 1], [], []>} : vector<32x16xf32>, vector<16x32xf32>, vector<32x32xf32> -> vector<32x32xf32>
    %485 = arith.addf %481, %484 : vector<32x32xf32>
    %c0_140 = arith.constant 0 : index
    %c4864 = arith.constant 4864 : index
    %486 = vector.load %arg2[%c0_140, %c4864] : memref<1x5248xf32, #tpu.memory_space<vmem>>, vector<1x32xf32>
    %c0_141 = arith.constant 0 : index
    %c4992 = arith.constant 4992 : index
    %487 = vector.load %arg2[%c0_141, %c4992] : memref<1x5248xf32, #tpu.memory_space<vmem>>, vector<1x32xf32>
    %cst_142 = arith.constant dense<0.000000e+00> : vector<32xf32>
    %488 = vector.multi_reduction <add>, %485, %cst_142 [1] : vector<32x32xf32> to vector<32xf32>
    %489 = vector.shape_cast %488 : vector<32xf32> to vector<32x1xf32>
    %cst_143 = arith.constant 3.200000e+01 : f32
    %490 = vector.broadcast %cst_143 : f32 to vector<32x1xf32>
    %491 = arith.divf %489, %490 : vector<32x1xf32>
    %492 = vector.broadcast %491 : vector<32x1xf32> to vector<32x32xf32>
    %493 = arith.subf %485, %492 : vector<32x32xf32>
    %494 = arith.mulf %493, %493 : vector<32x32xf32>
    %cst_144 = arith.constant dense<0.000000e+00> : vector<32xf32>
    %495 = vector.multi_reduction <add>, %494, %cst_144 [1] : vector<32x32xf32> to vector<32xf32>
    %496 = vector.shape_cast %495 : vector<32xf32> to vector<32x1xf32>
    %cst_145 = arith.constant 3.200000e+01 : f32
    %497 = vector.broadcast %cst_145 : f32 to vector<32x1xf32>
    %498 = arith.divf %496, %497 : vector<32x1xf32>
    %cst_146 = arith.constant 9.99999974E-6 : f32
    %499 = vector.broadcast %cst_146 : f32 to vector<32x1xf32>
    %500 = arith.addf %498, %499 : vector<32x1xf32>
    %501 = math.rsqrt %500 : vector<32x1xf32>
    %502 = vector.broadcast %501 : vector<32x1xf32> to vector<32x32xf32>
    %503 = arith.mulf %493, %502 : vector<32x32xf32>
    %504 = vector.broadcast %486 : vector<1x32xf32> to vector<32x32xf32>
    %505 = arith.mulf %503, %504 : vector<32x32xf32>
    %506 = vector.broadcast %487 : vector<1x32xf32> to vector<32x32xf32>
    %507 = arith.addf %505, %506 : vector<32x32xf32>
    %c0_147 = arith.constant 0 : index
    %c1280_148 = arith.constant 1280 : index
    %508 = vector.load %arg4[%c0_147, %c1280_148] : memref<64x1408xbf16, #tpu.memory_space<vmem>>, vector<64x32xbf16>
    %509 = arith.truncf %507 : vector<32x32xf32> to vector<32x32xbf16>
    %510 = vector.extract_strided_slice %508 {offsets = [0, 0], sizes = [32, 32], strides = [1, 1]} : vector<64x32xbf16> to vector<32x32xbf16>
    %cst_149 = arith.constant dense<0.000000e+00> : vector<32x32xf32>
    %511 = tpu.matmul %509, %510, %cst_149 {dimension_numbers = #tpu.dot_dimension_numbers<[1], [0], [0], [1], [0, 0, 1, 1], [], []>} : vector<32x32xbf16>, vector<32x32xbf16>, vector<32x32xf32> -> vector<32x32xf32>
    %512 = arith.truncf %225 : vector<32x32xf32> to vector<32x32xbf16>
    %513 = vector.extract_strided_slice %508 {offsets = [32, 0], sizes = [32, 32], strides = [1, 1]} : vector<64x32xbf16> to vector<32x32xbf16>
    %cst_150 = arith.constant dense<0.000000e+00> : vector<32x32xf32>
    %514 = tpu.matmul %512, %513, %cst_150 {dimension_numbers = #tpu.dot_dimension_numbers<[1], [0], [0], [1], [0, 0, 1, 1], [], []>} : vector<32x32xbf16>, vector<32x32xbf16>, vector<32x32xf32> -> vector<32x32xf32>
    %515 = arith.addf %511, %514 : vector<32x32xf32>
    %c0_151 = arith.constant 0 : index
    %c5120 = arith.constant 5120 : index
    %516 = vector.load %arg2[%c0_151, %c5120] : memref<1x5248xf32, #tpu.memory_space<vmem>>, vector<1x32xf32>
    %517 = vector.broadcast %516 : vector<1x32xf32> to vector<32x32xf32>
    %518 = arith.addf %515, %517 : vector<32x32xf32>
    %519 = arith.truncf %518 : vector<32x32xf32> to vector<32x32xbf16>
    %c0_152 = arith.constant 0 : index
    %c768_153 = arith.constant 768 : index
    %520 = vector.load %arg3[%c0_152, %c768_153] : memref<32x1664xbf16, #tpu.memory_space<vmem>>, vector<32x640xbf16>
    %cst_154 = arith.constant dense<0.000000e+00> : vector<32x640xf32>
    %521 = tpu.matmul %519, %520, %cst_154 {dimension_numbers = #tpu.dot_dimension_numbers<[1], [0], [0], [1], [0, 0, 1, 1], [], []>} : vector<32x32xbf16>, vector<32x640xbf16>, vector<32x640xf32> -> vector<32x640xf32>
    %c0_155 = arith.constant 0 : index
    %c3072 = arith.constant 3072 : index
    %522 = vector.load %arg2[%c0_155, %c3072] : memref<1x5248xf32, #tpu.memory_space<vmem>>, vector<1x640xf32>
    %523 = vector.broadcast %522 : vector<1x640xf32> to vector<32x640xf32>
    %524 = arith.addf %521, %523 : vector<32x640xf32>
    %c0_156 = arith.constant 0 : index
    %c0_157 = arith.constant 0 : index
    %525 = vector.load %arg8[%c0_156, %c0_157] : memref<256x32xf32, #tpu.memory_space<vmem>>, vector<32x32xf32>
    %c32_158 = arith.constant 32 : index
    %c0_159 = arith.constant 0 : index
    %526 = vector.load %arg8[%c32_158, %c0_159] : memref<256x32xf32, #tpu.memory_space<vmem>>, vector<32x32xf32>
    %c64_160 = arith.constant 64 : index
    %c0_161 = arith.constant 0 : index
    %527 = vector.load %arg8[%c64_160, %c0_161] : memref<256x32xf32, #tpu.memory_space<vmem>>, vector<32x32xf32>
    %c96_162 = arith.constant 96 : index
    %c0_163 = arith.constant 0 : index
    %528 = vector.load %arg8[%c96_162, %c0_163] : memref<256x32xf32, #tpu.memory_space<vmem>>, vector<32x32xf32>
    %c128_164 = arith.constant 128 : index
    %c0_165 = arith.constant 0 : index
    %529 = vector.load %arg8[%c128_164, %c0_165] : memref<256x32xf32, #tpu.memory_space<vmem>>, vector<32x32xf32>
    %c160_166 = arith.constant 160 : index
    %c0_167 = arith.constant 0 : index
    %530 = vector.load %arg8[%c160_166, %c0_167] : memref<256x32xf32, #tpu.memory_space<vmem>>, vector<32x32xf32>
    %c192_168 = arith.constant 192 : index
    %c0_169 = arith.constant 0 : index
    %531 = vector.load %arg8[%c192_168, %c0_169] : memref<256x32xf32, #tpu.memory_space<vmem>>, vector<32x32xf32>
    %c224_170 = arith.constant 224 : index
    %c0_171 = arith.constant 0 : index
    %532 = vector.load %arg8[%c224_170, %c0_171] : memref<256x32xf32, #tpu.memory_space<vmem>>, vector<32x32xf32>
    %533 = vector.extract_strided_slice %524 {offsets = [0, 0], sizes = [32, 64], strides = [1, 1]} : vector<32x640xf32> to vector<32x64xf32>
    %534 = vector.extract_strided_slice %524 {offsets = [0, 128], sizes = [32, 64], strides = [1, 1]} : vector<32x640xf32> to vector<32x64xf32>
    %535 = vector.extract_strided_slice %524 {offsets = [0, 256], sizes = [32, 64], strides = [1, 1]} : vector<32x640xf32> to vector<32x64xf32>
    %536 = vector.extract_strided_slice %524 {offsets = [0, 384], sizes = [32, 7], strides = [1, 1]} : vector<32x640xf32> to vector<32x7xf32>
    %537 = arith.truncf %533 : vector<32x64xf32> to vector<32x64xbf16>
    %538 = arith.truncf %534 : vector<32x64xf32> to vector<32x64xbf16>
    %cst_172 = arith.constant dense<0.000000e+00> : vector<32x32xf32>
    %539 = tpu.matmul %537, %538, %cst_172 {dimension_numbers = #tpu.dot_dimension_numbers<[1], [1], [0], [0], [0, 0, 1, 0], [], []>} : vector<32x64xbf16>, vector<32x64xbf16>, vector<32x32xf32> -> vector<32x32xf32>
    %540 = arith.addf %539, %525 : vector<32x32xf32>
    %541 = vector.extract_strided_slice %536 {offsets = [0, 0], sizes = [32, 1], strides = [1, 1]} : vector<32x7xf32> to vector<32x1xf32>
    %542 = vector.broadcast %541 : vector<32x1xf32> to vector<32x32xf32>
    %543 = arith.mulf %542, %526 : vector<32x32xf32>
    %544 = arith.addf %540, %543 : vector<32x32xf32>
    %545 = vector.extract_strided_slice %536 {offsets = [0, 1], sizes = [32, 1], strides = [1, 1]} : vector<32x7xf32> to vector<32x1xf32>
    %546 = vector.broadcast %545 : vector<32x1xf32> to vector<32x32xf32>
    %547 = arith.mulf %546, %527 : vector<32x32xf32>
    %548 = arith.addf %544, %547 : vector<32x32xf32>
    %549 = vector.extract_strided_slice %536 {offsets = [0, 2], sizes = [32, 1], strides = [1, 1]} : vector<32x7xf32> to vector<32x1xf32>
    %550 = vector.broadcast %549 : vector<32x1xf32> to vector<32x32xf32>
    %551 = arith.mulf %550, %528 : vector<32x32xf32>
    %552 = arith.addf %548, %551 : vector<32x32xf32>
    %553 = vector.extract_strided_slice %536 {offsets = [0, 3], sizes = [32, 1], strides = [1, 1]} : vector<32x7xf32> to vector<32x1xf32>
    %554 = vector.broadcast %553 : vector<32x1xf32> to vector<32x32xf32>
    %555 = arith.mulf %554, %529 : vector<32x32xf32>
    %556 = arith.addf %552, %555 : vector<32x32xf32>
    %557 = vector.extract_strided_slice %536 {offsets = [0, 4], sizes = [32, 1], strides = [1, 1]} : vector<32x7xf32> to vector<32x1xf32>
    %558 = vector.broadcast %557 : vector<32x1xf32> to vector<32x32xf32>
    %559 = arith.mulf %558, %530 : vector<32x32xf32>
    %560 = arith.addf %556, %559 : vector<32x32xf32>
    %561 = vector.extract_strided_slice %536 {offsets = [0, 5], sizes = [32, 1], strides = [1, 1]} : vector<32x7xf32> to vector<32x1xf32>
    %562 = vector.broadcast %561 : vector<32x1xf32> to vector<32x32xf32>
    %563 = arith.mulf %562, %531 : vector<32x32xf32>
    %564 = arith.addf %560, %563 : vector<32x32xf32>
    %565 = vector.extract_strided_slice %536 {offsets = [0, 6], sizes = [32, 1], strides = [1, 1]} : vector<32x7xf32> to vector<32x1xf32>
    %566 = vector.broadcast %565 : vector<32x1xf32> to vector<32x32xf32>
    %567 = arith.mulf %566, %532 : vector<32x32xf32>
    %568 = arith.addf %564, %567 : vector<32x32xf32>
    %cst_173 = arith.constant dense<0xFF800000> : vector<32xf32>
    %569 = vector.multi_reduction <maximumf>, %568, %cst_173 [1] : vector<32x32xf32> to vector<32xf32>
    %570 = vector.shape_cast %569 : vector<32xf32> to vector<32x1xf32>
    %571 = vector.broadcast %570 : vector<32x1xf32> to vector<32x32xf32>
    %572 = arith.subf %568, %571 : vector<32x32xf32>
    %573 = math.exp %572 : vector<32x32xf32>
    %cst_174 = arith.constant dense<0.000000e+00> : vector<32xf32>
    %574 = vector.multi_reduction <add>, %573, %cst_174 [1] : vector<32x32xf32> to vector<32xf32>
    %575 = vector.shape_cast %574 : vector<32xf32> to vector<32x1xf32>
    %576 = tpu.reciprocal %575 {approx = true} : vector<32x1xf32> -> vector<32x1xf32>
    %577 = vector.broadcast %576 : vector<32x1xf32> to vector<32x32xf32>
    %578 = arith.mulf %573, %577 : vector<32x32xf32>
    %579 = arith.truncf %578 : vector<32x32xf32> to vector<32x32xbf16>
    %580 = arith.truncf %535 : vector<32x64xf32> to vector<32x64xbf16>
    %cst_175 = arith.constant dense<0.000000e+00> : vector<32x64xf32>
    %581 = tpu.matmul %579, %580, %cst_175 {dimension_numbers = #tpu.dot_dimension_numbers<[1], [0], [0], [1], [0, 0, 1, 1], [], []>} : vector<32x32xbf16>, vector<32x64xbf16>, vector<32x64xf32> -> vector<32x64xf32>
    %582 = vector.extract_strided_slice %524 {offsets = [0, 64], sizes = [32, 64], strides = [1, 1]} : vector<32x640xf32> to vector<32x64xf32>
    %583 = vector.extract_strided_slice %524 {offsets = [0, 192], sizes = [32, 64], strides = [1, 1]} : vector<32x640xf32> to vector<32x64xf32>
    %584 = vector.extract_strided_slice %524 {offsets = [0, 320], sizes = [32, 64], strides = [1, 1]} : vector<32x640xf32> to vector<32x64xf32>
    %585 = vector.extract_strided_slice %524 {offsets = [0, 512], sizes = [32, 7], strides = [1, 1]} : vector<32x640xf32> to vector<32x7xf32>
    %586 = arith.truncf %582 : vector<32x64xf32> to vector<32x64xbf16>
    %587 = arith.truncf %583 : vector<32x64xf32> to vector<32x64xbf16>
    %cst_176 = arith.constant dense<0.000000e+00> : vector<32x32xf32>
    %588 = tpu.matmul %586, %587, %cst_176 {dimension_numbers = #tpu.dot_dimension_numbers<[1], [1], [0], [0], [0, 0, 1, 0], [], []>} : vector<32x64xbf16>, vector<32x64xbf16>, vector<32x32xf32> -> vector<32x32xf32>
    %589 = arith.addf %588, %525 : vector<32x32xf32>
    %590 = vector.extract_strided_slice %585 {offsets = [0, 0], sizes = [32, 1], strides = [1, 1]} : vector<32x7xf32> to vector<32x1xf32>
    %591 = vector.broadcast %590 : vector<32x1xf32> to vector<32x32xf32>
    %592 = arith.mulf %591, %526 : vector<32x32xf32>
    %593 = arith.addf %589, %592 : vector<32x32xf32>
    %594 = vector.extract_strided_slice %585 {offsets = [0, 1], sizes = [32, 1], strides = [1, 1]} : vector<32x7xf32> to vector<32x1xf32>
    %595 = vector.broadcast %594 : vector<32x1xf32> to vector<32x32xf32>
    %596 = arith.mulf %595, %527 : vector<32x32xf32>
    %597 = arith.addf %593, %596 : vector<32x32xf32>
    %598 = vector.extract_strided_slice %585 {offsets = [0, 2], sizes = [32, 1], strides = [1, 1]} : vector<32x7xf32> to vector<32x1xf32>
    %599 = vector.broadcast %598 : vector<32x1xf32> to vector<32x32xf32>
    %600 = arith.mulf %599, %528 : vector<32x32xf32>
    %601 = arith.addf %597, %600 : vector<32x32xf32>
    %602 = vector.extract_strided_slice %585 {offsets = [0, 3], sizes = [32, 1], strides = [1, 1]} : vector<32x7xf32> to vector<32x1xf32>
    %603 = vector.broadcast %602 : vector<32x1xf32> to vector<32x32xf32>
    %604 = arith.mulf %603, %529 : vector<32x32xf32>
    %605 = arith.addf %601, %604 : vector<32x32xf32>
    %606 = vector.extract_strided_slice %585 {offsets = [0, 4], sizes = [32, 1], strides = [1, 1]} : vector<32x7xf32> to vector<32x1xf32>
    %607 = vector.broadcast %606 : vector<32x1xf32> to vector<32x32xf32>
    %608 = arith.mulf %607, %530 : vector<32x32xf32>
    %609 = arith.addf %605, %608 : vector<32x32xf32>
    %610 = vector.extract_strided_slice %585 {offsets = [0, 5], sizes = [32, 1], strides = [1, 1]} : vector<32x7xf32> to vector<32x1xf32>
    %611 = vector.broadcast %610 : vector<32x1xf32> to vector<32x32xf32>
    %612 = arith.mulf %611, %531 : vector<32x32xf32>
    %613 = arith.addf %609, %612 : vector<32x32xf32>
    %614 = vector.extract_strided_slice %585 {offsets = [0, 6], sizes = [32, 1], strides = [1, 1]} : vector<32x7xf32> to vector<32x1xf32>
    %615 = vector.broadcast %614 : vector<32x1xf32> to vector<32x32xf32>
    %616 = arith.mulf %615, %532 : vector<32x32xf32>
    %617 = arith.addf %613, %616 : vector<32x32xf32>
    %cst_177 = arith.constant dense<0xFF800000> : vector<32xf32>
    %618 = vector.multi_reduction <maximumf>, %617, %cst_177 [1] : vector<32x32xf32> to vector<32xf32>
    %619 = vector.shape_cast %618 : vector<32xf32> to vector<32x1xf32>
    %620 = vector.broadcast %619 : vector<32x1xf32> to vector<32x32xf32>
    %621 = arith.subf %617, %620 : vector<32x32xf32>
    %622 = math.exp %621 : vector<32x32xf32>
    %cst_178 = arith.constant dense<0.000000e+00> : vector<32xf32>
    %623 = vector.multi_reduction <add>, %622, %cst_178 [1] : vector<32x32xf32> to vector<32xf32>
    %624 = vector.shape_cast %623 : vector<32xf32> to vector<32x1xf32>
    %625 = tpu.reciprocal %624 {approx = true} : vector<32x1xf32> -> vector<32x1xf32>
    %626 = vector.broadcast %625 : vector<32x1xf32> to vector<32x32xf32>
    %627 = arith.mulf %622, %626 : vector<32x32xf32>
    %628 = arith.truncf %627 : vector<32x32xf32> to vector<32x32xbf16>
    %629 = arith.truncf %584 : vector<32x64xf32> to vector<32x64xbf16>
    %cst_179 = arith.constant dense<0.000000e+00> : vector<32x64xf32>
    %630 = tpu.matmul %628, %629, %cst_179 {dimension_numbers = #tpu.dot_dimension_numbers<[1], [0], [0], [1], [0, 0, 1, 1], [], []>} : vector<32x32xbf16>, vector<32x64xbf16>, vector<32x64xf32> -> vector<32x64xf32>
    %631 = tpu.concatenate %581, %630 in 1 : vector<32x64xf32>, vector<32x64xf32> -> vector<32x128xf32>
    %632 = arith.truncf %631 : vector<32x128xf32> to vector<32x128xbf16>
    %c0_180 = arith.constant 0 : index
    %c384 = arith.constant 384 : index
    %633 = vector.load %arg5[%c0_180, %c384] : memref<128x512xbf16, #tpu.memory_space<vmem>>, vector<128x32xbf16>
    %cst_181 = arith.constant dense<0.000000e+00> : vector<32x32xf32>
    %634 = tpu.matmul %632, %633, %cst_181 {dimension_numbers = #tpu.dot_dimension_numbers<[1], [0], [0], [1], [0, 0, 1, 1], [], []>} : vector<32x128xbf16>, vector<128x32xbf16>, vector<32x32xf32> -> vector<32x32xf32>
    %c0_182 = arith.constant 0 : index
    %c3712 = arith.constant 3712 : index
    %635 = vector.load %arg2[%c0_182, %c3712] : memref<1x5248xf32, #tpu.memory_space<vmem>>, vector<1x32xf32>
    %636 = vector.broadcast %635 : vector<1x32xf32> to vector<32x32xf32>
    %637 = arith.addf %634, %636 : vector<32x32xf32>
    %c0_183 = arith.constant 0 : index
    %c3840 = arith.constant 3840 : index
    %638 = vector.load %arg2[%c0_183, %c3840] : memref<1x5248xf32, #tpu.memory_space<vmem>>, vector<1x32xf32>
    %c0_184 = arith.constant 0 : index
    %c3968 = arith.constant 3968 : index
    %639 = vector.load %arg2[%c0_184, %c3968] : memref<1x5248xf32, #tpu.memory_space<vmem>>, vector<1x32xf32>
    %cst_185 = arith.constant dense<0.000000e+00> : vector<32xf32>
    %640 = vector.multi_reduction <add>, %637, %cst_185 [1] : vector<32x32xf32> to vector<32xf32>
    %641 = vector.shape_cast %640 : vector<32xf32> to vector<32x1xf32>
    %cst_186 = arith.constant 3.200000e+01 : f32
    %642 = vector.broadcast %cst_186 : f32 to vector<32x1xf32>
    %643 = arith.divf %641, %642 : vector<32x1xf32>
    %644 = vector.broadcast %643 : vector<32x1xf32> to vector<32x32xf32>
    %645 = arith.subf %637, %644 : vector<32x32xf32>
    %646 = arith.mulf %645, %645 : vector<32x32xf32>
    %cst_187 = arith.constant dense<0.000000e+00> : vector<32xf32>
    %647 = vector.multi_reduction <add>, %646, %cst_187 [1] : vector<32x32xf32> to vector<32xf32>
    %648 = vector.shape_cast %647 : vector<32xf32> to vector<32x1xf32>
    %cst_188 = arith.constant 3.200000e+01 : f32
    %649 = vector.broadcast %cst_188 : f32 to vector<32x1xf32>
    %650 = arith.divf %648, %649 : vector<32x1xf32>
    %cst_189 = arith.constant 9.99999974E-6 : f32
    %651 = vector.broadcast %cst_189 : f32 to vector<32x1xf32>
    %652 = arith.addf %650, %651 : vector<32x1xf32>
    %653 = math.rsqrt %652 : vector<32x1xf32>
    %654 = vector.broadcast %653 : vector<32x1xf32> to vector<32x32xf32>
    %655 = arith.mulf %645, %654 : vector<32x32xf32>
    %656 = vector.broadcast %638 : vector<1x32xf32> to vector<32x32xf32>
    %657 = arith.mulf %655, %656 : vector<32x32xf32>
    %658 = vector.broadcast %639 : vector<1x32xf32> to vector<32x32xf32>
    %659 = arith.addf %657, %658 : vector<32x32xf32>
    %660 = arith.addf %659, %518 : vector<32x32xf32>
    %661 = arith.truncf %660 : vector<32x32xf32> to vector<32x32xbf16>
    %c0_190 = arith.constant 0 : index
    %c1408_191 = arith.constant 1408 : index
    %662 = vector.load %arg3[%c0_190, %c1408_191] : memref<32x1664xbf16, #tpu.memory_space<vmem>>, vector<32x64xbf16>
    %cst_192 = arith.constant dense<0.000000e+00> : vector<32x64xf32>
    %663 = tpu.matmul %661, %662, %cst_192 {dimension_numbers = #tpu.dot_dimension_numbers<[1], [0], [0], [1], [0, 0, 1, 1], [], []>} : vector<32x32xbf16>, vector<32x64xbf16>, vector<32x64xf32> -> vector<32x64xf32>
    %c0_193 = arith.constant 0 : index
    %c4096 = arith.constant 4096 : index
    %664 = vector.load %arg2[%c0_193, %c4096] : memref<1x5248xf32, #tpu.memory_space<vmem>>, vector<1x64xf32>
    %665 = vector.broadcast %664 : vector<1x64xf32> to vector<32x64xf32>
    %666 = arith.addf %663, %665 : vector<32x64xf32>
    %cst_194 = arith.constant 5.000000e-01 : f32
    %667 = vector.broadcast %cst_194 : f32 to vector<32x64xf32>
    %668 = arith.mulf %667, %666 : vector<32x64xf32>
    %cst_195 = arith.constant 4.471500e-02 : f32
    %669 = vector.broadcast %cst_195 : f32 to vector<32x64xf32>
    %670 = arith.mulf %669, %666 : vector<32x64xf32>
    %671 = arith.mulf %670, %666 : vector<32x64xf32>
    %672 = arith.mulf %671, %666 : vector<32x64xf32>
    %673 = arith.addf %666, %672 : vector<32x64xf32>
    %cst_196 = arith.constant 0.797884583 : f32
    %674 = vector.broadcast %cst_196 : f32 to vector<32x64xf32>
    %675 = arith.mulf %674, %673 : vector<32x64xf32>
    %676 = math.tanh %675 : vector<32x64xf32>
    %cst_197 = arith.constant 1.000000e+00 : f32
    %677 = vector.broadcast %cst_197 : f32 to vector<32x64xf32>
    %678 = arith.addf %677, %676 : vector<32x64xf32>
    %679 = arith.mulf %668, %678 : vector<32x64xf32>
    %680 = arith.truncf %679 : vector<32x64xf32> to vector<32x64xbf16>
    %c0_198 = arith.constant 0 : index
    %c896_199 = arith.constant 896 : index
    %681 = vector.load %arg4[%c0_198, %c896_199] : memref<64x1408xbf16, #tpu.memory_space<vmem>>, vector<64x32xbf16>
    %cst_200 = arith.constant dense<0.000000e+00> : vector<32x32xf32>
    %682 = tpu.matmul %680, %681, %cst_200 {dimension_numbers = #tpu.dot_dimension_numbers<[1], [0], [0], [1], [0, 0, 1, 1], [], []>} : vector<32x64xbf16>, vector<64x32xbf16>, vector<32x32xf32> -> vector<32x32xf32>
    %c0_201 = arith.constant 0 : index
    %c4224 = arith.constant 4224 : index
    %683 = vector.load %arg2[%c0_201, %c4224] : memref<1x5248xf32, #tpu.memory_space<vmem>>, vector<1x32xf32>
    %684 = vector.broadcast %683 : vector<1x32xf32> to vector<32x32xf32>
    %685 = arith.addf %682, %684 : vector<32x32xf32>
    %c0_202 = arith.constant 0 : index
    %c4352 = arith.constant 4352 : index
    %686 = vector.load %arg2[%c0_202, %c4352] : memref<1x5248xf32, #tpu.memory_space<vmem>>, vector<1x32xf32>
    %c0_203 = arith.constant 0 : index
    %c4480 = arith.constant 4480 : index
    %687 = vector.load %arg2[%c0_203, %c4480] : memref<1x5248xf32, #tpu.memory_space<vmem>>, vector<1x32xf32>
    %cst_204 = arith.constant dense<0.000000e+00> : vector<32xf32>
    %688 = vector.multi_reduction <add>, %685, %cst_204 [1] : vector<32x32xf32> to vector<32xf32>
    %689 = vector.shape_cast %688 : vector<32xf32> to vector<32x1xf32>
    %cst_205 = arith.constant 3.200000e+01 : f32
    %690 = vector.broadcast %cst_205 : f32 to vector<32x1xf32>
    %691 = arith.divf %689, %690 : vector<32x1xf32>
    %692 = vector.broadcast %691 : vector<32x1xf32> to vector<32x32xf32>
    %693 = arith.subf %685, %692 : vector<32x32xf32>
    %694 = arith.mulf %693, %693 : vector<32x32xf32>
    %cst_206 = arith.constant dense<0.000000e+00> : vector<32xf32>
    %695 = vector.multi_reduction <add>, %694, %cst_206 [1] : vector<32x32xf32> to vector<32xf32>
    %696 = vector.shape_cast %695 : vector<32xf32> to vector<32x1xf32>
    %cst_207 = arith.constant 3.200000e+01 : f32
    %697 = vector.broadcast %cst_207 : f32 to vector<32x1xf32>
    %698 = arith.divf %696, %697 : vector<32x1xf32>
    %cst_208 = arith.constant 9.99999974E-6 : f32
    %699 = vector.broadcast %cst_208 : f32 to vector<32x1xf32>
    %700 = arith.addf %698, %699 : vector<32x1xf32>
    %701 = math.rsqrt %700 : vector<32x1xf32>
    %702 = vector.broadcast %701 : vector<32x1xf32> to vector<32x32xf32>
    %703 = arith.mulf %693, %702 : vector<32x32xf32>
    %704 = vector.broadcast %686 : vector<1x32xf32> to vector<32x32xf32>
    %705 = arith.mulf %703, %704 : vector<32x32xf32>
    %706 = vector.broadcast %687 : vector<1x32xf32> to vector<32x32xf32>
    %707 = arith.addf %705, %706 : vector<32x32xf32>
    %708 = arith.addf %707, %660 : vector<32x32xf32>
    %709 = vector.extract_strided_slice %708 {offsets = [0, 0], sizes = [16, 32], strides = [1, 1]} : vector<32x32xf32> to vector<16x32xf32>
    %710 = vector.extract_strided_slice %709 {offsets = [2, 0], sizes = [14, 32], strides = [1, 1]} : vector<16x32xf32> to vector<14x32xf32>
    %711 = vector.extract_strided_slice %709 {offsets = [0, 0], sizes = [2, 32], strides = [1, 1]} : vector<16x32xf32> to vector<2x32xf32>
    %712 = vector.extract_strided_slice %708 {offsets = [16, 0], sizes = [16, 32], strides = [1, 1]} : vector<32x32xf32> to vector<16x32xf32>
    %713 = vector.extract_strided_slice %712 {offsets = [2, 0], sizes = [14, 32], strides = [1, 1]} : vector<16x32xf32> to vector<14x32xf32>
    %714 = vector.extract_strided_slice %712 {offsets = [0, 0], sizes = [2, 32], strides = [1, 1]} : vector<16x32xf32> to vector<2x32xf32>
    %715 = tpu.concatenate %710, %711, %713, %714 in 0 : vector<14x32xf32>, vector<2x32xf32>, vector<14x32xf32>, vector<2x32xf32> -> vector<32x32xf32>
    %716 = arith.truncf %715 : vector<32x32xf32> to vector<32x32xbf16>
    %c0_209 = arith.constant 0 : index
    %c1536_210 = arith.constant 1536 : index
    %717 = vector.load %arg3[%c0_209, %c1536_210] : memref<32x1664xbf16, #tpu.memory_space<vmem>>, vector<32x4xbf16>
    %cst_211 = arith.constant dense<0.000000e+00> : vector<32x4xf32>
    %718 = tpu.matmul %716, %717, %cst_211 {dimension_numbers = #tpu.dot_dimension_numbers<[1], [0], [0], [1], [0, 0, 1, 1], [], []>} : vector<32x32xbf16>, vector<32x4xbf16>, vector<32x4xf32> -> vector<32x4xf32>
    %c0_212 = arith.constant 0 : index
    %c0_213 = arith.constant 0 : index
    %719 = vector.load %arg12[%c0_212, %c0_213] : memref<32x4xf32, #tpu.memory_space<vmem>>, vector<32x4xf32>
    tpu.vector_store %arg12[%c0_212, %c0_213], %718 {strides = array<i32>} : memref<32x4xf32, #tpu.memory_space<vmem>>, vector<32x4xf32>,
    return
  }
  func.func @transform_0(%arg0: i32) -> (i32, i32) {
    %c0_i32 = arith.constant 0 : i32
    %c0_i32_0 = arith.constant 0 : i32
    return %arg0, %c0_i32 : i32, i32
  }
  func.func @transform_1(%arg0: i32) -> (i32, i32) {
    %c0_i32 = arith.constant 0 : i32
    %c0_i32_0 = arith.constant 0 : i32
    %c0_i32_1 = arith.constant 0 : i32
    return %c0_i32, %c0_i32_0 : i32, i32
  }
  func.func @transform_2(%arg0: i32) -> (i32, i32) {
    %c0_i32 = arith.constant 0 : i32
    %c0_i32_0 = arith.constant 0 : i32
    %c0_i32_1 = arith.constant 0 : i32
    return %c0_i32, %c0_i32_0 : i32, i32
  }
  func.func @transform_3(%arg0: i32) -> (i32, i32) {
    %c0_i32 = arith.constant 0 : i32
    %c0_i32_0 = arith.constant 0 : i32
    %c0_i32_1 = arith.constant 0 : i32
    return %c0_i32, %c0_i32_0 : i32, i32
  }
  func.func @transform_4(%arg0: i32) -> (i32, i32) {
    %c0_i32 = arith.constant 0 : i32
    %c0_i32_0 = arith.constant 0 : i32
    %c0_i32_1 = arith.constant 0 : i32
    return %c0_i32, %c0_i32_0 : i32, i32
  }
  func.func @transform_5(%arg0: i32) -> (i32, i32) {
    %c0_i32 = arith.constant 0 : i32
    %c0_i32_0 = arith.constant 0 : i32
    %c0_i32_1 = arith.constant 0 : i32
    return %c0_i32, %c0_i32_0 : i32, i32
  }
  func.func @transform_6(%arg0: i32) -> (i32, i32) {
    %c0_i32 = arith.constant 0 : i32
    %c0_i32_0 = arith.constant 0 : i32
    %c0_i32_1 = arith.constant 0 : i32
    return %c0_i32, %c0_i32_0 : i32, i32
  }
  func.func @transform_7(%arg0: i32) -> (i32, i32) {
    %c0_i32 = arith.constant 0 : i32
    %c0_i32_0 = arith.constant 0 : i32
    %c0_i32_1 = arith.constant 0 : i32
    return %c0_i32, %c0_i32_0 : i32, i32
  }
  func.func @transform_8(%arg0: i32) -> (i32, i32) {
    %c0_i32 = arith.constant 0 : i32
    %c0_i32_0 = arith.constant 0 : i32
    %c0_i32_1 = arith.constant 0 : i32
    return %c0_i32, %c0_i32_0 : i32, i32
  }
  func.func @transform_9(%arg0: i32) -> (i32, i32) {
    %c0_i32 = arith.constant 0 : i32
    %c0_i32_0 = arith.constant 0 : i32
    %c0_i32_1 = arith.constant 0 : i32
    return %c0_i32, %c0_i32_0 : i32, i32
  }
  func.func @transform_10(%arg0: i32) -> (i32, i32) {
    %c0_i32 = arith.constant 0 : i32
    %c0_i32_0 = arith.constant 0 : i32
    %c0_i32_1 = arith.constant 0 : i32
    return %c0_i32, %c0_i32_0 : i32, i32
  }
  func.func @transform_11(%arg0: i32) -> (i32, i32) {
    %c0_i32 = arith.constant 0 : i32
    %c0_i32_0 = arith.constant 0 : i32
    return %arg0, %c0_i32 : i32, i32
  }
}

</mosaic_0001>

<llo_original>
// kernel: forward.1
$region0: #{forward.1}
  #allocation0 [shape = 'u32[]', space=smem, size = 0x4, offset = 0x4, fixed_abs, tag = 'smem constant byte address 0x4 - core index']
  #allocation1 [shape = 'u32[144,128]{1,0:T(1,128)}', space=vmem, size = 0x12000, scoped, tag = 'internal scratch']
  %s0 = inlined_call_operand.vmem [shape: f32[32,4], index: 0, kind: input, shape index: {}]
  %s1 = inlined_call_operand.vmem [shape: f32[1,5248], index: 1, kind: input, shape index: {}]
  %s2 = inlined_call_operand.vmem [shape: bf16[32,1664], index: 2, kind: input, shape index: {}]
  %s3 = inlined_call_operand.vmem [shape: bf16[64,1408], index: 3, kind: input, shape index: {}]
  %s4 = inlined_call_operand.vmem [shape: bf16[128,512], index: 4, kind: input, shape index: {}]
  %s5 = inlined_call_operand.vmem [shape: bf16[4,96], index: 5, kind: input, shape index: {}]
  %s6 = inlined_call_operand.vmem [shape: f32[32,32], index: 6, kind: input, shape index: {}]
  %s7 = inlined_call_operand.vmem [shape: f32[256,32], index: 7, kind: input, shape index: {}]
  %s8 = inlined_call_operand.vmem [shape: f32[128,16], index: 8, kind: input, shape index: {}]
  %s9 = inlined_call_operand.vmem [shape: f32[32,32], index: 9, kind: input, shape index: {}]
  %s10 = inlined_call_operand.vmem [shape: f32[64,16], index: 10, kind: input, shape index: {}]
  %s11 = inlined_call_operand.vmem [shape: f32[32,4], index: 11, kind: output, shape index: {}]
  %s12 = sld [smem:[#allocation0]]
  $region54: #{forward.1} parent=0
    _
  %s14 = ssub.s32 1, %s12
  %s15 = scalar_select 0, %s14, %s12
  // Predicated region
  $region2: #{forward.1} parent=0 // pred_check
    _
  $region3: #{forward.1} parent=0 // pred_check_branch
    %17 = sbr.rel (0) target = $region5
  $region4: #{forward.1} parent=0 // pred_region
    _
  $region5: #{forward.1} parent=0 // pred_fallthru
    _
  // Predicated region
  $region6: #{forward.1} parent=0 // pred_check
    _
  $region7: #{forward.1} parent=0 // pred_check_branch
    %19 = sbr.rel (0) target = $region9
  $region8: #{forward.1} parent=0 // pred_region
    _
  $region9: #{forward.1} parent=0 // pred_fallthru
    _
  // Predicated region
  $region10: #{forward.1} parent=0 // pred_check
    _
  $region11: #{forward.1} parent=0 // pred_check_branch
    %21 = sbr.rel (0) target = $region13
  $region12: #{forward.1} parent=0 // pred_region
    _
  $region13: #{forward.1} parent=0 // pred_fallthru
    _
  // Predicated region
  $region14: #{forward.1} parent=0 // pred_check
    _
  $region15: #{forward.1} parent=0 // pred_check_branch
    %23 = sbr.rel (0) target = $region17
  $region16: #{forward.1} parent=0 // pred_region
    _
  $region17: #{forward.1} parent=0 // pred_fallthru
    _
  // Predicated region
  $region18: #{forward.1} parent=0 // pred_check
    _
  $region19: #{forward.1} parent=0 // pred_check_branch
    %25 = sbr.rel (0) target = $region21
  $region20: #{forward.1} parent=0 // pred_region
    _
  $region21: #{forward.1} parent=0 // pred_fallthru
    _
  // Predicated region
  $region22: #{forward.1} parent=0 // pred_check
    _
  $region23: #{forward.1} parent=0 // pred_check_branch
    %27 = sbr.rel (0) target = $region25
  $region24: #{forward.1} parent=0 // pred_region
    _
  $region25: #{forward.1} parent=0 // pred_fallthru
    _
  // Predicated region
  $region26: #{forward.1} parent=0 // pred_check
    _
  $region27: #{forward.1} parent=0 // pred_check_branch
    %29 = sbr.rel (0) target = $region29
  $region28: #{forward.1} parent=0 // pred_region
    _
  $region29: #{forward.1} parent=0 // pred_fallthru
    _
  // Predicated region
  $region30: #{forward.1} parent=0 // pred_check
    _
  $region31: #{forward.1} parent=0 // pred_check_branch
    %31 = sbr.rel (0) target = $region33
  $region32: #{forward.1} parent=0 // pred_region
    _
  $region33: #{forward.1} parent=0 // pred_fallthru
    _
  // Predicated region
  $region34: #{forward.1} parent=0 // pred_check
    _
  $region35: #{forward.1} parent=0 // pred_check_branch
    %33 = sbr.rel (0) target = $region37
  $region36: #{forward.1} parent=0 // pred_region
    _
  $region37: #{forward.1} parent=0 // pred_fallthru
    _
  // Predicated region
  $region38: #{forward.1} parent=0 // pred_check
    _
  $region39: #{forward.1} parent=0 // pred_check_branch
    %35 = sbr.rel (0) target = $region41
  $region40: #{forward.1} parent=0 // pred_region
    _
  $region41: #{forward.1} parent=0 // pred_fallthru
    _
  // Predicated region
  $region42: #{forward.1} parent=0 // pred_check
    _
  $region43: #{forward.1} parent=0 // pred_check_branch
    %37 = sbr.rel (0) target = $region45
  $region44: #{forward.1} parent=0 // pred_region
    _
  $region45: #{forward.1} parent=0 // pred_fallthru
    _
  %v39 = vld [vmem:[%s0] sm:$0xff]
  %v40 = vld [vmem:[%s0 + $0x8] sm:$0xff]
  %v41 = vld [vmem:[%s0 + $0x10] sm:$0xff]
  %v42 = vld [vmem:[%s0 + $0x18] sm:$0xff]
  %v44 = vrot.slane %v40, 7
  %vm47 = vcmask 1040384
  %v48 = vrot.slane %v39, 7
  %v49 = vsel %vm47, %v48, %v44
  %v53 = vrot.slane %v42, 7
  %v56 = vrot.slane %v41, 7
  %v57 = vsel %vm47, %v56, %v53
  %v60 = vsel %vm47, %v44, %v48
  %v61 = vsel %vm47, %v53, %v56
  %vm62 = vcmask 1046528
  %v63 = vrot.slane %v39, 1
  %v64 = vrot.slane %v40, 1
  %v65 = vsel %vm62, %v63, %v64
  %v69 = vrot.slane %v41, 1
  %v70 = vrot.slane %v42, 1
  %v71 = vsel %vm62, %v69, %v70
  %v75 = vsel %vm62, %v64, %v63
  %v76 = vsel %vm62, %v70, %v69
  %v77 = vld [vmem:[%s5] sm:$0x3]
  %v78 = vpack.c.bf16 %v49, %v60
  %v79 = vpack.c.bf16 %v57, %v61
  %v80 = vpack.c.bf16 %v40, %v39
  %v81 = vpack.c.bf16 %v42, %v41
  %v84 = vunpack.c.l.s4 1983009808
  %v85 = vunpack.c.0.s8 %v84
  %v86 = vlaneseq
  %v87 = vshrl.u32 %v86, 7
  %v88 = vsub.s32 %v85, %v87
  %v89 = vrot.slane %v77, %v88
  %90 = vrot.lane.b32.xlu0 %v89, 96
  %v91 = vpop.permute.xlu0 %90
  %vm92 = vcmask 31744
  %v94 = vsel %vm92, %v80, 0
  %v97 = vsel %vm92, %v81, 0
  %vm99 = vcmask 1041408
  %v101 = vsel %vm99, %v91, 0
  %103 = vmatprep.subr.bf16.mxu0 0
  %104 = vmatpush1.bf16.msra.mxu0 %v101
  %105 = vmatprep.subr.bf16.mxu0 0
  %106 = vmatpush1.bf16.msra.mxu0 0
  %107 = vmatprep.subr.bf16.mxu0 0
  %108 = vmatpush1.bf16.msra.mxu0 0
  %109 = vmatprep.subr.bf16.mxu0 0
  %110 = vmatpush1.bf16.msra.mxu0 0
  %111 = vmatprep.subr.bf16.mxu0 0
  %112 = vmatpush1.bf16.msra.mxu0 0
  %113 = vmatprep.subr.bf16.mxu0 0
  %114 = vmatpush1.bf16.msra.mxu0 0
  %115 = vmatprep.subr.bf16.mxu0 0
  %116 = vmatpush1.bf16.msra.mxu0 0
  %117 = vmatprep.subr.bf16.mxu0 0
  %118 = vmatpush1.bf16.msra.mxu0 0
  %119 = vmatprep.subr.bf16.mxu0 0
  %120 = vmatpush1.bf16.msra.mxu0 0
  %121 = vmatprep.subr.bf16.mxu0 0
  %122 = vmatpush1.bf16.msra.mxu0 0
  %123 = vmatprep.subr.bf16.mxu0 0
  %124 = vmatpush1.bf16.msra.mxu0 0
  %125 = vmatprep.subr.bf16.mxu0 0
  %126 = vmatpush1.bf16.msra.mxu0 0
  %127 = vmatprep.subr.bf16.mxu0 0
  %128 = vmatpush1.bf16.msra.mxu0 0
  %129 = vmatprep.subr.bf16.mxu0 0
  %130 = vmatpush1.bf16.msra.mxu0 0
  %131 = vmatprep.subr.bf16.mxu0 0
  %132 = vmatpush1.bf16.msra.mxu0 0
  %133 = vmatprep.subr.bf16.mxu0 0
  %134 = vmatpush1.bf16.msra.mxu0 0
  %135 = vmatprep.mubr.bf16.mxu0 0
  %136 = vmatmul.mubr.bf16.gmra.mrb[0].mxu0 %v94
  %v137 = vpop.f32.mrb[0].mxu0
  %v138 = vadd.f32 0.0, %v137
  %v139 = vpop.f32.mrb[0].mxu0
  %v140 = vpop.f32.mrb[0].mxu0
  %v141 = vadd.f32 0.0, %v140
  %v142 = vpop.f32.mrb[0].mxu0
  %143 = vmatprep.mubr.bf16.mxu0 0
  %144 = vmatmul.mubr.bf16.gmra.mrb[0].mxu0 %v97
  %v145 = vpop.f32.mrb[0].mxu0
  %v146 = vadd.f32 0.0, %v145
  %v147 = vpop.f32.mrb[0].mxu0
  %v148 = vpop.f32.mrb[0].mxu0
  %v149 = vadd.f32 0.0, %v148
  %v150 = vpop.f32.mrb[0].mxu0
  %151 = vdwg.mxu0
  %v153 = vsel %vm92, %v78, 0
  %v156 = vsel %vm92, %v79, 0
  %v159 = vsel %vm99, %v77, 0
  %161 = vmatprep.subr.bf16.mxu0 0
  %162 = vmatpush1.bf16.msra.mxu0 %v159
  %163 = vmatprep.subr.bf16.mxu0 0
  %164 = vmatpush1.bf16.msra.mxu0 0
  %165 = vmatprep.subr.bf16.mxu0 0
  %166 = vmatpush1.bf16.msra.mxu0 0
  %167 = vmatprep.subr.bf16.mxu0 0
  %168 = vmatpush1.bf16.msra.mxu0 0
  %169 = vmatprep.subr.bf16.mxu0 0
  %170 = vmatpush1.bf16.msra.mxu0 0
  %171 = vmatprep.subr.bf16.mxu0 0
  %172 = vmatpush1.bf16.msra.mxu0 0
  %173 = vmatprep.subr.bf16.mxu0 0
  %174 = vmatpush1.bf16.msra.mxu0 0
  %175 = vmatprep.subr.bf16.mxu0 0
  %176 = vmatpush1.bf16.msra.mxu0 0
  %177 = vmatprep.subr.bf16.mxu0 0
  %178 = vmatpush1.bf16.msra.mxu0 0
  %179 = vmatprep.subr.bf16.mxu0 0
  %180 = vmatpush1.bf16.msra.mxu0 0
  %181 = vmatprep.subr.bf16.mxu0 0
  %182 = vmatpush1.bf16.msra.mxu0 0
  %183 = vmatprep.subr.bf16.mxu0 0
  %184 = vmatpush1.bf16.msra.mxu0 0
  %185 = vmatprep.subr.bf16.mxu0 0
  %186 = vmatpush1.bf16.msra.mxu0 0
  %187 = vmatprep.subr.bf16.mxu0 0
  %188 = vmatpush1.bf16.msra.mxu0 0
  %189 = vmatprep.subr.bf16.mxu0 0
  %190 = vmatpush1.bf16.msra.mxu0 0
  %191 = vmatprep.subr.bf16.mxu0 0
  %192 = vmatpush1.bf16.msra.mxu0 0
  %193 = vmatprep.mubr.bf16.mxu0 0
  %194 = vmatmul.mubr.bf16.gmra.mrb[0].mxu0 %v153
  %v195 = vpop.f32.mrb[0].mxu0
  %v196 = vadd.f32 %v138, %v195
  %v197 = vpop.f32.mrb[0].mxu0
  %v198 = vpop.f32.mrb[0].mxu0
  %v199 = vadd.f32 %v141, %v198
  %v200 = vpop.f32.mrb[0].mxu0
  %201 = vmatprep.mubr.bf16.mxu0 0
  %202 = vmatmul.mubr.bf16.gmra.mrb[0].mxu0 %v156
  %v203 = vpop.f32.mrb[0].mxu0
  %v204 = vadd.f32 %v146, %v203
  %v205 = vpop.f32.mrb[0].mxu0
  %v206 = vpop.f32.mrb[0].mxu0
  %v207 = vadd.f32 %v149, %v206
  %v208 = vpop.f32.mrb[0].mxu0
  %209 = vdwg.mxu0
  %v210 = vpack.c.bf16 %v75, %v65
  %v211 = vpack.c.bf16 %v76, %v71
  %212 = vrot.lane.b32.xlu0 %v89, 64
  %v213 = vpop.permute.xlu0 %212
  %v215 = vsel %vm92, %v210, 0
  %v218 = vsel %vm92, %v211, 0
  %v221 = vsel %vm99, %v213, 0
  %223 = vmatprep.subr.bf16.mxu0 0
  %224 = vmatpush1.bf16.msra.mxu0 %v221
  %225 = vmatprep.subr.bf16.mxu0 0
  %226 = vmatpush1.bf16.msra.mxu0 0
  %227 = vmatprep.subr.bf16.mxu0 0
  %228 = vmatpush1.bf16.msra.mxu0 0
  %229 = vmatprep.subr.bf16.mxu0 0
  %230 = vmatpush1.bf16.msra.mxu0 0
  %231 = vmatprep.subr.bf16.mxu0 0
  %232 = vmatpush1.bf16.msra.mxu0 0
  %233 = vmatprep.subr.bf16.mxu0 0
  %234 = vmatpush1.bf16.msra.mxu0 0
  %235 = vmatprep.subr.bf16.mxu0 0
  %236 = vmatpush1.bf16.msra.mxu0 0
  %237 = vmatprep.subr.bf16.mxu0 0
  %238 = vmatpush1.bf16.msra.mxu0 0
  %239 = vmatprep.subr.bf16.mxu0 0
  %240 = vmatpush1.bf16.msra.mxu0 0
  %241 = vmatprep.subr.bf16.mxu0 0
  %242 = vmatpush1.bf16.msra.mxu0 0
  %243 = vmatprep.subr.bf16.mxu0 0
  %244 = vmatpush1.bf16.msra.mxu0 0
  %245 = vmatprep.subr.bf16.mxu0 0
  %246 = vmatpush1.bf16.msra.mxu0 0
  %247 = vmatprep.subr.bf16.mxu0 0
  %248 = vmatpush1.bf16.msra.mxu0 0
  %249 = vmatprep.subr.bf16.mxu0 0
  %250 = vmatpush1.bf16.msra.mxu0 0
  %251 = vmatprep.subr.bf16.mxu0 0
  %252 = vmatpush1.bf16.msra.mxu0 0
  %253 = vmatprep.subr.bf16.mxu0 0
  %254 = vmatpush1.bf16.msra.mxu0 0
  %255 = vmatprep.mubr.bf16.mxu0 0
  %256 = vmatmul.mubr.bf16.gmra.mrb[0].mxu0 %v215
  %v257 = vpop.f32.mrb[0].mxu0
  %v258 = vadd.f32 0.0, %v257
  %v259 = vpop.f32.mrb[0].mxu0
  %v260 = vpop.f32.mrb[0].mxu0
  %v261 = vadd.f32 0.0, %v260
  %v262 = vpop.f32.mrb[0].mxu0
  %263 = vmatprep.mubr.bf16.mxu0 0
  %264 = vmatmul.mubr.bf16.gmra.mrb[0].mxu0 %v218
  %v265 = vpop.f32.mrb[0].mxu0
  %v266 = vadd.f32 0.0, %v265
  %v267 = vpop.f32.mrb[0].mxu0
  %v268 = vpop.f32.mrb[0].mxu0
  %v269 = vadd.f32 0.0, %v268
  %v270 = vpop.f32.mrb[0].mxu0
  %271 = vdwg.mxu0
  %v272 = vadd.f32 %v196, %v258
  %v273 = vadd.f32 %v199, %v261
  %v274 = vadd.f32 %v204, %v266
  %v275 = vadd.f32 %v207, %v269
  %v276 = vld [vmem:[%s6] sm:$0xff]
  %v277 = vld [vmem:[%s6 + $0x8] sm:$0xff]
  %v278 = vld [vmem:[%s6 + $0x10] sm:$0xff]
  %v279 = vld [vmem:[%s6 + $0x18] sm:$0xff]
  %v280 = vadd.f32 %v272, %v276
  %v281 = vadd.f32 %v273, %v277
  %v282 = vadd.f32 %v274, %v278
  %v283 = vadd.f32 %v275, %v279
  %v284 = vpack.c.bf16 %v281, %v280
  %v285 = vpack.c.bf16 %v283, %v282
  %v286 = vld [vmem:[%s2] sm:$0xff]
  %v287 = vld [vmem:[%s2 + $0x8] sm:$0xff]
  %v288 = vld [vmem:[%s2 + $0x10] sm:$0xf]
  %v289 = vld [vmem:[%s2 + $0x34] sm:$0xff]
  %v290 = vld [vmem:[%s2 + $0x3c] sm:$0xff]
  %v291 = vld [vmem:[%s2 + $0x44] sm:$0xf]
  %v292 = vld [vmem:[%s2 + $0x68] sm:$0xff]
  %v293 = vld [vmem:[%s2 + $0x70] sm:$0xff]
  %v294 = vld [vmem:[%s2 + $0x78] sm:$0xf]
  %v295 = vld [vmem:[%s2 + $0x9c] sm:$0xff]
  %v296 = vld [vmem:[%s2 + $0xa4] sm:$0xff]
  %v297 = vld [vmem:[%s2 + $0xac] sm:$0xf]
  %v298 = vld [vmem:[%s1] sm:$0x1f]
  %v300 = vlaneseq
  %v301 = vshrl.u32 %v300, 7
  %v302 = vsub.s32 0, %v301
  %v303 = vrot.slane %v298, %v302
  %v304 = vlaneseq
  %v305 = vshrl.u32 %v304, 7
  %v306 = vsub.s32 1, %v305
  %v307 = vrot.slane %v298, %v306
  %v308 = vlaneseq
  %v309 = vshrl.u32 %v308, 7
  %v310 = vsub.s32 2, %v309
  %v311 = vrot.slane %v298, %v310
  %v312 = vlaneseq
  %v313 = vshrl.u32 %v312, 7
  %v314 = vsub.s32 3, %v313
  %v315 = vrot.slane %v298, %v314
  %v316 = vlaneseq
  %v317 = vshrl.u32 %v316, 7
  %v318 = vsub.s32 4, %v317
  %v319 = vrot.slane %v298, %v318
  %v337 = vunpack.c.l.b16 %v286
  %v338 = vunpack.c.h.b16 %v286
  %v339 = vunpack.c.l.b16 %v287
  %v340 = vunpack.c.h.b16 %v287
  %v341 = vunpack.c.l.b16 %v288
  %v342 = vunpack.c.l.b16 %v289
  %v343 = vunpack.c.h.b16 %v289
  %v344 = vunpack.c.l.b16 %v290
  %v345 = vunpack.c.h.b16 %v290
  %v346 = vunpack.c.l.b16 %v291
  %v347 = vunpack.c.l.b16 %v292
  %v348 = vunpack.c.h.b16 %v292
  %v349 = vunpack.c.l.b16 %v293
  %v350 = vunpack.c.h.b16 %v293
  %v351 = vunpack.c.l.b16 %v294
  %v352 = vunpack.c.l.b16 %v295
  %v353 = vunpack.c.h.b16 %v295
  %v354 = vunpack.c.l.b16 %v296
  %v355 = vunpack.c.h.b16 %v296
  %v356 = vunpack.c.l.b16 %v297
  %v357 = vpack.c.b16 %v342, %v337
  %v358 = vpack.c.b16 %v343, %v338
  %v359 = vpack.c.b16 %v344, %v339
  %v360 = vpack.c.b16 %v345, %v340
  %v361 = vpack.c.b16 %v346, %v341
  %v362 = vpack.c.b16 %v352, %v347
  %v363 = vpack.c.b16 %v353, %v348
  %v364 = vpack.c.b16 %v354, %v349
  %v365 = vpack.c.b16 %v355, %v350
  %v366 = vpack.c.b16 %v356, %v351
  %vm377 = vcmask 261120
  %v379 = vsel %vm377, %v284, 0
  %v382 = vsel %vm377, %v285, 0
  %384 = vmatprep.subr.bf16.mxu0 %v358
  %385 = vmatpush1.bf16.msra.mxu0 %v357
  %386 = vmatprep.subr.bf16.mxu0 %v363
  %387 = vmatpush1.bf16.msra.mxu0 %v362
  %388 = vmatprep.subr.bf16.mxu0 0
  %389 = vmatpush1.bf16.msra.mxu0 0
  %390 = vmatprep.subr.bf16.mxu0 0
  %391 = vmatpush1.bf16.msra.mxu0 0
  %392 = vmatprep.subr.bf16.mxu0 0
  %393 = vmatpush1.bf16.msra.mxu0 0
  %394 = vmatprep.subr.bf16.mxu0 0
  %395 = vmatpush1.bf16.msra.mxu0 0
  %396 = vmatprep.subr.bf16.mxu0 0
  %397 = vmatpush1.bf16.msra.mxu0 0
  %398 = vmatprep.subr.bf16.mxu0 0
  %399 = vmatpush1.bf16.msra.mxu0 0
  %400 = vmatprep.subr.bf16.mxu0 0
  %401 = vmatpush1.bf16.msra.mxu0 0
  %402 = vmatprep.subr.bf16.mxu0 0
  %403 = vmatpush1.bf16.msra.mxu0 0
  %404 = vmatprep.subr.bf16.mxu0 0
  %405 = vmatpush1.bf16.msra.mxu0 0
  %406 = vmatprep.subr.bf16.mxu0 0
  %407 = vmatpush1.bf16.msra.mxu0 0
  %408 = vmatprep.subr.bf16.mxu0 0
  %409 = vmatpush1.bf16.msra.mxu0 0
  %410 = vmatprep.subr.bf16.mxu0 0
  %411 = vmatpush1.bf16.msra.mxu0 0
  %412 = vmatprep.subr.bf16.mxu0 0
  %413 = vmatpush1.bf16.msra.mxu0 0
  %414 = vmatprep.subr.bf16.mxu0 0
  %415 = vmatpush1.bf16.msra.mxu0 0
  %416 = vmatprep.mubr.bf16.mxu0 0
  %417 = vmatmul.mubr.bf16.gmra.mrb[0].mxu0 %v379
  %v418 = vpop.f32.mrb[0].mxu0
  %v419 = vadd.f32 %v303, %v418
  %v420 = vpop.f32.mrb[0].mxu0
  %v421 = vadd.f32 %v307, %v420
  %v422 = vpop.f32.mrb[0].mxu0
  %v423 = vadd.f32 %v303, %v422
  %v424 = vpop.f32.mrb[0].mxu0
  %v425 = vadd.f32 %v307, %v424
  %426 = vmatprep.mubr.bf16.mxu0 0
  %427 = vmatmul.mubr.bf16.gmra.mrb[0].mxu0 %v382
  %v428 = vpop.f32.mrb[0].mxu0
  %v429 = vadd.f32 %v303, %v428
  %v430 = vpop.f32.mrb[0].mxu0
  %v431 = vadd.f32 %v307, %v430
  %v432 = vpop.f32.mrb[0].mxu0
  %v433 = vadd.f32 %v303, %v432
  %v434 = vpop.f32.mrb[0].mxu0
  %v435 = vadd.f32 %v307, %v434
  %436 = vdwg.mxu0
  %437 = vmatprep.subr.bf16.mxu0 %v360
  %438 = vmatpush1.bf16.msra.mxu0 %v359
  %439 = vmatprep.subr.bf16.mxu0 %v365
  %440 = vmatpush1.bf16.msra.mxu0 %v364
  %441 = vmatprep.subr.bf16.mxu0 0
  %442 = vmatpush1.bf16.msra.mxu0 0
  %443 = vmatprep.subr.bf16.mxu0 0
  %444 = vmatpush1.bf16.msra.mxu0 0
  %445 = vmatprep.subr.bf16.mxu0 0
  %446 = vmatpush1.bf16.msra.mxu0 0
  %447 = vmatprep.subr.bf16.mxu0 0
  %448 = vmatpush1.bf16.msra.mxu0 0
  %449 = vmatprep.subr.bf16.mxu0 0
  %450 = vmatpush1.bf16.msra.mxu0 0
  %451 = vmatprep.subr.bf16.mxu0 0
  %452 = vmatpush1.bf16.msra.mxu0 0
  %453 = vmatprep.subr.bf16.mxu0 0
  %454 = vmatpush1.bf16.msra.mxu0 0
  %455 = vmatprep.subr.bf16.mxu0 0
  %456 = vmatpush1.bf16.msra.mxu0 0
  %457 = vmatprep.subr.bf16.mxu0 0
  %458 = vmatpush1.bf16.msra.mxu0 0
  %459 = vmatprep.subr.bf16.mxu0 0
  %460 = vmatpush1.bf16.msra.mxu0 0
  %461 = vmatprep.subr.bf16.mxu0 0
  %462 = vmatpush1.bf16.msra.mxu0 0
  %463 = vmatprep.subr.bf16.mxu0 0
  %464 = vmatpush1.bf16.msra.mxu0 0
  %465 = vmatprep.subr.bf16.mxu0 0
  %466 = vmatpush1.bf16.msra.mxu0 0
  %467 = vmatprep.subr.bf16.mxu0 0
  %468 = vmatpush1.bf16.msra.mxu0 0
  %469 = vmatprep.mubr.bf16.mxu0 0
  %470 = vmatmul.mubr.bf16.gmra.mrb[0].mxu0 %v379
  %v471 = vpop.f32.mrb[0].mxu0
  %v472 = vadd.f32 %v311, %v471
  %v473 = vpop.f32.mrb[0].mxu0
  %v474 = vadd.f32 %v315, %v473
  %v475 = vpop.f32.mrb[0].mxu0
  %v476 = vadd.f32 %v311, %v475
  %v477 = vpop.f32.mrb[0].mxu0
  %v478 = vadd.f32 %v315, %v477
  %479 = vmatprep.mubr.bf16.mxu0 0
  %480 = vmatmul.mubr.bf16.gmra.mrb[0].mxu0 %v382
  %v481 = vpop.f32.mrb[0].mxu0
  %v482 = vadd.f32 %v311, %v481
  %v483 = vpop.f32.mrb[0].mxu0
  %v484 = vadd.f32 %v315, %v483
  %v485 = vpop.f32.mrb[0].mxu0
  %v486 = vadd.f32 %v311, %v485
  %v487 = vpop.f32.mrb[0].mxu0
  %v488 = vadd.f32 %v315, %v487
  %489 = vdwg.mxu0
  %490 = vmatprep.subr.bf16.mxu0 0
  %491 = vmatpush1.bf16.msra.mxu0 %v361
  %492 = vmatprep.subr.bf16.mxu0 0
  %493 = vmatpush1.bf16.msra.mxu0 %v366
  %494 = vmatprep.subr.bf16.mxu0 0
  %495 = vmatpush1.bf16.msra.mxu0 0
  %496 = vmatprep.subr.bf16.mxu0 0
  %497 = vmatpush1.bf16.msra.mxu0 0
  %498 = vmatprep.subr.bf16.mxu0 0
  %499 = vmatpush1.bf16.msra.mxu0 0
  %500 = vmatprep.subr.bf16.mxu0 0
  %501 = vmatpush1.bf16.msra.mxu0 0
  %502 = vmatprep.subr.bf16.mxu0 0
  %503 = vmatpush1.bf16.msra.mxu0 0
  %504 = vmatprep.subr.bf16.mxu0 0
  %505 = vmatpush1.bf16.msra.mxu0 0
  %506 = vmatprep.subr.bf16.mxu0 0
  %507 = vmatpush1.bf16.msra.mxu0 0
  %508 = vmatprep.subr.bf16.mxu0 0
  %509 = vmatpush1.bf16.msra.mxu0 0
  %510 = vmatprep.subr.bf16.mxu0 0
  %511 = vmatpush1.bf16.msra.mxu0 0
  %512 = vmatprep.subr.bf16.mxu0 0
  %513 = vmatpush1.bf16.msra.mxu0 0
  %514 = vmatprep.subr.bf16.mxu0 0
  %515 = vmatpush1.bf16.msra.mxu0 0
  %516 = vmatprep.subr.bf16.mxu0 0
  %517 = vmatpush1.bf16.msra.mxu0 0
  %518 = vmatprep.subr.bf16.mxu0 0
  %519 = vmatpush1.bf16.msra.mxu0 0
  %520 = vmatprep.subr.bf16.mxu0 0
  %521 = vmatpush1.bf16.msra.mxu0 0
  %522 = vmatprep.mubr.bf16.mxu0 0
  %523 = vmatmul.mubr.bf16.gmra.mrb[0].mxu0 %v379
  %v524 = vpop.f32.mrb[0].mxu0
  %v525 = vadd.f32 %v319, %v524
  %v526 = vpop.f32.mrb[0].mxu0
  %v527 = vpop.f32.mrb[0].mxu0
  %v528 = vadd.f32 %v319, %v527
  %v529 = vpop.f32.mrb[0].mxu0
  %530 = vmatprep.mubr.bf16.mxu0 0
  %531 = vmatmul.mubr.bf16.gmra.mrb[0].mxu0 %v382
  %v532 = vpop.f32.mrb[0].mxu0
  %v533 = vadd.f32 %v319, %v532
  %v534 = vpop.f32.mrb[0].mxu0
  %v535 = vpop.f32.mrb[0].mxu0
  %v536 = vadd.f32 %v319, %v535
  %v537 = vpop.f32.mrb[0].mxu0
  %538 = vdwg.mxu0
  %v539 = vld [vmem:[%s7] sm:$0xff]
  %v540 = vld [vmem:[%s7 + $0x8] sm:$0xff]
  %v541 = vld [vmem:[%s7 + $0x10] sm:$0xff]
  %v542 = vld [vmem:[%s7 + $0x18] sm:$0xff]
  %v543 = vld [vmem:[%s7 + $0x20] sm:$0xff]
  %v544 = vld [vmem:[%s7 + $0x28] sm:$0xff]
  %v545 = vld [vmem:[%s7 + $0x30] sm:$0xff]
  %v546 = vld [vmem:[%s7 + $0x38] sm:$0xff]
  %v547 = vld [vmem:[%s7 + $0x40] sm:$0xff]
  %v548 = vld [vmem:[%s7 + $0x48] sm:$0xff]
  %v549 = vld [vmem:[%s7 + $0x50] sm:$0xff]
  %v550 = vld [vmem:[%s7 + $0x58] sm:$0xff]
  %v551 = vld [vmem:[%s7 + $0x60] sm:$0xff]
  %v552 = vld [vmem:[%s7 + $0x68] sm:$0xff]
  %v553 = vld [vmem:[%s7 + $0x70] sm:$0xff]
  %v554 = vld [vmem:[%s7 + $0x78] sm:$0xff]
  %v555 = vld [vmem:[%s7 + $0x80] sm:$0xff]
  %v556 = vld [vmem:[%s7 + $0x88] sm:$0xff]
  %v557 = vld [vmem:[%s7 + $0x90] sm:$0xff]
  %v558 = vld [vmem:[%s7 + $0x98] sm:$0xff]
  %v559 = vld [vmem:[%s7 + $0xa0] sm:$0xff]
  %v560 = vld [vmem:[%s7 + $0xa8] sm:$0xff]
  %v561 = vld [vmem:[%s7 + $0xb0] sm:$0xff]
  %v562 = vld [vmem:[%s7 + $0xb8] sm:$0xff]
  %v563 = vld [vmem:[%s7 + $0xc0] sm:$0xff]
  %v564 = vld [vmem:[%s7 + $0xc8] sm:$0xff]
  %v565 = vld [vmem:[%s7 + $0xd0] sm:$0xff]
  %v566 = vld [vmem:[%s7 + $0xd8] sm:$0xff]
  %v567 = vld [vmem:[%s7 + $0xe0] sm:$0xff]
  %v568 = vld [vmem:[%s7 + $0xe8] sm:$0xff]
  %v569 = vld [vmem:[%s7 + $0xf0] sm:$0xff]
  %v570 = vld [vmem:[%s7 + $0xf8] sm:$0xff]
  %v571 = vpack.c.bf16 %v423, %v419
  %v572 = vpack.c.bf16 %v433, %v429
  %v573 = vpack.c.bf16 %v425, %v421
  %v574 = vpack.c.bf16 %v435, %v431
  %vm575 = vcmask 523264
  %v577 = vsel %vm575, %v571, 0
  %v580 = vsel %vm575, %v572, 0
  %v583 = vsel %vm575, %v573, 0
  %v586 = vsel %vm575, %v574, 0
  %588 = vmatprep.subr.bf16.mxu0 0
  %589 = vmatpush1.bf16.xpose.msra.mxu0 %v583
  %590 = vmatprep.subr.bf16.mxu0 0
  %591 = vmatpush1.bf16.xpose.msra.mxu0 %v586
  %592 = vmatprep.subr.bf16.mxu0 0
  %593 = vmatpush1.bf16.xpose.msra.mxu0 0
  %594 = vmatprep.subr.bf16.mxu0 0
  %595 = vmatpush1.bf16.xpose.msra.mxu0 0
  %596 = vmatprep.subr.bf16.mxu0 0
  %597 = vmatpush1.bf16.xpose.msra.mxu0 0
  %598 = vmatprep.subr.bf16.mxu0 0
  %599 = vmatpush1.bf16.xpose.msra.mxu0 0
  %600 = vmatprep.subr.bf16.mxu0 0
  %601 = vmatpush1.bf16.xpose.msra.mxu0 0
  %602 = vmatprep.subr.bf16.mxu0 0
  %603 = vmatpush1.bf16.xpose.msra.mxu0 0
  %604 = vmatprep.subr.bf16.mxu0 0
  %605 = vmatpush1.bf16.xpose.msra.mxu0 0
  %606 = vmatprep.subr.bf16.mxu0 0
  %607 = vmatpush1.bf16.xpose.msra.mxu0 0
  %608 = vmatprep.subr.bf16.mxu0 0
  %609 = vmatpush1.bf16.xpose.msra.mxu0 0
  %610 = vmatprep.subr.bf16.mxu0 0
  %611 = vmatpush1.bf16.xpose.msra.mxu0 0
  %612 = vmatprep.subr.bf16.mxu0 0
  %613 = vmatpush1.bf16.xpose.msra.mxu0 0
  %614 = vmatprep.subr.bf16.mxu0 0
  %615 = vmatpush1.bf16.xpose.msra.mxu0 0
  %616 = vmatprep.subr.bf16.mxu0 0
  %617 = vmatpush1.bf16.xpose.msra.mxu0 0
  %618 = vmatprep.subr.bf16.mxu0 0
  %619 = vmatpush1.bf16.xpose.msra.mxu0 0
  %620 = vmatprep.mubr.bf16.mxu0 0
  %621 = vmatmul.mubr.bf16.gmra.mrb[0].mxu0 %v577
  %v622 = vpop.f32.mrb[0].mxu0
  %v623 = vadd.f32 %v539, %v622
  %v624 = vpop.f32.mrb[0].mxu0
  %v625 = vpop.f32.mrb[0].mxu0
  %v626 = vadd.f32 %v540, %v625
  %v627 = vpop.f32.mrb[0].mxu0
  %628 = vmatprep.mubr.bf16.mxu0 0
  %629 = vmatmul.mubr.bf16.gmra.mrb[0].mxu0 %v580
  %v630 = vpop.f32.mrb[0].mxu0
  %v631 = vadd.f32 %v541, %v630
  %v632 = vpop.f32.mrb[0].mxu0
  %v633 = vpop.f32.mrb[0].mxu0
  %v634 = vadd.f32 %v542, %v633
  %v635 = vpop.f32.mrb[0].mxu0
  %636 = vdwg.mxu0
  %638 = vset.pattern.permute.xlu0 0
  %639 = vperm.xlu0 %638, %v474
  %v640 = vpop.permute.xlu0 %639
  %643 = vset.pattern.permute.xlu0 0
  %644 = vperm.xlu0 %643, %v478
  %v645 = vpop.permute.xlu0 %644
  %648 = vset.pattern.permute.xlu0 0
  %649 = vperm.xlu0 %648, %v484
  %v650 = vpop.permute.xlu0 %649
  %653 = vset.pattern.permute.xlu0 0
  %654 = vperm.xlu0 %653, %v488
  %v655 = vpop.permute.xlu0 %654
  %v657 = vmul.f32 %v640, %v543
  %v658 = vmul.f32 %v645, %v544
  %v659 = vmul.f32 %v650, %v545
  %v660 = vmul.f32 %v655, %v546
  %v661 = vadd.f32 %v623, %v657
  %v662 = vadd.f32 %v626, %v658
  %v663 = vadd.f32 %v631, %v659
  %v664 = vadd.f32 %v634, %v660
  %665 = vset.pattern.permute.xlu0 1
  %666 = vperm.xlu0 %665, %v474
  %v667 = vpop.permute.xlu0 %666
  %669 = vset.pattern.permute.xlu0 1
  %670 = vperm.xlu0 %669, %v478
  %v671 = vpop.permute.xlu0 %670
  %673 = vset.pattern.permute.xlu0 1
  %674 = vperm.xlu0 %673, %v484
  %v675 = vpop.permute.xlu0 %674
  %677 = vset.pattern.permute.xlu0 1
  %678 = vperm.xlu0 %677, %v488
  %v679 = vpop.permute.xlu0 %678
  %v681 = vmul.f32 %v667, %v547
  %v682 = vmul.f32 %v671, %v548
  %v683 = vmul.f32 %v675, %v549
  %v684 = vmul.f32 %v679, %v550
  %v685 = vadd.f32 %v661, %v681
  %v686 = vadd.f32 %v662, %v682
  %v687 = vadd.f32 %v663, %v683
  %v688 = vadd.f32 %v664, %v684
  %689 = vset.pattern.permute.xlu0 2
  %690 = vperm.xlu0 %689, %v474
  %v691 = vpop.permute.xlu0 %690
  %693 = vset.pattern.permute.xlu0 2
  %694 = vperm.xlu0 %693, %v478
  %v695 = vpop.permute.xlu0 %694
  %697 = vset.pattern.permute.xlu0 2
  %698 = vperm.xlu0 %697, %v484
  %v699 = vpop.permute.xlu0 %698
  %701 = vset.pattern.permute.xlu0 2
  %702 = vperm.xlu0 %701, %v488
  %v703 = vpop.permute.xlu0 %702
  %v705 = vmul.f32 %v691, %v551
  %v706 = vmul.f32 %v695, %v552
  %v707 = vmul.f32 %v699, %v553
  %v708 = vmul.f32 %v703, %v554
  %v709 = vadd.f32 %v685, %v705
  %v710 = vadd.f32 %v686, %v706
  %v711 = vadd.f32 %v687, %v707
  %v712 = vadd.f32 %v688, %v708
  %713 = vset.pattern.permute.xlu0 3
  %714 = vperm.xlu0 %713, %v474
  %v715 = vpop.permute.xlu0 %714
  %717 = vset.pattern.permute.xlu0 3
  %718 = vperm.xlu0 %717, %v478
  %v719 = vpop.permute.xlu0 %718
  %721 = vset.pattern.permute.xlu0 3
  %722 = vperm.xlu0 %721, %v484
  %v723 = vpop.permute.xlu0 %722
  %725 = vset.pattern.permute.xlu0 3
  %726 = vperm.xlu0 %725, %v488
  %v727 = vpop.permute.xlu0 %726
  %v729 = vmul.f32 %v715, %v555
  %v730 = vmul.f32 %v719, %v556
  %v731 = vmul.f32 %v723, %v557
  %v732 = vmul.f32 %v727, %v558
  %v733 = vadd.f32 %v709, %v729
  %v734 = vadd.f32 %v710, %v730
  %v735 = vadd.f32 %v711, %v731
  %v736 = vadd.f32 %v712, %v732
  %737 = vset.pattern.permute.xlu0 4
  %738 = vperm.xlu0 %737, %v474
  %v739 = vpop.permute.xlu0 %738
  %741 = vset.pattern.permute.xlu0 4
  %742 = vperm.xlu0 %741, %v478
  %v743 = vpop.permute.xlu0 %742
  %745 = vset.pattern.permute.xlu0 4
  %746 = vperm.xlu0 %745, %v484
  %v747 = vpop.permute.xlu0 %746
  %749 = vset.pattern.permute.xlu0 4
  %750 = vperm.xlu0 %749, %v488
  %v751 = vpop.permute.xlu0 %750
  %v753 = vmul.f32 %v739, %v559
  %v754 = vmul.f32 %v743, %v560
  %v755 = vmul.f32 %v747, %v561
  %v756 = vmul.f32 %v751, %v562
  %v757 = vadd.f32 %v733, %v753
  %v758 = vadd.f32 %v734, %v754
  %v759 = vadd.f32 %v735, %v755
  %v760 = vadd.f32 %v736, %v756
  %761 = vset.pattern.permute.xlu0 5
  %762 = vperm.xlu0 %761, %v474
  %v763 = vpop.permute.xlu0 %762
  %765 = vset.pattern.permute.xlu0 5
  %766 = vperm.xlu0 %765, %v478
  %v767 = vpop.permute.xlu0 %766
  %769 = vset.pattern.permute.xlu0 5
  %770 = vperm.xlu0 %769, %v484
  %v771 = vpop.permute.xlu0 %770
  %773 = vset.pattern.permute.xlu0 5
  %774 = vperm.xlu0 %773, %v488
  %v775 = vpop.permute.xlu0 %774
  %v777 = vmul.f32 %v763, %v563
  %v778 = vmul.f32 %v767, %v564
  %v779 = vmul.f32 %v771, %v565
  %v780 = vmul.f32 %v775, %v566
  %v781 = vadd.f32 %v757, %v777
  %v782 = vadd.f32 %v758, %v778
  %v783 = vadd.f32 %v759, %v779
  %v784 = vadd.f32 %v760, %v780
  %785 = vset.pattern.permute.xlu0 6
  %786 = vperm.xlu0 %785, %v474
  %v787 = vpop.permute.xlu0 %786
  %789 = vset.pattern.permute.xlu0 6
  %790 = vperm.xlu0 %789, %v478
  %v791 = vpop.permute.xlu0 %790
  %793 = vset.pattern.permute.xlu0 6
  %794 = vperm.xlu0 %793, %v484
  %v795 = vpop.permute.xlu0 %794
  %797 = vset.pattern.permute.xlu0 6
  %798 = vperm.xlu0 %797, %v488
  %v799 = vpop.permute.xlu0 %798
  %v801 = vmul.f32 %v787, %v567
  %v802 = vmul.f32 %v791, %v568
  %v803 = vmul.f32 %v795, %v569
  %v804 = vmul.f32 %v799, %v570
  %v805 = vadd.f32 %v781, %v801
  %v806 = vadd.f32 %v782, %v802
  %v807 = vadd.f32 %v783, %v803
  %v808 = vadd.f32 %v784, %v804
  %v809 = vsel %vm377, %v805, -inf
  %810 = vmax.xlane.f32.xlu0 %v809
  %v811 = vpop.xlane.xlu0 %810
  %v812 = vsel %vm377, %v806, -inf
  %813 = vmax.xlane.f32.xlu0 %v812
  %v814 = vpop.xlane.xlu0 %813
  %v815 = vsel %vm377, %v807, -inf
  %816 = vmax.xlane.f32.xlu0 %v815
  %v817 = vpop.xlane.xlu0 %816
  %v818 = vsel %vm377, %v808, -inf
  %819 = vmax.xlane.f32.xlu0 %v818
  %v820 = vpop.xlane.xlu0 %819
  %v821 = vsub.f32 %v805, %v811
  %v822 = vsub.f32 %v806, %v814
  %v823 = vsub.f32 %v807, %v817
  %v824 = vsub.f32 %v808, %v820
  %v825 = vmul.f32 %v821, 1.442695
  %v826 = vpow.pop %v825
  %v827 = vmul.f32 %v822, 1.442695
  %v828 = vpow.pop %v827
  %v829 = vmul.f32 %v823, 1.442695
  %v830 = vpow.pop %v829
  %v831 = vmul.f32 %v824, 1.442695
  %v832 = vpow.pop %v831
  %v833 = vsel %vm377, %v826, 0.0
  %834 = vadd.xlane.f32.xlu0 %v833
  %v835 = vpop.xlane.xlu0 %834
  %v836 = vsel %vm377, %v828, 0.0
  %837 = vadd.xlane.f32.xlu0 %v836
  %v838 = vpop.xlane.xlu0 %837
  %v839 = vsel %vm377, %v830, 0.0
  %840 = vadd.xlane.f32.xlu0 %v839
  %v841 = vpop.xlane.xlu0 %840
  %v842 = vsel %vm377, %v832, 0.0
  %843 = vadd.xlane.f32.xlu0 %v842
  %v844 = vpop.xlane.xlu0 %843
  %v845 = vrcp.pop %v835
  %v846 = vrcp.pop %v838
  %v847 = vrcp.pop %v841
  %v848 = vrcp.pop %v844
  %v849 = vmul.f32 %v826, %v845
  %v850 = vmul.f32 %v828, %v846
  %v851 = vmul.f32 %v830, %v847
  %v852 = vmul.f32 %v832, %v848
  %v853 = vpack.c.bf16 %v850, %v849
  %v854 = vpack.c.bf16 %v852, %v851
  %v855 = vpack.c.bf16 %v476, %v472
  %v856 = vpack.c.bf16 %v486, %v482
  %v858 = vsel %vm377, %v853, 0
  %v861 = vsel %vm377, %v854, 0
  %863 = vmatprep.subr.bf16.mxu0 0
  %864 = vmatpush1.bf16.msra.mxu0 %v855
  %865 = vmatprep.subr.bf16.mxu0 0
  %866 = vmatpush1.bf16.msra.mxu0 %v856
  %867 = vmatprep.subr.bf16.mxu0 0
  %868 = vmatpush1.bf16.msra.mxu0 0
  %869 = vmatprep.subr.bf16.mxu0 0
  %870 = vmatpush1.bf16.msra.mxu0 0
  %871 = vmatprep.subr.bf16.mxu0 0
  %872 = vmatpush1.bf16.msra.mxu0 0
  %873 = vmatprep.subr.bf16.mxu0 0
  %874 = vmatpush1.bf16.msra.mxu0 0
  %875 = vmatprep.subr.bf16.mxu0 0
  %876 = vmatpush1.bf16.msra.mxu0 0
  %877 = vmatprep.subr.bf16.mxu0 0
  %878 = vmatpush1.bf16.msra.mxu0 0
  %879 = vmatprep.subr.bf16.mxu0 0
  %880 = vmatpush1.bf16.msra.mxu0 0
  %881 = vmatprep.subr.bf16.mxu0 0
  %882 = vmatpush1.bf16.msra.mxu0 0
  %883 = vmatprep.subr.bf16.mxu0 0
  %884 = vmatpush1.bf16.msra.mxu0 0
  %885 = vmatprep.subr.bf16.mxu0 0
  %886 = vmatpush1.bf16.msra.mxu0 0
  %887 = vmatprep.subr.bf16.mxu0 0
  %888 = vmatpush1.bf16.msra.mxu0 0
  %889 = vmatprep.subr.bf16.mxu0 0
  %890 = vmatpush1.bf16.msra.mxu0 0
  %891 = vmatprep.subr.bf16.mxu0 0
  %892 = vmatpush1.bf16.msra.mxu0 0
  %893 = vmatprep.subr.bf16.mxu0 0
  %894 = vmatpush1.bf16.msra.mxu0 0
  %895 = vmatprep.mubr.bf16.mxu0 0
  %896 = vmatmul.mubr.bf16.gmra.mrb[0].mxu0 %v858
  %v897 = vpop.f32.mrb[0].mxu0
  %v898 = vadd.f32 0.0, %v897
  %v899 = vpop.f32.mrb[0].mxu0
  %v900 = vpop.f32.mrb[0].mxu0
  %v901 = vadd.f32 0.0, %v900
  %v902 = vpop.f32.mrb[0].mxu0
  %903 = vmatprep.mubr.bf16.mxu0 0
  %904 = vmatmul.mubr.bf16.gmra.mrb[0].mxu0 %v861
  %v905 = vpop.f32.mrb[0].mxu0
  %v906 = vadd.f32 0.0, %v905
  %v907 = vpop.f32.mrb[0].mxu0
  %v908 = vpop.f32.mrb[0].mxu0
  %v909 = vadd.f32 0.0, %v908
  %v910 = vpop.f32.mrb[0].mxu0
  %911 = vdwg.mxu0
  %914 = vrot.lane.b32.xlu0 %v571, 64
  %v915 = vpop.permute.xlu0 %914
  %916 = vrot.lane.b32.xlu0 %v572, 64
  %v917 = vpop.permute.xlu0 %916
  %920 = vrot.lane.b32.xlu0 %v573, 64
  %v921 = vpop.permute.xlu0 %920
  %922 = vrot.lane.b32.xlu0 %v574, 64
  %v923 = vpop.permute.xlu0 %922
  %v925 = vsel %vm575, %v915, 0
  %v928 = vsel %vm575, %v917, 0
  %v931 = vsel %vm575, %v921, 0
  %v934 = vsel %vm575, %v923, 0
  %936 = vmatprep.subr.bf16.mxu0 0
  %937 = vmatpush1.bf16.xpose.msra.mxu0 %v931
  %938 = vmatprep.subr.bf16.mxu0 0
  %939 = vmatpush1.bf16.xpose.msra.mxu0 %v934
  %940 = vmatprep.subr.bf16.mxu0 0
  %941 = vmatpush1.bf16.xpose.msra.mxu0 0
  %942 = vmatprep.subr.bf16.mxu0 0
  %943 = vmatpush1.bf16.xpose.msra.mxu0 0
  %944 = vmatprep.subr.bf16.mxu0 0
  %945 = vmatpush1.bf16.xpose.msra.mxu0 0
  %946 = vmatprep.subr.bf16.mxu0 0
  %947 = vmatpush1.bf16.xpose.msra.mxu0 0
  %948 = vmatprep.subr.bf16.mxu0 0
  %949 = vmatpush1.bf16.xpose.msra.mxu0 0
  %950 = vmatprep.subr.bf16.mxu0 0
  %951 = vmatpush1.bf16.xpose.msra.mxu0 0
  %952 = vmatprep.subr.bf16.mxu0 0
  %953 = vmatpush1.bf16.xpose.msra.mxu0 0
  %954 = vmatprep.subr.bf16.mxu0 0
  %955 = vmatpush1.bf16.xpose.msra.mxu0 0
  %956 = vmatprep.subr.bf16.mxu0 0
  %957 = vmatpush1.bf16.xpose.msra.mxu0 0
  %958 = vmatprep.subr.bf16.mxu0 0
  %959 = vmatpush1.bf16.xpose.msra.mxu0 0
  %960 = vmatprep.subr.bf16.mxu0 0
  %961 = vmatpush1.bf16.xpose.msra.mxu0 0
  %962 = vmatprep.subr.bf16.mxu0 0
  %963 = vmatpush1.bf16.xpose.msra.mxu0 0
  %964 = vmatprep.subr.bf16.mxu0 0
  %965 = vmatpush1.bf16.xpose.msra.mxu0 0
  %966 = vmatprep.subr.bf16.mxu0 0
  %967 = vmatpush1.bf16.xpose.msra.mxu0 0
  %968 = vmatprep.mubr.bf16.mxu0 0
  %969 = vmatmul.mubr.bf16.gmra.mrb[0].mxu0 %v925
  %v970 = vpop.f32.mrb[0].mxu0
  %v971 = vadd.f32 %v539, %v970
  %v972 = vpop.f32.mrb[0].mxu0
  %v973 = vpop.f32.mrb[0].mxu0
  %v974 = vadd.f32 %v540, %v973
  %v975 = vpop.f32.mrb[0].mxu0
  %976 = vmatprep.mubr.bf16.mxu0 0
  %977 = vmatmul.mubr.bf16.gmra.mrb[0].mxu0 %v928
  %v978 = vpop.f32.mrb[0].mxu0
  %v979 = vadd.f32 %v541, %v978
  %v980 = vpop.f32.mrb[0].mxu0
  %v981 = vpop.f32.mrb[0].mxu0
  %v982 = vadd.f32 %v542, %v981
  %v983 = vpop.f32.mrb[0].mxu0
  %984 = vdwg.mxu0
  %986 = vset.pattern.permute.xlu0 0
  %987 = vperm.xlu0 %986, %v525
  %v988 = vpop.permute.xlu0 %987
  %991 = vset.pattern.permute.xlu0 0
  %992 = vperm.xlu0 %991, %v528
  %v993 = vpop.permute.xlu0 %992
  %996 = vset.pattern.permute.xlu0 0
  %997 = vperm.xlu0 %996, %v533
  %v998 = vpop.permute.xlu0 %997
  %1001 = vset.pattern.permute.xlu0 0
  %1002 = vperm.xlu0 %1001, %v536
  %v1003 = vpop.permute.xlu0 %1002
  %v1005 = vmul.f32 %v988, %v543
  %v1006 = vmul.f32 %v993, %v544
  %v1007 = vmul.f32 %v998, %v545
  %v1008 = vmul.f32 %v1003, %v546
  %v1009 = vadd.f32 %v971, %v1005
  %v1010 = vadd.f32 %v974, %v1006
  %v1011 = vadd.f32 %v979, %v1007
  %v1012 = vadd.f32 %v982, %v1008
  %1013 = vset.pattern.permute.xlu0 1
  %1014 = vperm.xlu0 %1013, %v525
  %v1015 = vpop.permute.xlu0 %1014
  %1017 = vset.pattern.permute.xlu0 1
  %1018 = vperm.xlu0 %1017, %v528
  %v1019 = vpop.permute.xlu0 %1018
  %1021 = vset.pattern.permute.xlu0 1
  %1022 = vperm.xlu0 %1021, %v533
  %v1023 = vpop.permute.xlu0 %1022
  %1025 = vset.pattern.permute.xlu0 1
  %1026 = vperm.xlu0 %1025, %v536
  %v1027 = vpop.permute.xlu0 %1026
  %v1029 = vmul.f32 %v1015, %v547
  %v1030 = vmul.f32 %v1019, %v548
  %v1031 = vmul.f32 %v1023, %v549
  %v1032 = vmul.f32 %v1027, %v550
  %v1033 = vadd.f32 %v1009, %v1029
  %v1034 = vadd.f32 %v1010, %v1030
  %v1035 = vadd.f32 %v1011, %v1031
  %v1036 = vadd.f32 %v1012, %v1032
  %1037 = vset.pattern.permute.xlu0 2
  %1038 = vperm.xlu0 %1037, %v525
  %v1039 = vpop.permute.xlu0 %1038
  %1041 = vset.pattern.permute.xlu0 2
  %1042 = vperm.xlu0 %1041, %v528
  %v1043 = vpop.permute.xlu0 %1042
  %1045 = vset.pattern.permute.xlu0 2
  %1046 = vperm.xlu0 %1045, %v533
  %v1047 = vpop.permute.xlu0 %1046
  %1049 = vset.pattern.permute.xlu0 2
  %1050 = vperm.xlu0 %1049, %v536
  %v1051 = vpop.permute.xlu0 %1050
  %v1053 = vmul.f32 %v1039, %v551
  %v1054 = vmul.f32 %v1043, %v552
  %v1055 = vmul.f32 %v1047, %v553
  %v1056 = vmul.f32 %v1051, %v554
  %v1057 = vadd.f32 %v1033, %v1053
  %v1058 = vadd.f32 %v1034, %v1054
  %v1059 = vadd.f32 %v1035, %v1055
  %v1060 = vadd.f32 %v1036, %v1056
  %1061 = vset.pattern.permute.xlu0 3
  %1062 = vperm.xlu0 %1061, %v525
  %v1063 = vpop.permute.xlu0 %1062
  %1065 = vset.pattern.permute.xlu0 3
  %1066 = vperm.xlu0 %1065, %v528
  %v1067 = vpop.permute.xlu0 %1066
  %1069 = vset.pattern.permute.xlu0 3
  %1070 = vperm.xlu0 %1069, %v533
  %v1071 = vpop.permute.xlu0 %1070
  %1073 = vset.pattern.permute.xlu0 3
  %1074 = vperm.xlu0 %1073, %v536
  %v1075 = vpop.permute.xlu0 %1074
  %v1077 = vmul.f32 %v1063, %v555
  %v1078 = vmul.f32 %v1067, %v556
  %v1079 = vmul.f32 %v1071, %v557
  %v1080 = vmul.f32 %v1075, %v558
  %v1081 = vadd.f32 %v1057, %v1077
  %v1082 = vadd.f32 %v1058, %v1078
  %v1083 = vadd.f32 %v1059, %v1079
  %v1084 = vadd.f32 %v1060, %v1080
  %1085 = vset.pattern.permute.xlu0 4
  %1086 = vperm.xlu0 %1085, %v525
  %v1087 = vpop.permute.xlu0 %1086
  %1089 = vset.pattern.permute.xlu0 4
  %1090 = vperm.xlu0 %1089, %v528
  %v1091 = vpop.permute.xlu0 %1090
  %1093 = vset.pattern.permute.xlu0 4
  %1094 = vperm.xlu0 %1093, %v533
  %v1095 = vpop.permute.xlu0 %1094
  %1097 = vset.pattern.permute.xlu0 4
  %1098 = vperm.xlu0 %1097, %v536
  %v1099 = vpop.permute.xlu0 %1098
  %v1101 = vmul.f32 %v1087, %v559
  %v1102 = vmul.f32 %v1091, %v560
  %v1103 = vmul.f32 %v1095, %v561
  %v1104 = vmul.f32 %v1099, %v562
  %v1105 = vadd.f32 %v1081, %v1101
  %v1106 = vadd.f32 %v1082, %v1102
  %v1107 = vadd.f32 %v1083, %v1103
  %v1108 = vadd.f32 %v1084, %v1104
  %1109 = vset.pattern.permute.xlu0 5
  %1110 = vperm.xlu0 %1109, %v525
  %v1111 = vpop.permute.xlu0 %1110
  %1113 = vset.pattern.permute.xlu0 5
  %1114 = vperm.xlu0 %1113, %v528
  %v1115 = vpop.permute.xlu0 %1114
  %1117 = vset.pattern.permute.xlu0 5
  %1118 = vperm.xlu0 %1117, %v533
  %v1119 = vpop.permute.xlu0 %1118
  %1121 = vset.pattern.permute.xlu0 5
  %1122 = vperm.xlu0 %1121, %v536
  %v1123 = vpop.permute.xlu0 %1122
  %v1125 = vmul.f32 %v1111, %v563
  %v1126 = vmul.f32 %v1115, %v564
  %v1127 = vmul.f32 %v1119, %v565
  %v1128 = vmul.f32 %v1123, %v566
  %v1129 = vadd.f32 %v1105, %v1125
  %v1130 = vadd.f32 %v1106, %v1126
  %v1131 = vadd.f32 %v1107, %v1127
  %v1132 = vadd.f32 %v1108, %v1128
  %1133 = vset.pattern.permute.xlu0 6
  %1134 = vperm.xlu0 %1133, %v525
  %v1135 = vpop.permute.xlu0 %1134
  %1137 = vset.pattern.permute.xlu0 6
  %1138 = vperm.xlu0 %1137, %v528
  %v1139 = vpop.permute.xlu0 %1138
  %1141 = vset.pattern.permute.xlu0 6
  %1142 = vperm.xlu0 %1141, %v533
  %v1143 = vpop.permute.xlu0 %1142
  %1145 = vset.pattern.permute.xlu0 6
  %1146 = vperm.xlu0 %1145, %v536
  %v1147 = vpop.permute.xlu0 %1146
  %v1149 = vmul.f32 %v1135, %v567
  %v1150 = vmul.f32 %v1139, %v568
  %v1151 = vmul.f32 %v1143, %v569
  %v1152 = vmul.f32 %v1147, %v570
  %v1153 = vadd.f32 %v1129, %v1149
  %v1154 = vadd.f32 %v1130, %v1150
  %v1155 = vadd.f32 %v1131, %v1151
  %v1156 = vadd.f32 %v1132, %v1152
  %v1157 = vsel %vm377, %v1153, -inf
  %1158 = vmax.xlane.f32.xlu0 %v1157
  %v1159 = vpop.xlane.xlu0 %1158
  %v1160 = vsel %vm377, %v1154, -inf
  %1161 = vmax.xlane.f32.xlu0 %v1160
  %v1162 = vpop.xlane.xlu0 %1161
  %v1163 = vsel %vm377, %v1155, -inf
  %1164 = vmax.xlane.f32.xlu0 %v1163
  %v1165 = vpop.xlane.xlu0 %1164
  %v1166 = vsel %vm377, %v1156, -inf
  %1167 = vmax.xlane.f32.xlu0 %v1166
  %v1168 = vpop.xlane.xlu0 %1167
  %v1169 = vsub.f32 %v1153, %v1159
  %v1170 = vsub.f32 %v1154, %v1162
  %v1171 = vsub.f32 %v1155, %v1165
  %v1172 = vsub.f32 %v1156, %v1168
  %v1173 = vmul.f32 %v1169, 1.442695
  %v1174 = vpow.pop %v1173
  %v1175 = vmul.f32 %v1170, 1.442695
  %v1176 = vpow.pop %v1175
  %v1177 = vmul.f32 %v1171, 1.442695
  %v1178 = vpow.pop %v1177
  %v1179 = vmul.f32 %v1172, 1.442695
  %v1180 = vpow.pop %v1179
  %v1181 = vsel %vm377, %v1174, 0.0
  %1182 = vadd.xlane.f32.xlu0 %v1181
  %v1183 = vpop.xlane.xlu0 %1182
  %v1184 = vsel %vm377, %v1176, 0.0
  %1185 = vadd.xlane.f32.xlu0 %v1184
  %v1186 = vpop.xlane.xlu0 %1185
  %v1187 = vsel %vm377, %v1178, 0.0
  %1188 = vadd.xlane.f32.xlu0 %v1187
  %v1189 = vpop.xlane.xlu0 %1188
  %v1190 = vsel %vm377, %v1180, 0.0
  %1191 = vadd.xlane.f32.xlu0 %v1190
  %v1192 = vpop.xlane.xlu0 %1191
  %v1193 = vrcp.pop %v1183
  %v1194 = vrcp.pop %v1186
  %v1195 = vrcp.pop %v1189
  %v1196 = vrcp.pop %v1192
  %v1197 = vmul.f32 %v1174, %v1193
  %v1198 = vmul.f32 %v1176, %v1194
  %v1199 = vmul.f32 %v1178, %v1195
  %v1200 = vmul.f32 %v1180, %v1196
  %v1201 = vpack.c.bf16 %v1198, %v1197
  %v1202 = vpack.c.bf16 %v1200, %v1199
  %1205 = vrot.lane.b32.xlu0 %v855, 64
  %v1206 = vpop.permute.xlu0 %1205
  %1207 = vrot.lane.b32.xlu0 %v856, 64
  %v1208 = vpop.permute.xlu0 %1207
  %v1212 = vsel %vm377, %v1201, 0
  %v1215 = vsel %vm377, %v1202, 0
  %1217 = vmatprep.subr.bf16.mxu0 0
  %1218 = vmatpush1.bf16.msra.mxu0 %v1206
  %1219 = vmatprep.subr.bf16.mxu0 0
  %1220 = vmatpush1.bf16.msra.mxu0 %v1208
  %1221 = vmatprep.subr.bf16.mxu0 0
  %1222 = vmatpush1.bf16.msra.mxu0 0
  %1223 = vmatprep.subr.bf16.mxu0 0
  %1224 = vmatpush1.bf16.msra.mxu0 0
  %1225 = vmatprep.subr.bf16.mxu0 0
  %1226 = vmatpush1.bf16.msra.mxu0 0
  %1227 = vmatprep.subr.bf16.mxu0 0
  %1228 = vmatpush1.bf16.msra.mxu0 0
  %1229 = vmatprep.subr.bf16.mxu0 0
  %1230 = vmatpush1.bf16.msra.mxu0 0
  %1231 = vmatprep.subr.bf16.mxu0 0
  %1232 = vmatpush1.bf16.msra.mxu0 0
  %1233 = vmatprep.subr.bf16.mxu0 0
  %1234 = vmatpush1.bf16.msra.mxu0 0
  %1235 = vmatprep.subr.bf16.mxu0 0
  %1236 = vmatpush1.bf16.msra.mxu0 0
  %1237 = vmatprep.subr.bf16.mxu0 0
  %1238 = vmatpush1.bf16.msra.mxu0 0
  %1239 = vmatprep.subr.bf16.mxu0 0
  %1240 = vmatpush1.bf16.msra.mxu0 0
  %1241 = vmatprep.subr.bf16.mxu0 0
  %1242 = vmatpush1.bf16.msra.mxu0 0
  %1243 = vmatprep.subr.bf16.mxu0 0
  %1244 = vmatpush1.bf16.msra.mxu0 0
  %1245 = vmatprep.subr.bf16.mxu0 0
  %1246 = vmatpush1.bf16.msra.mxu0 0
  %1247 = vmatprep.subr.bf16.mxu0 0
  %1248 = vmatpush1.bf16.msra.mxu0 0
  %1249 = vmatprep.mubr.bf16.mxu0 0
  %1250 = vmatmul.mubr.bf16.gmra.mrb[0].mxu0 %v1212
  %v1251 = vpop.f32.mrb[0].mxu0
  %v1252 = vadd.f32 0.0, %v1251
  %v1253 = vpop.f32.mrb[0].mxu0
  %v1254 = vpop.f32.mrb[0].mxu0
  %v1255 = vadd.f32 0.0, %v1254
  %v1256 = vpop.f32.mrb[0].mxu0
  %1257 = vmatprep.mubr.bf16.mxu0 0
  %1258 = vmatmul.mubr.bf16.gmra.mrb[0].mxu0 %v1215
  %v1259 = vpop.f32.mrb[0].mxu0
  %v1260 = vadd.f32 0.0, %v1259
  %v1261 = vpop.f32.mrb[0].mxu0
  %v1262 = vpop.f32.mrb[0].mxu0
  %v1263 = vadd.f32 0.0, %v1262
  %v1264 = vpop.f32.mrb[0].mxu0
  %1265 = vdwg.mxu0
  %1270 = vrot.lane.b32.xlu0 %v1252, 64
  %v1271 = vpop.permute.xlu0 %1270
  %1272 = vrot.lane.b32.xlu0 %v1255, 64
  %v1273 = vpop.permute.xlu0 %1272
  %1274 = vrot.lane.b32.xlu0 %v1260, 64
  %v1275 = vpop.permute.xlu0 %1274
  %1276 = vrot.lane.b32.xlu0 %v1263, 64
  %v1277 = vpop.permute.xlu0 %1276
  %v1282 = vsel %vm575, %v898, %v1271
  %v1283 = vsel %vm575, %v901, %v1273
  %v1284 = vsel %vm575, %v906, %v1275
  %v1285 = vsel %vm575, %v909, %v1277
  %v1286 = vpack.c.bf16 %v1283, %v1282
  %v1287 = vpack.c.bf16 %v1285, %v1284
  %v1288 = vld [vmem:[%s4] sm:$0xf]
  %v1289 = vld [vmem:[%s4 + $0x10] sm:$0xf]
  %v1290 = vld [vmem:[%s4 + $0x20] sm:$0xf]
  %v1291 = vld [vmem:[%s4 + $0x30] sm:$0xf]
  %v1292 = vld [vmem:[%s4 + $0x40] sm:$0xf]
  %v1293 = vld [vmem:[%s4 + $0x50] sm:$0xf]
  %v1294 = vld [vmem:[%s4 + $0x60] sm:$0xf]
  %v1295 = vld [vmem:[%s4 + $0x70] sm:$0xf]
  %v1296 = vld [vmem:[%s4 + $0x80] sm:$0xf]
  %v1297 = vld [vmem:[%s4 + $0x90] sm:$0xf]
  %v1298 = vld [vmem:[%s4 + $0xa0] sm:$0xf]
  %v1299 = vld [vmem:[%s4 + $0xb0] sm:$0xf]
  %v1300 = vld [vmem:[%s4 + $0xc0] sm:$0xf]
  %v1301 = vld [vmem:[%s4 + $0xd0] sm:$0xf]
  %v1302 = vld [vmem:[%s4 + $0xe0] sm:$0xf]
  %v1303 = vld [vmem:[%s4 + $0xf0] sm:$0xf]
  %v1304 = vld [vmem:[%s1 + $0x5] sm:$0x1]
  %v1306 = vlaneseq
  %v1307 = vshrl.u32 %v1306, 7
  %v1308 = vsub.s32 0, %v1307
  %v1309 = vrot.slane %v1304, %v1308
  %v1327 = vunpack.c.l.b16 %v1288
  %v1328 = vunpack.c.l.b16 %v1289
  %v1329 = vunpack.c.l.b16 %v1290
  %v1330 = vunpack.c.l.b16 %v1291
  %v1331 = vunpack.c.l.b16 %v1292
  %v1332 = vunpack.c.l.b16 %v1293
  %v1333 = vunpack.c.l.b16 %v1294
  %v1334 = vunpack.c.l.b16 %v1295
  %v1335 = vunpack.c.l.b16 %v1296
  %v1336 = vunpack.c.l.b16 %v1297
  %v1337 = vunpack.c.l.b16 %v1298
  %v1338 = vunpack.c.l.b16 %v1299
  %v1339 = vunpack.c.l.b16 %v1300
  %v1340 = vunpack.c.l.b16 %v1301
  %v1341 = vunpack.c.l.b16 %v1302
  %v1342 = vunpack.c.l.b16 %v1303
  %v1343 = vpack.c.b16 %v1328, %v1327
  %v1344 = vpack.c.b16 %v1330, %v1329
  %v1345 = vpack.c.b16 %v1332, %v1331
  %v1346 = vpack.c.b16 %v1334, %v1333
  %v1347 = vpack.c.b16 %v1336, %v1335
  %v1348 = vpack.c.b16 %v1338, %v1337
  %v1349 = vpack.c.b16 %v1340, %v1339
  %v1350 = vpack.c.b16 %v1342, %v1341
  %1359 = vmatprep.subr.bf16.mxu0 0
  %1360 = vmatpush1.bf16.msra.mxu0 %v1343
  %1361 = vmatprep.subr.bf16.mxu0 0
  %1362 = vmatpush1.bf16.msra.mxu0 %v1344
  %1363 = vmatprep.subr.bf16.mxu0 0
  %1364 = vmatpush1.bf16.msra.mxu0 %v1345
  %1365 = vmatprep.subr.bf16.mxu0 0
  %1366 = vmatpush1.bf16.msra.mxu0 %v1346
  %1367 = vmatprep.subr.bf16.mxu0 0
  %1368 = vmatpush1.bf16.msra.mxu0 %v1347
  %1369 = vmatprep.subr.bf16.mxu0 0
  %1370 = vmatpush1.bf16.msra.mxu0 %v1348
  %1371 = vmatprep.subr.bf16.mxu0 0
  %1372 = vmatpush1.bf16.msra.mxu0 %v1349
  %1373 = vmatprep.subr.bf16.mxu0 0
  %1374 = vmatpush1.bf16.msra.mxu0 %v1350
  %1375 = vmatprep.subr.bf16.mxu0 0
  %1376 = vmatpush1.bf16.msra.mxu0 0
  %1377 = vmatprep.subr.bf16.mxu0 0
  %1378 = vmatpush1.bf16.msra.mxu0 0
  %1379 = vmatprep.subr.bf16.mxu0 0
  %1380 = vmatpush1.bf16.msra.mxu0 0
  %1381 = vmatprep.subr.bf16.mxu0 0
  %1382 = vmatpush1.bf16.msra.mxu0 0
  %1383 = vmatprep.subr.bf16.mxu0 0
  %1384 = vmatpush1.bf16.msra.mxu0 0
  %1385 = vmatprep.subr.bf16.mxu0 0
  %1386 = vmatpush1.bf16.msra.mxu0 0
  %1387 = vmatprep.subr.bf16.mxu0 0
  %1388 = vmatpush1.bf16.msra.mxu0 0
  %1389 = vmatprep.subr.bf16.mxu0 0
  %1390 = vmatpush1.bf16.msra.mxu0 0
  %1391 = vmatprep.mubr.bf16.mxu0 0
  %1392 = vmatmul.mubr.bf16.gmra.mrb[0].mxu0 %v1286
  %v1393 = vpop.f32.mrb[0].mxu0
  %v1394 = vadd.f32 %v1309, %v1393
  %v1395 = vpop.f32.mrb[0].mxu0
  %v1396 = vpop.f32.mrb[0].mxu0
  %v1397 = vadd.f32 %v1309, %v1396
  %v1398 = vpop.f32.mrb[0].mxu0
  %1399 = vmatprep.mubr.bf16.mxu0 0
  %1400 = vmatmul.mubr.bf16.gmra.mrb[0].mxu0 %v1287
  %v1401 = vpop.f32.mrb[0].mxu0
  %v1402 = vadd.f32 %v1309, %v1401
  %v1403 = vpop.f32.mrb[0].mxu0
  %v1404 = vpop.f32.mrb[0].mxu0
  %v1405 = vadd.f32 %v1309, %v1404
  %v1406 = vpop.f32.mrb[0].mxu0
  %1407 = vdwg.mxu0
  %v1408 = vld [vmem:[%s1 + $0x6] sm:$0x1]
  %v1409 = vld [vmem:[%s1 + $0x7] sm:$0x1]
  %v1410 = vsel %vm377, %v1394, 0.0
  %1411 = vadd.xlane.f32.xlu0 %v1410
  %v1412 = vpop.xlane.xlu0 %1411
  %v1413 = vsel %vm377, %v1397, 0.0
  %1414 = vadd.xlane.f32.xlu0 %v1413
  %v1415 = vpop.xlane.xlu0 %1414
  %v1416 = vsel %vm377, %v1402, 0.0
  %1417 = vadd.xlane.f32.xlu0 %v1416
  %v1418 = vpop.xlane.xlu0 %1417
  %v1419 = vsel %vm377, %v1405, 0.0
  %1420 = vadd.xlane.f32.xlu0 %v1419
  %v1421 = vpop.xlane.xlu0 %1420
  %v1422 = vrcp.pop 32.0
  %v1423 = vmul.f32 %v1412, %v1422
  %v1424 = vmul.f32 %v1415, %v1422
  %v1425 = vmul.f32 %v1418, %v1422
  %v1426 = vmul.f32 %v1421, %v1422
  %v1427 = vsub.f32 %v1394, %v1423
  %v1428 = vsub.f32 %v1397, %v1424
  %v1429 = vsub.f32 %v1402, %v1425
  %v1430 = vsub.f32 %v1405, %v1426
  %v1431 = vmul.f32 %v1427, %v1427
  %v1432 = vmul.f32 %v1428, %v1428
  %v1433 = vmul.f32 %v1429, %v1429
  %v1434 = vmul.f32 %v1430, %v1430
  %v1435 = vsel %vm377, %v1431, 0.0
  %1436 = vadd.xlane.f32.xlu0 %v1435
  %v1437 = vpop.xlane.xlu0 %1436
  %v1438 = vsel %vm377, %v1432, 0.0
  %1439 = vadd.xlane.f32.xlu0 %v1438
  %v1440 = vpop.xlane.xlu0 %1439
  %v1441 = vsel %vm377, %v1433, 0.0
  %1442 = vadd.xlane.f32.xlu0 %v1441
  %v1443 = vpop.xlane.xlu0 %1442
  %v1444 = vsel %vm377, %v1434, 0.0
  %1445 = vadd.xlane.f32.xlu0 %v1444
  %v1446 = vpop.xlane.xlu0 %1445
  %v1447 = vmul.f32 %v1437, %v1422
  %v1448 = vmul.f32 %v1440, %v1422
  %v1449 = vmul.f32 %v1443, %v1422
  %v1450 = vmul.f32 %v1446, %v1422
  %v1451 = vadd.f32 %v1447, 1e-05
  %v1452 = vadd.f32 %v1448, 1e-05
  %v1453 = vadd.f32 %v1449, 1e-05
  %v1454 = vadd.f32 %v1450, 1e-05
  %v1455 = vrsqrt.pop %v1451
  %v1456 = vrsqrt.pop %v1452
  %v1457 = vrsqrt.pop %v1453
  %v1458 = vrsqrt.pop %v1454
  %v1459 = vmul.f32 %v1427, %v1455
  %v1460 = vmul.f32 %v1428, %v1456
  %v1461 = vmul.f32 %v1429, %v1457
  %v1462 = vmul.f32 %v1430, %v1458
  %v1464 = vlaneseq
  %v1465 = vshrl.u32 %v1464, 7
  %v1466 = vsub.s32 0, %v1465
  %v1467 = vrot.slane %v1408, %v1466
  %v1469 = vmul.f32 %v1459, %v1467
  %v1470 = vmul.f32 %v1460, %v1467
  %v1471 = vmul.f32 %v1461, %v1467
  %v1472 = vmul.f32 %v1462, %v1467
  %v1474 = vlaneseq
  %v1475 = vshrl.u32 %v1474, 7
  %v1476 = vsub.s32 0, %v1475
  %v1477 = vrot.slane %v1409, %v1476
  %v1479 = vadd.f32 %v1469, %v1477
  %v1480 = vadd.f32 %v1470, %v1477
  %v1481 = vadd.f32 %v1471, %v1477
  %v1482 = vadd.f32 %v1472, %v1477
  %v1483 = vadd.f32 %v1479, %v280
  %v1484 = vadd.f32 %v1480, %v281
  %v1485 = vadd.f32 %v1481, %v282
  %v1486 = vadd.f32 %v1482, %v283
  %v1487 = vpack.c.bf16 %v1484, %v1483
  %v1488 = vpack.c.bf16 %v1486, %v1485
  %v1489 = vld [vmem:[%s2 + $0x14] sm:$0xf]
  %v1490 = vld [vmem:[%s2 + $0x48] sm:$0xf]
  %v1491 = vld [vmem:[%s2 + $0x7c] sm:$0xf]
  %v1492 = vld [vmem:[%s2 + $0xb0] sm:$0xf]
  %v1493 = vld [vmem:[%s1 + $0x8] sm:$0x1]
  %v1495 = vlaneseq
  %v1496 = vshrl.u32 %v1495, 7
  %v1497 = vsub.s32 0, %v1496
  %v1498 = vrot.slane %v1493, %v1497
  %v1504 = vunpack.c.l.b16 %v1489
  %v1505 = vunpack.c.l.b16 %v1490
  %v1506 = vunpack.c.l.b16 %v1491
  %v1507 = vunpack.c.l.b16 %v1492
  %v1508 = vpack.c.b16 %v1505, %v1504
  %v1509 = vpack.c.b16 %v1507, %v1506
  %v1513 = vsel %vm377, %v1487, 0
  %v1516 = vsel %vm377, %v1488, 0
  %1518 = vmatprep.subr.bf16.mxu0 0
  %1519 = vmatpush1.bf16.msra.mxu0 %v1508
  %1520 = vmatprep.subr.bf16.mxu0 0
  %1521 = vmatpush1.bf16.msra.mxu0 %v1509
  %1522 = vmatprep.subr.bf16.mxu0 0
  %1523 = vmatpush1.bf16.msra.mxu0 0
  %1524 = vmatprep.subr.bf16.mxu0 0
  %1525 = vmatpush1.bf16.msra.mxu0 0
  %1526 = vmatprep.subr.bf16.mxu0 0
  %1527 = vmatpush1.bf16.msra.mxu0 0
  %1528 = vmatprep.subr.bf16.mxu0 0
  %1529 = vmatpush1.bf16.msra.mxu0 0
  %1530 = vmatprep.subr.bf16.mxu0 0
  %1531 = vmatpush1.bf16.msra.mxu0 0
  %1532 = vmatprep.subr.bf16.mxu0 0
  %1533 = vmatpush1.bf16.msra.mxu0 0
  %1534 = vmatprep.subr.bf16.mxu0 0
  %1535 = vmatpush1.bf16.msra.mxu0 0
  %1536 = vmatprep.subr.bf16.mxu0 0
  %1537 = vmatpush1.bf16.msra.mxu0 0
  %1538 = vmatprep.subr.bf16.mxu0 0
  %1539 = vmatpush1.bf16.msra.mxu0 0
  %1540 = vmatprep.subr.bf16.mxu0 0
  %1541 = vmatpush1.bf16.msra.mxu0 0
  %1542 = vmatprep.subr.bf16.mxu0 0
  %1543 = vmatpush1.bf16.msra.mxu0 0
  %1544 = vmatprep.subr.bf16.mxu0 0
  %1545 = vmatpush1.bf16.msra.mxu0 0
  %1546 = vmatprep.subr.bf16.mxu0 0
  %1547 = vmatpush1.bf16.msra.mxu0 0
  %1548 = vmatprep.subr.bf16.mxu0 0
  %1549 = vmatpush1.bf16.msra.mxu0 0
  %1550 = vmatprep.mubr.bf16.mxu0 0
  %1551 = vmatmul.mubr.bf16.gmra.mrb[0].mxu0 %v1513
  %v1552 = vpop.f32.mrb[0].mxu0
  %v1553 = vadd.f32 %v1498, %v1552
  %v1554 = vpop.f32.mrb[0].mxu0
  %v1555 = vpop.f32.mrb[0].mxu0
  %v1556 = vadd.f32 %v1498, %v1555
  %v1557 = vpop.f32.mrb[0].mxu0
  %1558 = vmatprep.mubr.bf16.mxu0 0
  %1559 = vmatmul.mubr.bf16.gmra.mrb[0].mxu0 %v1516
  %v1560 = vpop.f32.mrb[0].mxu0
  %v1561 = vadd.f32 %v1498, %v1560
  %v1562 = vpop.f32.mrb[0].mxu0
  %v1563 = vpop.f32.mrb[0].mxu0
  %v1564 = vadd.f32 %v1498, %v1563
  %v1565 = vpop.f32.mrb[0].mxu0
  %1566 = vdwg.mxu0
  %v1567 = vmul.f32 %v1553, 0.5
  %v1568 = vmul.f32 %v1556, 0.5
  %v1569 = vmul.f32 %v1561, 0.5
  %v1570 = vmul.f32 %v1564, 0.5
  %v1571 = vmul.f32 %v1553, 0.044715
  %v1572 = vmul.f32 %v1556, 0.044715
  %v1573 = vmul.f32 %v1561, 0.044715
  %v1574 = vmul.f32 %v1564, 0.044715
  %v1575 = vmul.f32 %v1571, %v1553
  %v1576 = vmul.f32 %v1572, %v1556
  %v1577 = vmul.f32 %v1573, %v1561
  %v1578 = vmul.f32 %v1574, %v1564
  %v1579 = vmul.f32 %v1575, %v1553
  %v1580 = vmul.f32 %v1576, %v1556
  %v1581 = vmul.f32 %v1577, %v1561
  %v1582 = vmul.f32 %v1578, %v1564
  %v1583 = vadd.f32 %v1553, %v1579
  %v1584 = vadd.f32 %v1556, %v1580
  %v1585 = vadd.f32 %v1561, %v1581
  %v1586 = vadd.f32 %v1564, %v1582
  %v1587 = vmul.f32 %v1583, 0.7978846
  %v1588 = vmul.f32 %v1584, 0.7978846
  %v1589 = vmul.f32 %v1585, 0.7978846
  %v1590 = vmul.f32 %v1586, 0.7978846
  %v1591 = vtanh.pop %v1587
  %v1592 = vtanh.pop %v1588
  %v1593 = vtanh.pop %v1589
  %v1594 = vtanh.pop %v1590
  %v1595 = vadd.f32 %v1591, 1.0
  %v1596 = vadd.f32 %v1592, 1.0
  %v1597 = vadd.f32 %v1593, 1.0
  %v1598 = vadd.f32 %v1594, 1.0
  %v1599 = vmul.f32 %v1567, %v1595
  %v1600 = vmul.f32 %v1568, %v1596
  %v1601 = vmul.f32 %v1569, %v1597
  %v1602 = vmul.f32 %v1570, %v1598
  %v1603 = vpack.c.bf16 %v1600, %v1599
  %v1604 = vpack.c.bf16 %v1602, %v1601
  %v1605 = vld [vmem:[%s3] sm:$0xf]
  %v1606 = vld [vmem:[%s3 + $0x2c] sm:$0xf]
  %v1607 = vld [vmem:[%s3 + $0x58] sm:$0xf]
  %v1608 = vld [vmem:[%s3 + $0x84] sm:$0xf]
  %v1609 = vld [vmem:[%s3 + $0xb0] sm:$0xf]
  %v1610 = vld [vmem:[%s3 + $0xdc] sm:$0xf]
  %v1611 = vld [vmem:[%s3 + $0x108] sm:$0xf]
  %v1612 = vld [vmem:[%s3 + $0x134] sm:$0xf]
  %v1613 = vld [vmem:[%s1 + $0x9] sm:$0x1]
  %v1615 = vlaneseq
  %v1616 = vshrl.u32 %v1615, 7
  %v1617 = vsub.s32 0, %v1616
  %v1618 = vrot.slane %v1613, %v1617
  %v1628 = vunpack.c.l.b16 %v1605
  %v1629 = vunpack.c.l.b16 %v1606
  %v1630 = vunpack.c.l.b16 %v1607
  %v1631 = vunpack.c.l.b16 %v1608
  %v1632 = vunpack.c.l.b16 %v1609
  %v1633 = vunpack.c.l.b16 %v1610
  %v1634 = vunpack.c.l.b16 %v1611
  %v1635 = vunpack.c.l.b16 %v1612
  %v1636 = vpack.c.b16 %v1629, %v1628
  %v1637 = vpack.c.b16 %v1631, %v1630
  %v1638 = vpack.c.b16 %v1633, %v1632
  %v1639 = vpack.c.b16 %v1635, %v1634
  %v1645 = vsel %vm575, %v1603, 0
  %v1648 = vsel %vm575, %v1604, 0
  %1650 = vmatprep.subr.bf16.mxu0 0
  %1651 = vmatpush1.bf16.msra.mxu0 %v1636
  %1652 = vmatprep.subr.bf16.mxu0 0
  %1653 = vmatpush1.bf16.msra.mxu0 %v1637
  %1654 = vmatprep.subr.bf16.mxu0 0
  %1655 = vmatpush1.bf16.msra.mxu0 %v1638
  %1656 = vmatprep.subr.bf16.mxu0 0
  %1657 = vmatpush1.bf16.msra.mxu0 %v1639
  %1658 = vmatprep.subr.bf16.mxu0 0
  %1659 = vmatpush1.bf16.msra.mxu0 0
  %1660 = vmatprep.subr.bf16.mxu0 0
  %1661 = vmatpush1.bf16.msra.mxu0 0
  %1662 = vmatprep.subr.bf16.mxu0 0
  %1663 = vmatpush1.bf16.msra.mxu0 0
  %1664 = vmatprep.subr.bf16.mxu0 0
  %1665 = vmatpush1.bf16.msra.mxu0 0
  %1666 = vmatprep.subr.bf16.mxu0 0
  %1667 = vmatpush1.bf16.msra.mxu0 0
  %1668 = vmatprep.subr.bf16.mxu0 0
  %1669 = vmatpush1.bf16.msra.mxu0 0
  %1670 = vmatprep.subr.bf16.mxu0 0
  %1671 = vmatpush1.bf16.msra.mxu0 0
  %1672 = vmatprep.subr.bf16.mxu0 0
  %1673 = vmatpush1.bf16.msra.mxu0 0
  %1674 = vmatprep.subr.bf16.mxu0 0
  %1675 = vmatpush1.bf16.msra.mxu0 0
  %1676 = vmatprep.subr.bf16.mxu0 0
  %1677 = vmatpush1.bf16.msra.mxu0 0
  %1678 = vmatprep.subr.bf16.mxu0 0
  %1679 = vmatpush1.bf16.msra.mxu0 0
  %1680 = vmatprep.subr.bf16.mxu0 0
  %1681 = vmatpush1.bf16.msra.mxu0 0
  %1682 = vmatprep.mubr.bf16.mxu0 0
  %1683 = vmatmul.mubr.bf16.gmra.mrb[0].mxu0 %v1645
  %v1684 = vpop.f32.mrb[0].mxu0
  %v1685 = vadd.f32 %v1618, %v1684
  %v1686 = vpop.f32.mrb[0].mxu0
  %v1687 = vpop.f32.mrb[0].mxu0
  %v1688 = vadd.f32 %v1618, %v1687
  %v1689 = vpop.f32.mrb[0].mxu0
  %1690 = vmatprep.mubr.bf16.mxu0 0
  %1691 = vmatmul.mubr.bf16.gmra.mrb[0].mxu0 %v1648
  %v1692 = vpop.f32.mrb[0].mxu0
  %v1693 = vadd.f32 %v1618, %v1692
  %v1694 = vpop.f32.mrb[0].mxu0
  %v1695 = vpop.f32.mrb[0].mxu0
  %v1696 = vadd.f32 %v1618, %v1695
  %v1697 = vpop.f32.mrb[0].mxu0
  %1698 = vdwg.mxu0
  %v1699 = vld [vmem:[%s1 + $0xa] sm:$0x1]
  %v1700 = vld [vmem:[%s1 + $0xb] sm:$0x1]
  %v1701 = vsel %vm377, %v1685, 0.0
  %1702 = vadd.xlane.f32.xlu0 %v1701
  %v1703 = vpop.xlane.xlu0 %1702
  %v1704 = vsel %vm377, %v1688, 0.0
  %1705 = vadd.xlane.f32.xlu0 %v1704
  %v1706 = vpop.xlane.xlu0 %1705
  %v1707 = vsel %vm377, %v1693, 0.0
  %1708 = vadd.xlane.f32.xlu0 %v1707
  %v1709 = vpop.xlane.xlu0 %1708
  %v1710 = vsel %vm377, %v1696, 0.0
  %1711 = vadd.xlane.f32.xlu0 %v1710
  %v1712 = vpop.xlane.xlu0 %1711
  %v1713 = vmul.f32 %v1703, %v1422
  %v1714 = vmul.f32 %v1706, %v1422
  %v1715 = vmul.f32 %v1709, %v1422
  %v1716 = vmul.f32 %v1712, %v1422
  %v1717 = vsub.f32 %v1685, %v1713
  %v1718 = vsub.f32 %v1688, %v1714
  %v1719 = vsub.f32 %v1693, %v1715
  %v1720 = vsub.f32 %v1696, %v1716
  %v1721 = vmul.f32 %v1717, %v1717
  %v1722 = vmul.f32 %v1718, %v1718
  %v1723 = vmul.f32 %v1719, %v1719
  %v1724 = vmul.f32 %v1720, %v1720
  %v1725 = vsel %vm377, %v1721, 0.0
  %1726 = vadd.xlane.f32.xlu0 %v1725
  %v1727 = vpop.xlane.xlu0 %1726
  %v1728 = vsel %vm377, %v1722, 0.0
  %1729 = vadd.xlane.f32.xlu0 %v1728
  %v1730 = vpop.xlane.xlu0 %1729
  %v1731 = vsel %vm377, %v1723, 0.0
  %1732 = vadd.xlane.f32.xlu0 %v1731
  %v1733 = vpop.xlane.xlu0 %1732
  %v1734 = vsel %vm377, %v1724, 0.0
  %1735 = vadd.xlane.f32.xlu0 %v1734
  %v1736 = vpop.xlane.xlu0 %1735
  %v1737 = vmul.f32 %v1727, %v1422
  %v1738 = vmul.f32 %v1730, %v1422
  %v1739 = vmul.f32 %v1733, %v1422
  %v1740 = vmul.f32 %v1736, %v1422
  %v1741 = vadd.f32 %v1737, 1e-05
  %v1742 = vadd.f32 %v1738, 1e-05
  %v1743 = vadd.f32 %v1739, 1e-05
  %v1744 = vadd.f32 %v1740, 1e-05
  %v1745 = vrsqrt.pop %v1741
  %v1746 = vrsqrt.pop %v1742
  %v1747 = vrsqrt.pop %v1743
  %v1748 = vrsqrt.pop %v1744
  %v1749 = vmul.f32 %v1717, %v1745
  %v1750 = vmul.f32 %v1718, %v1746
  %v1751 = vmul.f32 %v1719, %v1747
  %v1752 = vmul.f32 %v1720, %v1748
  %v1754 = vlaneseq
  %v1755 = vshrl.u32 %v1754, 7
  %v1756 = vsub.s32 0, %v1755
  %v1757 = vrot.slane %v1699, %v1756
  %v1759 = vmul.f32 %v1749, %v1757
  %v1760 = vmul.f32 %v1750, %v1757
  %v1761 = vmul.f32 %v1751, %v1757
  %v1762 = vmul.f32 %v1752, %v1757
  %v1764 = vlaneseq
  %v1765 = vshrl.u32 %v1764, 7
  %v1766 = vsub.s32 0, %v1765
  %v1767 = vrot.slane %v1700, %v1766
  %v1769 = vadd.f32 %v1759, %v1767
  %v1770 = vadd.f32 %v1760, %v1767
  %v1771 = vadd.f32 %v1761, %v1767
  %v1772 = vadd.f32 %v1762, %v1767
  %v1773 = vadd.f32 %v1769, %v1483
  %v1774 = vadd.f32 %v1770, %v1484
  %v1775 = vadd.f32 %v1771, %v1485
  %v1776 = vadd.f32 %v1772, %v1486
  %vm1779 = vcmask 1045504
  %v1780 = vrot.slane %v1773, 2
  %v1781 = vrot.slane %v1774, 2
  %v1782 = vsel %vm1779, %v1780, %v1781
  %v1788 = vrot.slane %v1775, 2
  %v1789 = vrot.slane %v1776, 2
  %v1790 = vsel %vm1779, %v1788, %v1789
  %v1794 = vsel %vm1779, %v1781, %v1780
  %v1795 = vsel %vm1779, %v1789, %v1788
  %v1796 = vld [vmem:[%s9] sm:$0xff]
  %v1797 = vld [vmem:[%s9 + $0x8] sm:$0xff]
  %v1799 = vsel %vm377, %v1796, 0
  %v1802 = vsel %vm377, %v1797, 0
  %1804 = vmatprep.subr.mxu0 0.0
  %1805 = vmatpush1.msra.mxu0 %v1782
  %1806 = vmatprep.subr.mxu0 0.0
  %1807 = vmatpush1.msra.mxu0 %v1794
  %1808 = vmatprep.subr.mxu0 0.0
  %1809 = vmatpush1.msra.mxu0 %v1790
  %1810 = vmatprep.subr.mxu0 0.0
  %1811 = vmatpush1.msra.mxu0 %v1795
  %1812 = vmatprep.subr.mxu0 0.0
  %1813 = vmatpush1.msra.mxu0 0.0
  %1814 = vmatprep.subr.mxu0 0.0
  %1815 = vmatpush1.msra.mxu0 0.0
  %1816 = vmatprep.subr.mxu0 0.0
  %1817 = vmatpush1.msra.mxu0 0.0
  %1818 = vmatprep.subr.mxu0 0.0
  %1819 = vmatpush1.msra.mxu0 0.0
  %1820 = vmatprep.subr.mxu0 0.0
  %1821 = vmatpush1.msra.mxu0 0.0
  %1822 = vmatprep.subr.mxu0 0.0
  %1823 = vmatpush1.msra.mxu0 0.0
  %1824 = vmatprep.subr.mxu0 0.0
  %1825 = vmatpush1.msra.mxu0 0.0
  %1826 = vmatprep.subr.mxu0 0.0
  %1827 = vmatpush1.msra.mxu0 0.0
  %1828 = vmatprep.subr.mxu0 0.0
  %1829 = vmatpush1.msra.mxu0 0.0
  %1830 = vmatprep.subr.mxu0 0.0
  %1831 = vmatpush1.msra.mxu0 0.0
  %1832 = vmatprep.subr.mxu0 0.0
  %1833 = vmatpush1.msra.mxu0 0.0
  %1834 = vmatprep.subr.mxu0 0.0
  %1835 = vmatpush1.msra.mxu0 0.0
  %1836 = vmatprep.subr.mxu0 0.0
  %1837 = vmatpush1.msra.mxu0 0.0
  %1838 = vmatprep.subr.mxu0 0.0
  %1839 = vmatpush1.msra.mxu0 0.0
  %1840 = vmatprep.subr.mxu0 0.0
  %1841 = vmatpush1.msra.mxu0 0.0
  %1842 = vmatprep.subr.mxu0 0.0
  %1843 = vmatpush1.msra.mxu0 0.0
  %1844 = vmatprep.subr.mxu0 0.0
  %1845 = vmatpush1.msra.mxu0 0.0
  %1846 = vmatprep.subr.mxu0 0.0
  %1847 = vmatpush1.msra.mxu0 0.0
  %1848 = vmatprep.subr.mxu0 0.0
  %1849 = vmatpush1.msra.mxu0 0.0
  %1850 = vmatprep.subr.mxu0 0.0
  %1851 = vmatpush1.msra.mxu0 0.0
  %1852 = vmatprep.subr.mxu0 0.0
  %1853 = vmatpush1.msra.mxu0 0.0
  %1854 = vmatprep.subr.mxu0 0.0
  %1855 = vmatpush1.msra.mxu0 0.0
  %1856 = vmatprep.subr.mxu0 0.0
  %1857 = vmatpush1.msra.mxu0 0.0
  %1858 = vmatprep.subr.mxu0 0.0
  %1859 = vmatpush1.msra.mxu0 0.0
  %1860 = vmatprep.subr.mxu0 0.0
  %1861 = vmatpush1.msra.mxu0 0.0
  %1862 = vmatprep.subr.mxu0 0.0
  %1863 = vmatpush1.msra.mxu0 0.0
  %1864 = vmatprep.subr.mxu0 0.0
  %1865 = vmatpush1.msra.mxu0 0.0
  %1866 = vmatprep.subr.mxu0 0.0
  %1867 = vmatpush1.msra.mxu0 0.0
  %1868 = vmatprep.mubr.f32.mxu0 0.0
  %1869 = vmatmul.mubr.f32.gmra.mrb[0].mxu0 %v1799
  %v1870 = vpop.f32.mrb[0].mxu0
  %v1871 = vadd.f32 0.0, %v1870
  %v1872 = vpop.f32.mrb[0].mxu0
  %1873 = vmatprep.mubr.f32.mxu0 0.0
  %1874 = vmatmul.mubr.f32.gmra.mrb[0].mxu0 %v1802
  %v1875 = vpop.f32.mrb[0].mxu0
  %v1876 = vadd.f32 0.0, %v1875
  %v1877 = vpop.f32.mrb[0].mxu0
  %1878 = vdwg.mxu0
  %v1879 = vld [vmem:[%s9 + $0x10] sm:$0xff]
  %v1880 = vld [vmem:[%s9 + $0x18] sm:$0xff]
  %v1882 = vsel %vm377, %v1879, 0
  %v1885 = vsel %vm377, %v1880, 0
  %1887 = vmatprep.subr.mxu0 0.0
  %1888 = vmatpush1.msra.mxu0 %v1782
  %1889 = vmatprep.subr.mxu0 0.0
  %1890 = vmatpush1.msra.mxu0 %v1794
  %1891 = vmatprep.subr.mxu0 0.0
  %1892 = vmatpush1.msra.mxu0 %v1790
  %1893 = vmatprep.subr.mxu0 0.0
  %1894 = vmatpush1.msra.mxu0 %v1795
  %1895 = vmatprep.subr.mxu0 0.0
  %1896 = vmatpush1.msra.mxu0 0.0
  %1897 = vmatprep.subr.mxu0 0.0
  %1898 = vmatpush1.msra.mxu0 0.0
  %1899 = vmatprep.subr.mxu0 0.0
  %1900 = vmatpush1.msra.mxu0 0.0
  %1901 = vmatprep.subr.mxu0 0.0
  %1902 = vmatpush1.msra.mxu0 0.0
  %1903 = vmatprep.subr.mxu0 0.0
  %1904 = vmatpush1.msra.mxu0 0.0
  %1905 = vmatprep.subr.mxu0 0.0
  %1906 = vmatpush1.msra.mxu0 0.0
  %1907 = vmatprep.subr.mxu0 0.0
  %1908 = vmatpush1.msra.mxu0 0.0
  %1909 = vmatprep.subr.mxu0 0.0
  %1910 = vmatpush1.msra.mxu0 0.0
  %1911 = vmatprep.subr.mxu0 0.0
  %1912 = vmatpush1.msra.mxu0 0.0
  %1913 = vmatprep.subr.mxu0 0.0
  %1914 = vmatpush1.msra.mxu0 0.0
  %1915 = vmatprep.subr.mxu0 0.0
  %1916 = vmatpush1.msra.mxu0 0.0
  %1917 = vmatprep.subr.mxu0 0.0
  %1918 = vmatpush1.msra.mxu0 0.0
  %1919 = vmatprep.subr.mxu0 0.0
  %1920 = vmatpush1.msra.mxu0 0.0
  %1921 = vmatprep.subr.mxu0 0.0
  %1922 = vmatpush1.msra.mxu0 0.0
  %1923 = vmatprep.subr.mxu0 0.0
  %1924 = vmatpush1.msra.mxu0 0.0
  %1925 = vmatprep.subr.mxu0 0.0
  %1926 = vmatpush1.msra.mxu0 0.0
  %1927 = vmatprep.subr.mxu0 0.0
  %1928 = vmatpush1.msra.mxu0 0.0
  %1929 = vmatprep.subr.mxu0 0.0
  %1930 = vmatpush1.msra.mxu0 0.0
  %1931 = vmatprep.subr.mxu0 0.0
  %1932 = vmatpush1.msra.mxu0 0.0
  %1933 = vmatprep.subr.mxu0 0.0
  %1934 = vmatpush1.msra.mxu0 0.0
  %1935 = vmatprep.subr.mxu0 0.0
  %1936 = vmatpush1.msra.mxu0 0.0
  %1937 = vmatprep.subr.mxu0 0.0
  %1938 = vmatpush1.msra.mxu0 0.0
  %1939 = vmatprep.subr.mxu0 0.0
  %1940 = vmatpush1.msra.mxu0 0.0
  %1941 = vmatprep.subr.mxu0 0.0
  %1942 = vmatpush1.msra.mxu0 0.0
  %1943 = vmatprep.subr.mxu0 0.0
  %1944 = vmatpush1.msra.mxu0 0.0
  %1945 = vmatprep.subr.mxu0 0.0
  %1946 = vmatpush1.msra.mxu0 0.0
  %1947 = vmatprep.subr.mxu0 0.0
  %1948 = vmatpush1.msra.mxu0 0.0
  %1949 = vmatprep.subr.mxu0 0.0
  %1950 = vmatpush1.msra.mxu0 0.0
  %1951 = vmatprep.mubr.f32.mxu0 0.0
  %1952 = vmatmul.mubr.f32.gmra.mrb[0].mxu0 %v1882
  %v1953 = vpop.f32.mrb[0].mxu0
  %v1954 = vadd.f32 0.0, %v1953
  %v1955 = vpop.f32.mrb[0].mxu0
  %1956 = vmatprep.mubr.f32.mxu0 0.0
  %1957 = vmatmul.mubr.f32.gmra.mrb[0].mxu0 %v1885
  %v1958 = vpop.f32.mrb[0].mxu0
  %v1959 = vadd.f32 0.0, %v1958
  %v1960 = vpop.f32.mrb[0].mxu0
  %1961 = vdwg.mxu0
  %v1962 = vsel %vm377, %v1871, 0.0
  %1963 = vadd.xlane.f32.xlu0 %v1962
  %v1964 = vpop.xlane.xlu0 %1963
  %v1965 = vsel %vm377, %v1876, 0.0
  %1966 = vadd.xlane.f32.xlu0 %v1965
  %v1967 = vpop.xlane.xlu0 %1966
  %v1968 = vsel %vm377, %v1954, 0.0
  %1969 = vadd.xlane.f32.xlu0 %v1968
  %v1970 = vpop.xlane.xlu0 %1969
  %v1971 = vsel %vm377, %v1959, 0.0
  %1972 = vadd.xlane.f32.xlu0 %v1971
  %v1973 = vpop.xlane.xlu0 %1972
  %v1974 = vadd.f32 %v1964, %v1970
  %v1975 = vadd.f32 %v1967, %v1973
  %v1976 = vrcp.pop 64.0
  %v1977 = vmul.f32 %v1974, %v1976
  %v1978 = vmul.f32 %v1975, %v1976
  %v1979 = vsub.f32 %v1871, %v1977
  %v1980 = vsub.f32 %v1876, %v1978
  %v1981 = vsub.f32 %v1954, %v1977
  %v1982 = vsub.f32 %v1959, %v1978
  %v1983 = vmul.f32 %v1979, %v1979
  %v1984 = vmul.f32 %v1980, %v1980
  %v1985 = vsel %vm377, %v1983, 0.0
  %1986 = vadd.xlane.f32.xlu0 %v1985
  %v1987 = vpop.xlane.xlu0 %1986
  %v1988 = vsel %vm377, %v1984, 0.0
  %1989 = vadd.xlane.f32.xlu0 %v1988
  %v1990 = vpop.xlane.xlu0 %1989
  %v1991 = vmul.f32 %v1981, %v1981
  %v1992 = vmul.f32 %v1982, %v1982
  %v1993 = vsel %vm377, %v1991, 0.0
  %1994 = vadd.xlane.f32.xlu0 %v1993
  %v1995 = vpop.xlane.xlu0 %1994
  %v1996 = vsel %vm377, %v1992, 0.0
  %1997 = vadd.xlane.f32.xlu0 %v1996
  %v1998 = vpop.xlane.xlu0 %1997
  %v1999 = vadd.f32 %v1987, %v1995
  %v2000 = vadd.f32 %v1990, %v1998
  %v2001 = vmul.f32 %v1999, %v1976
  %v2002 = vmul.f32 %v2000, %v1976
  %v2003 = vadd.f32 %v2001, 1e-05
  %v2004 = vadd.f32 %v2002, 1e-05
  %v2005 = vrsqrt.pop %v2003
  %v2006 = vrsqrt.pop %v2004
  %v2007 = vld [vmem:[%s1 + $0x24] sm:$0x1]
  %v2008 = vld [vmem:[%s1 + $0x25] sm:$0x1]
  %v2009 = vmul.f32 %v1979, %v2005
  %v2010 = vmul.f32 %v1980, %v2006
  %v2012 = vlaneseq
  %v2013 = vshrl.u32 %v2012, 7
  %v2014 = vsub.s32 0, %v2013
  %v2015 = vrot.slane %v2007, %v2014
  %v2017 = vmul.f32 %v2009, %v2015
  %v2018 = vmul.f32 %v2010, %v2015
  %v2020 = vlaneseq
  %v2021 = vshrl.u32 %v2020, 7
  %v2022 = vsub.s32 0, %v2021
  %v2023 = vrot.slane %v2008, %v2022
  %v2025 = vadd.f32 %v2017, %v2023
  %v2026 = vadd.f32 %v2018, %v2023
  %v2027 = vmul.f32 %v1981, %v2005
  %v2028 = vmul.f32 %v1982, %v2006
  %2029 = vrot.lane.b32.xlu0 %v2015, 96
  %v2030 = vpop.permute.xlu0 %2029
  %v2032 = vmul.f32 %v2027, %v2030
  %v2033 = vmul.f32 %v2028, %v2030
  %2034 = vrot.lane.b32.xlu0 %v2023, 96
  %v2035 = vpop.permute.xlu0 %2034
  %v2037 = vadd.f32 %v2032, %v2035
  %v2038 = vadd.f32 %v2033, %v2035
  %v2039 = vld [vmem:[%s3 + $0x20] sm:$0xf]
  %v2040 = vld [vmem:[%s3 + $0x4c] sm:$0xf]
  %v2041 = vld [vmem:[%s3 + $0x78] sm:$0xf]
  %v2042 = vld [vmem:[%s3 + $0xa4] sm:$0xf]
  %v2043 = vld [vmem:[%s3 + $0xd0] sm:$0xf]
  %v2044 = vld [vmem:[%s3 + $0xfc] sm:$0xf]
  %v2045 = vld [vmem:[%s3 + $0x128] sm:$0xf]
  %v2046 = vld [vmem:[%s3 + $0x154] sm:$0xf]
  %v2047 = vpack.c.bf16 %v2026, %v2025
  %v2048 = vpack.c.bf16 %v2038, %v2037
  %v2053 = vunpack.c.l.b16 %v2043
  %v2054 = vunpack.c.l.b16 %v2044
  %v2055 = vunpack.c.l.b16 %v2045
  %v2056 = vunpack.c.l.b16 %v2046
  %v2057 = vpack.c.b16 %v2054, %v2053
  %v2058 = vpack.c.b16 %v2056, %v2055
  %v2062 = vsel %vm377, %v2048, 0
  %2064 = vmatprep.subr.bf16.mxu0 0
  %2065 = vmatpush1.bf16.msra.mxu0 %v2057
  %2066 = vmatprep.subr.bf16.mxu0 0
  %2067 = vmatpush1.bf16.msra.mxu0 %v2058
  %2068 = vmatprep.subr.bf16.mxu0 0
  %2069 = vmatpush1.bf16.msra.mxu0 0
  %2070 = vmatprep.subr.bf16.mxu0 0
  %2071 = vmatpush1.bf16.msra.mxu0 0
  %2072 = vmatprep.subr.bf16.mxu0 0
  %2073 = vmatpush1.bf16.msra.mxu0 0
  %2074 = vmatprep.subr.bf16.mxu0 0
  %2075 = vmatpush1.bf16.msra.mxu0 0
  %2076 = vmatprep.subr.bf16.mxu0 0
  %2077 = vmatpush1.bf16.msra.mxu0 0
  %2078 = vmatprep.subr.bf16.mxu0 0
  %2079 = vmatpush1.bf16.msra.mxu0 0
  %2080 = vmatprep.subr.bf16.mxu0 0
  %2081 = vmatpush1.bf16.msra.mxu0 0
  %2082 = vmatprep.subr.bf16.mxu0 0
  %2083 = vmatpush1.bf16.msra.mxu0 0
  %2084 = vmatprep.subr.bf16.mxu0 0
  %2085 = vmatpush1.bf16.msra.mxu0 0
  %2086 = vmatprep.subr.bf16.mxu0 0
  %2087 = vmatpush1.bf16.msra.mxu0 0
  %2088 = vmatprep.subr.bf16.mxu0 0
  %2089 = vmatpush1.bf16.msra.mxu0 0
  %2090 = vmatprep.subr.bf16.mxu0 0
  %2091 = vmatpush1.bf16.msra.mxu0 0
  %2092 = vmatprep.subr.bf16.mxu0 0
  %2093 = vmatpush1.bf16.msra.mxu0 0
  %2094 = vmatprep.subr.bf16.mxu0 0
  %2095 = vmatpush1.bf16.msra.mxu0 0
  %2096 = vmatprep.mubr.bf16.mxu0 0
  %2097 = vmatmul.mubr.bf16.gmra.mrb[0].mxu0 %v2062
  %v2098 = vpop.f32.mrb[0].mxu0
  %v2099 = vadd.f32 0.0, %v2098
  %v2100 = vpop.f32.mrb[0].mxu0
  %v2101 = vpop.f32.mrb[0].mxu0
  %v2102 = vadd.f32 0.0, %v2101
  %v2103 = vpop.f32.mrb[0].mxu0
  %2104 = vdwg.mxu0
  %v2109 = vunpack.c.l.b16 %v2039
  %v2110 = vunpack.c.l.b16 %v2040
  %v2111 = vunpack.c.l.b16 %v2041
  %v2112 = vunpack.c.l.b16 %v2042
  %v2113 = vpack.c.b16 %v2110, %v2109
  %v2114 = vpack.c.b16 %v2112, %v2111
  %v2118 = vsel %vm377, %v2047, 0
  %2120 = vmatprep.subr.bf16.mxu0 0
  %2121 = vmatpush1.bf16.msra.mxu0 %v2113
  %2122 = vmatprep.subr.bf16.mxu0 0
  %2123 = vmatpush1.bf16.msra.mxu0 %v2114
  %2124 = vmatprep.subr.bf16.mxu0 0
  %2125 = vmatpush1.bf16.msra.mxu0 0
  %2126 = vmatprep.subr.bf16.mxu0 0
  %2127 = vmatpush1.bf16.msra.mxu0 0
  %2128 = vmatprep.subr.bf16.mxu0 0
  %2129 = vmatpush1.bf16.msra.mxu0 0
  %2130 = vmatprep.subr.bf16.mxu0 0
  %2131 = vmatpush1.bf16.msra.mxu0 0
  %2132 = vmatprep.subr.bf16.mxu0 0
  %2133 = vmatpush1.bf16.msra.mxu0 0
  %2134 = vmatprep.subr.bf16.mxu0 0
  %2135 = vmatpush1.bf16.msra.mxu0 0
  %2136 = vmatprep.subr.bf16.mxu0 0
  %2137 = vmatpush1.bf16.msra.mxu0 0
  %2138 = vmatprep.subr.bf16.mxu0 0
  %2139 = vmatpush1.bf16.msra.mxu0 0
  %2140 = vmatprep.subr.bf16.mxu0 0
  %2141 = vmatpush1.bf16.msra.mxu0 0
  %2142 = vmatprep.subr.bf16.mxu0 0
  %2143 = vmatpush1.bf16.msra.mxu0 0
  %2144 = vmatprep.subr.bf16.mxu0 0
  %2145 = vmatpush1.bf16.msra.mxu0 0
  %2146 = vmatprep.subr.bf16.mxu0 0
  %2147 = vmatpush1.bf16.msra.mxu0 0
  %2148 = vmatprep.subr.bf16.mxu0 0
  %2149 = vmatpush1.bf16.msra.mxu0 0
  %2150 = vmatprep.subr.bf16.mxu0 0
  %2151 = vmatpush1.bf16.msra.mxu0 0
  %2152 = vmatprep.mubr.bf16.mxu0 0
  %2153 = vmatmul.mubr.bf16.gmra.mrb[0].mxu0 %v2118
  %v2154 = vpop.f32.mrb[0].mxu0
  %v2155 = vadd.f32 %v2099, %v2154
  %v2156 = vpop.f32.mrb[0].mxu0
  %v2157 = vpop.f32.mrb[0].mxu0
  %v2158 = vadd.f32 %v2102, %v2157
  %v2159 = vpop.f32.mrb[0].mxu0
  %2160 = vdwg.mxu0
  %v2161 = vpack.c.bf16 %v2158, %v2155
  %v2162 = vld [vmem:[%s3 + $0x4] sm:$0xff]
  %v2163 = vld [vmem:[%s3 + $0xc] sm:$0xff]
  %v2164 = vld [vmem:[%s3 + $0x14] sm:$0xf]
  %v2165 = vld [vmem:[%s3 + $0x30] sm:$0xff]
  %v2166 = vld [vmem:[%s3 + $0x38] sm:$0xff]
  %v2167 = vld [vmem:[%s3 + $0x40] sm:$0xf]
  %v2168 = vld [vmem:[%s3 + $0x5c] sm:$0xff]
  %v2169 = vld [vmem:[%s3 + $0x64] sm:$0xff]
  %v2170 = vld [vmem:[%s3 + $0x6c] sm:$0xf]
  %v2171 = vld [vmem:[%s3 + $0x88] sm:$0xff]
  %v2172 = vld [vmem:[%s3 + $0x90] sm:$0xff]
  %v2173 = vld [vmem:[%s3 + $0x98] sm:$0xf]
  %v2174 = vld [vmem:[%s3 + $0xb4] sm:$0xff]
  %v2175 = vld [vmem:[%s3 + $0xbc] sm:$0xff]
  %v2176 = vld [vmem:[%s3 + $0xc4] sm:$0xf]
  %v2177 = vld [vmem:[%s3 + $0xe0] sm:$0xff]
  %v2178 = vld [vmem:[%s3 + $0xe8] sm:$0xff]
  %v2179 = vld [vmem:[%s3 + $0xf0] sm:$0xf]
  %v2180 = vld [vmem:[%s3 + $0x10c] sm:$0xff]
  %v2181 = vld [vmem:[%s3 + $0x114] sm:$0xff]
  %v2182 = vld [vmem:[%s3 + $0x11c] sm:$0xf]
  %v2183 = vld [vmem:[%s3 + $0x138] sm:$0xff]
  %v2184 = vld [vmem:[%s3 + $0x140] sm:$0xff]
  %v2185 = vld [vmem:[%s3 + $0x148] sm:$0xf]
  %v2186 = vld [vmem:[%s1 + $0xc] sm:$0x1f]
  %v2188 = vlaneseq
  %v2189 = vshrl.u32 %v2188, 7
  %v2190 = vsub.s32 0, %v2189
  %v2191 = vrot.slane %v2186, %v2190
  %v2192 = vlaneseq
  %v2193 = vshrl.u32 %v2192, 7
  %v2194 = vsub.s32 1, %v2193
  %v2195 = vrot.slane %v2186, %v2194
  %v2196 = vlaneseq
  %v2197 = vshrl.u32 %v2196, 7
  %v2198 = vsub.s32 2, %v2197
  %v2199 = vrot.slane %v2186, %v2198
  %v2200 = vlaneseq
  %v2201 = vshrl.u32 %v2200, 7
  %v2202 = vsub.s32 3, %v2201
  %v2203 = vrot.slane %v2186, %v2202
  %v2204 = vlaneseq
  %v2205 = vshrl.u32 %v2204, 7
  %v2206 = vsub.s32 4, %v2205
  %v2207 = vrot.slane %v2186, %v2206
  %v2237 = vunpack.c.l.b16 %v2162
  %v2238 = vunpack.c.h.b16 %v2162
  %v2239 = vunpack.c.l.b16 %v2163
  %v2240 = vunpack.c.h.b16 %v2163
  %v2241 = vunpack.c.l.b16 %v2164
  %v2242 = vunpack.c.l.b16 %v2165
  %v2243 = vunpack.c.h.b16 %v2165
  %v2244 = vunpack.c.l.b16 %v2166
  %v2245 = vunpack.c.h.b16 %v2166
  %v2246 = vunpack.c.l.b16 %v2167
  %v2247 = vunpack.c.l.b16 %v2168
  %v2248 = vunpack.c.h.b16 %v2168
  %v2249 = vunpack.c.l.b16 %v2169
  %v2250 = vunpack.c.h.b16 %v2169
  %v2251 = vunpack.c.l.b16 %v2170
  %v2252 = vunpack.c.l.b16 %v2171
  %v2253 = vunpack.c.h.b16 %v2171
  %v2254 = vunpack.c.l.b16 %v2172
  %v2255 = vunpack.c.h.b16 %v2172
  %v2256 = vunpack.c.l.b16 %v2173
  %v2257 = vunpack.c.l.b16 %v2174
  %v2258 = vunpack.c.h.b16 %v2174
  %v2259 = vunpack.c.l.b16 %v2175
  %v2260 = vunpack.c.h.b16 %v2175
  %v2261 = vunpack.c.l.b16 %v2176
  %v2262 = vunpack.c.l.b16 %v2177
  %v2263 = vunpack.c.h.b16 %v2177
  %v2264 = vunpack.c.l.b16 %v2178
  %v2265 = vunpack.c.h.b16 %v2178
  %v2266 = vunpack.c.l.b16 %v2179
  %v2267 = vunpack.c.l.b16 %v2180
  %v2268 = vunpack.c.h.b16 %v2180
  %v2269 = vunpack.c.l.b16 %v2181
  %v2270 = vunpack.c.h.b16 %v2181
  %v2271 = vunpack.c.l.b16 %v2182
  %v2272 = vunpack.c.l.b16 %v2183
  %v2273 = vunpack.c.h.b16 %v2183
  %v2274 = vunpack.c.l.b16 %v2184
  %v2275 = vunpack.c.h.b16 %v2184
  %v2276 = vunpack.c.l.b16 %v2185
  %v2277 = vpack.c.b16 %v2242, %v2237
  %v2278 = vpack.c.b16 %v2243, %v2238
  %v2279 = vpack.c.b16 %v2244, %v2239
  %v2280 = vpack.c.b16 %v2245, %v2240
  %v2281 = vpack.c.b16 %v2246, %v2241
  %v2282 = vpack.c.b16 %v2252, %v2247
  %v2283 = vpack.c.b16 %v2253, %v2248
  %v2284 = vpack.c.b16 %v2254, %v2249
  %v2285 = vpack.c.b16 %v2255, %v2250
  %v2286 = vpack.c.b16 %v2256, %v2251
  %v2287 = vpack.c.b16 %v2262, %v2257
  %v2288 = vpack.c.b16 %v2263, %v2258
  %v2289 = vpack.c.b16 %v2264, %v2259
  %v2290 = vpack.c.b16 %v2265, %v2260
  %v2291 = vpack.c.b16 %v2266, %v2261
  %v2292 = vpack.c.b16 %v2272, %v2267
  %v2293 = vpack.c.b16 %v2273, %v2268
  %v2294 = vpack.c.b16 %v2274, %v2269
  %v2295 = vpack.c.b16 %v2275, %v2270
  %v2296 = vpack.c.b16 %v2276, %v2271
  %v2318 = vsel %vm575, %v2161, 0
  %2320 = vmatprep.subr.bf16.mxu0 %v2278
  %2321 = vmatpush1.bf16.msra.mxu0 %v2277
  %2322 = vmatprep.subr.bf16.mxu0 %v2283
  %2323 = vmatpush1.bf16.msra.mxu0 %v2282
  %2324 = vmatprep.subr.bf16.mxu0 %v2288
  %2325 = vmatpush1.bf16.msra.mxu0 %v2287
  %2326 = vmatprep.subr.bf16.mxu0 %v2293
  %2327 = vmatpush1.bf16.msra.mxu0 %v2292
  %2328 = vmatprep.subr.bf16.mxu0 0
  %2329 = vmatpush1.bf16.msra.mxu0 0
  %2330 = vmatprep.subr.bf16.mxu0 0
  %2331 = vmatpush1.bf16.msra.mxu0 0
  %2332 = vmatprep.subr.bf16.mxu0 0
  %2333 = vmatpush1.bf16.msra.mxu0 0
  %2334 = vmatprep.subr.bf16.mxu0 0
  %2335 = vmatpush1.bf16.msra.mxu0 0
  %2336 = vmatprep.subr.bf16.mxu0 0
  %2337 = vmatpush1.bf16.msra.mxu0 0
  %2338 = vmatprep.subr.bf16.mxu0 0
  %2339 = vmatpush1.bf16.msra.mxu0 0
  %2340 = vmatprep.subr.bf16.mxu0 0
  %2341 = vmatpush1.bf16.msra.mxu0 0
  %2342 = vmatprep.subr.bf16.mxu0 0
  %2343 = vmatpush1.bf16.msra.mxu0 0
  %2344 = vmatprep.subr.bf16.mxu0 0
  %2345 = vmatpush1.bf16.msra.mxu0 0
  %2346 = vmatprep.subr.bf16.mxu0 0
  %2347 = vmatpush1.bf16.msra.mxu0 0
  %2348 = vmatprep.subr.bf16.mxu0 0
  %2349 = vmatpush1.bf16.msra.mxu0 0
  %2350 = vmatprep.subr.bf16.mxu0 0
  %2351 = vmatpush1.bf16.msra.mxu0 0
  %2352 = vmatprep.mubr.bf16.mxu0 0
  %2353 = vmatmul.mubr.bf16.gmra.mrb[0].mxu0 %v2318
  %v2354 = vpop.f32.mrb[0].mxu0
  %v2355 = vadd.f32 %v2191, %v2354
  %v2356 = vpop.f32.mrb[0].mxu0
  %v2357 = vadd.f32 %v2195, %v2356
  %v2358 = vpop.f32.mrb[0].mxu0
  %v2359 = vadd.f32 %v2191, %v2358
  %v2360 = vpop.f32.mrb[0].mxu0
  %v2361 = vadd.f32 %v2195, %v2360
  %2362 = vdwg.mxu0
  %2363 = vmatprep.subr.bf16.mxu0 %v2280
  %2364 = vmatpush1.bf16.msra.mxu0 %v2279
  %2365 = vmatprep.subr.bf16.mxu0 %v2285
  %2366 = vmatpush1.bf16.msra.mxu0 %v2284
  %2367 = vmatprep.subr.bf16.mxu0 %v2290
  %2368 = vmatpush1.bf16.msra.mxu0 %v2289
  %2369 = vmatprep.subr.bf16.mxu0 %v2295
  %2370 = vmatpush1.bf16.msra.mxu0 %v2294
  %2371 = vmatprep.subr.bf16.mxu0 0
  %2372 = vmatpush1.bf16.msra.mxu0 0
  %2373 = vmatprep.subr.bf16.mxu0 0
  %2374 = vmatpush1.bf16.msra.mxu0 0
  %2375 = vmatprep.subr.bf16.mxu0 0
  %2376 = vmatpush1.bf16.msra.mxu0 0
  %2377 = vmatprep.subr.bf16.mxu0 0
  %2378 = vmatpush1.bf16.msra.mxu0 0
  %2379 = vmatprep.subr.bf16.mxu0 0
  %2380 = vmatpush1.bf16.msra.mxu0 0
  %2381 = vmatprep.subr.bf16.mxu0 0
  %2382 = vmatpush1.bf16.msra.mxu0 0
  %2383 = vmatprep.subr.bf16.mxu0 0
  %2384 = vmatpush1.bf16.msra.mxu0 0
  %2385 = vmatprep.subr.bf16.mxu0 0
  %2386 = vmatpush1.bf16.msra.mxu0 0
  %2387 = vmatprep.subr.bf16.mxu0 0
  %2388 = vmatpush1.bf16.msra.mxu0 0
  %2389 = vmatprep.subr.bf16.mxu0 0
  %2390 = vmatpush1.bf16.msra.mxu0 0
  %2391 = vmatprep.subr.bf16.mxu0 0
  %2392 = vmatpush1.bf16.msra.mxu0 0
  %2393 = vmatprep.subr.bf16.mxu0 0
  %2394 = vmatpush1.bf16.msra.mxu0 0
  %2395 = vmatprep.mubr.bf16.mxu0 0
  %2396 = vmatmul.mubr.bf16.gmra.mrb[0].mxu0 %v2318
  %v2397 = vpop.f32.mrb[0].mxu0
  %v2398 = vadd.f32 %v2199, %v2397
  %v2399 = vpop.f32.mrb[0].mxu0
  %v2400 = vadd.f32 %v2203, %v2399
  %v2401 = vpop.f32.mrb[0].mxu0
  %v2402 = vadd.f32 %v2199, %v2401
  %v2403 = vpop.f32.mrb[0].mxu0
  %v2404 = vadd.f32 %v2203, %v2403
  %2405 = vdwg.mxu0
  %2406 = vmatprep.subr.bf16.mxu0 0
  %2407 = vmatpush1.bf16.msra.mxu0 %v2281
  %2408 = vmatprep.subr.bf16.mxu0 0
  %2409 = vmatpush1.bf16.msra.mxu0 %v2286
  %2410 = vmatprep.subr.bf16.mxu0 0
  %2411 = vmatpush1.bf16.msra.mxu0 %v2291
  %2412 = vmatprep.subr.bf16.mxu0 0
  %2413 = vmatpush1.bf16.msra.mxu0 %v2296
  %2414 = vmatprep.subr.bf16.mxu0 0
  %2415 = vmatpush1.bf16.msra.mxu0 0
  %2416 = vmatprep.subr.bf16.mxu0 0
  %2417 = vmatpush1.bf16.msra.mxu0 0
  %2418 = vmatprep.subr.bf16.mxu0 0
  %2419 = vmatpush1.bf16.msra.mxu0 0
  %2420 = vmatprep.subr.bf16.mxu0 0
  %2421 = vmatpush1.bf16.msra.mxu0 0
  %2422 = vmatprep.subr.bf16.mxu0 0
  %2423 = vmatpush1.bf16.msra.mxu0 0
  %2424 = vmatprep.subr.bf16.mxu0 0
  %2425 = vmatpush1.bf16.msra.mxu0 0
  %2426 = vmatprep.subr.bf16.mxu0 0
  %2427 = vmatpush1.bf16.msra.mxu0 0
  %2428 = vmatprep.subr.bf16.mxu0 0
  %2429 = vmatpush1.bf16.msra.mxu0 0
  %2430 = vmatprep.subr.bf16.mxu0 0
  %2431 = vmatpush1.bf16.msra.mxu0 0
  %2432 = vmatprep.subr.bf16.mxu0 0
  %2433 = vmatpush1.bf16.msra.mxu0 0
  %2434 = vmatprep.subr.bf16.mxu0 0
  %2435 = vmatpush1.bf16.msra.mxu0 0
  %2436 = vmatprep.subr.bf16.mxu0 0
  %2437 = vmatpush1.bf16.msra.mxu0 0
  %2438 = vmatprep.mubr.bf16.mxu0 0
  %2439 = vmatmul.mubr.bf16.gmra.mrb[0].mxu0 %v2318
  %v2440 = vpop.f32.mrb[0].mxu0
  %v2441 = vadd.f32 %v2207, %v2440
  %v2442 = vpop.f32.mrb[0].mxu0
  %v2443 = vpop.f32.mrb[0].mxu0
  %v2444 = vadd.f32 %v2207, %v2443
  %v2445 = vpop.f32.mrb[0].mxu0
  %2446 = vdwg.mxu0
  %v2447 = vld [vmem:[%s8] sm:$0xff]
  %v2448 = vld [vmem:[%s8 + $0x8] sm:$0xff]
  %v2449 = vld [vmem:[%s8 + $0x10] sm:$0xff]
  %v2450 = vld [vmem:[%s8 + $0x18] sm:$0xff]
  %v2451 = vld [vmem:[%s8 + $0x20] sm:$0xff]
  %v2452 = vld [vmem:[%s8 + $0x28] sm:$0xff]
  %v2453 = vld [vmem:[%s8 + $0x30] sm:$0xff]
  %v2454 = vld [vmem:[%s8 + $0x38] sm:$0xff]
  %v2455 = vld [vmem:[%s8 + $0x40] sm:$0xff]
  %v2456 = vld [vmem:[%s8 + $0x48] sm:$0xff]
  %v2457 = vld [vmem:[%s8 + $0x50] sm:$0xff]
  %v2458 = vld [vmem:[%s8 + $0x58] sm:$0xff]
  %v2459 = vld [vmem:[%s8 + $0x60] sm:$0xff]
  %v2460 = vld [vmem:[%s8 + $0x68] sm:$0xff]
  %v2461 = vld [vmem:[%s8 + $0x70] sm:$0xff]
  %v2462 = vld [vmem:[%s8 + $0x78] sm:$0xff]
  %v2463 = vpack.c.bf16 %v2359, %v2355
  %v2464 = vpack.c.bf16 %v2361, %v2357
  %v2466 = vsel %vm575, %v2463, 0
  %v2469 = vsel %vm575, %v2464, 0
  %2471 = vmatprep.subr.bf16.mxu0 0
  %2472 = vmatpush1.bf16.xpose.msra.mxu0 %v2469
  %2473 = vmatprep.subr.bf16.mxu0 0
  %2474 = vmatpush1.bf16.xpose.msra.mxu0 0
  %2475 = vmatprep.subr.bf16.mxu0 0
  %2476 = vmatpush1.bf16.xpose.msra.mxu0 0
  %2477 = vmatprep.subr.bf16.mxu0 0
  %2478 = vmatpush1.bf16.xpose.msra.mxu0 0
  %2479 = vmatprep.subr.bf16.mxu0 0
  %2480 = vmatpush1.bf16.xpose.msra.mxu0 0
  %2481 = vmatprep.subr.bf16.mxu0 0
  %2482 = vmatpush1.bf16.xpose.msra.mxu0 0
  %2483 = vmatprep.subr.bf16.mxu0 0
  %2484 = vmatpush1.bf16.xpose.msra.mxu0 0
  %2485 = vmatprep.subr.bf16.mxu0 0
  %2486 = vmatpush1.bf16.xpose.msra.mxu0 0
  %2487 = vmatprep.subr.bf16.mxu0 0
  %2488 = vmatpush1.bf16.xpose.msra.mxu0 0
  %2489 = vmatprep.subr.bf16.mxu0 0
  %2490 = vmatpush1.bf16.xpose.msra.mxu0 0
  %2491 = vmatprep.subr.bf16.mxu0 0
  %2492 = vmatpush1.bf16.xpose.msra.mxu0 0
  %2493 = vmatprep.subr.bf16.mxu0 0
  %2494 = vmatpush1.bf16.xpose.msra.mxu0 0
  %2495 = vmatprep.subr.bf16.mxu0 0
  %2496 = vmatpush1.bf16.xpose.msra.mxu0 0
  %2497 = vmatprep.subr.bf16.mxu0 0
  %2498 = vmatpush1.bf16.xpose.msra.mxu0 0
  %2499 = vmatprep.subr.bf16.mxu0 0
  %2500 = vmatpush1.bf16.xpose.msra.mxu0 0
  %2501 = vmatprep.subr.bf16.mxu0 0
  %2502 = vmatpush1.bf16.xpose.msra.mxu0 0
  %2503 = vmatprep.mubr.bf16.mxu0 0
  %2504 = vmatmul.mubr.bf16.gmra.mrb[0].mxu0 %v2466
  %v2505 = vpop.f32.mrb[0].mxu0
  %v2506 = vadd.f32 %v2447, %v2505
  %v2507 = vpop.f32.mrb[0].mxu0
  %v2508 = vpop.f32.mrb[0].mxu0
  %v2509 = vadd.f32 %v2448, %v2508
  %v2510 = vpop.f32.mrb[0].mxu0
  %2511 = vdwg.mxu0
  %2513 = vset.pattern.permute.xlu0 0
  %2514 = vperm.xlu0 %2513, %v2400
  %v2515 = vpop.permute.xlu0 %2514
  %2518 = vset.pattern.permute.xlu0 0
  %2519 = vperm.xlu0 %2518, %v2404
  %v2520 = vpop.permute.xlu0 %2519
  %v2522 = vmul.f32 %v2515, %v2449
  %v2523 = vmul.f32 %v2520, %v2450
  %v2524 = vadd.f32 %v2506, %v2522
  %v2525 = vadd.f32 %v2509, %v2523
  %2526 = vset.pattern.permute.xlu0 1
  %2527 = vperm.xlu0 %2526, %v2400
  %v2528 = vpop.permute.xlu0 %2527
  %2530 = vset.pattern.permute.xlu0 1
  %2531 = vperm.xlu0 %2530, %v2404
  %v2532 = vpop.permute.xlu0 %2531
  %v2534 = vmul.f32 %v2528, %v2451
  %v2535 = vmul.f32 %v2532, %v2452
  %v2536 = vadd.f32 %v2524, %v2534
  %v2537 = vadd.f32 %v2525, %v2535
  %2538 = vset.pattern.permute.xlu0 2
  %2539 = vperm.xlu0 %2538, %v2400
  %v2540 = vpop.permute.xlu0 %2539
  %2542 = vset.pattern.permute.xlu0 2
  %2543 = vperm.xlu0 %2542, %v2404
  %v2544 = vpop.permute.xlu0 %2543
  %v2546 = vmul.f32 %v2540, %v2453
  %v2547 = vmul.f32 %v2544, %v2454
  %v2548 = vadd.f32 %v2536, %v2546
  %v2549 = vadd.f32 %v2537, %v2547
  %2550 = vset.pattern.permute.xlu0 3
  %2551 = vperm.xlu0 %2550, %v2400
  %v2552 = vpop.permute.xlu0 %2551
  %2554 = vset.pattern.permute.xlu0 3
  %2555 = vperm.xlu0 %2554, %v2404
  %v2556 = vpop.permute.xlu0 %2555
  %v2558 = vmul.f32 %v2552, %v2455
  %v2559 = vmul.f32 %v2556, %v2456
  %v2560 = vadd.f32 %v2548, %v2558
  %v2561 = vadd.f32 %v2549, %v2559
  %2562 = vset.pattern.permute.xlu0 4
  %2563 = vperm.xlu0 %2562, %v2400
  %v2564 = vpop.permute.xlu0 %2563
  %2566 = vset.pattern.permute.xlu0 4
  %2567 = vperm.xlu0 %2566, %v2404
  %v2568 = vpop.permute.xlu0 %2567
  %v2570 = vmul.f32 %v2564, %v2457
  %v2571 = vmul.f32 %v2568, %v2458
  %v2572 = vadd.f32 %v2560, %v2570
  %v2573 = vadd.f32 %v2561, %v2571
  %2574 = vset.pattern.permute.xlu0 5
  %2575 = vperm.xlu0 %2574, %v2400
  %v2576 = vpop.permute.xlu0 %2575
  %2578 = vset.pattern.permute.xlu0 5
  %2579 = vperm.xlu0 %2578, %v2404
  %v2580 = vpop.permute.xlu0 %2579
  %v2582 = vmul.f32 %v2576, %v2459
  %v2583 = vmul.f32 %v2580, %v2460
  %v2584 = vadd.f32 %v2572, %v2582
  %v2585 = vadd.f32 %v2573, %v2583
  %2586 = vset.pattern.permute.xlu0 6
  %2587 = vperm.xlu0 %2586, %v2400
  %v2588 = vpop.permute.xlu0 %2587
  %2590 = vset.pattern.permute.xlu0 6
  %2591 = vperm.xlu0 %2590, %v2404
  %v2592 = vpop.permute.xlu0 %2591
  %v2594 = vmul.f32 %v2588, %v2461
  %v2595 = vmul.f32 %v2592, %v2462
  %v2596 = vadd.f32 %v2584, %v2594
  %v2597 = vadd.f32 %v2585, %v2595
  %vm2598 = vcmask 130048
  %v2599 = vsel %vm2598, %v2596, -inf
  %2600 = vmax.xlane.f32.xlu0 %v2599
  %v2601 = vpop.xlane.xlu0 %2600
  %v2602 = vsel %vm2598, %v2597, -inf
  %2603 = vmax.xlane.f32.xlu0 %v2602
  %v2604 = vpop.xlane.xlu0 %2603
  %v2605 = vsub.f32 %v2596, %v2601
  %v2606 = vsub.f32 %v2597, %v2604
  %v2607 = vmul.f32 %v2605, 1.442695
  %v2608 = vpow.pop %v2607
  %v2609 = vmul.f32 %v2606, 1.442695
  %v2610 = vpow.pop %v2609
  %v2611 = vsel %vm2598, %v2608, 0.0
  %2612 = vadd.xlane.f32.xlu0 %v2611
  %v2613 = vpop.xlane.xlu0 %2612
  %v2614 = vsel %vm2598, %v2610, 0.0
  %2615 = vadd.xlane.f32.xlu0 %v2614
  %v2616 = vpop.xlane.xlu0 %2615
  %v2617 = vrcp.pop %v2613
  %v2618 = vrcp.pop %v2616
  %v2619 = vmul.f32 %v2608, %v2617
  %v2620 = vmul.f32 %v2610, %v2618
  %v2621 = vpack.c.bf16 %v2620, %v2619
  %v2622 = vpack.c.bf16 %v2402, %v2398
  %v2624 = vsel %vm2598, %v2621, 0
  %2626 = vmatprep.subr.bf16.mxu0 0
  %2627 = vmatpush1.bf16.msra.mxu0 %v2622
  %2628 = vmatprep.subr.bf16.mxu0 0
  %2629 = vmatpush1.bf16.msra.mxu0 0
  %2630 = vmatprep.subr.bf16.mxu0 0
  %2631 = vmatpush1.bf16.msra.mxu0 0
  %2632 = vmatprep.subr.bf16.mxu0 0
  %2633 = vmatpush1.bf16.msra.mxu0 0
  %2634 = vmatprep.subr.bf16.mxu0 0
  %2635 = vmatpush1.bf16.msra.mxu0 0
  %2636 = vmatprep.subr.bf16.mxu0 0
  %2637 = vmatpush1.bf16.msra.mxu0 0
  %2638 = vmatprep.subr.bf16.mxu0 0
  %2639 = vmatpush1.bf16.msra.mxu0 0
  %2640 = vmatprep.subr.bf16.mxu0 0
  %2641 = vmatpush1.bf16.msra.mxu0 0
  %2642 = vmatprep.subr.bf16.mxu0 0
  %2643 = vmatpush1.bf16.msra.mxu0 0
  %2644 = vmatprep.subr.bf16.mxu0 0
  %2645 = vmatpush1.bf16.msra.mxu0 0
  %2646 = vmatprep.subr.bf16.mxu0 0
  %2647 = vmatpush1.bf16.msra.mxu0 0
  %2648 = vmatprep.subr.bf16.mxu0 0
  %2649 = vmatpush1.bf16.msra.mxu0 0
  %2650 = vmatprep.subr.bf16.mxu0 0
  %2651 = vmatpush1.bf16.msra.mxu0 0
  %2652 = vmatprep.subr.bf16.mxu0 0
  %2653 = vmatpush1.bf16.msra.mxu0 0
  %2654 = vmatprep.subr.bf16.mxu0 0
  %2655 = vmatpush1.bf16.msra.mxu0 0
  %2656 = vmatprep.subr.bf16.mxu0 0
  %2657 = vmatpush1.bf16.msra.mxu0 0
  %2658 = vmatprep.mubr.bf16.mxu0 0
  %2659 = vmatmul.mubr.bf16.gmra.mrb[0].mxu0 %v2624
  %v2660 = vpop.f32.mrb[0].mxu0
  %v2661 = vadd.f32 0.0, %v2660
  %v2662 = vpop.f32.mrb[0].mxu0
  %v2663 = vpop.f32.mrb[0].mxu0
  %v2664 = vadd.f32 0.0, %v2663
  %v2665 = vpop.f32.mrb[0].mxu0
  %2666 = vdwg.mxu0
  %2668 = vrot.lane.b32.xlu0 %v2463, 64
  %v2669 = vpop.permute.xlu0 %2668
  %2671 = vrot.lane.b32.xlu0 %v2464, 64
  %v2672 = vpop.permute.xlu0 %2671
  %v2674 = vsel %vm575, %v2669, 0
  %v2677 = vsel %vm575, %v2672, 0
  %2679 = vmatprep.subr.bf16.mxu0 0
  %2680 = vmatpush1.bf16.xpose.msra.mxu0 %v2677
  %2681 = vmatprep.subr.bf16.mxu0 0
  %2682 = vmatpush1.bf16.xpose.msra.mxu0 0
  %2683 = vmatprep.subr.bf16.mxu0 0
  %2684 = vmatpush1.bf16.xpose.msra.mxu0 0
  %2685 = vmatprep.subr.bf16.mxu0 0
  %2686 = vmatpush1.bf16.xpose.msra.mxu0 0
  %2687 = vmatprep.subr.bf16.mxu0 0
  %2688 = vmatpush1.bf16.xpose.msra.mxu0 0
  %2689 = vmatprep.subr.bf16.mxu0 0
  %2690 = vmatpush1.bf16.xpose.msra.mxu0 0
  %2691 = vmatprep.subr.bf16.mxu0 0
  %2692 = vmatpush1.bf16.xpose.msra.mxu0 0
  %2693 = vmatprep.subr.bf16.mxu0 0
  %2694 = vmatpush1.bf16.xpose.msra.mxu0 0
  %2695 = vmatprep.subr.bf16.mxu0 0
  %2696 = vmatpush1.bf16.xpose.msra.mxu0 0
  %2697 = vmatprep.subr.bf16.mxu0 0
  %2698 = vmatpush1.bf16.xpose.msra.mxu0 0
  %2699 = vmatprep.subr.bf16.mxu0 0
  %2700 = vmatpush1.bf16.xpose.msra.mxu0 0
  %2701 = vmatprep.subr.bf16.mxu0 0
  %2702 = vmatpush1.bf16.xpose.msra.mxu0 0
  %2703 = vmatprep.subr.bf16.mxu0 0
  %2704 = vmatpush1.bf16.xpose.msra.mxu0 0
  %2705 = vmatprep.subr.bf16.mxu0 0
  %2706 = vmatpush1.bf16.xpose.msra.mxu0 0
  %2707 = vmatprep.subr.bf16.mxu0 0
  %2708 = vmatpush1.bf16.xpose.msra.mxu0 0
  %2709 = vmatprep.subr.bf16.mxu0 0
  %2710 = vmatpush1.bf16.xpose.msra.mxu0 0
  %2711 = vmatprep.mubr.bf16.mxu0 0
  %2712 = vmatmul.mubr.bf16.gmra.mrb[0].mxu0 %v2674
  %v2713 = vpop.f32.mrb[0].mxu0
  %v2714 = vadd.f32 %v2447, %v2713
  %v2715 = vpop.f32.mrb[0].mxu0
  %v2716 = vpop.f32.mrb[0].mxu0
  %v2717 = vadd.f32 %v2448, %v2716
  %v2718 = vpop.f32.mrb[0].mxu0
  %2719 = vdwg.mxu0
  %2721 = vset.pattern.permute.xlu0 0
  %2722 = vperm.xlu0 %2721, %v2441
  %v2723 = vpop.permute.xlu0 %2722
  %2726 = vset.pattern.permute.xlu0 0
  %2727 = vperm.xlu0 %2726, %v2444
  %v2728 = vpop.permute.xlu0 %2727
  %v2730 = vmul.f32 %v2723, %v2449
  %v2731 = vmul.f32 %v2728, %v2450
  %v2732 = vadd.f32 %v2714, %v2730
  %v2733 = vadd.f32 %v2717, %v2731
  %2734 = vset.pattern.permute.xlu0 1
  %2735 = vperm.xlu0 %2734, %v2441
  %v2736 = vpop.permute.xlu0 %2735
  %2738 = vset.pattern.permute.xlu0 1
  %2739 = vperm.xlu0 %2738, %v2444
  %v2740 = vpop.permute.xlu0 %2739
  %v2742 = vmul.f32 %v2736, %v2451
  %v2743 = vmul.f32 %v2740, %v2452
  %v2744 = vadd.f32 %v2732, %v2742
  %v2745 = vadd.f32 %v2733, %v2743
  %2746 = vset.pattern.permute.xlu0 2
  %2747 = vperm.xlu0 %2746, %v2441
  %v2748 = vpop.permute.xlu0 %2747
  %2750 = vset.pattern.permute.xlu0 2
  %2751 = vperm.xlu0 %2750, %v2444
  %v2752 = vpop.permute.xlu0 %2751
  %v2754 = vmul.f32 %v2748, %v2453
  %v2755 = vmul.f32 %v2752, %v2454
  %v2756 = vadd.f32 %v2744, %v2754
  %v2757 = vadd.f32 %v2745, %v2755
  %2758 = vset.pattern.permute.xlu0 3
  %2759 = vperm.xlu0 %2758, %v2441
  %v2760 = vpop.permute.xlu0 %2759
  %2762 = vset.pattern.permute.xlu0 3
  %2763 = vperm.xlu0 %2762, %v2444
  %v2764 = vpop.permute.xlu0 %2763
  %v2766 = vmul.f32 %v2760, %v2455
  %v2767 = vmul.f32 %v2764, %v2456
  %v2768 = vadd.f32 %v2756, %v2766
  %v2769 = vadd.f32 %v2757, %v2767
  %2770 = vset.pattern.permute.xlu0 4
  %2771 = vperm.xlu0 %2770, %v2441
  %v2772 = vpop.permute.xlu0 %2771
  %2774 = vset.pattern.permute.xlu0 4
  %2775 = vperm.xlu0 %2774, %v2444
  %v2776 = vpop.permute.xlu0 %2775
  %v2778 = vmul.f32 %v2772, %v2457
  %v2779 = vmul.f32 %v2776, %v2458
  %v2780 = vadd.f32 %v2768, %v2778
  %v2781 = vadd.f32 %v2769, %v2779
  %2782 = vset.pattern.permute.xlu0 5
  %2783 = vperm.xlu0 %2782, %v2441
  %v2784 = vpop.permute.xlu0 %2783
  %2786 = vset.pattern.permute.xlu0 5
  %2787 = vperm.xlu0 %2786, %v2444
  %v2788 = vpop.permute.xlu0 %2787
  %v2790 = vmul.f32 %v2784, %v2459
  %v2791 = vmul.f32 %v2788, %v2460
  %v2792 = vadd.f32 %v2780, %v2790
  %v2793 = vadd.f32 %v2781, %v2791
  %2794 = vset.pattern.permute.xlu0 6
  %2795 = vperm.xlu0 %2794, %v2441
  %v2796 = vpop.permute.xlu0 %2795
  %2798 = vset.pattern.permute.xlu0 6
  %2799 = vperm.xlu0 %2798, %v2444
  %v2800 = vpop.permute.xlu0 %2799
  %v2802 = vmul.f32 %v2796, %v2461
  %v2803 = vmul.f32 %v2800, %v2462
  %v2804 = vadd.f32 %v2792, %v2802
  %v2805 = vadd.f32 %v2793, %v2803
  %v2806 = vsel %vm2598, %v2804, -inf
  %2807 = vmax.xlane.f32.xlu0 %v2806
  %v2808 = vpop.xlane.xlu0 %2807
  %v2809 = vsel %vm2598, %v2805, -inf
  %2810 = vmax.xlane.f32.xlu0 %v2809
  %v2811 = vpop.xlane.xlu0 %2810
  %v2812 = vsub.f32 %v2804, %v2808
  %v2813 = vsub.f32 %v2805, %v2811
  %v2814 = vmul.f32 %v2812, 1.442695
  %v2815 = vpow.pop %v2814
  %v2816 = vmul.f32 %v2813, 1.442695
  %v2817 = vpow.pop %v2816
  %v2818 = vsel %vm2598, %v2815, 0.0
  %2819 = vadd.xlane.f32.xlu0 %v2818
  %v2820 = vpop.xlane.xlu0 %2819
  %v2821 = vsel %vm2598, %v2817, 0.0
  %2822 = vadd.xlane.f32.xlu0 %v2821
  %v2823 = vpop.xlane.xlu0 %2822
  %v2824 = vrcp.pop %v2820
  %v2825 = vrcp.pop %v2823
  %v2826 = vmul.f32 %v2815, %v2824
  %v2827 = vmul.f32 %v2817, %v2825
  %v2828 = vpack.c.bf16 %v2827, %v2826
  %2830 = vrot.lane.b32.xlu0 %v2622, 64
  %v2831 = vpop.permute.xlu0 %2830
  %v2834 = vsel %vm2598, %v2828, 0
  %2836 = vmatprep.subr.bf16.mxu0 0
  %2837 = vmatpush1.bf16.msra.mxu0 %v2831
  %2838 = vmatprep.subr.bf16.mxu0 0
  %2839 = vmatpush1.bf16.msra.mxu0 0
  %2840 = vmatprep.subr.bf16.mxu0 0
  %2841 = vmatpush1.bf16.msra.mxu0 0
  %2842 = vmatprep.subr.bf16.mxu0 0
  %2843 = vmatpush1.bf16.msra.mxu0 0
  %2844 = vmatprep.subr.bf16.mxu0 0
  %2845 = vmatpush1.bf16.msra.mxu0 0
  %2846 = vmatprep.subr.bf16.mxu0 0
  %2847 = vmatpush1.bf16.msra.mxu0 0
  %2848 = vmatprep.subr.bf16.mxu0 0
  %2849 = vmatpush1.bf16.msra.mxu0 0
  %2850 = vmatprep.subr.bf16.mxu0 0
  %2851 = vmatpush1.bf16.msra.mxu0 0
  %2852 = vmatprep.subr.bf16.mxu0 0
  %2853 = vmatpush1.bf16.msra.mxu0 0
  %2854 = vmatprep.subr.bf16.mxu0 0
  %2855 = vmatpush1.bf16.msra.mxu0 0
  %2856 = vmatprep.subr.bf16.mxu0 0
  %2857 = vmatpush1.bf16.msra.mxu0 0
  %2858 = vmatprep.subr.bf16.mxu0 0
  %2859 = vmatpush1.bf16.msra.mxu0 0
  %2860 = vmatprep.subr.bf16.mxu0 0
  %2861 = vmatpush1.bf16.msra.mxu0 0
  %2862 = vmatprep.subr.bf16.mxu0 0
  %2863 = vmatpush1.bf16.msra.mxu0 0
  %2864 = vmatprep.subr.bf16.mxu0 0
  %2865 = vmatpush1.bf16.msra.mxu0 0
  %2866 = vmatprep.subr.bf16.mxu0 0
  %2867 = vmatpush1.bf16.msra.mxu0 0
  %2868 = vmatprep.mubr.bf16.mxu0 0
  %2869 = vmatmul.mubr.bf16.gmra.mrb[0].mxu0 %v2834
  %v2870 = vpop.f32.mrb[0].mxu0
  %v2871 = vadd.f32 0.0, %v2870
  %v2872 = vpop.f32.mrb[0].mxu0
  %v2873 = vpop.f32.mrb[0].mxu0
  %v2874 = vadd.f32 0.0, %v2873
  %v2875 = vpop.f32.mrb[0].mxu0
  %2876 = vdwg.mxu0
  %2879 = vrot.lane.b32.xlu0 %v2871, 64
  %v2880 = vpop.permute.xlu0 %2879
  %2881 = vrot.lane.b32.xlu0 %v2874, 64
  %v2882 = vpop.permute.xlu0 %2881
  %v2885 = vsel %vm575, %v2661, %v2880
  %v2886 = vsel %vm575, %v2664, %v2882
  %v2887 = vpack.c.bf16 %v2886, %v2885
  %v2888 = vld [vmem:[%s4 + $0x4] sm:$0xf]
  %v2889 = vld [vmem:[%s4 + $0x14] sm:$0xf]
  %v2890 = vld [vmem:[%s4 + $0x24] sm:$0xf]
  %v2891 = vld [vmem:[%s4 + $0x34] sm:$0xf]
  %v2892 = vld [vmem:[%s4 + $0x44] sm:$0xf]
  %v2893 = vld [vmem:[%s4 + $0x54] sm:$0xf]
  %v2894 = vld [vmem:[%s4 + $0x64] sm:$0xf]
  %v2895 = vld [vmem:[%s4 + $0x74] sm:$0xf]
  %v2896 = vld [vmem:[%s4 + $0x84] sm:$0xf]
  %v2897 = vld [vmem:[%s4 + $0x94] sm:$0xf]
  %v2898 = vld [vmem:[%s4 + $0xa4] sm:$0xf]
  %v2899 = vld [vmem:[%s4 + $0xb4] sm:$0xf]
  %v2900 = vld [vmem:[%s4 + $0xc4] sm:$0xf]
  %v2901 = vld [vmem:[%s4 + $0xd4] sm:$0xf]
  %v2902 = vld [vmem:[%s4 + $0xe4] sm:$0xf]
  %v2903 = vld [vmem:[%s4 + $0xf4] sm:$0xf]
  %v2904 = vld [vmem:[%s1 + $0x11] sm:$0x1]
  %v2906 = vlaneseq
  %v2907 = vshrl.u32 %v2906, 7
  %v2908 = vsub.s32 0, %v2907
  %v2909 = vrot.slane %v2904, %v2908
  %v2927 = vunpack.c.l.b16 %v2888
  %v2928 = vunpack.c.l.b16 %v2889
  %v2929 = vunpack.c.l.b16 %v2890
  %v2930 = vunpack.c.l.b16 %v2891
  %v2931 = vunpack.c.l.b16 %v2892
  %v2932 = vunpack.c.l.b16 %v2893
  %v2933 = vunpack.c.l.b16 %v2894
  %v2934 = vunpack.c.l.b16 %v2895
  %v2935 = vunpack.c.l.b16 %v2896
  %v2936 = vunpack.c.l.b16 %v2897
  %v2937 = vunpack.c.l.b16 %v2898
  %v2938 = vunpack.c.l.b16 %v2899
  %v2939 = vunpack.c.l.b16 %v2900
  %v2940 = vunpack.c.l.b16 %v2901
  %v2941 = vunpack.c.l.b16 %v2902
  %v2942 = vunpack.c.l.b16 %v2903
  %v2943 = vpack.c.b16 %v2928, %v2927
  %v2944 = vpack.c.b16 %v2930, %v2929
  %v2945 = vpack.c.b16 %v2932, %v2931
  %v2946 = vpack.c.b16 %v2934, %v2933
  %v2947 = vpack.c.b16 %v2936, %v2935
  %v2948 = vpack.c.b16 %v2938, %v2937
  %v2949 = vpack.c.b16 %v2940, %v2939
  %v2950 = vpack.c.b16 %v2942, %v2941
  %2959 = vmatprep.subr.bf16.mxu0 0
  %2960 = vmatpush1.bf16.msra.mxu0 %v2943
  %2961 = vmatprep.subr.bf16.mxu0 0
  %2962 = vmatpush1.bf16.msra.mxu0 %v2944
  %2963 = vmatprep.subr.bf16.mxu0 0
  %2964 = vmatpush1.bf16.msra.mxu0 %v2945
  %2965 = vmatprep.subr.bf16.mxu0 0
  %2966 = vmatpush1.bf16.msra.mxu0 %v2946
  %2967 = vmatprep.subr.bf16.mxu0 0
  %2968 = vmatpush1.bf16.msra.mxu0 %v2947
  %2969 = vmatprep.subr.bf16.mxu0 0
  %2970 = vmatpush1.bf16.msra.mxu0 %v2948
  %2971 = vmatprep.subr.bf16.mxu0 0
  %2972 = vmatpush1.bf16.msra.mxu0 %v2949
  %2973 = vmatprep.subr.bf16.mxu0 0
  %2974 = vmatpush1.bf16.msra.mxu0 %v2950
  %2975 = vmatprep.subr.bf16.mxu0 0
  %2976 = vmatpush1.bf16.msra.mxu0 0
  %2977 = vmatprep.subr.bf16.mxu0 0
  %2978 = vmatpush1.bf16.msra.mxu0 0
  %2979 = vmatprep.subr.bf16.mxu0 0
  %2980 = vmatpush1.bf16.msra.mxu0 0
  %2981 = vmatprep.subr.bf16.mxu0 0
  %2982 = vmatpush1.bf16.msra.mxu0 0
  %2983 = vmatprep.subr.bf16.mxu0 0
  %2984 = vmatpush1.bf16.msra.mxu0 0
  %2985 = vmatprep.subr.bf16.mxu0 0
  %2986 = vmatpush1.bf16.msra.mxu0 0
  %2987 = vmatprep.subr.bf16.mxu0 0
  %2988 = vmatpush1.bf16.msra.mxu0 0
  %2989 = vmatprep.subr.bf16.mxu0 0
  %2990 = vmatpush1.bf16.msra.mxu0 0
  %2991 = vmatprep.mubr.bf16.mxu0 0
  %2992 = vmatmul.mubr.bf16.gmra.mrb[0].mxu0 %v2887
  %v2993 = vpop.f32.mrb[0].mxu0
  %v2994 = vadd.f32 %v2909, %v2993
  %v2995 = vpop.f32.mrb[0].mxu0
  %v2996 = vpop.f32.mrb[0].mxu0
  %v2997 = vadd.f32 %v2909, %v2996
  %v2998 = vpop.f32.mrb[0].mxu0
  %2999 = vdwg.mxu0
  %v3000 = vld [vmem:[%s1 + $0x12] sm:$0x1]
  %v3001 = vld [vmem:[%s1 + $0x13] sm:$0x1]
  %v3002 = vsel %vm575, %v2994, 0.0
  %3003 = vadd.xlane.f32.xlu0 %v3002
  %v3004 = vpop.xlane.xlu0 %3003
  %v3005 = vsel %vm575, %v2997, 0.0
  %3006 = vadd.xlane.f32.xlu0 %v3005
  %v3007 = vpop.xlane.xlu0 %3006
  %v3008 = vmul.f32 %v3004, %v1976
  %v3009 = vmul.f32 %v3007, %v1976
  %v3010 = vsub.f32 %v2994, %v3008
  %v3011 = vsub.f32 %v2997, %v3009
  %v3012 = vmul.f32 %v3010, %v3010
  %v3013 = vmul.f32 %v3011, %v3011
  %v3014 = vsel %vm575, %v3012, 0.0
  %3015 = vadd.xlane.f32.xlu0 %v3014
  %v3016 = vpop.xlane.xlu0 %3015
  %v3017 = vsel %vm575, %v3013, 0.0
  %3018 = vadd.xlane.f32.xlu0 %v3017
  %v3019 = vpop.xlane.xlu0 %3018
  %v3020 = vmul.f32 %v3016, %v1976
  %v3021 = vmul.f32 %v3019, %v1976
  %v3022 = vadd.f32 %v3020, 1e-05
  %v3023 = vadd.f32 %v3021, 1e-05
  %v3024 = vrsqrt.pop %v3022
  %v3025 = vrsqrt.pop %v3023
  %v3026 = vmul.f32 %v3010, %v3024
  %v3027 = vmul.f32 %v3011, %v3025
  %v3029 = vlaneseq
  %v3030 = vshrl.u32 %v3029, 7
  %v3031 = vsub.s32 0, %v3030
  %v3032 = vrot.slane %v3000, %v3031
  %v3034 = vmul.f32 %v3026, %v3032
  %v3035 = vmul.f32 %v3027, %v3032
  %v3037 = vlaneseq
  %v3038 = vshrl.u32 %v3037, 7
  %v3039 = vsub.s32 0, %v3038
  %v3040 = vrot.slane %v3001, %v3039
  %v3042 = vadd.f32 %v3034, %v3040
  %v3043 = vadd.f32 %v3035, %v3040
  %v3044 = vadd.f32 %v3042, %v2155
  %v3045 = vadd.f32 %v3043, %v2158
  %v3046 = vpack.c.bf16 %v3045, %v3044
  %v3047 = vld [vmem:[%s3 + $0x18] sm:$0xf]
  %v3048 = vld [vmem:[%s3 + $0x44] sm:$0xf]
  %v3049 = vld [vmem:[%s3 + $0x70] sm:$0xf]
  %v3050 = vld [vmem:[%s3 + $0x9c] sm:$0xf]
  %v3051 = vld [vmem:[%s3 + $0xc8] sm:$0xf]
  %v3052 = vld [vmem:[%s3 + $0xf4] sm:$0xf]
  %v3053 = vld [vmem:[%s3 + $0x120] sm:$0xf]
  %v3054 = vld [vmem:[%s3 + $0x14c] sm:$0xf]
  %v3055 = vld [vmem:[%s1 + $0x14] sm:$0x1]
  %v3057 = vlaneseq
  %v3058 = vshrl.u32 %v3057, 7
  %v3059 = vsub.s32 0, %v3058
  %v3060 = vrot.slane %v3055, %v3059
  %v3070 = vunpack.c.l.b16 %v3047
  %v3071 = vunpack.c.l.b16 %v3048
  %v3072 = vunpack.c.l.b16 %v3049
  %v3073 = vunpack.c.l.b16 %v3050
  %v3074 = vunpack.c.l.b16 %v3051
  %v3075 = vunpack.c.l.b16 %v3052
  %v3076 = vunpack.c.l.b16 %v3053
  %v3077 = vunpack.c.l.b16 %v3054
  %v3078 = vpack.c.b16 %v3071, %v3070
  %v3079 = vpack.c.b16 %v3073, %v3072
  %v3080 = vpack.c.b16 %v3075, %v3074
  %v3081 = vpack.c.b16 %v3077, %v3076
  %v3087 = vsel %vm575, %v3046, 0
  %3089 = vmatprep.subr.bf16.mxu0 0
  %3090 = vmatpush1.bf16.msra.mxu0 %v3078
  %3091 = vmatprep.subr.bf16.mxu0 0
  %3092 = vmatpush1.bf16.msra.mxu0 %v3079
  %3093 = vmatprep.subr.bf16.mxu0 0
  %3094 = vmatpush1.bf16.msra.mxu0 %v3080
  %3095 = vmatprep.subr.bf16.mxu0 0
  %3096 = vmatpush1.bf16.msra.mxu0 %v3081
  %3097 = vmatprep.subr.bf16.mxu0 0
  %3098 = vmatpush1.bf16.msra.mxu0 0
  %3099 = vmatprep.subr.bf16.mxu0 0
  %3100 = vmatpush1.bf16.msra.mxu0 0
  %3101 = vmatprep.subr.bf16.mxu0 0
  %3102 = vmatpush1.bf16.msra.mxu0 0
  %3103 = vmatprep.subr.bf16.mxu0 0
  %3104 = vmatpush1.bf16.msra.mxu0 0
  %3105 = vmatprep.subr.bf16.mxu0 0
  %3106 = vmatpush1.bf16.msra.mxu0 0
  %3107 = vmatprep.subr.bf16.mxu0 0
  %3108 = vmatpush1.bf16.msra.mxu0 0
  %3109 = vmatprep.subr.bf16.mxu0 0
  %3110 = vmatpush1.bf16.msra.mxu0 0
  %3111 = vmatprep.subr.bf16.mxu0 0
  %3112 = vmatpush1.bf16.msra.mxu0 0
  %3113 = vmatprep.subr.bf16.mxu0 0
  %3114 = vmatpush1.bf16.msra.mxu0 0
  %3115 = vmatprep.subr.bf16.mxu0 0
  %3116 = vmatpush1.bf16.msra.mxu0 0
  %3117 = vmatprep.subr.bf16.mxu0 0
  %3118 = vmatpush1.bf16.msra.mxu0 0
  %3119 = vmatprep.subr.bf16.mxu0 0
  %3120 = vmatpush1.bf16.msra.mxu0 0
  %3121 = vmatprep.mubr.bf16.mxu0 0
  %3122 = vmatmul.mubr.bf16.gmra.mrb[0].mxu0 %v3087
  %v3123 = vpop.f32.mrb[0].mxu0
  %v3124 = vadd.f32 %v3060, %v3123
  %v3125 = vpop.f32.mrb[0].mxu0
  %v3126 = vpop.f32.mrb[0].mxu0
  %v3127 = vadd.f32 %v3060, %v3126
  %v3128 = vpop.f32.mrb[0].mxu0
  %3129 = vdwg.mxu0
  %v3130 = vmul.f32 %v3124, 0.5
  %v3131 = vmul.f32 %v3127, 0.5
  %v3132 = vmul.f32 %v3124, 0.044715
  %v3133 = vmul.f32 %v3127, 0.044715
  %v3134 = vmul.f32 %v3132, %v3124
  %v3135 = vmul.f32 %v3133, %v3127
  %v3136 = vmul.f32 %v3134, %v3124
  %v3137 = vmul.f32 %v3135, %v3127
  %v3138 = vadd.f32 %v3124, %v3136
  %v3139 = vadd.f32 %v3127, %v3137
  %v3140 = vmul.f32 %v3138, 0.7978846
  %v3141 = vmul.f32 %v3139, 0.7978846
  %v3142 = vtanh.pop %v3140
  %v3143 = vtanh.pop %v3141
  %v3144 = vadd.f32 %v3142, 1.0
  %v3145 = vadd.f32 %v3143, 1.0
  %v3146 = vmul.f32 %v3130, %v3144
  %v3147 = vmul.f32 %v3131, %v3145
  %v3148 = vpack.c.bf16 %v3147, %v3146
  %v3149 = vld [vmem:[%s4 + $0x8] sm:$0xf]
  %v3150 = vld [vmem:[%s4 + $0x18] sm:$0xf]
  %v3151 = vld [vmem:[%s4 + $0x28] sm:$0xf]
  %v3152 = vld [vmem:[%s4 + $0x38] sm:$0xf]
  %v3153 = vld [vmem:[%s4 + $0x48] sm:$0xf]
  %v3154 = vld [vmem:[%s4 + $0x58] sm:$0xf]
  %v3155 = vld [vmem:[%s4 + $0x68] sm:$0xf]
  %v3156 = vld [vmem:[%s4 + $0x78] sm:$0xf]
  %v3157 = vld [vmem:[%s4 + $0x88] sm:$0xf]
  %v3158 = vld [vmem:[%s4 + $0x98] sm:$0xf]
  %v3159 = vld [vmem:[%s4 + $0xa8] sm:$0xf]
  %v3160 = vld [vmem:[%s4 + $0xb8] sm:$0xf]
  %v3161 = vld [vmem:[%s4 + $0xc8] sm:$0xf]
  %v3162 = vld [vmem:[%s4 + $0xd8] sm:$0xf]
  %v3163 = vld [vmem:[%s4 + $0xe8] sm:$0xf]
  %v3164 = vld [vmem:[%s4 + $0xf8] sm:$0xf]
  %v3165 = vld [vmem:[%s1 + $0x15] sm:$0x1]
  %v3167 = vlaneseq
  %v3168 = vshrl.u32 %v3167, 7
  %v3169 = vsub.s32 0, %v3168
  %v3170 = vrot.slane %v3165, %v3169
  %v3188 = vunpack.c.l.b16 %v3149
  %v3189 = vunpack.c.l.b16 %v3150
  %v3190 = vunpack.c.l.b16 %v3151
  %v3191 = vunpack.c.l.b16 %v3152
  %v3192 = vunpack.c.l.b16 %v3153
  %v3193 = vunpack.c.l.b16 %v3154
  %v3194 = vunpack.c.l.b16 %v3155
  %v3195 = vunpack.c.l.b16 %v3156
  %v3196 = vunpack.c.l.b16 %v3157
  %v3197 = vunpack.c.l.b16 %v3158
  %v3198 = vunpack.c.l.b16 %v3159
  %v3199 = vunpack.c.l.b16 %v3160
  %v3200 = vunpack.c.l.b16 %v3161
  %v3201 = vunpack.c.l.b16 %v3162
  %v3202 = vunpack.c.l.b16 %v3163
  %v3203 = vunpack.c.l.b16 %v3164
  %v3204 = vpack.c.b16 %v3189, %v3188
  %v3205 = vpack.c.b16 %v3191, %v3190
  %v3206 = vpack.c.b16 %v3193, %v3192
  %v3207 = vpack.c.b16 %v3195, %v3194
  %v3208 = vpack.c.b16 %v3197, %v3196
  %v3209 = vpack.c.b16 %v3199, %v3198
  %v3210 = vpack.c.b16 %v3201, %v3200
  %v3211 = vpack.c.b16 %v3203, %v3202
  %3220 = vmatprep.subr.bf16.mxu0 0
  %3221 = vmatpush1.bf16.msra.mxu0 %v3204
  %3222 = vmatprep.subr.bf16.mxu0 0
  %3223 = vmatpush1.bf16.msra.mxu0 %v3205
  %3224 = vmatprep.subr.bf16.mxu0 0
  %3225 = vmatpush1.bf16.msra.mxu0 %v3206
  %3226 = vmatprep.subr.bf16.mxu0 0
  %3227 = vmatpush1.bf16.msra.mxu0 %v3207
  %3228 = vmatprep.subr.bf16.mxu0 0
  %3229 = vmatpush1.bf16.msra.mxu0 %v3208
  %3230 = vmatprep.subr.bf16.mxu0 0
  %3231 = vmatpush1.bf16.msra.mxu0 %v3209
  %3232 = vmatprep.subr.bf16.mxu0 0
  %3233 = vmatpush1.bf16.msra.mxu0 %v3210
  %3234 = vmatprep.subr.bf16.mxu0 0
  %3235 = vmatpush1.bf16.msra.mxu0 %v3211
  %3236 = vmatprep.subr.bf16.mxu0 0
  %3237 = vmatpush1.bf16.msra.mxu0 0
  %3238 = vmatprep.subr.bf16.mxu0 0
  %3239 = vmatpush1.bf16.msra.mxu0 0
  %3240 = vmatprep.subr.bf16.mxu0 0
  %3241 = vmatpush1.bf16.msra.mxu0 0
  %3242 = vmatprep.subr.bf16.mxu0 0
  %3243 = vmatpush1.bf16.msra.mxu0 0
  %3244 = vmatprep.subr.bf16.mxu0 0
  %3245 = vmatpush1.bf16.msra.mxu0 0
  %3246 = vmatprep.subr.bf16.mxu0 0
  %3247 = vmatpush1.bf16.msra.mxu0 0
  %3248 = vmatprep.subr.bf16.mxu0 0
  %3249 = vmatpush1.bf16.msra.mxu0 0
  %3250 = vmatprep.subr.bf16.mxu0 0
  %3251 = vmatpush1.bf16.msra.mxu0 0
  %3252 = vmatprep.mubr.bf16.mxu0 0
  %3253 = vmatmul.mubr.bf16.gmra.mrb[0].mxu0 %v3148
  %v3254 = vpop.f32.mrb[0].mxu0
  %v3255 = vadd.f32 %v3170, %v3254
  %v3256 = vpop.f32.mrb[0].mxu0
  %v3257 = vpop.f32.mrb[0].mxu0
  %v3258 = vadd.f32 %v3170, %v3257
  %v3259 = vpop.f32.mrb[0].mxu0
  %3260 = vdwg.mxu0
  %v3261 = vld [vmem:[%s1 + $0x16] sm:$0x1]
  %v3262 = vld [vmem:[%s1 + $0x17] sm:$0x1]
  %v3263 = vsel %vm575, %v3255, 0.0
  %3264 = vadd.xlane.f32.xlu0 %v3263
  %v3265 = vpop.xlane.xlu0 %3264
  %v3266 = vsel %vm575, %v3258, 0.0
  %3267 = vadd.xlane.f32.xlu0 %v3266
  %v3268 = vpop.xlane.xlu0 %3267
  %v3269 = vmul.f32 %v3265, %v1976
  %v3270 = vmul.f32 %v3268, %v1976
  %v3271 = vsub.f32 %v3255, %v3269
  %v3272 = vsub.f32 %v3258, %v3270
  %v3273 = vmul.f32 %v3271, %v3271
  %v3274 = vmul.f32 %v3272, %v3272
  %v3275 = vsel %vm575, %v3273, 0.0
  %3276 = vadd.xlane.f32.xlu0 %v3275
  %v3277 = vpop.xlane.xlu0 %3276
  %v3278 = vsel %vm575, %v3274, 0.0
  %3279 = vadd.xlane.f32.xlu0 %v3278
  %v3280 = vpop.xlane.xlu0 %3279
  %v3281 = vmul.f32 %v3277, %v1976
  %v3282 = vmul.f32 %v3280, %v1976
  %v3283 = vadd.f32 %v3281, 1e-05
  %v3284 = vadd.f32 %v3282, 1e-05
  %v3285 = vrsqrt.pop %v3283
  %v3286 = vrsqrt.pop %v3284
  %v3287 = vmul.f32 %v3271, %v3285
  %v3288 = vmul.f32 %v3272, %v3286
  %v3290 = vlaneseq
  %v3291 = vshrl.u32 %v3290, 7
  %v3292 = vsub.s32 0, %v3291
  %v3293 = vrot.slane %v3261, %v3292
  %v3295 = vmul.f32 %v3287, %v3293
  %v3296 = vmul.f32 %v3288, %v3293
  %v3298 = vlaneseq
  %v3299 = vshrl.u32 %v3298, 7
  %v3300 = vsub.s32 0, %v3299
  %v3301 = vrot.slane %v3262, %v3300
  %v3303 = vadd.f32 %v3295, %v3301
  %v3304 = vadd.f32 %v3296, %v3301
  %v3305 = vadd.f32 %v3303, %v3044
  %v3306 = vadd.f32 %v3304, %v3045
  %v3308 = vrot.slane %v3305, 2
  %v3311 = vrot.slane %v3306, 2
  %v3313 = vsel %vm1779, %v3308, %v3308
  %v3314 = vsel %vm1779, %v3311, %v3311
  %v3315 = vpack.c.bf16 %v3314, %v3313
  %v3316 = vld [vmem:[%s3 + $0x24] sm:$0xf]
  %v3317 = vld [vmem:[%s3 + $0x50] sm:$0xf]
  %v3318 = vld [vmem:[%s3 + $0x7c] sm:$0xf]
  %v3319 = vld [vmem:[%s3 + $0xa8] sm:$0xf]
  %v3320 = vld [vmem:[%s3 + $0xd4] sm:$0xf]
  %v3321 = vld [vmem:[%s3 + $0x100] sm:$0xf]
  %v3322 = vld [vmem:[%s3 + $0x12c] sm:$0xf]
  %v3323 = vld [vmem:[%s3 + $0x158] sm:$0xf]
  %v3332 = vunpack.c.l.b16 %v3316
  %v3333 = vunpack.c.l.b16 %v3317
  %v3334 = vunpack.c.l.b16 %v3318
  %v3335 = vunpack.c.l.b16 %v3319
  %v3336 = vunpack.c.l.b16 %v3320
  %v3337 = vunpack.c.l.b16 %v3321
  %v3338 = vunpack.c.l.b16 %v3322
  %v3339 = vunpack.c.l.b16 %v3323
  %v3340 = vpack.c.b16 %v3333, %v3332
  %v3341 = vpack.c.b16 %v3335, %v3334
  %v3342 = vpack.c.b16 %v3337, %v3336
  %v3343 = vpack.c.b16 %v3339, %v3338
  %v3349 = vsel %vm575, %v3315, 0
  %3351 = vmatprep.subr.bf16.mxu0 0
  %3352 = vmatpush1.bf16.msra.mxu0 %v3340
  %3353 = vmatprep.subr.bf16.mxu0 0
  %3354 = vmatpush1.bf16.msra.mxu0 %v3341
  %3355 = vmatprep.subr.bf16.mxu0 0
  %3356 = vmatpush1.bf16.msra.mxu0 %v3342
  %3357 = vmatprep.subr.bf16.mxu0 0
  %3358 = vmatpush1.bf16.msra.mxu0 %v3343
  %3359 = vmatprep.subr.bf16.mxu0 0
  %3360 = vmatpush1.bf16.msra.mxu0 0
  %3361 = vmatprep.subr.bf16.mxu0 0
  %3362 = vmatpush1.bf16.msra.mxu0 0
  %3363 = vmatprep.subr.bf16.mxu0 0
  %3364 = vmatpush1.bf16.msra.mxu0 0
  %3365 = vmatprep.subr.bf16.mxu0 0
  %3366 = vmatpush1.bf16.msra.mxu0 0
  %3367 = vmatprep.subr.bf16.mxu0 0
  %3368 = vmatpush1.bf16.msra.mxu0 0
  %3369 = vmatprep.subr.bf16.mxu0 0
  %3370 = vmatpush1.bf16.msra.mxu0 0
  %3371 = vmatprep.subr.bf16.mxu0 0
  %3372 = vmatpush1.bf16.msra.mxu0 0
  %3373 = vmatprep.subr.bf16.mxu0 0
  %3374 = vmatpush1.bf16.msra.mxu0 0
  %3375 = vmatprep.subr.bf16.mxu0 0
  %3376 = vmatpush1.bf16.msra.mxu0 0
  %3377 = vmatprep.subr.bf16.mxu0 0
  %3378 = vmatpush1.bf16.msra.mxu0 0
  %3379 = vmatprep.subr.bf16.mxu0 0
  %3380 = vmatpush1.bf16.msra.mxu0 0
  %3381 = vmatprep.subr.bf16.mxu0 0
  %3382 = vmatpush1.bf16.msra.mxu0 0
  %3383 = vmatprep.mubr.bf16.mxu0 0
  %3384 = vmatmul.mubr.bf16.gmra.mrb[0].mxu0 %v3349
  %v3385 = vpop.f32.mrb[0].mxu0
  %v3386 = vadd.f32 0.0, %v3385
  %v3387 = vpop.f32.mrb[0].mxu0
  %v3388 = vpop.f32.mrb[0].mxu0
  %v3389 = vadd.f32 0.0, %v3388
  %v3390 = vpop.f32.mrb[0].mxu0
  %3391 = vdwg.mxu0
  %v3392 = vld [vmem:[%s10] sm:$0xff]
  %v3393 = vld [vmem:[%s10 + $0x8] sm:$0xff]
  %v3394 = vld [vmem:[%s10 + $0x10] sm:$0xff]
  %v3395 = vld [vmem:[%s10 + $0x18] sm:$0xff]
  %v3396 = vld [vmem:[%s10 + $0x20] sm:$0xff]
  %v3397 = vld [vmem:[%s10 + $0x28] sm:$0xff]
  %v3398 = vld [vmem:[%s10 + $0x30] sm:$0xff]
  %v3399 = vld [vmem:[%s10 + $0x38] sm:$0xff]
  %3402 = vrot.lane.b32.xlu0 %v3386, 96
  %v3403 = vpop.permute.xlu0 %3402
  %3404 = vrot.lane.b32.xlu0 %v3389, 96
  %v3405 = vpop.permute.xlu0 %3404
  %v3409 = vsel %vm2598, %v3396, 0
  %v3412 = vsel %vm2598, %v3397, 0
  %v3415 = vsel %vm2598, %v3398, 0
  %v3418 = vsel %vm2598, %v3399, 0
  %3420 = vmatprep.subr.mxu0 0.0
  %3421 = vmatpush1.msra.mxu0 %v3403
  %3422 = vmatprep.subr.mxu0 0.0
  %3423 = vmatpush1.msra.mxu0 %v3405
  %3424 = vmatprep.subr.mxu0 0.0
  %3425 = vmatpush1.msra.mxu0 0.0
  %3426 = vmatprep.subr.mxu0 0.0
  %3427 = vmatpush1.msra.mxu0 0.0
  %3428 = vmatprep.subr.mxu0 0.0
  %3429 = vmatpush1.msra.mxu0 0.0
  %3430 = vmatprep.subr.mxu0 0.0
  %3431 = vmatpush1.msra.mxu0 0.0
  %3432 = vmatprep.subr.mxu0 0.0
  %3433 = vmatpush1.msra.mxu0 0.0
  %3434 = vmatprep.subr.mxu0 0.0
  %3435 = vmatpush1.msra.mxu0 0.0
  %3436 = vmatprep.subr.mxu0 0.0
  %3437 = vmatpush1.msra.mxu0 0.0
  %3438 = vmatprep.subr.mxu0 0.0
  %3439 = vmatpush1.msra.mxu0 0.0
  %3440 = vmatprep.subr.mxu0 0.0
  %3441 = vmatpush1.msra.mxu0 0.0
  %3442 = vmatprep.subr.mxu0 0.0
  %3443 = vmatpush1.msra.mxu0 0.0
  %3444 = vmatprep.subr.mxu0 0.0
  %3445 = vmatpush1.msra.mxu0 0.0
  %3446 = vmatprep.subr.mxu0 0.0
  %3447 = vmatpush1.msra.mxu0 0.0
  %3448 = vmatprep.subr.mxu0 0.0
  %3449 = vmatpush1.msra.mxu0 0.0
  %3450 = vmatprep.subr.mxu0 0.0
  %3451 = vmatpush1.msra.mxu0 0.0
  %3452 = vmatprep.subr.mxu0 0.0
  %3453 = vmatpush1.msra.mxu0 0.0
  %3454 = vmatprep.subr.mxu0 0.0
  %3455 = vmatpush1.msra.mxu0 0.0
  %3456 = vmatprep.subr.mxu0 0.0
  %3457 = vmatpush1.msra.mxu0 0.0
  %3458 = vmatprep.subr.mxu0 0.0
  %3459 = vmatpush1.msra.mxu0 0.0
  %3460 = vmatprep.subr.mxu0 0.0
  %3461 = vmatpush1.msra.mxu0 0.0
  %3462 = vmatprep.subr.mxu0 0.0
  %3463 = vmatpush1.msra.mxu0 0.0
  %3464 = vmatprep.subr.mxu0 0.0
  %3465 = vmatpush1.msra.mxu0 0.0
  %3466 = vmatprep.subr.mxu0 0.0
  %3467 = vmatpush1.msra.mxu0 0.0
  %3468 = vmatprep.subr.mxu0 0.0
  %3469 = vmatpush1.msra.mxu0 0.0
  %3470 = vmatprep.subr.mxu0 0.0
  %3471 = vmatpush1.msra.mxu0 0.0
  %3472 = vmatprep.subr.mxu0 0.0
  %3473 = vmatpush1.msra.mxu0 0.0
  %3474 = vmatprep.subr.mxu0 0.0
  %3475 = vmatpush1.msra.mxu0 0.0
  %3476 = vmatprep.subr.mxu0 0.0
  %3477 = vmatpush1.msra.mxu0 0.0
  %3478 = vmatprep.subr.mxu0 0.0
  %3479 = vmatpush1.msra.mxu0 0.0
  %3480 = vmatprep.subr.mxu0 0.0
  %3481 = vmatpush1.msra.mxu0 0.0
  %3482 = vmatprep.subr.mxu0 0.0
  %3483 = vmatpush1.msra.mxu0 0.0
  %3484 = vmatprep.mubr.f32.mxu0 0.0
  %3485 = vmatmul.mubr.f32.gmra.mrb[0].mxu0 %v3409
  %v3486 = vpop.f32.mrb[0].mxu0
  %v3487 = vadd.f32 0.0, %v3486
  %v3488 = vpop.f32.mrb[0].mxu0
  %3489 = vmatprep.mubr.f32.mxu0 0.0
  %3490 = vmatmul.mubr.f32.gmra.mrb[0].mxu0 %v3412
  %v3491 = vpop.f32.mrb[0].mxu0
  %v3492 = vadd.f32 0.0, %v3491
  %v3493 = vpop.f32.mrb[0].mxu0
  %3494 = vmatprep.mubr.f32.mxu0 0.0
  %3495 = vmatmul.mubr.f32.gmra.mrb[0].mxu0 %v3415
  %v3496 = vpop.f32.mrb[0].mxu0
  %v3497 = vadd.f32 0.0, %v3496
  %v3498 = vpop.f32.mrb[0].mxu0
  %3499 = vmatprep.mubr.f32.mxu0 0.0
  %3500 = vmatmul.mubr.f32.gmra.mrb[0].mxu0 %v3418
  %v3501 = vpop.f32.mrb[0].mxu0
  %v3502 = vadd.f32 0.0, %v3501
  %v3503 = vpop.f32.mrb[0].mxu0
  %3504 = vdwg.mxu0
  %v3506 = vsel %vm2598, %v3392, 0
  %v3509 = vsel %vm2598, %v3393, 0
  %v3512 = vsel %vm2598, %v3394, 0
  %v3515 = vsel %vm2598, %v3395, 0
  %3517 = vmatprep.subr.mxu0 0.0
  %3518 = vmatpush1.msra.mxu0 %v3386
  %3519 = vmatprep.subr.mxu0 0.0
  %3520 = vmatpush1.msra.mxu0 %v3389
  %3521 = vmatprep.subr.mxu0 0.0
  %3522 = vmatpush1.msra.mxu0 0.0
  %3523 = vmatprep.subr.mxu0 0.0
  %3524 = vmatpush1.msra.mxu0 0.0
  %3525 = vmatprep.subr.mxu0 0.0
  %3526 = vmatpush1.msra.mxu0 0.0
  %3527 = vmatprep.subr.mxu0 0.0
  %3528 = vmatpush1.msra.mxu0 0.0
  %3529 = vmatprep.subr.mxu0 0.0
  %3530 = vmatpush1.msra.mxu0 0.0
  %3531 = vmatprep.subr.mxu0 0.0
  %3532 = vmatpush1.msra.mxu0 0.0
  %3533 = vmatprep.subr.mxu0 0.0
  %3534 = vmatpush1.msra.mxu0 0.0
  %3535 = vmatprep.subr.mxu0 0.0
  %3536 = vmatpush1.msra.mxu0 0.0
  %3537 = vmatprep.subr.mxu0 0.0
  %3538 = vmatpush1.msra.mxu0 0.0
  %3539 = vmatprep.subr.mxu0 0.0
  %3540 = vmatpush1.msra.mxu0 0.0
  %3541 = vmatprep.subr.mxu0 0.0
  %3542 = vmatpush1.msra.mxu0 0.0
  %3543 = vmatprep.subr.mxu0 0.0
  %3544 = vmatpush1.msra.mxu0 0.0
  %3545 = vmatprep.subr.mxu0 0.0
  %3546 = vmatpush1.msra.mxu0 0.0
  %3547 = vmatprep.subr.mxu0 0.0
  %3548 = vmatpush1.msra.mxu0 0.0
  %3549 = vmatprep.subr.mxu0 0.0
  %3550 = vmatpush1.msra.mxu0 0.0
  %3551 = vmatprep.subr.mxu0 0.0
  %3552 = vmatpush1.msra.mxu0 0.0
  %3553 = vmatprep.subr.mxu0 0.0
  %3554 = vmatpush1.msra.mxu0 0.0
  %3555 = vmatprep.subr.mxu0 0.0
  %3556 = vmatpush1.msra.mxu0 0.0
  %3557 = vmatprep.subr.mxu0 0.0
  %3558 = vmatpush1.msra.mxu0 0.0
  %3559 = vmatprep.subr.mxu0 0.0
  %3560 = vmatpush1.msra.mxu0 0.0
  %3561 = vmatprep.subr.mxu0 0.0
  %3562 = vmatpush1.msra.mxu0 0.0
  %3563 = vmatprep.subr.mxu0 0.0
  %3564 = vmatpush1.msra.mxu0 0.0
  %3565 = vmatprep.subr.mxu0 0.0
  %3566 = vmatpush1.msra.mxu0 0.0
  %3567 = vmatprep.subr.mxu0 0.0
  %3568 = vmatpush1.msra.mxu0 0.0
  %3569 = vmatprep.subr.mxu0 0.0
  %3570 = vmatpush1.msra.mxu0 0.0
  %3571 = vmatprep.subr.mxu0 0.0
  %3572 = vmatpush1.msra.mxu0 0.0
  %3573 = vmatprep.subr.mxu0 0.0
  %3574 = vmatpush1.msra.mxu0 0.0
  %3575 = vmatprep.subr.mxu0 0.0
  %3576 = vmatpush1.msra.mxu0 0.0
  %3577 = vmatprep.subr.mxu0 0.0
  %3578 = vmatpush1.msra.mxu0 0.0
  %3579 = vmatprep.subr.mxu0 0.0
  %3580 = vmatpush1.msra.mxu0 0.0
  %3581 = vmatprep.mubr.f32.mxu0 0.0
  %3582 = vmatmul.mubr.f32.gmra.mrb[0].mxu0 %v3506
  %v3583 = vpop.f32.mrb[0].mxu0
  %v3584 = vadd.f32 %v3487, %v3583
  %v3585 = vpop.f32.mrb[0].mxu0
  %3586 = vmatprep.mubr.f32.mxu0 0.0
  %3587 = vmatmul.mubr.f32.gmra.mrb[0].mxu0 %v3509
  %v3588 = vpop.f32.mrb[0].mxu0
  %v3589 = vadd.f32 %v3492, %v3588
  %v3590 = vpop.f32.mrb[0].mxu0
  %3591 = vmatprep.mubr.f32.mxu0 0.0
  %3592 = vmatmul.mubr.f32.gmra.mrb[0].mxu0 %v3512
  %v3593 = vpop.f32.mrb[0].mxu0
  %v3594 = vadd.f32 %v3497, %v3593
  %v3595 = vpop.f32.mrb[0].mxu0
  %3596 = vmatprep.mubr.f32.mxu0 0.0
  %3597 = vmatmul.mubr.f32.gmra.mrb[0].mxu0 %v3515
  %v3598 = vpop.f32.mrb[0].mxu0
  %v3599 = vadd.f32 %v3502, %v3598
  %v3600 = vpop.f32.mrb[0].mxu0
  %3601 = vdwg.mxu0
  %v3602 = vld [vmem:[%s1 + $0x26] sm:$0x1]
  %v3603 = vld [vmem:[%s1 + $0x27] sm:$0x1]
  %v3604 = vsel %vm377, %v3584, 0.0
  %3605 = vadd.xlane.f32.xlu0 %v3604
  %v3606 = vpop.xlane.xlu0 %3605
  %v3607 = vsel %vm377, %v3589, 0.0
  %3608 = vadd.xlane.f32.xlu0 %v3607
  %v3609 = vpop.xlane.xlu0 %3608
  %v3610 = vsel %vm377, %v3594, 0.0
  %3611 = vadd.xlane.f32.xlu0 %v3610
  %v3612 = vpop.xlane.xlu0 %3611
  %v3613 = vsel %vm377, %v3599, 0.0
  %3614 = vadd.xlane.f32.xlu0 %v3613
  %v3615 = vpop.xlane.xlu0 %3614
  %v3616 = vmul.f32 %v3606, %v1422
  %v3617 = vmul.f32 %v3609, %v1422
  %v3618 = vmul.f32 %v3612, %v1422
  %v3619 = vmul.f32 %v3615, %v1422
  %v3620 = vsub.f32 %v3584, %v3616
  %v3621 = vsub.f32 %v3589, %v3617
  %v3622 = vsub.f32 %v3594, %v3618
  %v3623 = vsub.f32 %v3599, %v3619
  %v3624 = vmul.f32 %v3620, %v3620
  %v3625 = vmul.f32 %v3621, %v3621
  %v3626 = vmul.f32 %v3622, %v3622
  %v3627 = vmul.f32 %v3623, %v3623
  %v3628 = vsel %vm377, %v3624, 0.0
  %3629 = vadd.xlane.f32.xlu0 %v3628
  %v3630 = vpop.xlane.xlu0 %3629
  %v3631 = vsel %vm377, %v3625, 0.0
  %3632 = vadd.xlane.f32.xlu0 %v3631
  %v3633 = vpop.xlane.xlu0 %3632
  %v3634 = vsel %vm377, %v3626, 0.0
  %3635 = vadd.xlane.f32.xlu0 %v3634
  %v3636 = vpop.xlane.xlu0 %3635
  %v3637 = vsel %vm377, %v3627, 0.0
  %3638 = vadd.xlane.f32.xlu0 %v3637
  %v3639 = vpop.xlane.xlu0 %3638
  %v3640 = vmul.f32 %v3630, %v1422
  %v3641 = vmul.f32 %v3633, %v1422
  %v3642 = vmul.f32 %v3636, %v1422
  %v3643 = vmul.f32 %v3639, %v1422
  %v3644 = vadd.f32 %v3640, 1e-05
  %v3645 = vadd.f32 %v3641, 1e-05
  %v3646 = vadd.f32 %v3642, 1e-05
  %v3647 = vadd.f32 %v3643, 1e-05
  %v3648 = vrsqrt.pop %v3644
  %v3649 = vrsqrt.pop %v3645
  %v3650 = vrsqrt.pop %v3646
  %v3651 = vrsqrt.pop %v3647
  %v3652 = vmul.f32 %v3620, %v3648
  %v3653 = vmul.f32 %v3621, %v3649
  %v3654 = vmul.f32 %v3622, %v3650
  %v3655 = vmul.f32 %v3623, %v3651
  %v3657 = vlaneseq
  %v3658 = vshrl.u32 %v3657, 7
  %v3659 = vsub.s32 0, %v3658
  %v3660 = vrot.slane %v3602, %v3659
  %v3662 = vmul.f32 %v3652, %v3660
  %v3663 = vmul.f32 %v3653, %v3660
  %v3664 = vmul.f32 %v3654, %v3660
  %v3665 = vmul.f32 %v3655, %v3660
  %v3667 = vlaneseq
  %v3668 = vshrl.u32 %v3667, 7
  %v3669 = vsub.s32 0, %v3668
  %v3670 = vrot.slane %v3603, %v3669
  %v3672 = vadd.f32 %v3662, %v3670
  %v3673 = vadd.f32 %v3663, %v3670
  %v3674 = vadd.f32 %v3664, %v3670
  %v3675 = vadd.f32 %v3665, %v3670
  %v3676 = vld [vmem:[%s3 + $0x28] sm:$0xf]
  %v3677 = vld [vmem:[%s3 + $0x54] sm:$0xf]
  %v3678 = vld [vmem:[%s3 + $0x80] sm:$0xf]
  %v3679 = vld [vmem:[%s3 + $0xac] sm:$0xf]
  %v3680 = vld [vmem:[%s3 + $0xd8] sm:$0xf]
  %v3681 = vld [vmem:[%s3 + $0x104] sm:$0xf]
  %v3682 = vld [vmem:[%s3 + $0x130] sm:$0xf]
  %v3683 = vld [vmem:[%s3 + $0x15c] sm:$0xf]
  %v3684 = vpack.c.bf16 %v3673, %v3672
  %v3685 = vpack.c.bf16 %v3675, %v3674
  %v3686 = vpack.c.bf16 %v1794, %v1782
  %v3687 = vpack.c.bf16 %v1795, %v1790
  %v3692 = vunpack.c.l.b16 %v3680
  %v3693 = vunpack.c.l.b16 %v3681
  %v3694 = vunpack.c.l.b16 %v3682
  %v3695 = vunpack.c.l.b16 %v3683
  %v3696 = vpack.c.b16 %v3693, %v3692
  %v3697 = vpack.c.b16 %v3695, %v3694
  %v3701 = vsel %vm377, %v3686, 0
  %v3704 = vsel %vm377, %v3687, 0
  %3706 = vmatprep.subr.bf16.mxu0 0
  %3707 = vmatpush1.bf16.msra.mxu0 %v3696
  %3708 = vmatprep.subr.bf16.mxu0 0
  %3709 = vmatpush1.bf16.msra.mxu0 %v3697
  %3710 = vmatprep.subr.bf16.mxu0 0
  %3711 = vmatpush1.bf16.msra.mxu0 0
  %3712 = vmatprep.subr.bf16.mxu0 0
  %3713 = vmatpush1.bf16.msra.mxu0 0
  %3714 = vmatprep.subr.bf16.mxu0 0
  %3715 = vmatpush1.bf16.msra.mxu0 0
  %3716 = vmatprep.subr.bf16.mxu0 0
  %3717 = vmatpush1.bf16.msra.mxu0 0
  %3718 = vmatprep.subr.bf16.mxu0 0
  %3719 = vmatpush1.bf16.msra.mxu0 0
  %3720 = vmatprep.subr.bf16.mxu0 0
  %3721 = vmatpush1.bf16.msra.mxu0 0
  %3722 = vmatprep.subr.bf16.mxu0 0
  %3723 = vmatpush1.bf16.msra.mxu0 0
  %3724 = vmatprep.subr.bf16.mxu0 0
  %3725 = vmatpush1.bf16.msra.mxu0 0
  %3726 = vmatprep.subr.bf16.mxu0 0
  %3727 = vmatpush1.bf16.msra.mxu0 0
  %3728 = vmatprep.subr.bf16.mxu0 0
  %3729 = vmatpush1.bf16.msra.mxu0 0
  %3730 = vmatprep.subr.bf16.mxu0 0
  %3731 = vmatpush1.bf16.msra.mxu0 0
  %3732 = vmatprep.subr.bf16.mxu0 0
  %3733 = vmatpush1.bf16.msra.mxu0 0
  %3734 = vmatprep.subr.bf16.mxu0 0
  %3735 = vmatpush1.bf16.msra.mxu0 0
  %3736 = vmatprep.subr.bf16.mxu0 0
  %3737 = vmatpush1.bf16.msra.mxu0 0
  %3738 = vmatprep.mubr.bf16.mxu0 0
  %3739 = vmatmul.mubr.bf16.gmra.mrb[0].mxu0 %v3701
  %v3740 = vpop.f32.mrb[0].mxu0
  %v3741 = vadd.f32 0.0, %v3740
  %v3742 = vpop.f32.mrb[0].mxu0
  %v3743 = vpop.f32.mrb[0].mxu0
  %v3744 = vadd.f32 0.0, %v3743
  %v3745 = vpop.f32.mrb[0].mxu0
  %3746 = vmatprep.mubr.bf16.mxu0 0
  %3747 = vmatmul.mubr.bf16.gmra.mrb[0].mxu0 %v3704
  %v3748 = vpop.f32.mrb[0].mxu0
  %v3749 = vadd.f32 0.0, %v3748
  %v3750 = vpop.f32.mrb[0].mxu0
  %v3751 = vpop.f32.mrb[0].mxu0
  %v3752 = vadd.f32 0.0, %v3751
  %v3753 = vpop.f32.mrb[0].mxu0
  %3754 = vdwg.mxu0
  %v3759 = vunpack.c.l.b16 %v3676
  %v3760 = vunpack.c.l.b16 %v3677
  %v3761 = vunpack.c.l.b16 %v3678
  %v3762 = vunpack.c.l.b16 %v3679
  %v3763 = vpack.c.b16 %v3760, %v3759
  %v3764 = vpack.c.b16 %v3762, %v3761
  %v3768 = vsel %vm377, %v3684, 0
  %v3771 = vsel %vm377, %v3685, 0
  %3773 = vmatprep.subr.bf16.mxu0 0
  %3774 = vmatpush1.bf16.msra.mxu0 %v3763
  %3775 = vmatprep.subr.bf16.mxu0 0
  %3776 = vmatpush1.bf16.msra.mxu0 %v3764
  %3777 = vmatprep.subr.bf16.mxu0 0
  %3778 = vmatpush1.bf16.msra.mxu0 0
  %3779 = vmatprep.subr.bf16.mxu0 0
  %3780 = vmatpush1.bf16.msra.mxu0 0
  %3781 = vmatprep.subr.bf16.mxu0 0
  %3782 = vmatpush1.bf16.msra.mxu0 0
  %3783 = vmatprep.subr.bf16.mxu0 0
  %3784 = vmatpush1.bf16.msra.mxu0 0
  %3785 = vmatprep.subr.bf16.mxu0 0
  %3786 = vmatpush1.bf16.msra.mxu0 0
  %3787 = vmatprep.subr.bf16.mxu0 0
  %3788 = vmatpush1.bf16.msra.mxu0 0
  %3789 = vmatprep.subr.bf16.mxu0 0
  %3790 = vmatpush1.bf16.msra.mxu0 0
  %3791 = vmatprep.subr.bf16.mxu0 0
  %3792 = vmatpush1.bf16.msra.mxu0 0
  %3793 = vmatprep.subr.bf16.mxu0 0
  %3794 = vmatpush1.bf16.msra.mxu0 0
  %3795 = vmatprep.subr.bf16.mxu0 0
  %3796 = vmatpush1.bf16.msra.mxu0 0
  %3797 = vmatprep.subr.bf16.mxu0 0
  %3798 = vmatpush1.bf16.msra.mxu0 0
  %3799 = vmatprep.subr.bf16.mxu0 0
  %3800 = vmatpush1.bf16.msra.mxu0 0
  %3801 = vmatprep.subr.bf16.mxu0 0
  %3802 = vmatpush1.bf16.msra.mxu0 0
  %3803 = vmatprep.subr.bf16.mxu0 0
  %3804 = vmatpush1.bf16.msra.mxu0 0
  %3805 = vmatprep.mubr.bf16.mxu0 0
  %3806 = vmatmul.mubr.bf16.gmra.mrb[0].mxu0 %v3768
  %v3807 = vpop.f32.mrb[0].mxu0
  %v3808 = vadd.f32 %v3741, %v3807
  %v3809 = vpop.f32.mrb[0].mxu0
  %v3810 = vpop.f32.mrb[0].mxu0
  %v3811 = vadd.f32 %v3744, %v3810
  %v3812 = vpop.f32.mrb[0].mxu0
  %3813 = vmatprep.mubr.bf16.mxu0 0
  %3814 = vmatmul.mubr.bf16.gmra.mrb[0].mxu0 %v3771
  %v3815 = vpop.f32.mrb[0].mxu0
  %v3816 = vadd.f32 %v3749, %v3815
  %v3817 = vpop.f32.mrb[0].mxu0
  %v3818 = vpop.f32.mrb[0].mxu0
  %v3819 = vadd.f32 %v3752, %v3818
  %v3820 = vpop.f32.mrb[0].mxu0
  %3821 = vdwg.mxu0
  %v3822 = vld [vmem:[%s1 + $0x28] sm:$0x1]
  %v3824 = vlaneseq
  %v3825 = vshrl.u32 %v3824, 7
  %v3826 = vsub.s32 0, %v3825
  %v3827 = vrot.slane %v3822, %v3826
  %v3829 = vadd.f32 %v3808, %v3827
  %v3830 = vadd.f32 %v3811, %v3827
  %v3831 = vadd.f32 %v3816, %v3827
  %v3832 = vadd.f32 %v3819, %v3827
  %v3833 = vpack.c.bf16 %v3830, %v3829
  %v3834 = vpack.c.bf16 %v3832, %v3831
  %v3835 = vld [vmem:[%s2 + $0x18] sm:$0xff]
  %v3836 = vld [vmem:[%s2 + $0x20] sm:$0xff]
  %v3837 = vld [vmem:[%s2 + $0x28] sm:$0xf]
  %v3838 = vld [vmem:[%s2 + $0x4c] sm:$0xff]
  %v3839 = vld [vmem:[%s2 + $0x54] sm:$0xff]
  %v3840 = vld [vmem:[%s2 + $0x5c] sm:$0xf]
  %v3841 = vld [vmem:[%s2 + $0x80] sm:$0xff]
  %v3842 = vld [vmem:[%s2 + $0x88] sm:$0xff]
  %v3843 = vld [vmem:[%s2 + $0x90] sm:$0xf]
  %v3844 = vld [vmem:[%s2 + $0xb4] sm:$0xff]
  %v3845 = vld [vmem:[%s2 + $0xbc] sm:$0xff]
  %v3846 = vld [vmem:[%s2 + $0xc4] sm:$0xf]
  %v3847 = vld [vmem:[%s1 + $0x18] sm:$0x1f]
  %v3849 = vlaneseq
  %v3850 = vshrl.u32 %v3849, 7
  %v3851 = vsub.s32 0, %v3850
  %v3852 = vrot.slane %v3847, %v3851
  %v3853 = vlaneseq
  %v3854 = vshrl.u32 %v3853, 7
  %v3855 = vsub.s32 1, %v3854
  %v3856 = vrot.slane %v3847, %v3855
  %v3857 = vlaneseq
  %v3858 = vshrl.u32 %v3857, 7
  %v3859 = vsub.s32 2, %v3858
  %v3860 = vrot.slane %v3847, %v3859
  %v3861 = vlaneseq
  %v3862 = vshrl.u32 %v3861, 7
  %v3863 = vsub.s32 3, %v3862
  %v3864 = vrot.slane %v3847, %v3863
  %v3865 = vlaneseq
  %v3866 = vshrl.u32 %v3865, 7
  %v3867 = vsub.s32 4, %v3866
  %v3868 = vrot.slane %v3847, %v3867
  %v3886 = vunpack.c.l.b16 %v3835
  %v3887 = vunpack.c.h.b16 %v3835
  %v3888 = vunpack.c.l.b16 %v3836
  %v3889 = vunpack.c.h.b16 %v3836
  %v3890 = vunpack.c.l.b16 %v3837
  %v3891 = vunpack.c.l.b16 %v3838
  %v3892 = vunpack.c.h.b16 %v3838
  %v3893 = vunpack.c.l.b16 %v3839
  %v3894 = vunpack.c.h.b16 %v3839
  %v3895 = vunpack.c.l.b16 %v3840
  %v3896 = vunpack.c.l.b16 %v3841
  %v3897 = vunpack.c.h.b16 %v3841
  %v3898 = vunpack.c.l.b16 %v3842
  %v3899 = vunpack.c.h.b16 %v3842
  %v3900 = vunpack.c.l.b16 %v3843
  %v3901 = vunpack.c.l.b16 %v3844
  %v3902 = vunpack.c.h.b16 %v3844
  %v3903 = vunpack.c.l.b16 %v3845
  %v3904 = vunpack.c.h.b16 %v3845
  %v3905 = vunpack.c.l.b16 %v3846
  %v3906 = vpack.c.b16 %v3891, %v3886
  %v3907 = vpack.c.b16 %v3892, %v3887
  %v3908 = vpack.c.b16 %v3893, %v3888
  %v3909 = vpack.c.b16 %v3894, %v3889
  %v3910 = vpack.c.b16 %v3895, %v3890
  %v3911 = vpack.c.b16 %v3901, %v3896
  %v3912 = vpack.c.b16 %v3902, %v3897
  %v3913 = vpack.c.b16 %v3903, %v3898
  %v3914 = vpack.c.b16 %v3904, %v3899
  %v3915 = vpack.c.b16 %v3905, %v3900
  %v3927 = vsel %vm377, %v3833, 0
  %v3930 = vsel %vm377, %v3834, 0
  %3932 = vmatprep.subr.bf16.mxu0 %v3907
  %3933 = vmatpush1.bf16.msra.mxu0 %v3906
  %3934 = vmatprep.subr.bf16.mxu0 %v3912
  %3935 = vmatpush1.bf16.msra.mxu0 %v3911
  %3936 = vmatprep.subr.bf16.mxu0 0
  %3937 = vmatpush1.bf16.msra.mxu0 0
  %3938 = vmatprep.subr.bf16.mxu0 0
  %3939 = vmatpush1.bf16.msra.mxu0 0
  %3940 = vmatprep.subr.bf16.mxu0 0
  %3941 = vmatpush1.bf16.msra.mxu0 0
  %3942 = vmatprep.subr.bf16.mxu0 0
  %3943 = vmatpush1.bf16.msra.mxu0 0
  %3944 = vmatprep.subr.bf16.mxu0 0
  %3945 = vmatpush1.bf16.msra.mxu0 0
  %3946 = vmatprep.subr.bf16.mxu0 0
  %3947 = vmatpush1.bf16.msra.mxu0 0
  %3948 = vmatprep.subr.bf16.mxu0 0
  %3949 = vmatpush1.bf16.msra.mxu0 0
  %3950 = vmatprep.subr.bf16.mxu0 0
  %3951 = vmatpush1.bf16.msra.mxu0 0
  %3952 = vmatprep.subr.bf16.mxu0 0
  %3953 = vmatpush1.bf16.msra.mxu0 0
  %3954 = vmatprep.subr.bf16.mxu0 0
  %3955 = vmatpush1.bf16.msra.mxu0 0
  %3956 = vmatprep.subr.bf16.mxu0 0
  %3957 = vmatpush1.bf16.msra.mxu0 0
  %3958 = vmatprep.subr.bf16.mxu0 0
  %3959 = vmatpush1.bf16.msra.mxu0 0
  %3960 = vmatprep.subr.bf16.mxu0 0
  %3961 = vmatpush1.bf16.msra.mxu0 0
  %3962 = vmatprep.subr.bf16.mxu0 0
  %3963 = vmatpush1.bf16.msra.mxu0 0
  %3964 = vmatprep.mubr.bf16.mxu0 0
  %3965 = vmatmul.mubr.bf16.gmra.mrb[0].mxu0 %v3927
  %v3966 = vpop.f32.mrb[0].mxu0
  %v3967 = vadd.f32 %v3852, %v3966
  %v3968 = vpop.f32.mrb[0].mxu0
  %v3969 = vadd.f32 %v3856, %v3968
  %v3970 = vpop.f32.mrb[0].mxu0
  %v3971 = vadd.f32 %v3852, %v3970
  %v3972 = vpop.f32.mrb[0].mxu0
  %v3973 = vadd.f32 %v3856, %v3972
  %3974 = vmatprep.mubr.bf16.mxu0 0
  %3975 = vmatmul.mubr.bf16.gmra.mrb[0].mxu0 %v3930
  %v3976 = vpop.f32.mrb[0].mxu0
  %v3977 = vadd.f32 %v3852, %v3976
  %v3978 = vpop.f32.mrb[0].mxu0
  %v3979 = vadd.f32 %v3856, %v3978
  %v3980 = vpop.f32.mrb[0].mxu0
  %v3981 = vadd.f32 %v3852, %v3980
  %v3982 = vpop.f32.mrb[0].mxu0
  %v3983 = vadd.f32 %v3856, %v3982
  %3984 = vdwg.mxu0
  %3985 = vmatprep.subr.bf16.mxu0 %v3909
  %3986 = vmatpush1.bf16.msra.mxu0 %v3908
  %3987 = vmatprep.subr.bf16.mxu0 %v3914
  %3988 = vmatpush1.bf16.msra.mxu0 %v3913
  %3989 = vmatprep.subr.bf16.mxu0 0
  %3990 = vmatpush1.bf16.msra.mxu0 0
  %3991 = vmatprep.subr.bf16.mxu0 0
  %3992 = vmatpush1.bf16.msra.mxu0 0
  %3993 = vmatprep.subr.bf16.mxu0 0
  %3994 = vmatpush1.bf16.msra.mxu0 0
  %3995 = vmatprep.subr.bf16.mxu0 0
  %3996 = vmatpush1.bf16.msra.mxu0 0
  %3997 = vmatprep.subr.bf16.mxu0 0
  %3998 = vmatpush1.bf16.msra.mxu0 0
  %3999 = vmatprep.subr.bf16.mxu0 0
  %4000 = vmatpush1.bf16.msra.mxu0 0
  %4001 = vmatprep.subr.bf16.mxu0 0
  %4002 = vmatpush1.bf16.msra.mxu0 0
  %4003 = vmatprep.subr.bf16.mxu0 0
  %4004 = vmatpush1.bf16.msra.mxu0 0
  %4005 = vmatprep.subr.bf16.mxu0 0
  %4006 = vmatpush1.bf16.msra.mxu0 0
  %4007 = vmatprep.subr.bf16.mxu0 0
  %4008 = vmatpush1.bf16.msra.mxu0 0
  %4009 = vmatprep.subr.bf16.mxu0 0
  %4010 = vmatpush1.bf16.msra.mxu0 0
  %4011 = vmatprep.subr.bf16.mxu0 0
  %4012 = vmatpush1.bf16.msra.mxu0 0
  %4013 = vmatprep.subr.bf16.mxu0 0
  %4014 = vmatpush1.bf16.msra.mxu0 0
  %4015 = vmatprep.subr.bf16.mxu0 0
  %4016 = vmatpush1.bf16.msra.mxu0 0
  %4017 = vmatprep.mubr.bf16.mxu0 0
  %4018 = vmatmul.mubr.bf16.gmra.mrb[0].mxu0 %v3927
  %v4019 = vpop.f32.mrb[0].mxu0
  %v4020 = vadd.f32 %v3860, %v4019
  %v4021 = vpop.f32.mrb[0].mxu0
  %v4022 = vadd.f32 %v3864, %v4021
  %v4023 = vpop.f32.mrb[0].mxu0
  %v4024 = vadd.f32 %v3860, %v4023
  %v4025 = vpop.f32.mrb[0].mxu0
  %v4026 = vadd.f32 %v3864, %v4025
  %4027 = vmatprep.mubr.bf16.mxu0 0
  %4028 = vmatmul.mubr.bf16.gmra.mrb[0].mxu0 %v3930
  %v4029 = vpop.f32.mrb[0].mxu0
  %v4030 = vadd.f32 %v3860, %v4029
  %v4031 = vpop.f32.mrb[0].mxu0
  %v4032 = vadd.f32 %v3864, %v4031
  %v4033 = vpop.f32.mrb[0].mxu0
  %v4034 = vadd.f32 %v3860, %v4033
  %v4035 = vpop.f32.mrb[0].mxu0
  %v4036 = vadd.f32 %v3864, %v4035
  %4037 = vdwg.mxu0
  %4038 = vmatprep.subr.bf16.mxu0 0
  %4039 = vmatpush1.bf16.msra.mxu0 %v3910
  %4040 = vmatprep.subr.bf16.mxu0 0
  %4041 = vmatpush1.bf16.msra.mxu0 %v3915
  %4042 = vmatprep.subr.bf16.mxu0 0
  %4043 = vmatpush1.bf16.msra.mxu0 0
  %4044 = vmatprep.subr.bf16.mxu0 0
  %4045 = vmatpush1.bf16.msra.mxu0 0
  %4046 = vmatprep.subr.bf16.mxu0 0
  %4047 = vmatpush1.bf16.msra.mxu0 0
  %4048 = vmatprep.subr.bf16.mxu0 0
  %4049 = vmatpush1.bf16.msra.mxu0 0
  %4050 = vmatprep.subr.bf16.mxu0 0
  %4051 = vmatpush1.bf16.msra.mxu0 0
  %4052 = vmatprep.subr.bf16.mxu0 0
  %4053 = vmatpush1.bf16.msra.mxu0 0
  %4054 = vmatprep.subr.bf16.mxu0 0
  %4055 = vmatpush1.bf16.msra.mxu0 0
  %4056 = vmatprep.subr.bf16.mxu0 0
  %4057 = vmatpush1.bf16.msra.mxu0 0
  %4058 = vmatprep.subr.bf16.mxu0 0
  %4059 = vmatpush1.bf16.msra.mxu0 0
  %4060 = vmatprep.subr.bf16.mxu0 0
  %4061 = vmatpush1.bf16.msra.mxu0 0
  %4062 = vmatprep.subr.bf16.mxu0 0
  %4063 = vmatpush1.bf16.msra.mxu0 0
  %4064 = vmatprep.subr.bf16.mxu0 0
  %4065 = vmatpush1.bf16.msra.mxu0 0
  %4066 = vmatprep.subr.bf16.mxu0 0
  %4067 = vmatpush1.bf16.msra.mxu0 0
  %4068 = vmatprep.subr.bf16.mxu0 0
  %4069 = vmatpush1.bf16.msra.mxu0 0
  %4070 = vmatprep.mubr.bf16.mxu0 0
  %4071 = vmatmul.mubr.bf16.gmra.mrb[0].mxu0 %v3927
  %v4072 = vpop.f32.mrb[0].mxu0
  %v4073 = vadd.f32 %v3868, %v4072
  %v4074 = vpop.f32.mrb[0].mxu0
  %v4075 = vpop.f32.mrb[0].mxu0
  %v4076 = vadd.f32 %v3868, %v4075
  %v4077 = vpop.f32.mrb[0].mxu0
  %4078 = vmatprep.mubr.bf16.mxu0 0
  %4079 = vmatmul.mubr.bf16.gmra.mrb[0].mxu0 %v3930
  %v4080 = vpop.f32.mrb[0].mxu0
  %v4081 = vadd.f32 %v3868, %v4080
  %v4082 = vpop.f32.mrb[0].mxu0
  %v4083 = vpop.f32.mrb[0].mxu0
  %v4084 = vadd.f32 %v3868, %v4083
  %v4085 = vpop.f32.mrb[0].mxu0
  %4086 = vdwg.mxu0
  %v4087 = vpack.c.bf16 %v3971, %v3967
  %v4088 = vpack.c.bf16 %v3981, %v3977
  %v4089 = vpack.c.bf16 %v3973, %v3969
  %v4090 = vpack.c.bf16 %v3983, %v3979
  %v4092 = vsel %vm575, %v4087, 0
  %v4095 = vsel %vm575, %v4088, 0
  %v4098 = vsel %vm575, %v4089, 0
  %v4101 = vsel %vm575, %v4090, 0
  %4103 = vmatprep.subr.bf16.mxu0 0
  %4104 = vmatpush1.bf16.xpose.msra.mxu0 %v4098
  %4105 = vmatprep.subr.bf16.mxu0 0
  %4106 = vmatpush1.bf16.xpose.msra.mxu0 %v4101
  %4107 = vmatprep.subr.bf16.mxu0 0
  %4108 = vmatpush1.bf16.xpose.msra.mxu0 0
  %4109 = vmatprep.subr.bf16.mxu0 0
  %4110 = vmatpush1.bf16.xpose.msra.mxu0 0
  %4111 = vmatprep.subr.bf16.mxu0 0
  %4112 = vmatpush1.bf16.xpose.msra.mxu0 0
  %4113 = vmatprep.subr.bf16.mxu0 0
  %4114 = vmatpush1.bf16.xpose.msra.mxu0 0
  %4115 = vmatprep.subr.bf16.mxu0 0
  %4116 = vmatpush1.bf16.xpose.msra.mxu0 0
  %4117 = vmatprep.subr.bf16.mxu0 0
  %4118 = vmatpush1.bf16.xpose.msra.mxu0 0
  %4119 = vmatprep.subr.bf16.mxu0 0
  %4120 = vmatpush1.bf16.xpose.msra.mxu0 0
  %4121 = vmatprep.subr.bf16.mxu0 0
  %4122 = vmatpush1.bf16.xpose.msra.mxu0 0
  %4123 = vmatprep.subr.bf16.mxu0 0
  %4124 = vmatpush1.bf16.xpose.msra.mxu0 0
  %4125 = vmatprep.subr.bf16.mxu0 0
  %4126 = vmatpush1.bf16.xpose.msra.mxu0 0
  %4127 = vmatprep.subr.bf16.mxu0 0
  %4128 = vmatpush1.bf16.xpose.msra.mxu0 0
  %4129 = vmatprep.subr.bf16.mxu0 0
  %4130 = vmatpush1.bf16.xpose.msra.mxu0 0
  %4131 = vmatprep.subr.bf16.mxu0 0
  %4132 = vmatpush1.bf16.xpose.msra.mxu0 0
  %4133 = vmatprep.subr.bf16.mxu0 0
  %4134 = vmatpush1.bf16.xpose.msra.mxu0 0
  %4135 = vmatprep.mubr.bf16.mxu0 0
  %4136 = vmatmul.mubr.bf16.gmra.mrb[0].mxu0 %v4092
  %v4137 = vpop.f32.mrb[0].mxu0
  %v4138 = vadd.f32 %v539, %v4137
  %v4139 = vpop.f32.mrb[0].mxu0
  %v4140 = vpop.f32.mrb[0].mxu0
  %v4141 = vadd.f32 %v540, %v4140
  %v4142 = vpop.f32.mrb[0].mxu0
  %4143 = vmatprep.mubr.bf16.mxu0 0
  %4144 = vmatmul.mubr.bf16.gmra.mrb[0].mxu0 %v4095
  %v4145 = vpop.f32.mrb[0].mxu0
  %v4146 = vadd.f32 %v541, %v4145
  %v4147 = vpop.f32.mrb[0].mxu0
  %v4148 = vpop.f32.mrb[0].mxu0
  %v4149 = vadd.f32 %v542, %v4148
  %v4150 = vpop.f32.mrb[0].mxu0
  %4151 = vdwg.mxu0
  %4153 = vset.pattern.permute.xlu0 0
  %4154 = vperm.xlu0 %4153, %v4022
  %v4155 = vpop.permute.xlu0 %4154
  %4158 = vset.pattern.permute.xlu0 0
  %4159 = vperm.xlu0 %4158, %v4026
  %v4160 = vpop.permute.xlu0 %4159
  %4163 = vset.pattern.permute.xlu0 0
  %4164 = vperm.xlu0 %4163, %v4032
  %v4165 = vpop.permute.xlu0 %4164
  %4168 = vset.pattern.permute.xlu0 0
  %4169 = vperm.xlu0 %4168, %v4036
  %v4170 = vpop.permute.xlu0 %4169
  %v4172 = vmul.f32 %v4155, %v543
  %v4173 = vmul.f32 %v4160, %v544
  %v4174 = vmul.f32 %v4165, %v545
  %v4175 = vmul.f32 %v4170, %v546
  %v4176 = vadd.f32 %v4138, %v4172
  %v4177 = vadd.f32 %v4141, %v4173
  %v4178 = vadd.f32 %v4146, %v4174
  %v4179 = vadd.f32 %v4149, %v4175
  %4180 = vset.pattern.permute.xlu0 1
  %4181 = vperm.xlu0 %4180, %v4022
  %v4182 = vpop.permute.xlu0 %4181
  %4184 = vset.pattern.permute.xlu0 1
  %4185 = vperm.xlu0 %4184, %v4026
  %v4186 = vpop.permute.xlu0 %4185
  %4188 = vset.pattern.permute.xlu0 1
  %4189 = vperm.xlu0 %4188, %v4032
  %v4190 = vpop.permute.xlu0 %4189
  %4192 = vset.pattern.permute.xlu0 1
  %4193 = vperm.xlu0 %4192, %v4036
  %v4194 = vpop.permute.xlu0 %4193
  %v4196 = vmul.f32 %v4182, %v547
  %v4197 = vmul.f32 %v4186, %v548
  %v4198 = vmul.f32 %v4190, %v549
  %v4199 = vmul.f32 %v4194, %v550
  %v4200 = vadd.f32 %v4176, %v4196
  %v4201 = vadd.f32 %v4177, %v4197
  %v4202 = vadd.f32 %v4178, %v4198
  %v4203 = vadd.f32 %v4179, %v4199
  %4204 = vset.pattern.permute.xlu0 2
  %4205 = vperm.xlu0 %4204, %v4022
  %v4206 = vpop.permute.xlu0 %4205
  %4208 = vset.pattern.permute.xlu0 2
  %4209 = vperm.xlu0 %4208, %v4026
  %v4210 = vpop.permute.xlu0 %4209
  %4212 = vset.pattern.permute.xlu0 2
  %4213 = vperm.xlu0 %4212, %v4032
  %v4214 = vpop.permute.xlu0 %4213
  %4216 = vset.pattern.permute.xlu0 2
  %4217 = vperm.xlu0 %4216, %v4036
  %v4218 = vpop.permute.xlu0 %4217
  %v4220 = vmul.f32 %v4206, %v551
  %v4221 = vmul.f32 %v4210, %v552
  %v4222 = vmul.f32 %v4214, %v553
  %v4223 = vmul.f32 %v4218, %v554
  %v4224 = vadd.f32 %v4200, %v4220
  %v4225 = vadd.f32 %v4201, %v4221
  %v4226 = vadd.f32 %v4202, %v4222
  %v4227 = vadd.f32 %v4203, %v4223
  %4228 = vset.pattern.permute.xlu0 3
  %4229 = vperm.xlu0 %4228, %v4022
  %v4230 = vpop.permute.xlu0 %4229
  %4232 = vset.pattern.permute.xlu0 3
  %4233 = vperm.xlu0 %4232, %v4026
  %v4234 = vpop.permute.xlu0 %4233
  %4236 = vset.pattern.permute.xlu0 3
  %4237 = vperm.xlu0 %4236, %v4032
  %v4238 = vpop.permute.xlu0 %4237
  %4240 = vset.pattern.permute.xlu0 3
  %4241 = vperm.xlu0 %4240, %v4036
  %v4242 = vpop.permute.xlu0 %4241
  %v4244 = vmul.f32 %v4230, %v555
  %v4245 = vmul.f32 %v4234, %v556
  %v4246 = vmul.f32 %v4238, %v557
  %v4247 = vmul.f32 %v4242, %v558
  %v4248 = vadd.f32 %v4224, %v4244
  %v4249 = vadd.f32 %v4225, %v4245
  %v4250 = vadd.f32 %v4226, %v4246
  %v4251 = vadd.f32 %v4227, %v4247
  %4252 = vset.pattern.permute.xlu0 4
  %4253 = vperm.xlu0 %4252, %v4022
  %v4254 = vpop.permute.xlu0 %4253
  %4256 = vset.pattern.permute.xlu0 4
  %4257 = vperm.xlu0 %4256, %v4026
  %v4258 = vpop.permute.xlu0 %4257
  %4260 = vset.pattern.permute.xlu0 4
  %4261 = vperm.xlu0 %4260, %v4032
  %v4262 = vpop.permute.xlu0 %4261
  %4264 = vset.pattern.permute.xlu0 4
  %4265 = vperm.xlu0 %4264, %v4036
  %v4266 = vpop.permute.xlu0 %4265
  %v4268 = vmul.f32 %v4254, %v559
  %v4269 = vmul.f32 %v4258, %v560
  %v4270 = vmul.f32 %v4262, %v561
  %v4271 = vmul.f32 %v4266, %v562
  %v4272 = vadd.f32 %v4248, %v4268
  %v4273 = vadd.f32 %v4249, %v4269
  %v4274 = vadd.f32 %v4250, %v4270
  %v4275 = vadd.f32 %v4251, %v4271
  %4276 = vset.pattern.permute.xlu0 5
  %4277 = vperm.xlu0 %4276, %v4022
  %v4278 = vpop.permute.xlu0 %4277
  %4280 = vset.pattern.permute.xlu0 5
  %4281 = vperm.xlu0 %4280, %v4026
  %v4282 = vpop.permute.xlu0 %4281
  %4284 = vset.pattern.permute.xlu0 5
  %4285 = vperm.xlu0 %4284, %v4032
  %v4286 = vpop.permute.xlu0 %4285
  %4288 = vset.pattern.permute.xlu0 5
  %4289 = vperm.xlu0 %4288, %v4036
  %v4290 = vpop.permute.xlu0 %4289
  %v4292 = vmul.f32 %v4278, %v563
  %v4293 = vmul.f32 %v4282, %v564
  %v4294 = vmul.f32 %v4286, %v565
  %v4295 = vmul.f32 %v4290, %v566
  %v4296 = vadd.f32 %v4272, %v4292
  %v4297 = vadd.f32 %v4273, %v4293
  %v4298 = vadd.f32 %v4274, %v4294
  %v4299 = vadd.f32 %v4275, %v4295
  %4300 = vset.pattern.permute.xlu0 6
  %4301 = vperm.xlu0 %4300, %v4022
  %v4302 = vpop.permute.xlu0 %4301
  %4304 = vset.pattern.permute.xlu0 6
  %4305 = vperm.xlu0 %4304, %v4026
  %v4306 = vpop.permute.xlu0 %4305
  %4308 = vset.pattern.permute.xlu0 6
  %4309 = vperm.xlu0 %4308, %v4032
  %v4310 = vpop.permute.xlu0 %4309
  %4312 = vset.pattern.permute.xlu0 6
  %4313 = vperm.xlu0 %4312, %v4036
  %v4314 = vpop.permute.xlu0 %4313
  %v4316 = vmul.f32 %v4302, %v567
  %v4317 = vmul.f32 %v4306, %v568
  %v4318 = vmul.f32 %v4310, %v569
  %v4319 = vmul.f32 %v4314, %v570
  %v4320 = vadd.f32 %v4296, %v4316
  %v4321 = vadd.f32 %v4297, %v4317
  %v4322 = vadd.f32 %v4298, %v4318
  %v4323 = vadd.f32 %v4299, %v4319
  %v4324 = vsel %vm377, %v4320, -inf
  %4325 = vmax.xlane.f32.xlu0 %v4324
  %v4326 = vpop.xlane.xlu0 %4325
  %v4327 = vsel %vm377, %v4321, -inf
  %4328 = vmax.xlane.f32.xlu0 %v4327
  %v4329 = vpop.xlane.xlu0 %4328
  %v4330 = vsel %vm377, %v4322, -inf
  %4331 = vmax.xlane.f32.xlu0 %v4330
  %v4332 = vpop.xlane.xlu0 %4331
  %v4333 = vsel %vm377, %v4323, -inf
  %4334 = vmax.xlane.f32.xlu0 %v4333
  %v4335 = vpop.xlane.xlu0 %4334
  %v4336 = vsub.f32 %v4320, %v4326
  %v4337 = vsub.f32 %v4321, %v4329
  %v4338 = vsub.f32 %v4322, %v4332
  %v4339 = vsub.f32 %v4323, %v4335
  %v4340 = vmul.f32 %v4336, 1.442695
  %v4341 = vpow.pop %v4340
  %v4342 = vmul.f32 %v4337, 1.442695
  %v4343 = vpow.pop %v4342
  %v4344 = vmul.f32 %v4338, 1.442695
  %v4345 = vpow.pop %v4344
  %v4346 = vmul.f32 %v4339, 1.442695
  %v4347 = vpow.pop %v4346
  %v4348 = vsel %vm377, %v4341, 0.0
  %4349 = vadd.xlane.f32.xlu0 %v4348
  %v4350 = vpop.xlane.xlu0 %4349
  %v4351 = vsel %vm377, %v4343, 0.0
  %4352 = vadd.xlane.f32.xlu0 %v4351
  %v4353 = vpop.xlane.xlu0 %4352
  %v4354 = vsel %vm377, %v4345, 0.0
  %4355 = vadd.xlane.f32.xlu0 %v4354
  %v4356 = vpop.xlane.xlu0 %4355
  %v4357 = vsel %vm377, %v4347, 0.0
  %4358 = vadd.xlane.f32.xlu0 %v4357
  %v4359 = vpop.xlane.xlu0 %4358
  %v4360 = vrcp.pop %v4350
  %v4361 = vrcp.pop %v4353
  %v4362 = vrcp.pop %v4356
  %v4363 = vrcp.pop %v4359
  %v4364 = vmul.f32 %v4341, %v4360
  %v4365 = vmul.f32 %v4343, %v4361
  %v4366 = vmul.f32 %v4345, %v4362
  %v4367 = vmul.f32 %v4347, %v4363
  %v4368 = vpack.c.bf16 %v4365, %v4364
  %v4369 = vpack.c.bf16 %v4367, %v4366
  %v4370 = vpack.c.bf16 %v4024, %v4020
  %v4371 = vpack.c.bf16 %v4034, %v4030
  %v4373 = vsel %vm377, %v4368, 0
  %v4376 = vsel %vm377, %v4369, 0
  %4378 = vmatprep.subr.bf16.mxu0 0
  %4379 = vmatpush1.bf16.msra.mxu0 %v4370
  %4380 = vmatprep.subr.bf16.mxu0 0
  %4381 = vmatpush1.bf16.msra.mxu0 %v4371
  %4382 = vmatprep.subr.bf16.mxu0 0
  %4383 = vmatpush1.bf16.msra.mxu0 0
  %4384 = vmatprep.subr.bf16.mxu0 0
  %4385 = vmatpush1.bf16.msra.mxu0 0
  %4386 = vmatprep.subr.bf16.mxu0 0
  %4387 = vmatpush1.bf16.msra.mxu0 0
  %4388 = vmatprep.subr.bf16.mxu0 0
  %4389 = vmatpush1.bf16.msra.mxu0 0
  %4390 = vmatprep.subr.bf16.mxu0 0
  %4391 = vmatpush1.bf16.msra.mxu0 0
  %4392 = vmatprep.subr.bf16.mxu0 0
  %4393 = vmatpush1.bf16.msra.mxu0 0
  %4394 = vmatprep.subr.bf16.mxu0 0
  %4395 = vmatpush1.bf16.msra.mxu0 0
  %4396 = vmatprep.subr.bf16.mxu0 0
  %4397 = vmatpush1.bf16.msra.mxu0 0
  %4398 = vmatprep.subr.bf16.mxu0 0
  %4399 = vmatpush1.bf16.msra.mxu0 0
  %4400 = vmatprep.subr.bf16.mxu0 0
  %4401 = vmatpush1.bf16.msra.mxu0 0
  %4402 = vmatprep.subr.bf16.mxu0 0
  %4403 = vmatpush1.bf16.msra.mxu0 0
  %4404 = vmatprep.subr.bf16.mxu0 0
  %4405 = vmatpush1.bf16.msra.mxu0 0
  %4406 = vmatprep.subr.bf16.mxu0 0
  %4407 = vmatpush1.bf16.msra.mxu0 0
  %4408 = vmatprep.subr.bf16.mxu0 0
  %4409 = vmatpush1.bf16.msra.mxu0 0
  %4410 = vmatprep.mubr.bf16.mxu0 0
  %4411 = vmatmul.mubr.bf16.gmra.mrb[0].mxu0 %v4373
  %v4412 = vpop.f32.mrb[0].mxu0
  %v4413 = vadd.f32 0.0, %v4412
  %v4414 = vpop.f32.mrb[0].mxu0
  %v4415 = vpop.f32.mrb[0].mxu0
  %v4416 = vadd.f32 0.0, %v4415
  %v4417 = vpop.f32.mrb[0].mxu0
  %4418 = vmatprep.mubr.bf16.mxu0 0
  %4419 = vmatmul.mubr.bf16.gmra.mrb[0].mxu0 %v4376
  %v4420 = vpop.f32.mrb[0].mxu0
  %v4421 = vadd.f32 0.0, %v4420
  %v4422 = vpop.f32.mrb[0].mxu0
  %v4423 = vpop.f32.mrb[0].mxu0
  %v4424 = vadd.f32 0.0, %v4423
  %v4425 = vpop.f32.mrb[0].mxu0
  %4426 = vdwg.mxu0
  %4429 = vrot.lane.b32.xlu0 %v4087, 64
  %v4430 = vpop.permute.xlu0 %4429
  %4431 = vrot.lane.b32.xlu0 %v4088, 64
  %v4432 = vpop.permute.xlu0 %4431
  %4435 = vrot.lane.b32.xlu0 %v4089, 64
  %v4436 = vpop.permute.xlu0 %4435
  %4437 = vrot.lane.b32.xlu0 %v4090, 64
  %v4438 = vpop.permute.xlu0 %4437
  %v4440 = vsel %vm575, %v4430, 0
  %v4443 = vsel %vm575, %v4432, 0
  %v4446 = vsel %vm575, %v4436, 0
  %v4449 = vsel %vm575, %v4438, 0
  %4451 = vmatprep.subr.bf16.mxu0 0
  %4452 = vmatpush1.bf16.xpose.msra.mxu0 %v4446
  %4453 = vmatprep.subr.bf16.mxu0 0
  %4454 = vmatpush1.bf16.xpose.msra.mxu0 %v4449
  %4455 = vmatprep.subr.bf16.mxu0 0
  %4456 = vmatpush1.bf16.xpose.msra.mxu0 0
  %4457 = vmatprep.subr.bf16.mxu0 0
  %4458 = vmatpush1.bf16.xpose.msra.mxu0 0
  %4459 = vmatprep.subr.bf16.mxu0 0
  %4460 = vmatpush1.bf16.xpose.msra.mxu0 0
  %4461 = vmatprep.subr.bf16.mxu0 0
  %4462 = vmatpush1.bf16.xpose.msra.mxu0 0
  %4463 = vmatprep.subr.bf16.mxu0 0
  %4464 = vmatpush1.bf16.xpose.msra.mxu0 0
  %4465 = vmatprep.subr.bf16.mxu0 0
  %4466 = vmatpush1.bf16.xpose.msra.mxu0 0
  %4467 = vmatprep.subr.bf16.mxu0 0
  %4468 = vmatpush1.bf16.xpose.msra.mxu0 0
  %4469 = vmatprep.subr.bf16.mxu0 0
  %4470 = vmatpush1.bf16.xpose.msra.mxu0 0
  %4471 = vmatprep.subr.bf16.mxu0 0
  %4472 = vmatpush1.bf16.xpose.msra.mxu0 0
  %4473 = vmatprep.subr.bf16.mxu0 0
  %4474 = vmatpush1.bf16.xpose.msra.mxu0 0
  %4475 = vmatprep.subr.bf16.mxu0 0
  %4476 = vmatpush1.bf16.xpose.msra.mxu0 0
  %4477 = vmatprep.subr.bf16.mxu0 0
  %4478 = vmatpush1.bf16.xpose.msra.mxu0 0
  %4479 = vmatprep.subr.bf16.mxu0 0
  %4480 = vmatpush1.bf16.xpose.msra.mxu0 0
  %4481 = vmatprep.subr.bf16.mxu0 0
  %4482 = vmatpush1.bf16.xpose.msra.mxu0 0
  %4483 = vmatprep.mubr.bf16.mxu0 0
  %4484 = vmatmul.mubr.bf16.gmra.mrb[0].mxu0 %v4440
  %v4485 = vpop.f32.mrb[0].mxu0
  %v4486 = vadd.f32 %v539, %v4485
  %v4487 = vpop.f32.mrb[0].mxu0
  %v4488 = vpop.f32.mrb[0].mxu0
  %v4489 = vadd.f32 %v540, %v4488
  %v4490 = vpop.f32.mrb[0].mxu0
  %4491 = vmatprep.mubr.bf16.mxu0 0
  %4492 = vmatmul.mubr.bf16.gmra.mrb[0].mxu0 %v4443
  %v4493 = vpop.f32.mrb[0].mxu0
  %v4494 = vadd.f32 %v541, %v4493
  %v4495 = vpop.f32.mrb[0].mxu0
  %v4496 = vpop.f32.mrb[0].mxu0
  %v4497 = vadd.f32 %v542, %v4496
  %v4498 = vpop.f32.mrb[0].mxu0
  %4499 = vdwg.mxu0
  %4501 = vset.pattern.permute.xlu0 0
  %4502 = vperm.xlu0 %4501, %v4073
  %v4503 = vpop.permute.xlu0 %4502
  %4506 = vset.pattern.permute.xlu0 0
  %4507 = vperm.xlu0 %4506, %v4076
  %v4508 = vpop.permute.xlu0 %4507
  %4511 = vset.pattern.permute.xlu0 0
  %4512 = vperm.xlu0 %4511, %v4081
  %v4513 = vpop.permute.xlu0 %4512
  %4516 = vset.pattern.permute.xlu0 0
  %4517 = vperm.xlu0 %4516, %v4084
  %v4518 = vpop.permute.xlu0 %4517
  %v4520 = vmul.f32 %v4503, %v543
  %v4521 = vmul.f32 %v4508, %v544
  %v4522 = vmul.f32 %v4513, %v545
  %v4523 = vmul.f32 %v4518, %v546
  %v4524 = vadd.f32 %v4486, %v4520
  %v4525 = vadd.f32 %v4489, %v4521
  %v4526 = vadd.f32 %v4494, %v4522
  %v4527 = vadd.f32 %v4497, %v4523
  %4528 = vset.pattern.permute.xlu0 1
  %4529 = vperm.xlu0 %4528, %v4073
  %v4530 = vpop.permute.xlu0 %4529
  %4532 = vset.pattern.permute.xlu0 1
  %4533 = vperm.xlu0 %4532, %v4076
  %v4534 = vpop.permute.xlu0 %4533
  %4536 = vset.pattern.permute.xlu0 1
  %4537 = vperm.xlu0 %4536, %v4081
  %v4538 = vpop.permute.xlu0 %4537
  %4540 = vset.pattern.permute.xlu0 1
  %4541 = vperm.xlu0 %4540, %v4084
  %v4542 = vpop.permute.xlu0 %4541
  %v4544 = vmul.f32 %v4530, %v547
  %v4545 = vmul.f32 %v4534, %v548
  %v4546 = vmul.f32 %v4538, %v549
  %v4547 = vmul.f32 %v4542, %v550
  %v4548 = vadd.f32 %v4524, %v4544
  %v4549 = vadd.f32 %v4525, %v4545
  %v4550 = vadd.f32 %v4526, %v4546
  %v4551 = vadd.f32 %v4527, %v4547
  %4552 = vset.pattern.permute.xlu0 2
  %4553 = vperm.xlu0 %4552, %v4073
  %v4554 = vpop.permute.xlu0 %4553
  %4556 = vset.pattern.permute.xlu0 2
  %4557 = vperm.xlu0 %4556, %v4076
  %v4558 = vpop.permute.xlu0 %4557
  %4560 = vset.pattern.permute.xlu0 2
  %4561 = vperm.xlu0 %4560, %v4081
  %v4562 = vpop.permute.xlu0 %4561
  %4564 = vset.pattern.permute.xlu0 2
  %4565 = vperm.xlu0 %4564, %v4084
  %v4566 = vpop.permute.xlu0 %4565
  %v4568 = vmul.f32 %v4554, %v551
  %v4569 = vmul.f32 %v4558, %v552
  %v4570 = vmul.f32 %v4562, %v553
  %v4571 = vmul.f32 %v4566, %v554
  %v4572 = vadd.f32 %v4548, %v4568
  %v4573 = vadd.f32 %v4549, %v4569
  %v4574 = vadd.f32 %v4550, %v4570
  %v4575 = vadd.f32 %v4551, %v4571
  %4576 = vset.pattern.permute.xlu0 3
  %4577 = vperm.xlu0 %4576, %v4073
  %v4578 = vpop.permute.xlu0 %4577
  %4580 = vset.pattern.permute.xlu0 3
  %4581 = vperm.xlu0 %4580, %v4076
  %v4582 = vpop.permute.xlu0 %4581
  %4584 = vset.pattern.permute.xlu0 3
  %4585 = vperm.xlu0 %4584, %v4081
  %v4586 = vpop.permute.xlu0 %4585
  %4588 = vset.pattern.permute.xlu0 3
  %4589 = vperm.xlu0 %4588, %v4084
  %v4590 = vpop.permute.xlu0 %4589
  %v4592 = vmul.f32 %v4578, %v555
  %v4593 = vmul.f32 %v4582, %v556
  %v4594 = vmul.f32 %v4586, %v557
  %v4595 = vmul.f32 %v4590, %v558
  %v4596 = vadd.f32 %v4572, %v4592
  %v4597 = vadd.f32 %v4573, %v4593
  %v4598 = vadd.f32 %v4574, %v4594
  %v4599 = vadd.f32 %v4575, %v4595
  %4600 = vset.pattern.permute.xlu0 4
  %4601 = vperm.xlu0 %4600, %v4073
  %v4602 = vpop.permute.xlu0 %4601
  %4604 = vset.pattern.permute.xlu0 4
  %4605 = vperm.xlu0 %4604, %v4076
  %v4606 = vpop.permute.xlu0 %4605
  %4608 = vset.pattern.permute.xlu0 4
  %4609 = vperm.xlu0 %4608, %v4081
  %v4610 = vpop.permute.xlu0 %4609
  %4612 = vset.pattern.permute.xlu0 4
  %4613 = vperm.xlu0 %4612, %v4084
  %v4614 = vpop.permute.xlu0 %4613
  %v4616 = vmul.f32 %v4602, %v559
  %v4617 = vmul.f32 %v4606, %v560
  %v4618 = vmul.f32 %v4610, %v561
  %v4619 = vmul.f32 %v4614, %v562
  %v4620 = vadd.f32 %v4596, %v4616
  %v4621 = vadd.f32 %v4597, %v4617
  %v4622 = vadd.f32 %v4598, %v4618
  %v4623 = vadd.f32 %v4599, %v4619
  %4624 = vset.pattern.permute.xlu0 5
  %4625 = vperm.xlu0 %4624, %v4073
  %v4626 = vpop.permute.xlu0 %4625
  %4628 = vset.pattern.permute.xlu0 5
  %4629 = vperm.xlu0 %4628, %v4076
  %v4630 = vpop.permute.xlu0 %4629
  %4632 = vset.pattern.permute.xlu0 5
  %4633 = vperm.xlu0 %4632, %v4081
  %v4634 = vpop.permute.xlu0 %4633
  %4636 = vset.pattern.permute.xlu0 5
  %4637 = vperm.xlu0 %4636, %v4084
  %v4638 = vpop.permute.xlu0 %4637
  %v4640 = vmul.f32 %v4626, %v563
  %v4641 = vmul.f32 %v4630, %v564
  %v4642 = vmul.f32 %v4634, %v565
  %v4643 = vmul.f32 %v4638, %v566
  %v4644 = vadd.f32 %v4620, %v4640
  %v4645 = vadd.f32 %v4621, %v4641
  %v4646 = vadd.f32 %v4622, %v4642
  %v4647 = vadd.f32 %v4623, %v4643
  %4648 = vset.pattern.permute.xlu0 6
  %4649 = vperm.xlu0 %4648, %v4073
  %v4650 = vpop.permute.xlu0 %4649
  %4652 = vset.pattern.permute.xlu0 6
  %4653 = vperm.xlu0 %4652, %v4076
  %v4654 = vpop.permute.xlu0 %4653
  %4656 = vset.pattern.permute.xlu0 6
  %4657 = vperm.xlu0 %4656, %v4081
  %v4658 = vpop.permute.xlu0 %4657
  %4660 = vset.pattern.permute.xlu0 6
  %4661 = vperm.xlu0 %4660, %v4084
  %v4662 = vpop.permute.xlu0 %4661
  %v4664 = vmul.f32 %v4650, %v567
  %v4665 = vmul.f32 %v4654, %v568
  %v4666 = vmul.f32 %v4658, %v569
  %v4667 = vmul.f32 %v4662, %v570
  %v4668 = vadd.f32 %v4644, %v4664
  %v4669 = vadd.f32 %v4645, %v4665
  %v4670 = vadd.f32 %v4646, %v4666
  %v4671 = vadd.f32 %v4647, %v4667
  %v4672 = vsel %vm377, %v4668, -inf
  %4673 = vmax.xlane.f32.xlu0 %v4672
  %v4674 = vpop.xlane.xlu0 %4673
  %v4675 = vsel %vm377, %v4669, -inf
  %4676 = vmax.xlane.f32.xlu0 %v4675
  %v4677 = vpop.xlane.xlu0 %4676
  %v4678 = vsel %vm377, %v4670, -inf
  %4679 = vmax.xlane.f32.xlu0 %v4678
  %v4680 = vpop.xlane.xlu0 %4679
  %v4681 = vsel %vm377, %v4671, -inf
  %4682 = vmax.xlane.f32.xlu0 %v4681
  %v4683 = vpop.xlane.xlu0 %4682
  %v4684 = vsub.f32 %v4668, %v4674
  %v4685 = vsub.f32 %v4669, %v4677
  %v4686 = vsub.f32 %v4670, %v4680
  %v4687 = vsub.f32 %v4671, %v4683
  %v4688 = vmul.f32 %v4684, 1.442695
  %v4689 = vpow.pop %v4688
  %v4690 = vmul.f32 %v4685, 1.442695
  %v4691 = vpow.pop %v4690
  %v4692 = vmul.f32 %v4686, 1.442695
  %v4693 = vpow.pop %v4692
  %v4694 = vmul.f32 %v4687, 1.442695
  %v4695 = vpow.pop %v4694
  %v4696 = vsel %vm377, %v4689, 0.0
  %4697 = vadd.xlane.f32.xlu0 %v4696
  %v4698 = vpop.xlane.xlu0 %4697
  %v4699 = vsel %vm377, %v4691, 0.0
  %4700 = vadd.xlane.f32.xlu0 %v4699
  %v4701 = vpop.xlane.xlu0 %4700
  %v4702 = vsel %vm377, %v4693, 0.0
  %4703 = vadd.xlane.f32.xlu0 %v4702
  %v4704 = vpop.xlane.xlu0 %4703
  %v4705 = vsel %vm377, %v4695, 0.0
  %4706 = vadd.xlane.f32.xlu0 %v4705
  %v4707 = vpop.xlane.xlu0 %4706
  %v4708 = vrcp.pop %v4698
  %v4709 = vrcp.pop %v4701
  %v4710 = vrcp.pop %v4704
  %v4711 = vrcp.pop %v4707
  %v4712 = vmul.f32 %v4689, %v4708
  %v4713 = vmul.f32 %v4691, %v4709
  %v4714 = vmul.f32 %v4693, %v4710
  %v4715 = vmul.f32 %v4695, %v4711
  %v4716 = vpack.c.bf16 %v4713, %v4712
  %v4717 = vpack.c.bf16 %v4715, %v4714
  %4720 = vrot.lane.b32.xlu0 %v4370, 64
  %v4721 = vpop.permute.xlu0 %4720
  %4722 = vrot.lane.b32.xlu0 %v4371, 64
  %v4723 = vpop.permute.xlu0 %4722
  %v4727 = vsel %vm377, %v4716, 0
  %v4730 = vsel %vm377, %v4717, 0
  %4732 = vmatprep.subr.bf16.mxu0 0
  %4733 = vmatpush1.bf16.msra.mxu0 %v4721
  %4734 = vmatprep.subr.bf16.mxu0 0
  %4735 = vmatpush1.bf16.msra.mxu0 %v4723
  %4736 = vmatprep.subr.bf16.mxu0 0
  %4737 = vmatpush1.bf16.msra.mxu0 0
  %4738 = vmatprep.subr.bf16.mxu0 0
  %4739 = vmatpush1.bf16.msra.mxu0 0
  %4740 = vmatprep.subr.bf16.mxu0 0
  %4741 = vmatpush1.bf16.msra.mxu0 0
  %4742 = vmatprep.subr.bf16.mxu0 0
  %4743 = vmatpush1.bf16.msra.mxu0 0
  %4744 = vmatprep.subr.bf16.mxu0 0
  %4745 = vmatpush1.bf16.msra.mxu0 0
  %4746 = vmatprep.subr.bf16.mxu0 0
  %4747 = vmatpush1.bf16.msra.mxu0 0
  %4748 = vmatprep.subr.bf16.mxu0 0
  %4749 = vmatpush1.bf16.msra.mxu0 0
  %4750 = vmatprep.subr.bf16.mxu0 0
  %4751 = vmatpush1.bf16.msra.mxu0 0
  %4752 = vmatprep.subr.bf16.mxu0 0
  %4753 = vmatpush1.bf16.msra.mxu0 0
  %4754 = vmatprep.subr.bf16.mxu0 0
  %4755 = vmatpush1.bf16.msra.mxu0 0
  %4756 = vmatprep.subr.bf16.mxu0 0
  %4757 = vmatpush1.bf16.msra.mxu0 0
  %4758 = vmatprep.subr.bf16.mxu0 0
  %4759 = vmatpush1.bf16.msra.mxu0 0
  %4760 = vmatprep.subr.bf16.mxu0 0
  %4761 = vmatpush1.bf16.msra.mxu0 0
  %4762 = vmatprep.subr.bf16.mxu0 0
  %4763 = vmatpush1.bf16.msra.mxu0 0
  %4764 = vmatprep.mubr.bf16.mxu0 0
  %4765 = vmatmul.mubr.bf16.gmra.mrb[0].mxu0 %v4727
  %v4766 = vpop.f32.mrb[0].mxu0
  %v4767 = vadd.f32 0.0, %v4766
  %v4768 = vpop.f32.mrb[0].mxu0
  %v4769 = vpop.f32.mrb[0].mxu0
  %v4770 = vadd.f32 0.0, %v4769
  %v4771 = vpop.f32.mrb[0].mxu0
  %4772 = vmatprep.mubr.bf16.mxu0 0
  %4773 = vmatmul.mubr.bf16.gmra.mrb[0].mxu0 %v4730
  %v4774 = vpop.f32.mrb[0].mxu0
  %v4775 = vadd.f32 0.0, %v4774
  %v4776 = vpop.f32.mrb[0].mxu0
  %v4777 = vpop.f32.mrb[0].mxu0
  %v4778 = vadd.f32 0.0, %v4777
  %v4779 = vpop.f32.mrb[0].mxu0
  %4780 = vdwg.mxu0
  %4785 = vrot.lane.b32.xlu0 %v4767, 64
  %v4786 = vpop.permute.xlu0 %4785
  %4787 = vrot.lane.b32.xlu0 %v4770, 64
  %v4788 = vpop.permute.xlu0 %4787
  %4789 = vrot.lane.b32.xlu0 %v4775, 64
  %v4790 = vpop.permute.xlu0 %4789
  %4791 = vrot.lane.b32.xlu0 %v4778, 64
  %v4792 = vpop.permute.xlu0 %4791
  %v4797 = vsel %vm575, %v4413, %v4786
  %v4798 = vsel %vm575, %v4416, %v4788
  %v4799 = vsel %vm575, %v4421, %v4790
  %v4800 = vsel %vm575, %v4424, %v4792
  %v4801 = vpack.c.bf16 %v4798, %v4797
  %v4802 = vpack.c.bf16 %v4800, %v4799
  %v4803 = vld [vmem:[%s4 + $0xc] sm:$0xf]
  %v4804 = vld [vmem:[%s4 + $0x1c] sm:$0xf]
  %v4805 = vld [vmem:[%s4 + $0x2c] sm:$0xf]
  %v4806 = vld [vmem:[%s4 + $0x3c] sm:$0xf]
  %v4807 = vld [vmem:[%s4 + $0x4c] sm:$0xf]
  %v4808 = vld [vmem:[%s4 + $0x5c] sm:$0xf]
  %v4809 = vld [vmem:[%s4 + $0x6c] sm:$0xf]
  %v4810 = vld [vmem:[%s4 + $0x7c] sm:$0xf]
  %v4811 = vld [vmem:[%s4 + $0x8c] sm:$0xf]
  %v4812 = vld [vmem:[%s4 + $0x9c] sm:$0xf]
  %v4813 = vld [vmem:[%s4 + $0xac] sm:$0xf]
  %v4814 = vld [vmem:[%s4 + $0xbc] sm:$0xf]
  %v4815 = vld [vmem:[%s4 + $0xcc] sm:$0xf]
  %v4816 = vld [vmem:[%s4 + $0xdc] sm:$0xf]
  %v4817 = vld [vmem:[%s4 + $0xec] sm:$0xf]
  %v4818 = vld [vmem:[%s4 + $0xfc] sm:$0xf]
  %v4819 = vld [vmem:[%s1 + $0x1d] sm:$0x1]
  %v4821 = vlaneseq
  %v4822 = vshrl.u32 %v4821, 7
  %v4823 = vsub.s32 0, %v4822
  %v4824 = vrot.slane %v4819, %v4823
  %v4842 = vunpack.c.l.b16 %v4803
  %v4843 = vunpack.c.l.b16 %v4804
  %v4844 = vunpack.c.l.b16 %v4805
  %v4845 = vunpack.c.l.b16 %v4806
  %v4846 = vunpack.c.l.b16 %v4807
  %v4847 = vunpack.c.l.b16 %v4808
  %v4848 = vunpack.c.l.b16 %v4809
  %v4849 = vunpack.c.l.b16 %v4810
  %v4850 = vunpack.c.l.b16 %v4811
  %v4851 = vunpack.c.l.b16 %v4812
  %v4852 = vunpack.c.l.b16 %v4813
  %v4853 = vunpack.c.l.b16 %v4814
  %v4854 = vunpack.c.l.b16 %v4815
  %v4855 = vunpack.c.l.b16 %v4816
  %v4856 = vunpack.c.l.b16 %v4817
  %v4857 = vunpack.c.l.b16 %v4818
  %v4858 = vpack.c.b16 %v4843, %v4842
  %v4859 = vpack.c.b16 %v4845, %v4844
  %v4860 = vpack.c.b16 %v4847, %v4846
  %v4861 = vpack.c.b16 %v4849, %v4848
  %v4862 = vpack.c.b16 %v4851, %v4850
  %v4863 = vpack.c.b16 %v4853, %v4852
  %v4864 = vpack.c.b16 %v4855, %v4854
  %v4865 = vpack.c.b16 %v4857, %v4856
  %4874 = vmatprep.subr.bf16.mxu0 0
  %4875 = vmatpush1.bf16.msra.mxu0 %v4858
  %4876 = vmatprep.subr.bf16.mxu0 0
  %4877 = vmatpush1.bf16.msra.mxu0 %v4859
  %4878 = vmatprep.subr.bf16.mxu0 0
  %4879 = vmatpush1.bf16.msra.mxu0 %v4860
  %4880 = vmatprep.subr.bf16.mxu0 0
  %4881 = vmatpush1.bf16.msra.mxu0 %v4861
  %4882 = vmatprep.subr.bf16.mxu0 0
  %4883 = vmatpush1.bf16.msra.mxu0 %v4862
  %4884 = vmatprep.subr.bf16.mxu0 0
  %4885 = vmatpush1.bf16.msra.mxu0 %v4863
  %4886 = vmatprep.subr.bf16.mxu0 0
  %4887 = vmatpush1.bf16.msra.mxu0 %v4864
  %4888 = vmatprep.subr.bf16.mxu0 0
  %4889 = vmatpush1.bf16.msra.mxu0 %v4865
  %4890 = vmatprep.subr.bf16.mxu0 0
  %4891 = vmatpush1.bf16.msra.mxu0 0
  %4892 = vmatprep.subr.bf16.mxu0 0
  %4893 = vmatpush1.bf16.msra.mxu0 0
  %4894 = vmatprep.subr.bf16.mxu0 0
  %4895 = vmatpush1.bf16.msra.mxu0 0
  %4896 = vmatprep.subr.bf16.mxu0 0
  %4897 = vmatpush1.bf16.msra.mxu0 0
  %4898 = vmatprep.subr.bf16.mxu0 0
  %4899 = vmatpush1.bf16.msra.mxu0 0
  %4900 = vmatprep.subr.bf16.mxu0 0
  %4901 = vmatpush1.bf16.msra.mxu0 0
  %4902 = vmatprep.subr.bf16.mxu0 0
  %4903 = vmatpush1.bf16.msra.mxu0 0
  %4904 = vmatprep.subr.bf16.mxu0 0
  %4905 = vmatpush1.bf16.msra.mxu0 0
  %4906 = vmatprep.mubr.bf16.mxu0 0
  %4907 = vmatmul.mubr.bf16.gmra.mrb[0].mxu0 %v4801
  %v4908 = vpop.f32.mrb[0].mxu0
  %v4909 = vadd.f32 %v4824, %v4908
  %v4910 = vpop.f32.mrb[0].mxu0
  %v4911 = vpop.f32.mrb[0].mxu0
  %v4912 = vadd.f32 %v4824, %v4911
  %v4913 = vpop.f32.mrb[0].mxu0
  %4914 = vmatprep.mubr.bf16.mxu0 0
  %4915 = vmatmul.mubr.bf16.gmra.mrb[0].mxu0 %v4802
  %v4916 = vpop.f32.mrb[0].mxu0
  %v4917 = vadd.f32 %v4824, %v4916
  %v4918 = vpop.f32.mrb[0].mxu0
  %v4919 = vpop.f32.mrb[0].mxu0
  %v4920 = vadd.f32 %v4824, %v4919
  %v4921 = vpop.f32.mrb[0].mxu0
  %4922 = vdwg.mxu0
  %v4923 = vld [vmem:[%s1 + $0x1e] sm:$0x1]
  %v4924 = vld [vmem:[%s1 + $0x1f] sm:$0x1]
  %v4925 = vsel %vm377, %v4909, 0.0
  %4926 = vadd.xlane.f32.xlu0 %v4925
  %v4927 = vpop.xlane.xlu0 %4926
  %v4928 = vsel %vm377, %v4912, 0.0
  %4929 = vadd.xlane.f32.xlu0 %v4928
  %v4930 = vpop.xlane.xlu0 %4929
  %v4931 = vsel %vm377, %v4917, 0.0
  %4932 = vadd.xlane.f32.xlu0 %v4931
  %v4933 = vpop.xlane.xlu0 %4932
  %v4934 = vsel %vm377, %v4920, 0.0
  %4935 = vadd.xlane.f32.xlu0 %v4934
  %v4936 = vpop.xlane.xlu0 %4935
  %v4937 = vmul.f32 %v4927, %v1422
  %v4938 = vmul.f32 %v4930, %v1422
  %v4939 = vmul.f32 %v4933, %v1422
  %v4940 = vmul.f32 %v4936, %v1422
  %v4941 = vsub.f32 %v4909, %v4937
  %v4942 = vsub.f32 %v4912, %v4938
  %v4943 = vsub.f32 %v4917, %v4939
  %v4944 = vsub.f32 %v4920, %v4940
  %v4945 = vmul.f32 %v4941, %v4941
  %v4946 = vmul.f32 %v4942, %v4942
  %v4947 = vmul.f32 %v4943, %v4943
  %v4948 = vmul.f32 %v4944, %v4944
  %v4949 = vsel %vm377, %v4945, 0.0
  %4950 = vadd.xlane.f32.xlu0 %v4949
  %v4951 = vpop.xlane.xlu0 %4950
  %v4952 = vsel %vm377, %v4946, 0.0
  %4953 = vadd.xlane.f32.xlu0 %v4952
  %v4954 = vpop.xlane.xlu0 %4953
  %v4955 = vsel %vm377, %v4947, 0.0
  %4956 = vadd.xlane.f32.xlu0 %v4955
  %v4957 = vpop.xlane.xlu0 %4956
  %v4958 = vsel %vm377, %v4948, 0.0
  %4959 = vadd.xlane.f32.xlu0 %v4958
  %v4960 = vpop.xlane.xlu0 %4959
  %v4961 = vmul.f32 %v4951, %v1422
  %v4962 = vmul.f32 %v4954, %v1422
  %v4963 = vmul.f32 %v4957, %v1422
  %v4964 = vmul.f32 %v4960, %v1422
  %v4965 = vadd.f32 %v4961, 1e-05
  %v4966 = vadd.f32 %v4962, 1e-05
  %v4967 = vadd.f32 %v4963, 1e-05
  %v4968 = vadd.f32 %v4964, 1e-05
  %v4969 = vrsqrt.pop %v4965
  %v4970 = vrsqrt.pop %v4966
  %v4971 = vrsqrt.pop %v4967
  %v4972 = vrsqrt.pop %v4968
  %v4973 = vmul.f32 %v4941, %v4969
  %v4974 = vmul.f32 %v4942, %v4970
  %v4975 = vmul.f32 %v4943, %v4971
  %v4976 = vmul.f32 %v4944, %v4972
  %v4978 = vlaneseq
  %v4979 = vshrl.u32 %v4978, 7
  %v4980 = vsub.s32 0, %v4979
  %v4981 = vrot.slane %v4923, %v4980
  %v4983 = vmul.f32 %v4973, %v4981
  %v4984 = vmul.f32 %v4974, %v4981
  %v4985 = vmul.f32 %v4975, %v4981
  %v4986 = vmul.f32 %v4976, %v4981
  %v4988 = vlaneseq
  %v4989 = vshrl.u32 %v4988, 7
  %v4990 = vsub.s32 0, %v4989
  %v4991 = vrot.slane %v4924, %v4990
  %v4993 = vadd.f32 %v4983, %v4991
  %v4994 = vadd.f32 %v4984, %v4991
  %v4995 = vadd.f32 %v4985, %v4991
  %v4996 = vadd.f32 %v4986, %v4991
  %v4997 = vadd.f32 %v4993, %v3829
  %v4998 = vadd.f32 %v4994, %v3830
  %v4999 = vadd.f32 %v4995, %v3831
  %v5000 = vadd.f32 %v4996, %v3832
  %v5001 = vpack.c.bf16 %v4998, %v4997
  %v5002 = vpack.c.bf16 %v5000, %v4999
  %v5003 = vld [vmem:[%s2 + $0x2c] sm:$0xf]
  %v5004 = vld [vmem:[%s2 + $0x60] sm:$0xf]
  %v5005 = vld [vmem:[%s2 + $0x94] sm:$0xf]
  %v5006 = vld [vmem:[%s2 + $0xc8] sm:$0xf]
  %v5007 = vld [vmem:[%s1 + $0x20] sm:$0x1]
  %v5009 = vlaneseq
  %v5010 = vshrl.u32 %v5009, 7
  %v5011 = vsub.s32 0, %v5010
  %v5012 = vrot.slane %v5007, %v5011
  %v5018 = vunpack.c.l.b16 %v5003
  %v5019 = vunpack.c.l.b16 %v5004
  %v5020 = vunpack.c.l.b16 %v5005
  %v5021 = vunpack.c.l.b16 %v5006
  %v5022 = vpack.c.b16 %v5019, %v5018
  %v5023 = vpack.c.b16 %v5021, %v5020
  %v5027 = vsel %vm377, %v5001, 0
  %v5030 = vsel %vm377, %v5002, 0
  %5032 = vmatprep.subr.bf16.mxu0 0
  %5033 = vmatpush1.bf16.msra.mxu0 %v5022
  %5034 = vmatprep.subr.bf16.mxu0 0
  %5035 = vmatpush1.bf16.msra.mxu0 %v5023
  %5036 = vmatprep.subr.bf16.mxu0 0
  %5037 = vmatpush1.bf16.msra.mxu0 0
  %5038 = vmatprep.subr.bf16.mxu0 0
  %5039 = vmatpush1.bf16.msra.mxu0 0
  %5040 = vmatprep.subr.bf16.mxu0 0
  %5041 = vmatpush1.bf16.msra.mxu0 0
  %5042 = vmatprep.subr.bf16.mxu0 0
  %5043 = vmatpush1.bf16.msra.mxu0 0
  %5044 = vmatprep.subr.bf16.mxu0 0
  %5045 = vmatpush1.bf16.msra.mxu0 0
  %5046 = vmatprep.subr.bf16.mxu0 0
  %5047 = vmatpush1.bf16.msra.mxu0 0
  %5048 = vmatprep.subr.bf16.mxu0 0
  %5049 = vmatpush1.bf16.msra.mxu0 0
  %5050 = vmatprep.subr.bf16.mxu0 0
  %5051 = vmatpush1.bf16.msra.mxu0 0
  %5052 = vmatprep.subr.bf16.mxu0 0
  %5053 = vmatpush1.bf16.msra.mxu0 0
  %5054 = vmatprep.subr.bf16.mxu0 0
  %5055 = vmatpush1.bf16.msra.mxu0 0
  %5056 = vmatprep.subr.bf16.mxu0 0
  %5057 = vmatpush1.bf16.msra.mxu0 0
  %5058 = vmatprep.subr.bf16.mxu0 0
  %5059 = vmatpush1.bf16.msra.mxu0 0
  %5060 = vmatprep.subr.bf16.mxu0 0
  %5061 = vmatpush1.bf16.msra.mxu0 0
  %5062 = vmatprep.subr.bf16.mxu0 0
  %5063 = vmatpush1.bf16.msra.mxu0 0
  %5064 = vmatprep.mubr.bf16.mxu0 0
  %5065 = vmatmul.mubr.bf16.gmra.mrb[0].mxu0 %v5027
  %v5066 = vpop.f32.mrb[0].mxu0
  %v5067 = vadd.f32 %v5012, %v5066
  %v5068 = vpop.f32.mrb[0].mxu0
  %v5069 = vpop.f32.mrb[0].mxu0
  %v5070 = vadd.f32 %v5012, %v5069
  %v5071 = vpop.f32.mrb[0].mxu0
  %5072 = vmatprep.mubr.bf16.mxu0 0
  %5073 = vmatmul.mubr.bf16.gmra.mrb[0].mxu0 %v5030
  %v5074 = vpop.f32.mrb[0].mxu0
  %v5075 = vadd.f32 %v5012, %v5074
  %v5076 = vpop.f32.mrb[0].mxu0
  %v5077 = vpop.f32.mrb[0].mxu0
  %v5078 = vadd.f32 %v5012, %v5077
  %v5079 = vpop.f32.mrb[0].mxu0
  %5080 = vdwg.mxu0
  %v5081 = vmul.f32 %v5067, 0.5
  %v5082 = vmul.f32 %v5070, 0.5
  %v5083 = vmul.f32 %v5075, 0.5
  %v5084 = vmul.f32 %v5078, 0.5
  %v5085 = vmul.f32 %v5067, 0.044715
  %v5086 = vmul.f32 %v5070, 0.044715
  %v5087 = vmul.f32 %v5075, 0.044715
  %v5088 = vmul.f32 %v5078, 0.044715
  %v5089 = vmul.f32 %v5085, %v5067
  %v5090 = vmul.f32 %v5086, %v5070
  %v5091 = vmul.f32 %v5087, %v5075
  %v5092 = vmul.f32 %v5088, %v5078
  %v5093 = vmul.f32 %v5089, %v5067
  %v5094 = vmul.f32 %v5090, %v5070
  %v5095 = vmul.f32 %v5091, %v5075
  %v5096 = vmul.f32 %v5092, %v5078
  %v5097 = vadd.f32 %v5067, %v5093
  %v5098 = vadd.f32 %v5070, %v5094
  %v5099 = vadd.f32 %v5075, %v5095
  %v5100 = vadd.f32 %v5078, %v5096
  %v5101 = vmul.f32 %v5097, 0.7978846
  %v5102 = vmul.f32 %v5098, 0.7978846
  %v5103 = vmul.f32 %v5099, 0.7978846
  %v5104 = vmul.f32 %v5100, 0.7978846
  %v5105 = vtanh.pop %v5101
  %v5106 = vtanh.pop %v5102
  %v5107 = vtanh.pop %v5103
  %v5108 = vtanh.pop %v5104
  %v5109 = vadd.f32 %v5105, 1.0
  %v5110 = vadd.f32 %v5106, 1.0
  %v5111 = vadd.f32 %v5107, 1.0
  %v5112 = vadd.f32 %v5108, 1.0
  %v5113 = vmul.f32 %v5081, %v5109
  %v5114 = vmul.f32 %v5082, %v5110
  %v5115 = vmul.f32 %v5083, %v5111
  %v5116 = vmul.f32 %v5084, %v5112
  %v5117 = vpack.c.bf16 %v5114, %v5113
  %v5118 = vpack.c.bf16 %v5116, %v5115
  %v5119 = vld [vmem:[%s3 + $0x1c] sm:$0xf]
  %v5120 = vld [vmem:[%s3 + $0x48] sm:$0xf]
  %v5121 = vld [vmem:[%s3 + $0x74] sm:$0xf]
  %v5122 = vld [vmem:[%s3 + $0xa0] sm:$0xf]
  %v5123 = vld [vmem:[%s3 + $0xcc] sm:$0xf]
  %v5124 = vld [vmem:[%s3 + $0xf8] sm:$0xf]
  %v5125 = vld [vmem:[%s3 + $0x124] sm:$0xf]
  %v5126 = vld [vmem:[%s3 + $0x150] sm:$0xf]
  %v5127 = vld [vmem:[%s1 + $0x21] sm:$0x1]
  %v5129 = vlaneseq
  %v5130 = vshrl.u32 %v5129, 7
  %v5131 = vsub.s32 0, %v5130
  %v5132 = vrot.slane %v5127, %v5131
  %v5142 = vunpack.c.l.b16 %v5119
  %v5143 = vunpack.c.l.b16 %v5120
  %v5144 = vunpack.c.l.b16 %v5121
  %v5145 = vunpack.c.l.b16 %v5122
  %v5146 = vunpack.c.l.b16 %v5123
  %v5147 = vunpack.c.l.b16 %v5124
  %v5148 = vunpack.c.l.b16 %v5125
  %v5149 = vunpack.c.l.b16 %v5126
  %v5150 = vpack.c.b16 %v5143, %v5142
  %v5151 = vpack.c.b16 %v5145, %v5144
  %v5152 = vpack.c.b16 %v5147, %v5146
  %v5153 = vpack.c.b16 %v5149, %v5148
  %v5159 = vsel %vm575, %v5117, 0
  %v5162 = vsel %vm575, %v5118, 0
  %5164 = vmatprep.subr.bf16.mxu0 0
  %5165 = vmatpush1.bf16.msra.mxu0 %v5150
  %5166 = vmatprep.subr.bf16.mxu0 0
  %5167 = vmatpush1.bf16.msra.mxu0 %v5151
  %5168 = vmatprep.subr.bf16.mxu0 0
  %5169 = vmatpush1.bf16.msra.mxu0 %v5152
  %5170 = vmatprep.subr.bf16.mxu0 0
  %5171 = vmatpush1.bf16.msra.mxu0 %v5153
  %5172 = vmatprep.subr.bf16.mxu0 0
  %5173 = vmatpush1.bf16.msra.mxu0 0
  %5174 = vmatprep.subr.bf16.mxu0 0
  %5175 = vmatpush1.bf16.msra.mxu0 0
  %5176 = vmatprep.subr.bf16.mxu0 0
  %5177 = vmatpush1.bf16.msra.mxu0 0
  %5178 = vmatprep.subr.bf16.mxu0 0
  %5179 = vmatpush1.bf16.msra.mxu0 0
  %5180 = vmatprep.subr.bf16.mxu0 0
  %5181 = vmatpush1.bf16.msra.mxu0 0
  %5182 = vmatprep.subr.bf16.mxu0 0
  %5183 = vmatpush1.bf16.msra.mxu0 0
  %5184 = vmatprep.subr.bf16.mxu0 0
  %5185 = vmatpush1.bf16.msra.mxu0 0
  %5186 = vmatprep.subr.bf16.mxu0 0
  %5187 = vmatpush1.bf16.msra.mxu0 0
  %5188 = vmatprep.subr.bf16.mxu0 0
  %5189 = vmatpush1.bf16.msra.mxu0 0
  %5190 = vmatprep.subr.bf16.mxu0 0
  %5191 = vmatpush1.bf16.msra.mxu0 0
  %5192 = vmatprep.subr.bf16.mxu0 0
  %5193 = vmatpush1.bf16.msra.mxu0 0
  %5194 = vmatprep.subr.bf16.mxu0 0
  %5195 = vmatpush1.bf16.msra.mxu0 0
  %5196 = vmatprep.mubr.bf16.mxu0 0
  %5197 = vmatmul.mubr.bf16.gmra.mrb[0].mxu0 %v5159
  %v5198 = vpop.f32.mrb[0].mxu0
  %v5199 = vadd.f32 %v5132, %v5198
  %v5200 = vpop.f32.mrb[0].mxu0
  %v5201 = vpop.f32.mrb[0].mxu0
  %v5202 = vadd.f32 %v5132, %v5201
  %v5203 = vpop.f32.mrb[0].mxu0
  %5204 = vmatprep.mubr.bf16.mxu0 0
  %5205 = vmatmul.mubr.bf16.gmra.mrb[0].mxu0 %v5162
  %v5206 = vpop.f32.mrb[0].mxu0
  %v5207 = vadd.f32 %v5132, %v5206
  %v5208 = vpop.f32.mrb[0].mxu0
  %v5209 = vpop.f32.mrb[0].mxu0
  %v5210 = vadd.f32 %v5132, %v5209
  %v5211 = vpop.f32.mrb[0].mxu0
  %5212 = vdwg.mxu0
  %v5213 = vld [vmem:[%s1 + $0x22] sm:$0x1]
  %v5214 = vld [vmem:[%s1 + $0x23] sm:$0x1]
  %v5215 = vsel %vm377, %v5199, 0.0
  %5216 = vadd.xlane.f32.xlu0 %v5215
  %v5217 = vpop.xlane.xlu0 %5216
  %v5218 = vsel %vm377, %v5202, 0.0
  %5219 = vadd.xlane.f32.xlu0 %v5218
  %v5220 = vpop.xlane.xlu0 %5219
  %v5221 = vsel %vm377, %v5207, 0.0
  %5222 = vadd.xlane.f32.xlu0 %v5221
  %v5223 = vpop.xlane.xlu0 %5222
  %v5224 = vsel %vm377, %v5210, 0.0
  %5225 = vadd.xlane.f32.xlu0 %v5224
  %v5226 = vpop.xlane.xlu0 %5225
  %v5227 = vmul.f32 %v5217, %v1422
  %v5228 = vmul.f32 %v5220, %v1422
  %v5229 = vmul.f32 %v5223, %v1422
  %v5230 = vmul.f32 %v5226, %v1422
  %v5231 = vsub.f32 %v5199, %v5227
  %v5232 = vsub.f32 %v5202, %v5228
  %v5233 = vsub.f32 %v5207, %v5229
  %v5234 = vsub.f32 %v5210, %v5230
  %v5235 = vmul.f32 %v5231, %v5231
  %v5236 = vmul.f32 %v5232, %v5232
  %v5237 = vmul.f32 %v5233, %v5233
  %v5238 = vmul.f32 %v5234, %v5234
  %v5239 = vsel %vm377, %v5235, 0.0
  %5240 = vadd.xlane.f32.xlu0 %v5239
  %v5241 = vpop.xlane.xlu0 %5240
  %v5242 = vsel %vm377, %v5236, 0.0
  %5243 = vadd.xlane.f32.xlu0 %v5242
  %v5244 = vpop.xlane.xlu0 %5243
  %v5245 = vsel %vm377, %v5237, 0.0
  %5246 = vadd.xlane.f32.xlu0 %v5245
  %v5247 = vpop.xlane.xlu0 %5246
  %v5248 = vsel %vm377, %v5238, 0.0
  %5249 = vadd.xlane.f32.xlu0 %v5248
  %v5250 = vpop.xlane.xlu0 %5249
  %v5251 = vmul.f32 %v5241, %v1422
  %v5252 = vmul.f32 %v5244, %v1422
  %v5253 = vmul.f32 %v5247, %v1422
  %v5254 = vmul.f32 %v5250, %v1422
  %v5255 = vadd.f32 %v5251, 1e-05
  %v5256 = vadd.f32 %v5252, 1e-05
  %v5257 = vadd.f32 %v5253, 1e-05
  %v5258 = vadd.f32 %v5254, 1e-05
  %v5259 = vrsqrt.pop %v5255
  %v5260 = vrsqrt.pop %v5256
  %v5261 = vrsqrt.pop %v5257
  %v5262 = vrsqrt.pop %v5258
  %v5263 = vmul.f32 %v5231, %v5259
  %v5264 = vmul.f32 %v5232, %v5260
  %v5265 = vmul.f32 %v5233, %v5261
  %v5266 = vmul.f32 %v5234, %v5262
  %v5268 = vlaneseq
  %v5269 = vshrl.u32 %v5268, 7
  %v5270 = vsub.s32 0, %v5269
  %v5271 = vrot.slane %v5213, %v5270
  %v5273 = vmul.f32 %v5263, %v5271
  %v5274 = vmul.f32 %v5264, %v5271
  %v5275 = vmul.f32 %v5265, %v5271
  %v5276 = vmul.f32 %v5266, %v5271
  %v5278 = vlaneseq
  %v5279 = vshrl.u32 %v5278, 7
  %v5280 = vsub.s32 0, %v5279
  %v5281 = vrot.slane %v5214, %v5280
  %v5283 = vadd.f32 %v5273, %v5281
  %v5284 = vadd.f32 %v5274, %v5281
  %v5285 = vadd.f32 %v5275, %v5281
  %v5286 = vadd.f32 %v5276, %v5281
  %v5287 = vadd.f32 %v5283, %v4997
  %v5288 = vadd.f32 %v5284, %v4998
  %v5289 = vadd.f32 %v5285, %v4999
  %v5290 = vadd.f32 %v5286, %v5000
  %v5293 = vrot.slane %v5287, 2
  %v5294 = vrot.slane %v5288, 2
  %v5295 = vsel %vm1779, %v5293, %v5294
  %v5301 = vrot.slane %v5289, 2
  %v5302 = vrot.slane %v5290, 2
  %v5303 = vsel %vm1779, %v5301, %v5302
  %v5307 = vsel %vm1779, %v5294, %v5293
  %v5308 = vsel %vm1779, %v5302, %v5301
  %v5309 = vpack.c.bf16 %v5307, %v5295
  %v5310 = vpack.c.bf16 %v5308, %v5303
  %v5311 = vld [vmem:[%s2 + $0x30] sm:$0xf]
  %v5312 = vld [vmem:[%s2 + $0x64] sm:$0xf]
  %v5313 = vld [vmem:[%s2 + $0x98] sm:$0xf]
  %v5314 = vld [vmem:[%s2 + $0xcc] sm:$0xf]
  %v5319 = vunpack.c.l.b16 %v5311
  %v5320 = vunpack.c.l.b16 %v5312
  %v5321 = vunpack.c.l.b16 %v5313
  %v5322 = vunpack.c.l.b16 %v5314
  %v5323 = vpack.c.b16 %v5320, %v5319
  %v5324 = vpack.c.b16 %v5322, %v5321
  %v5328 = vsel %vm377, %v5309, 0
  %v5331 = vsel %vm377, %v5310, 0
  %5333 = vmatprep.subr.bf16.mxu0 0
  %5334 = vmatpush1.bf16.msra.mxu0 %v5323
  %5335 = vmatprep.subr.bf16.mxu0 0
  %5336 = vmatpush1.bf16.msra.mxu0 %v5324
  %5337 = vmatprep.subr.bf16.mxu0 0
  %5338 = vmatpush1.bf16.msra.mxu0 0
  %5339 = vmatprep.subr.bf16.mxu0 0
  %5340 = vmatpush1.bf16.msra.mxu0 0
  %5341 = vmatprep.subr.bf16.mxu0 0
  %5342 = vmatpush1.bf16.msra.mxu0 0
  %5343 = vmatprep.subr.bf16.mxu0 0
  %5344 = vmatpush1.bf16.msra.mxu0 0
  %5345 = vmatprep.subr.bf16.mxu0 0
  %5346 = vmatpush1.bf16.msra.mxu0 0
  %5347 = vmatprep.subr.bf16.mxu0 0
  %5348 = vmatpush1.bf16.msra.mxu0 0
  %5349 = vmatprep.subr.bf16.mxu0 0
  %5350 = vmatpush1.bf16.msra.mxu0 0
  %5351 = vmatprep.subr.bf16.mxu0 0
  %5352 = vmatpush1.bf16.msra.mxu0 0
  %5353 = vmatprep.subr.bf16.mxu0 0
  %5354 = vmatpush1.bf16.msra.mxu0 0
  %5355 = vmatprep.subr.bf16.mxu0 0
  %5356 = vmatpush1.bf16.msra.mxu0 0
  %5357 = vmatprep.subr.bf16.mxu0 0
  %5358 = vmatpush1.bf16.msra.mxu0 0
  %5359 = vmatprep.subr.bf16.mxu0 0
  %5360 = vmatpush1.bf16.msra.mxu0 0
  %5361 = vmatprep.subr.bf16.mxu0 0
  %5362 = vmatpush1.bf16.msra.mxu0 0
  %5363 = vmatprep.subr.bf16.mxu0 0
  %5364 = vmatpush1.bf16.msra.mxu0 0
  %5365 = vmatprep.mubr.bf16.mxu0 0
  %5366 = vmatmul.mubr.bf16.gmra.mrb[0].mxu0 %v5328
  %v5367 = vpop.f32.mrb[0].mxu0
  %v5368 = vadd.f32 0.0, %v5367
  %v5369 = vpop.f32.mrb[0].mxu0
  %v5370 = vpop.f32.mrb[0].mxu0
  %v5371 = vadd.f32 0.0, %v5370
  %v5372 = vpop.f32.mrb[0].mxu0
  %5373 = vmatprep.mubr.bf16.mxu0 0
  %5374 = vmatmul.mubr.bf16.gmra.mrb[0].mxu0 %v5331
  %v5375 = vpop.f32.mrb[0].mxu0
  %v5376 = vadd.f32 0.0, %v5375
  %v5377 = vpop.f32.mrb[0].mxu0
  %v5378 = vpop.f32.mrb[0].mxu0
  %v5379 = vadd.f32 0.0, %v5378
  %v5380 = vpop.f32.mrb[0].mxu0
  %5381 = vdwg.mxu0
  %5382 = vst.msk [vmem:[%s11] sm:$0xff] %vm92, %v5368
  %5383 = vst.msk [vmem:[%s11 + $0x8] sm:$0xff] %vm92, %v5371
  %5384 = vst.msk [vmem:[%s11 + $0x10] sm:$0xff] %vm92, %v5376
  %5385 = vst.msk [vmem:[%s11 + $0x18] sm:$0xff] %vm92, %v5379
  // Predicated region
  $region46: #{forward.1} parent=0 // pred_check
    _
  $region47: #{forward.1} parent=0 // pred_check_branch
    %5387 = sbr.rel (0) target = $region49
  $region48: #{forward.1} parent=0 // pred_region
    _
  $region49: #{forward.1} parent=0 // pred_fallthru
    _
  // Predicated region
  $region50: #{forward.1} parent=0 // pred_check
    _
  $region51: #{forward.1} parent=0 // pred_check_branch
    %5389 = sbr.rel (0) target = $region53
  $region52: #{forward.1} parent=0 // pred_region
    _
  $region53: #{forward.1} parent=0 // pred_fallthru
    _

</llo_original>
